<compile_context>
chip_gen: v7x
topology: tpu7x:2x2x1
jax: 0.10.0
libtpu: 0.0.40
codegen_flags: <defaults>
</compile_context>

<pallas_src>
import functools
import math

import jax
import jax.numpy as jnp
from jax.experimental import pallas as pl
from jax.experimental.pallas import tpu as pltpu

_LANE = 128
_MIB = 1024 * 1024
# Keep X fully VMEM-resident when its (double-buffered) footprint is below this.
_X_RESIDENT_MAX_BYTES = 12 * _MIB


def _round_up(v, m):
    return (v + m - 1) // m * m


# ----------------------------------------------------------------------------
# One WeightedSAGEConv layer as a single pallas_call, tiled over (row_tiles, k_tiles):
#   acc[i]  = sum_k A[i, k] @ X[k]                 (f32 VMEM accumulator)
#   out[i]  = acc[i] @ Wl^T + X[i] @ Wr^T          (two MXU dots, optional ReLU)
# Row axis "parallel" (megacore sharding on v7x), reduction axis last, "arbitrary".
# ----------------------------------------------------------------------------
def _sage_layer(a, x, wl_t, wr_t, *, apply_relu, out_dtype, tm, tk):
    n_pad = a.shape[0]
    c_pad = x.shape[1]
    cout_pad = wl_t.shape[1]
    grid = (n_pad // tm, n_pad // tk)

    x_resident = 2 * n_pad * c_pad * x.dtype.itemsize <= _X_RESIDENT_MAX_BYTES

    if x_resident:
        def kernel(a_ref, x_ref, wl_ref, wr_ref, o_ref, acc_ref):
            i = pl.program_id(0)
            k = pl.program_id(1)

            @pl.when(k == 0)
            def _():
                acc_ref[...] = jnp.zeros_like(acc_ref)

            xk = x_ref[pl.ds(pl.multiple_of(k * tk, tk), tk), :]
            acc_ref[...] += jnp.dot(a_ref[...], xk,
                                    preferred_element_type=jnp.float32)

            @pl.when(k == pl.num_programs(1) - 1)
            def _():
                xi = x_ref[pl.ds(pl.multiple_of(i * tm, tm), tm), :]
                out = (jnp.dot(acc_ref[...], wl_ref[...],
                               preferred_element_type=jnp.float32)
                       + jnp.dot(xi, wr_ref[...],
                                 preferred_element_type=jnp.float32))
                if apply_relu:
                    out = jnp.maximum(out, 0.0)
                o_ref[...] = out.astype(o_ref.dtype)

        in_specs = [
            pl.BlockSpec((tm, tk), lambda i, k: (i, k)),           # A tile (streamed, bf16)
            pl.BlockSpec((n_pad, c_pad), lambda i, k: (0, 0)),     # X resident (bf16)
            pl.BlockSpec((c_pad, cout_pad), lambda i, k: (0, 0)),  # Wl^T resident
            pl.BlockSpec((c_pad, cout_pad), lambda i, k: (0, 0)),  # Wr^T resident
        ]
        operands = (a, x, wl_t, wr_t)
    else:
        def kernel(a_ref, xk_ref, xi_ref, wl_ref, wr_ref, o_ref, acc_ref):
            k = pl.program_id(1)

            @pl.when(k == 0)
            def _():
                acc_ref[...] = jnp.zeros_like(acc_ref)

            acc_ref[...] += jnp.dot(a_ref[...], xk_ref[...],
                                    preferred_element_type=jnp.float32)

            @pl.when(k == pl.num_programs(1) - 1)
            def _():
                out = (jnp.dot(acc_ref[...], wl_ref[...],
                               preferred_element_type=jnp.float32)
                       + jnp.dot(xi_ref[...], wr_ref[...],
                                 preferred_element_type=jnp.float32))
                if apply_relu:
                    out = jnp.maximum(out, 0.0)
                o_ref[...] = out.astype(o_ref.dtype)

        in_specs = [
            pl.BlockSpec((tm, tk), lambda i, k: (i, k)),           # A tile
            pl.BlockSpec((tk, c_pad), lambda i, k: (k, 0)),        # X rows (agg source)
            pl.BlockSpec((tm, c_pad), lambda i, k: (i, 0)),        # X rows (self term)
            pl.BlockSpec((c_pad, cout_pad), lambda i, k: (0, 0)),  # Wl^T resident
            pl.BlockSpec((c_pad, cout_pad), lambda i, k: (0, 0)),  # Wr^T resident
        ]
        operands = (a, x, x, wl_t, wr_t)

    # VMEM budget derived from the tile plan (double-buffered inputs/outputs + scratch),
    # clamped to a range valid on v7x (64 MiB physical) while using v5e/v6e headroom.
    a_bytes = 2 * tm * tk * a.dtype.itemsize
    x_bytes = (2 * n_pad * c_pad if x_resident else 2 * (tm + tk) * c_pad) * x.dtype.itemsize
    w_bytes = 2 * 2 * c_pad * cout_pad * 4
    o_bytes = 2 * tm * cout_pad * jnp.dtype(out_dtype).itemsize
    acc_bytes = tm * c_pad * 4
    vmem_limit = int(min(max(a_bytes + x_bytes + w_bytes + o_bytes + acc_bytes + 8 * _MIB,
                             32 * _MIB), 56 * _MIB))

    cost = pl.CostEstimate(
        flops=2 * n_pad * n_pad * c_pad + 2 * 2 * n_pad * c_pad * cout_pad,
        transcendentals=0,
        bytes_accessed=(n_pad * n_pad * a.dtype.itemsize
                        + n_pad * c_pad * x.dtype.itemsize
                        + 2 * c_pad * cout_pad * 4
                        + n_pad * cout_pad * jnp.dtype(out_dtype).itemsize),
    )

    return pl.pallas_call(
        kernel,
        out_shape=jax.ShapeDtypeStruct((n_pad, cout_pad), out_dtype),
        grid_spec=pltpu.PrefetchScalarGridSpec(
            num_scalar_prefetch=0,
            grid=grid,
            in_specs=in_specs,
            out_specs=pl.BlockSpec((tm, cout_pad), lambda i, k: (i, 0)),
            scratch_shapes=[pltpu.VMEM((tm, c_pad), jnp.float32)],
        ),
        compiler_params=pltpu.CompilerParams(
            dimension_semantics=("parallel", "arbitrary"),
            vmem_limit_bytes=vmem_limit,
        ),
        cost_estimate=cost,
    )(*operands)


# ----------------------------------------------------------------------------
# Wrapper: pad to lane-dense / tile-aligned shapes, pack weights, run 2 layers.
# ----------------------------------------------------------------------------
def _pack_weight(w, c_pad, cout_pad):
    """Pre-transpose + zero-pad nn.Linear weight [out, in] -> [c_pad, cout_pad] f32."""
    cout, cin = w.shape
    return jnp.pad(w.T.astype(jnp.float32), ((0, c_pad - cin), (0, cout_pad - cout)))


@functools.partial(jax.jit, static_argnames=("tm", "tk"))
def graphsage_pallas(a, x, w1l, w1r, w2l, w2r, *, tm=512, tk=512):
    n, cin = x.shape
    hid = w1l.shape[0]
    cout = w2l.shape[0]

    cin_p = _round_up(cin, _LANE)
    hid_p = _round_up(hid, _LANE)
    cout_p = _round_up(cout, _LANE)

    # Clamp tiles to the (128-aligned) problem size, then pad N so both tiles divide it.
    # (On v7x prefer tm giving an even row-tile count so both TensorCores stay busy.)
    n_128 = _round_up(n, _LANE)
    tm_eff = min(tm, n_128)
    tk_eff = min(tk, n_128)
    n_pad = _round_up(n, math.lcm(tm_eff, tk_eff))

    # bf16 for the streamed N^2 operand A and for node features/hidden activations;
    # all accumulation stays f32 inside the kernel.
    a_pad = jnp.pad(a.astype(jnp.bfloat16), ((0, n_pad - n), (0, n_pad - n)))
    x_pad = jnp.pad(x.astype(jnp.bfloat16), ((0, n_pad - n), (0, cin_p - cin)))

    w1l_t = _pack_weight(w1l, cin_p, hid_p)
    w1r_t = _pack_weight(w1r, cin_p, hid_p)
    w2l_t = _pack_weight(w2l, hid_p, cout_p)
    w2r_t = _pack_weight(w2r, hid_p, cout_p)

    # layer 1: WeightedSAGEConv(in -> hidden) + ReLU (bf16 output feeds layer 2)
    h = _sage_layer(a_pad, x_pad, w1l_t, w1r_t, apply_relu=True,
                    out_dtype=jnp.bfloat16, tm=tm_eff, tk=tk_eff)
    # dropout(p=0.5, training=False) -> identity (eval semantics)
    # layer 2: WeightedSAGEConv(hidden -> out)
    out = _sage_layer(a_pad, h, w2l_t, w2r_t, apply_relu=False,
                      out_dtype=jnp.float32, tm=tm_eff, tk=tk_eff)
    return out[:n, :cout]


# ----------------------------------------------------------------------------
# Plain-JAX glue: dense aggregation matrix matching WeightedSAGEConv semantics:
#   deg[i] = #edges with dst == i
#   w_e'   = w_e / clamp(deg[dst_e], 1e-12)     (normalize=True)
#   out[i] = mean over incoming edges of w_e' * x[src_e]  (aggr='mean', 0 msgs -> 0)
# Net effect (as in the PyTorch code): 1/deg^2 scaling.
# ----------------------------------------------------------------------------
def build_aggregation_matrix(edge_index, edge_weight, num_nodes):
    src = edge_index[0]
    dst = edge_index[1]
    if edge_weight is None:
        edge_weight = jnp.ones((edge_index.shape[1],), dtype=jnp.float32)

    deg = jnp.zeros((num_nodes,), jnp.float32).at[dst].add(1.0)
    w_norm = edge_weight / jnp.maximum(deg, 1e-12)[dst]          # normalize=True clamp
    a = jnp.zeros((num_nodes, num_nodes), jnp.float32).at[dst, src].add(w_norm)
    a = a / jnp.maximum(deg, 1.0)[:, None]                       # mean over messages (0 -> 0)
    return a


# ----------------------------------------------------------------------------
# Pure-JAX f32 reference (mirrors the PyTorch forward) for the correctness check.
# ----------------------------------------------------------------------------
def graphsage_ref(a, x, w1l, w1r, w2l, w2r):
    h = jnp.maximum(a @ x @ w1l.T + x @ w1r.T, 0.0)
    return a @ h @ w2l.T + h @ w2r.T


if __name__ == "__main__":
    num_nodes = 1300          # pads to 1536 -> grid (3, 3) with 512x512 tiles
    in_channels = 12
    hidden_channels = 40
    out_channels = 24
    num_edges = 6000

    key = jax.random.PRNGKey(0)
    k_x, k_src, k_dst, k_ew, k_w1l, k_w1r, k_w2l, k_w2r = jax.random.split(key, 8)

    x = jax.random.normal(k_x, (num_nodes, in_channels), jnp.float32)
    src = jax.random.randint(k_src, (num_edges,), 0, num_nodes)
    dst = jax.random.randint(k_dst, (num_edges,), 0, num_nodes)
    edge_index = jnp.stack([src, dst], axis=0)                       # [2, E]
    edge_weight = jax.random.uniform(k_ew, (num_edges,), jnp.float32) + 0.1

    # nn.Linear(in, out, bias=False) weights: shape [out, in]
    def init_w(k, fan_out, fan_in):
        bound = 1.0 / jnp.sqrt(float(fan_in))
        return jax.random.uniform(k, (fan_out, fan_in), jnp.float32, -bound, bound)

    w1l = init_w(k_w1l, hidden_channels, in_channels)
    w1r = init_w(k_w1r, hidden_channels, in_channels)
    w2l = init_w(k_w2l, out_channels, hidden_channels)
    w2r = init_w(k_w2r, out_channels, hidden_channels)

    a = build_aggregation_matrix(edge_index, edge_weight, num_nodes)

    out = graphsage_pallas(a, x, w1l, w1r, w2l, w2r)
    out = jax.block_until_ready(out)

    ref = graphsage_ref(a, x, w1l, w1r, w2l, w2r)
    assert out.shape == (num_nodes, out_channels)
    # bf16 streamed operands (f32 accumulation) -> loosened tolerance vs f32 reference.
    assert jnp.allclose(out, ref, atol=5e-2, rtol=5e-2), float(jnp.max(jnp.abs(out - ref)))

    print("KERNEL_OK")
</pallas_src>

<mosaic_0001>
module attributes {stable_mosaic.version = 11 : i64} {
  func.func @kernel(%arg0: i32, %arg1: i32, %arg2: memref<512x512xbf16, #tpu.memory_space<vmem>>, %arg3: memref<1536x128xbf16, #tpu.memory_space<vmem>>, %arg4: memref<128x128xf32, #tpu.memory_space<vmem>>, %arg5: memref<128x128xf32, #tpu.memory_space<vmem>>, %arg6: memref<512x128xbf16, #tpu.memory_space<vmem>>, %arg7: memref<512x128xf32, #tpu.memory_space<vmem>>) attributes {dimension_semantics = [#tpu.dimension_semantics<parallel>, #tpu.dimension_semantics<arbitrary>], iteration_bounds = array<i64: 3, 3>, scalar_prefetch = 0 : i64, scratch_operands = 1 : i64, tpu.core_type = #tpu.core_type<tc>, window_params = [{transform_indices = @transform_0, window_bounds = array<i64: 512, 512>}, {pipeline_mode = #tpu.pipeline_mode<synchronous>, transform_indices = @transform_1, window_bounds = array<i64: 1536, 128>}, {pipeline_mode = #tpu.pipeline_mode<synchronous>, transform_indices = @transform_2, window_bounds = array<i64: 128, 128>}, {pipeline_mode = #tpu.pipeline_mode<synchronous>, transform_indices = @transform_3, window_bounds = array<i64: 128, 128>}, {transform_indices = @transform_4, window_bounds = array<i64: 512, 128>}]} {
    %c0_i32 = arith.constant 0 : i32
    %0 = arith.cmpi eq, %arg1, %c0_i32 : i32
    %1 = arith.extui %0 : i1 to i32
    %c0_i32_0 = arith.constant 0 : i32
    %2 = arith.cmpi ne, %1, %c0_i32_0 : i32
    scf.if %2 {
      %cst_8 = arith.constant 0.000000e+00 : f32
      %15 = vector.broadcast %cst_8 : f32 to vector<512x128xf32>
      %c0_9 = arith.constant 0 : index
      %c0_10 = arith.constant 0 : index
      %16 = vector.load %arg7[%c0_9, %c0_10] : memref<512x128xf32, #tpu.memory_space<vmem>>, vector<512x128xf32>
      tpu.vector_store %arg7[%c0_9, %c0_10], %15 {strides = array<i32>} : memref<512x128xf32, #tpu.memory_space<vmem>>, vector<512x128xf32>,
    } else {
    }
    %c512_i32 = arith.constant 512 : i32
    %3 = arith.muli %arg1, %c512_i32 : i32
    %4 = tpu.assume_multiple %3, 512 : i32
    %5 = arith.index_cast %4 : i32 to index
    %c0 = arith.constant 0 : index
    %6 = vector.load %arg3[%5, %c0] : memref<1536x128xbf16, #tpu.memory_space<vmem>>, vector<512x128xbf16>
    %c0_1 = arith.constant 0 : index
    %c0_2 = arith.constant 0 : index
    %7 = vector.load %arg7[%c0_1, %c0_2] : memref<512x128xf32, #tpu.memory_space<vmem>>, vector<512x128xf32>
    %c0_3 = arith.constant 0 : index
    %c0_4 = arith.constant 0 : index
    %8 = vector.load %arg2[%c0_3, %c0_4] : memref<512x512xbf16, #tpu.memory_space<vmem>>, vector<512x512xbf16>
    %cst = arith.constant dense<0.000000e+00> : vector<512x128xf32>
    %9 = tpu.matmul %8, %6, %cst {dimension_numbers = #tpu.dot_dimension_numbers<[1], [0], [0], [1], [0, 0, 1, 1], [], []>} : vector<512x512xbf16>, vector<512x128xbf16>, vector<512x128xf32> -> vector<512x128xf32>
    %10 = arith.addf %7, %9 : vector<512x128xf32>
    %c0_5 = arith.constant 0 : index
    %c0_6 = arith.constant 0 : index
    %11 = vector.load %arg7[%c0_5, %c0_6] : memref<512x128xf32, #tpu.memory_space<vmem>>, vector<512x128xf32>
    tpu.vector_store %arg7[%c0_5, %c0_6], %10 {strides = array<i32>} : memref<512x128xf32, #tpu.memory_space<vmem>>, vector<512x128xf32>,
    %c2_i32 = arith.constant 2 : i32
    %12 = arith.cmpi eq, %arg1, %c2_i32 : i32
    %13 = arith.extui %12 : i1 to i32
    %c0_i32_7 = arith.constant 0 : i32
    %14 = arith.cmpi ne, %13, %c0_i32_7 : i32
    scf.if %14 {
      %c512_i32_8 = arith.constant 512 : i32
      %15 = arith.muli %arg0, %c512_i32_8 : i32
      %16 = tpu.assume_multiple %15, 512 : i32
      %17 = arith.index_cast %16 : i32 to index
      %c0_9 = arith.constant 0 : index
      %18 = vector.load %arg3[%17, %c0_9] : memref<1536x128xbf16, #tpu.memory_space<vmem>>, vector<512x128xbf16>
      %c0_10 = arith.constant 0 : index
      %c0_11 = arith.constant 0 : index
      %19 = vector.load %arg7[%c0_10, %c0_11] : memref<512x128xf32, #tpu.memory_space<vmem>>, vector<512x128xf32>
      %c0_12 = arith.constant 0 : index
      %c0_13 = arith.constant 0 : index
      %20 = vector.load %arg4[%c0_12, %c0_13] : memref<128x128xf32, #tpu.memory_space<vmem>>, vector<128x128xf32>
      %cst_14 = arith.constant dense<0.000000e+00> : vector<512x128xf32>
      %21 = tpu.matmul %19, %20, %cst_14 {dimension_numbers = #tpu.dot_dimension_numbers<[1], [0], [0], [1], [0, 0, 1, 1], [], []>} : vector<512x128xf32>, vector<128x128xf32>, vector<512x128xf32> -> vector<512x128xf32>
      %c0_15 = arith.constant 0 : index
      %c0_16 = arith.constant 0 : index
      %22 = vector.load %arg5[%c0_15, %c0_16] : memref<128x128xf32, #tpu.memory_space<vmem>>, vector<128x128xf32>
      %cst_17 = arith.constant dense<0.000000e+00> : vector<512x128xf32>
      %23 = tpu.matmul %18, %22, %cst_17 {dimension_numbers = #tpu.dot_dimension_numbers<[1], [0], [0], [1], [0, 0, 1, 1], [], []>} : vector<512x128xbf16>, vector<128x128xf32>, vector<512x128xf32> -> vector<512x128xf32>
      %24 = arith.addf %21, %23 : vector<512x128xf32>
      %cst_18 = arith.constant 0.000000e+00 : f32
      %25 = vector.broadcast %cst_18 : f32 to vector<512x128xf32>
      %26 = arith.maximumf %24, %25 : vector<512x128xf32>
      %27 = arith.truncf %26 : vector<512x128xf32> to vector<512x128xbf16>
      %c0_19 = arith.constant 0 : index
      %c0_20 = arith.constant 0 : index
      %28 = vector.load %arg6[%c0_19, %c0_20] : memref<512x128xbf16, #tpu.memory_space<vmem>>, vector<512x128xbf16>
      tpu.vector_store %arg6[%c0_19, %c0_20], %27 {strides = array<i32>} : memref<512x128xbf16, #tpu.memory_space<vmem>>, vector<512x128xbf16>,
    } else {
    }
    return
  }
  func.func @transform_0(%arg0: i32, %arg1: i32) -> (i32, i32) {
    %c0_i32 = arith.constant 0 : i32
    return %arg0, %arg1 : i32, i32
  }
  func.func @transform_1(%arg0: i32, %arg1: i32) -> (i32, i32) {
    %c0_i32 = arith.constant 0 : i32
    %c0_i32_0 = arith.constant 0 : i32
    %c0_i32_1 = arith.constant 0 : i32
    return %c0_i32, %c0_i32_0 : i32, i32
  }
  func.func @transform_2(%arg0: i32, %arg1: i32) -> (i32, i32) {
    %c0_i32 = arith.constant 0 : i32
    %c0_i32_0 = arith.constant 0 : i32
    %c0_i32_1 = arith.constant 0 : i32
    return %c0_i32, %c0_i32_0 : i32, i32
  }
  func.func @transform_3(%arg0: i32, %arg1: i32) -> (i32, i32) {
    %c0_i32 = arith.constant 0 : i32
    %c0_i32_0 = arith.constant 0 : i32
    %c0_i32_1 = arith.constant 0 : i32
    return %c0_i32, %c0_i32_0 : i32, i32
  }
  func.func @transform_4(%arg0: i32, %arg1: i32) -> (i32, i32) {
    %c0_i32 = arith.constant 0 : i32
    %c0_i32_0 = arith.constant 0 : i32
    return %arg0, %c0_i32 : i32, i32
  }
}

module attributes {stable_mosaic.version = 11 : i64} {
  func.func @kernel(%arg0: i32, %arg1: i32, %arg2: memref<512x512xbf16, #tpu.memory_space<vmem>>, %arg3: memref<1536x128xbf16, #tpu.memory_space<vmem>>, %arg4: memref<128x128xf32, #tpu.memory_space<vmem>>, %arg5: memref<128x128xf32, #tpu.memory_space<vmem>>, %arg6: memref<512x128xf32, #tpu.memory_space<vmem>>, %arg7: memref<512x128xf32, #tpu.memory_space<vmem>>) attributes {dimension_semantics = [#tpu.dimension_semantics<parallel>, #tpu.dimension_semantics<arbitrary>], iteration_bounds = array<i64: 3, 3>, scalar_prefetch = 0 : i64, scratch_operands = 1 : i64, tpu.core_type = #tpu.core_type<tc>, window_params = [{transform_indices = @transform_0, window_bounds = array<i64: 512, 512>}, {pipeline_mode = #tpu.pipeline_mode<synchronous>, transform_indices = @transform_1, window_bounds = array<i64: 1536, 128>}, {pipeline_mode = #tpu.pipeline_mode<synchronous>, transform_indices = @transform_2, window_bounds = array<i64: 128, 128>}, {pipeline_mode = #tpu.pipeline_mode<synchronous>, transform_indices = @transform_3, window_bounds = array<i64: 128, 128>}, {transform_indices = @transform_4, window_bounds = array<i64: 512, 128>}]} {
    %c0_i32 = arith.constant 0 : i32
    %0 = arith.cmpi eq, %arg1, %c0_i32 : i32
    %1 = arith.extui %0 : i1 to i32
    %c0_i32_0 = arith.constant 0 : i32
    %2 = arith.cmpi ne, %1, %c0_i32_0 : i32
    scf.if %2 {
      %cst_8 = arith.constant 0.000000e+00 : f32
      %15 = vector.broadcast %cst_8 : f32 to vector<512x128xf32>
      %c0_9 = arith.constant 0 : index
      %c0_10 = arith.constant 0 : index
      %16 = vector.load %arg7[%c0_9, %c0_10] : memref<512x128xf32, #tpu.memory_space<vmem>>, vector<512x128xf32>
      tpu.vector_store %arg7[%c0_9, %c0_10], %15 {strides = array<i32>} : memref<512x128xf32, #tpu.memory_space<vmem>>, vector<512x128xf32>,
    } else {
    }
    %c512_i32 = arith.constant 512 : i32
    %3 = arith.muli %arg1, %c512_i32 : i32
    %4 = tpu.assume_multiple %3, 512 : i32
    %5 = arith.index_cast %4 : i32 to index
    %c0 = arith.constant 0 : index
    %6 = vector.load %arg3[%5, %c0] : memref<1536x128xbf16, #tpu.memory_space<vmem>>, vector<512x128xbf16>
    %c0_1 = arith.constant 0 : index
    %c0_2 = arith.constant 0 : index
    %7 = vector.load %arg7[%c0_1, %c0_2] : memref<512x128xf32, #tpu.memory_space<vmem>>, vector<512x128xf32>
    %c0_3 = arith.constant 0 : index
    %c0_4 = arith.constant 0 : index
    %8 = vector.load %arg2[%c0_3, %c0_4] : memref<512x512xbf16, #tpu.memory_space<vmem>>, vector<512x512xbf16>
    %cst = arith.constant dense<0.000000e+00> : vector<512x128xf32>
    %9 = tpu.matmul %8, %6, %cst {dimension_numbers = #tpu.dot_dimension_numbers<[1], [0], [0], [1], [0, 0, 1, 1], [], []>} : vector<512x512xbf16>, vector<512x128xbf16>, vector<512x128xf32> -> vector<512x128xf32>
    %10 = arith.addf %7, %9 : vector<512x128xf32>
    %c0_5 = arith.constant 0 : index
    %c0_6 = arith.constant 0 : index
    %11 = vector.load %arg7[%c0_5, %c0_6] : memref<512x128xf32, #tpu.memory_space<vmem>>, vector<512x128xf32>
    tpu.vector_store %arg7[%c0_5, %c0_6], %10 {strides = array<i32>} : memref<512x128xf32, #tpu.memory_space<vmem>>, vector<512x128xf32>,
    %c2_i32 = arith.constant 2 : i32
    %12 = arith.cmpi eq, %arg1, %c2_i32 : i32
    %13 = arith.extui %12 : i1 to i32
    %c0_i32_7 = arith.constant 0 : i32
    %14 = arith.cmpi ne, %13, %c0_i32_7 : i32
    scf.if %14 {
      %c512_i32_8 = arith.constant 512 : i32
      %15 = arith.muli %arg0, %c512_i32_8 : i32
      %16 = tpu.assume_multiple %15, 512 : i32
      %17 = arith.index_cast %16 : i32 to index
      %c0_9 = arith.constant 0 : index
      %18 = vector.load %arg3[%17, %c0_9] : memref<1536x128xbf16, #tpu.memory_space<vmem>>, vector<512x128xbf16>
      %c0_10 = arith.constant 0 : index
      %c0_11 = arith.constant 0 : index
      %19 = vector.load %arg7[%c0_10, %c0_11] : memref<512x128xf32, #tpu.memory_space<vmem>>, vector<512x128xf32>
      %c0_12 = arith.constant 0 : index
      %c0_13 = arith.constant 0 : index
      %20 = vector.load %arg4[%c0_12, %c0_13] : memref<128x128xf32, #tpu.memory_space<vmem>>, vector<128x128xf32>
      %cst_14 = arith.constant dense<0.000000e+00> : vector<512x128xf32>
      %21 = tpu.matmul %19, %20, %cst_14 {dimension_numbers = #tpu.dot_dimension_numbers<[1], [0], [0], [1], [0, 0, 1, 1], [], []>} : vector<512x128xf32>, vector<128x128xf32>, vector<512x128xf32> -> vector<512x128xf32>
      %c0_15 = arith.constant 0 : index
      %c0_16 = arith.constant 0 : index
      %22 = vector.load %arg5[%c0_15, %c0_16] : memref<128x128xf32, #tpu.memory_space<vmem>>, vector<128x128xf32>
      %cst_17 = arith.constant dense<0.000000e+00> : vector<512x128xf32>
      %23 = tpu.matmul %18, %22, %cst_17 {dimension_numbers = #tpu.dot_dimension_numbers<[1], [0], [0], [1], [0, 0, 1, 1], [], []>} : vector<512x128xbf16>, vector<128x128xf32>, vector<512x128xf32> -> vector<512x128xf32>
      %24 = arith.addf %21, %23 : vector<512x128xf32>
      %c0_18 = arith.constant 0 : index
      %c0_19 = arith.constant 0 : index
      %25 = vector.load %arg6[%c0_18, %c0_19] : memref<512x128xf32, #tpu.memory_space<vmem>>, vector<512x128xf32>
      tpu.vector_store %arg6[%c0_18, %c0_19], %24 {strides = array<i32>} : memref<512x128xf32, #tpu.memory_space<vmem>>, vector<512x128xf32>,
    } else {
    }
    return
  }
  func.func @transform_0(%arg0: i32, %arg1: i32) -> (i32, i32) {
    %c0_i32 = arith.constant 0 : i32
    return %arg0, %arg1 : i32, i32
  }
  func.func @transform_1(%arg0: i32, %arg1: i32) -> (i32, i32) {
    %c0_i32 = arith.constant 0 : i32
    %c0_i32_0 = arith.constant 0 : i32
    %c0_i32_1 = arith.constant 0 : i32
    return %c0_i32, %c0_i32_0 : i32, i32
  }
  func.func @transform_2(%arg0: i32, %arg1: i32) -> (i32, i32) {
    %c0_i32 = arith.constant 0 : i32
    %c0_i32_0 = arith.constant 0 : i32
    %c0_i32_1 = arith.constant 0 : i32
    return %c0_i32, %c0_i32_0 : i32, i32
  }
  func.func @transform_3(%arg0: i32, %arg1: i32) -> (i32, i32) {
    %c0_i32 = arith.constant 0 : i32
    %c0_i32_0 = arith.constant 0 : i32
    %c0_i32_1 = arith.constant 0 : i32
    return %c0_i32, %c0_i32_0 : i32, i32
  }
  func.func @transform_4(%arg0: i32, %arg1: i32) -> (i32, i32) {
    %c0_i32 = arith.constant 0 : i32
    %c0_i32_0 = arith.constant 0 : i32
    return %arg0, %c0_i32 : i32, i32
  }
}

</mosaic_0001>

<llo_original>
// kernel: graphsage_pallas.3
$region0: #{graphsage_pallas.3}
  #allocation0 [shape = 'u32[]', space=smem, size = 0x4, offset = 0x4, fixed_abs, tag = 'smem constant byte address 0x4 - core index']
  #allocation1 [shape = 'u32[144,128]{1,0:T(1,128)}', space=vmem, size = 0x12000, scoped, tag = 'internal scratch']
  #allocation2 [shape = 'f32[512,128]{1,0:T(8,128)}', space=vmem, size = 0x40000, scoped, tag = 'scratch operand']
  %s0 = inlined_call_operand.vmem [shape: bf16[1536,1536], index: 0, kind: input, shape index: {}]
  %s1 = inlined_call_operand.vmem [shape: bf16[1536,128], index: 1, kind: input, shape index: {}]
  %s2 = inlined_call_operand.vmem [shape: f32[128,128], index: 2, kind: input, shape index: {}]
  %s3 = inlined_call_operand.vmem [shape: f32[128,128], index: 3, kind: input, shape index: {}]
  %s4 = inlined_call_operand.vmem [shape: f32[1536,128], index: 4, kind: output, shape index: {}]
  %s5 = sld [smem:[#allocation0]]
  $region80: #{graphsage_pallas.3} parent=0
    _
  %s7 = ssub.s32 1, %s5
  %s8 = scalar_select 0, %s7, %s5
  $region1: #{graphsage_pallas.3} parent=0
    #allocation3 [shape = 'u8[1048576]{0}', space=vmem, size = 0x100000, scoped, tag = 'input window, operand 0']
    loop: start=0, step=1, limit=11
    $region2: #{graphsage_pallas.3} parent=1 // loop_pre_header
      _
    $region3: #{graphsage_pallas.3} parent=1 // loop_header
      %s10 = sphi 0, %s14
      %p11 = scmp.ge.s32.totalorder %s10, 11
      %s17 = sphi 0, %s29
      %s18 = sphi 0, %s25
      %s19 = sphi 0, %s17
      %s20 = sphi 0, %s18
      %s21 = sphi 0, %s19
      %s22 = sphi 0, %s20
      %s34 = sphi 0, %s36
      %s37 = sphi 0, %s34
      %s38 = sphi 0, %s37
      %s54 = sphi 0, %s38
      %s58 = sphi 0, %s58
      %s60 = sphi 0, %s58
      %s61 = sphi 0, %s60
      %s75 = sphi 0, %s61
      %s79 = sphi 0, %s79
      %s81 = sphi 0, %s79
      %s82 = sphi 0, %s81
      %s96 = sphi 0, %s82
      %s100 = sphi 0, %s100
      %s102 = sphi 0, %s100
      %s103 = sphi 0, %s102
      %s117 = sphi 0, %s103
      %s123 = sphi 0, %s125
      %s126 = sphi 0, %s123
      %s127 = sphi 0, %s126
      %s143 = sphi 0, %s127
    $region4: #{graphsage_pallas.3} parent=1 // loop_header_branch
      %13 = sbr.rel (%p11) target = $region8
    $region5: #{graphsage_pallas.3} parent=1 // loop_body
      %s15 = ssub.s32 %s10, 1
      %s16 = ssub.s32 %s10, 2
      %s23 = sadd.s32 1, %s18
      %p24 = scmp.ge.s32.totalorder %s23, 3
      %s25 = scalar_select %p24, 0, %s23
      %s26 = sadd.s32 1, %s17
      %s27 = scalar_select %p24, %s26, %s17
      %p28 = scmp.ge.s32.totalorder %s27, 3
      %s29 = scalar_select %p28, 0, %s27
      %s30 = ssub.s32 %s17, %s29
      %s31 = ssub.s32 %s18, %s25
      %s32 = sor.u32 %s30, %s31
      %p33 = scmp.eq.s32.totalorder %s32, 0
      %s35 = sadd.s32 %s34, 1
      %s36 = scalar_select %p33, %s34, %s35
      %p39 = pneg %p33
      %p40 = scmp.eq.s32.totalorder %s10, 8
      %p41 = por %p39, %p40
      %p42 = scmp.ne.s32.totalorder %s34, %s37
      %p43 = scmp.eq.s32.totalorder %s10, 0
      %p44 = por %p42, %p43
      %p45 = scmp.ne.s32.totalorder %s34, %s37
      %p46 = scmp.eq.s32.totalorder %s15, 8
      %p47 = por %p45, %p46
      %p48 = scmp.ne.s32.totalorder %s37, %s38
      %p49 = scmp.eq.s32.totalorder %s15, 0
      %p50 = por %p48, %p49
      %p51 = scmp.ne.s32.totalorder %s37, %s38
      %p52 = scmp.eq.s32.totalorder %s16, 8
      %p53 = por %p51, %p52
      %p55 = scmp.ne.s32.totalorder %s38, %s54
      %p56 = scmp.eq.s32.totalorder %s16, 0
      %p57 = por %p55, %p56
      %s59 = sadd.s32 %s58, 1
      %p62 = scmp.eq.s32.totalorder %s10, 8
      %p63 = scmp.ne.s32.totalorder %s58, %s60
      %p64 = scmp.eq.s32.totalorder %s10, 0
      %p65 = por %p63, %p64
      %p66 = scmp.ne.s32.totalorder %s58, %s60
      %p67 = scmp.eq.s32.totalorder %s15, 8
      %p68 = por %p66, %p67
      %p69 = scmp.ne.s32.totalorder %s60, %s61
      %p70 = scmp.eq.s32.totalorder %s15, 0
      %p71 = por %p69, %p70
      %p72 = scmp.ne.s32.totalorder %s60, %s61
      %p73 = scmp.eq.s32.totalorder %s16, 8
      %p74 = por %p72, %p73
      %p76 = scmp.ne.s32.totalorder %s61, %s75
      %p77 = scmp.eq.s32.totalorder %s16, 0
      %p78 = por %p76, %p77
      %s80 = sadd.s32 %s79, 1
      %p83 = scmp.eq.s32.totalorder %s10, 8
      %p84 = scmp.ne.s32.totalorder %s79, %s81
      %p85 = scmp.eq.s32.totalorder %s10, 0
      %p86 = por %p84, %p85
      %p87 = scmp.ne.s32.totalorder %s79, %s81
      %p88 = scmp.eq.s32.totalorder %s15, 8
      %p89 = por %p87, %p88
      %p90 = scmp.ne.s32.totalorder %s81, %s82
      %p91 = scmp.eq.s32.totalorder %s15, 0
      %p92 = por %p90, %p91
      %p93 = scmp.ne.s32.totalorder %s81, %s82
      %p94 = scmp.eq.s32.totalorder %s16, 8
      %p95 = por %p93, %p94
      %p97 = scmp.ne.s32.totalorder %s82, %s96
      %p98 = scmp.eq.s32.totalorder %s16, 0
      %p99 = por %p97, %p98
      %s101 = sadd.s32 %s100, 1
      %p104 = scmp.eq.s32.totalorder %s10, 8
      %p105 = scmp.ne.s32.totalorder %s100, %s102
      %p106 = scmp.eq.s32.totalorder %s10, 0
      %p107 = por %p105, %p106
      %p108 = scmp.ne.s32.totalorder %s100, %s102
      %p109 = scmp.eq.s32.totalorder %s15, 8
      %p110 = por %p108, %p109
      %p111 = scmp.ne.s32.totalorder %s102, %s103
      %p112 = scmp.eq.s32.totalorder %s15, 0
      %p113 = por %p111, %p112
      %p114 = scmp.ne.s32.totalorder %s102, %s103
      %p115 = scmp.eq.s32.totalorder %s16, 8
      %p116 = por %p114, %p115
      %p118 = scmp.ne.s32.totalorder %s103, %s117
      %p119 = scmp.eq.s32.totalorder %s16, 0
      %p120 = por %p118, %p119
      %s121 = ssub.s32 %s17, %s29
      %p122 = scmp.eq.s32.totalorder %s121, 0
      %s124 = sadd.s32 %s123, 1
      %s125 = scalar_select %p122, %s123, %s124
      %p128 = pneg %p122
      %p129 = scmp.eq.s32.totalorder %s10, 8
      %p130 = por %p128, %p129
      %p131 = scmp.ne.s32.totalorder %s123, %s126
      %p132 = scmp.eq.s32.totalorder %s10, 0
      %p133 = por %p131, %p132
      %p134 = scmp.ne.s32.totalorder %s123, %s126
      %p135 = scmp.eq.s32.totalorder %s15, 8
      %p136 = por %p134, %p135
      %p137 = scmp.ne.s32.totalorder %s126, %s127
      %p138 = scmp.eq.s32.totalorder %s15, 0
      %p139 = por %p137, %p138
      %p140 = scmp.ne.s32.totalorder %s126, %s127
      %p141 = scmp.eq.s32.totalorder %s16, 8
      %p142 = por %p140, %p141
      %p144 = scmp.ne.s32.totalorder %s127, %s143
      %p145 = scmp.eq.s32.totalorder %s16, 0
      %p146 = por %p144, %p145
      %p147 = scmp.le.s32.totalorder 1, %s10
      %p148 = scmp.lt.s32.totalorder %s10, 10
      %p149 = pnand %p147, %p148
      %p150 = pneg %p149
      // Predicated region
      $region9: #{graphsage_pallas.3} parent=5 // pred_check
        _
      $region10: #{graphsage_pallas.3} parent=5 // pred_check_branch
        %152 = sbr.rel (%p149) target = $region12
      $region11: #{graphsage_pallas.3} parent=5 // pred_region
        %s153 = ssub.s32 %s10, 1
        // Predicated region
        $region13: #{graphsage_pallas.3} parent=11 // pred_check
          %p154 = pneg %p71
        $region14: #{graphsage_pallas.3} parent=11 // pred_check_branch
          %156 = sbr.rel (%p154) target = $region16
        $region15: #{graphsage_pallas.3} parent=11 // pred_region
          _
        $region16: #{graphsage_pallas.3} parent=11 // pred_fallthru
          _
        // Predicated region
        $region17: #{graphsage_pallas.3} parent=11 // pred_check
          %p157 = pneg %p92
        $region18: #{graphsage_pallas.3} parent=11 // pred_check_branch
          %159 = sbr.rel (%p157) target = $region20
        $region19: #{graphsage_pallas.3} parent=11 // pred_region
          _
        $region20: #{graphsage_pallas.3} parent=11 // pred_fallthru
          _
        // Predicated region
        $region21: #{graphsage_pallas.3} parent=11 // pred_check
          %p160 = pneg %p113
        $region22: #{graphsage_pallas.3} parent=11 // pred_check_branch
          %162 = sbr.rel (%p160) target = $region24
        $region23: #{graphsage_pallas.3} parent=11 // pred_region
          _
        $region24: #{graphsage_pallas.3} parent=11 // pred_fallthru
          _
      $region12: #{graphsage_pallas.3} parent=5 // pred_fallthru
        _
      %p163 = scmp.lt.s32.totalorder %s10, 9
      // Predicated region
      $region25: #{graphsage_pallas.3} parent=5 // pred_check
        %p164 = pneg %p163
      $region26: #{graphsage_pallas.3} parent=5 // pred_check_branch
        %166 = sbr.rel (%p164) target = $region28
      $region27: #{graphsage_pallas.3} parent=5 // pred_region
        // Predicated region
        $region29: #{graphsage_pallas.3} parent=27 // pred_check
          %p167 = pneg %p44
        $region30: #{graphsage_pallas.3} parent=27 // pred_check_branch
          %169 = sbr.rel (%p167) target = $region32
        $region31: #{graphsage_pallas.3} parent=27 // pred_region
          %s170 = sand.u32 %s34, 1
          %s171 = sand.u32 %s34, 1
          %s172 = smul.addr %s171, 1024
          %s173 = scalar_lea.vmem [#allocation3], %s172
          %s174 = smul.u32 64, %s17
          %s175 = smul.u32 4, %s18
          %s176 = smul.addr %s174, 12
          %s177 = sadd.s32 %s175, %s176
          %s178 = smul.addr %s177, 4
          %s179 = scalar_lea.vmem %s0, %s178
          // Predicated region
          $region33: #{graphsage_pallas.3} parent=31 // pred_check
            _
          $region34: #{graphsage_pallas.3} parent=31 // pred_check_branch
            %181 = sbr.rel (0) target = $region36
          $region35: #{graphsage_pallas.3} parent=31 // pred_region
            // Predicated region
            $region37: #{graphsage_pallas.3} parent=35 // pred_check
              _
            $region38: #{graphsage_pallas.3} parent=35 // pred_check_branch
              %183 = sbr.rel (0) target = $region40
            $region39: #{graphsage_pallas.3} parent=35 // pred_region
              loop: start=0, step=1, limit=1
              $region41: #{graphsage_pallas.3} parent=39 // loop_pre_header
                _
              $region42: #{graphsage_pallas.3} parent=39 // loop_header
                %s185 = sphi 0, %s189
                %p186 = scmp.ge.s32.totalorder %s185, 1
                %s190 = sphi %s179, %s179
                %s191 = sphi %s173, %s173
              $region43: #{graphsage_pallas.3} parent=39 // loop_header_branch
                %188 = sbr.rel (%p186) target = $region47
              $region44: #{graphsage_pallas.3} parent=39 // loop_body
                %v192 = vld [vmem:[%s190] sm:$0xff]
                %193 = vst [vmem:[%s191] sm:$0xff] %v192
                %v194 = vld [vmem:[%s190 + $0x8] sm:$0xff]
                %195 = vst [vmem:[%s191 + $0x8] sm:$0xff] %v194
                %v196 = vld [vmem:[%s190 + $0x30] sm:$0xff]
                %197 = vst [vmem:[%s191 + $0x10] sm:$0xff] %v196
                %v198 = vld [vmem:[%s190 + $0x38] sm:$0xff]
                %199 = vst [vmem:[%s191 + $0x18] sm:$0xff] %v198
                %v200 = vld [vmem:[%s190 + $0x60] sm:$0xff]
                %201 = vst [vmem:[%s191 + $0x20] sm:$0xff] %v200
                %v202 = vld [vmem:[%s190 + $0x68] sm:$0xff]
                %203 = vst [vmem:[%s191 + $0x28] sm:$0xff] %v202
                %v204 = vld [vmem:[%s190 + $0x90] sm:$0xff]
                %205 = vst [vmem:[%s191 + $0x30] sm:$0xff] %v204
                %v206 = vld [vmem:[%s190 + $0x98] sm:$0xff]
                %207 = vst [vmem:[%s191 + $0x38] sm:$0xff] %v206
                %v208 = vld [vmem:[%s190 + $0xc0] sm:$0xff]
                %209 = vst [vmem:[%s191 + $0x40] sm:$0xff] %v208
                %v210 = vld [vmem:[%s190 + $0xc8] sm:$0xff]
                %211 = vst [vmem:[%s191 + $0x48] sm:$0xff] %v210
                %v212 = vld [vmem:[%s190 + $0xf0] sm:$0xff]
                %213 = vst [vmem:[%s191 + $0x50] sm:$0xff] %v212
                %v214 = vld [vmem:[%s190 + $0xf8] sm:$0xff]
                %215 = vst [vmem:[%s191 + $0x58] sm:$0xff] %v214
                %v216 = vld [vmem:[%s190 + $0x120] sm:$0xff]
                %217 = vst [vmem:[%s191 + $0x60] sm:$0xff] %v216
                %v218 = vld [vmem:[%s190 + $0x128] sm:$0xff]
                %219 = vst [vmem:[%s191 + $0x68] sm:$0xff] %v218
                %v220 = vld [vmem:[%s190 + $0x150] sm:$0xff]
                %221 = vst [vmem:[%s191 + $0x70] sm:$0xff] %v220
                %v222 = vld [vmem:[%s190 + $0x158] sm:$0xff]
                %223 = vst [vmem:[%s191 + $0x78] sm:$0xff] %v222
                %v224 = vld [vmem:[%s190 + $0x180] sm:$0xff]
                %225 = vst [vmem:[%s191 + $0x80] sm:$0xff] %v224
                %v226 = vld [vmem:[%s190 + $0x188] sm:$0xff]
                %227 = vst [vmem:[%s191 + $0x88] sm:$0xff] %v226
                %v228 = vld [vmem:[%s190 + $0x1b0] sm:$0xff]
                %229 = vst [vmem:[%s191 + $0x90] sm:$0xff] %v228
                %v230 = vld [vmem:[%s190 + $0x1b8] sm:$0xff]
                %231 = vst [vmem:[%s191 + $0x98] sm:$0xff] %v230
                %v232 = vld [vmem:[%s190 + $0x1e0] sm:$0xff]
                %233 = vst [vmem:[%s191 + $0xa0] sm:$0xff] %v232
                %v234 = vld [vmem:[%s190 + $0x1e8] sm:$0xff]
                %235 = vst [vmem:[%s191 + $0xa8] sm:$0xff] %v234
                %v236 = vld [vmem:[%s190 + $0x210] sm:$0xff]
                %237 = vst [vmem:[%s191 + $0xb0] sm:$0xff] %v236
                %v238 = vld [vmem:[%s190 + $0x218] sm:$0xff]
                %239 = vst [vmem:[%s191 + $0xb8] sm:$0xff] %v238
                %v240 = vld [vmem:[%s190 + $0x240] sm:$0xff]
                %241 = vst [vmem:[%s191 + $0xc0] sm:$0xff] %v240
                %v242 = vld [vmem:[%s190 + $0x248] sm:$0xff]
                %243 = vst [vmem:[%s191 + $0xc8] sm:$0xff] %v242
                %v244 = vld [vmem:[%s190 + $0x270] sm:$0xff]
                %245 = vst [vmem:[%s191 + $0xd0] sm:$0xff] %v244
                %v246 = vld [vmem:[%s190 + $0x278] sm:$0xff]
                %247 = vst [vmem:[%s191 + $0xd8] sm:$0xff] %v246
                %v248 = vld [vmem:[%s190 + $0x2a0] sm:$0xff]
                %249 = vst [vmem:[%s191 + $0xe0] sm:$0xff] %v248
                %v250 = vld [vmem:[%s190 + $0x2a8] sm:$0xff]
                %251 = vst [vmem:[%s191 + $0xe8] sm:$0xff] %v250
                %v252 = vld [vmem:[%s190 + $0x2d0] sm:$0xff]
                %253 = vst [vmem:[%s191 + $0xf0] sm:$0xff] %v252
                %v254 = vld [vmem:[%s190 + $0x2d8] sm:$0xff]
                %255 = vst [vmem:[%s191 + $0xf8] sm:$0xff] %v254
                %v256 = vld [vmem:[%s190 + $0x300] sm:$0xff]
                %257 = vst [vmem:[%s191 + $0x100] sm:$0xff] %v256
                %v258 = vld [vmem:[%s190 + $0x308] sm:$0xff]
                %259 = vst [vmem:[%s191 + $0x108] sm:$0xff] %v258
                %v260 = vld [vmem:[%s190 + $0x330] sm:$0xff]
                %261 = vst [vmem:[%s191 + $0x110] sm:$0xff] %v260
                %v262 = vld [vmem:[%s190 + $0x338] sm:$0xff]
                %263 = vst [vmem:[%s191 + $0x118] sm:$0xff] %v262
                %v264 = vld [vmem:[%s190 + $0x360] sm:$0xff]
                %265 = vst [vmem:[%s191 + $0x120] sm:$0xff] %v264
                %v266 = vld [vmem:[%s190 + $0x368] sm:$0xff]
                %267 = vst [vmem:[%s191 + $0x128] sm:$0xff] %v266
                %v268 = vld [vmem:[%s190 + $0x390] sm:$0xff]
                %269 = vst [vmem:[%s191 + $0x130] sm:$0xff] %v268
                %v270 = vld [vmem:[%s190 + $0x398] sm:$0xff]
                %271 = vst [vmem:[%s191 + $0x138] sm:$0xff] %v270
                %v272 = vld [vmem:[%s190 + $0x3c0] sm:$0xff]
                %273 = vst [vmem:[%s191 + $0x140] sm:$0xff] %v272
                %v274 = vld [vmem:[%s190 + $0x3c8] sm:$0xff]
                %275 = vst [vmem:[%s191 + $0x148] sm:$0xff] %v274
                %v276 = vld [vmem:[%s190 + $0x3f0] sm:$0xff]
                %277 = vst [vmem:[%s191 + $0x150] sm:$0xff] %v276
                %v278 = vld [vmem:[%s190 + $0x3f8] sm:$0xff]
                %279 = vst [vmem:[%s191 + $0x158] sm:$0xff] %v278
                %v280 = vld [vmem:[%s190 + $0x420] sm:$0xff]
                %281 = vst [vmem:[%s191 + $0x160] sm:$0xff] %v280
                %v282 = vld [vmem:[%s190 + $0x428] sm:$0xff]
                %283 = vst [vmem:[%s191 + $0x168] sm:$0xff] %v282
                %v284 = vld [vmem:[%s190 + $0x450] sm:$0xff]
                %285 = vst [vmem:[%s191 + $0x170] sm:$0xff] %v284
                %v286 = vld [vmem:[%s190 + $0x458] sm:$0xff]
                %287 = vst [vmem:[%s191 + $0x178] sm:$0xff] %v286
                %v288 = vld [vmem:[%s190 + $0x480] sm:$0xff]
                %289 = vst [vmem:[%s191 + $0x180] sm:$0xff] %v288
                %v290 = vld [vmem:[%s190 + $0x488] sm:$0xff]
                %291 = vst [vmem:[%s191 + $0x188] sm:$0xff] %v290
                %v292 = vld [vmem:[%s190 + $0x4b0] sm:$0xff]
                %293 = vst [vmem:[%s191 + $0x190] sm:$0xff] %v292
                %v294 = vld [vmem:[%s190 + $0x4b8] sm:$0xff]
                %295 = vst [vmem:[%s191 + $0x198] sm:$0xff] %v294
                %v296 = vld [vmem:[%s190 + $0x4e0] sm:$0xff]
                %297 = vst [vmem:[%s191 + $0x1a0] sm:$0xff] %v296
                %v298 = vld [vmem:[%s190 + $0x4e8] sm:$0xff]
                %299 = vst [vmem:[%s191 + $0x1a8] sm:$0xff] %v298
                %v300 = vld [vmem:[%s190 + $0x510] sm:$0xff]
                %301 = vst [vmem:[%s191 + $0x1b0] sm:$0xff] %v300
                %v302 = vld [vmem:[%s190 + $0x518] sm:$0xff]
                %303 = vst [vmem:[%s191 + $0x1b8] sm:$0xff] %v302
                %v304 = vld [vmem:[%s190 + $0x540] sm:$0xff]
                %305 = vst [vmem:[%s191 + $0x1c0] sm:$0xff] %v304
                %v306 = vld [vmem:[%s190 + $0x548] sm:$0xff]
                %307 = vst [vmem:[%s191 + $0x1c8] sm:$0xff] %v306
                %v308 = vld [vmem:[%s190 + $0x570] sm:$0xff]
                %309 = vst [vmem:[%s191 + $0x1d0] sm:$0xff] %v308
                %v310 = vld [vmem:[%s190 + $0x578] sm:$0xff]
                %311 = vst [vmem:[%s191 + $0x1d8] sm:$0xff] %v310
                %v312 = vld [vmem:[%s190 + $0x5a0] sm:$0xff]
                %313 = vst [vmem:[%s191 + $0x1e0] sm:$0xff] %v312
                %v314 = vld [vmem:[%s190 + $0x5a8] sm:$0xff]
                %315 = vst [vmem:[%s191 + $0x1e8] sm:$0xff] %v314
                %v316 = vld [vmem:[%s190 + $0x5d0] sm:$0xff]
                %317 = vst [vmem:[%s191 + $0x1f0] sm:$0xff] %v316
                %v318 = vld [vmem:[%s190 + $0x5d8] sm:$0xff]
                %319 = vst [vmem:[%s191 + $0x1f8] sm:$0xff] %v318
                %v320 = vld [vmem:[%s190 + $0x600] sm:$0xff]
                %321 = vst [vmem:[%s191 + $0x200] sm:$0xff] %v320
                %v322 = vld [vmem:[%s190 + $0x608] sm:$0xff]
                %323 = vst [vmem:[%s191 + $0x208] sm:$0xff] %v322
                %v324 = vld [vmem:[%s190 + $0x630] sm:$0xff]
                %325 = vst [vmem:[%s191 + $0x210] sm:$0xff] %v324
                %v326 = vld [vmem:[%s190 + $0x638] sm:$0xff]
                %327 = vst [vmem:[%s191 + $0x218] sm:$0xff] %v326
                %v328 = vld [vmem:[%s190 + $0x660] sm:$0xff]
                %329 = vst [vmem:[%s191 + $0x220] sm:$0xff] %v328
                %v330 = vld [vmem:[%s190 + $0x668] sm:$0xff]
                %331 = vst [vmem:[%s191 + $0x228] sm:$0xff] %v330
                %v332 = vld [vmem:[%s190 + $0x690] sm:$0xff]
                %333 = vst [vmem:[%s191 + $0x230] sm:$0xff] %v332
                %v334 = vld [vmem:[%s190 + $0x698] sm:$0xff]
                %335 = vst [vmem:[%s191 + $0x238] sm:$0xff] %v334
                %v336 = vld [vmem:[%s190 + $0x6c0] sm:$0xff]
                %337 = vst [vmem:[%s191 + $0x240] sm:$0xff] %v336
                %v338 = vld [vmem:[%s190 + $0x6c8] sm:$0xff]
                %339 = vst [vmem:[%s191 + $0x248] sm:$0xff] %v338
                %v340 = vld [vmem:[%s190 + $0x6f0] sm:$0xff]
                %341 = vst [vmem:[%s191 + $0x250] sm:$0xff] %v340
                %v342 = vld [vmem:[%s190 + $0x6f8] sm:$0xff]
                %343 = vst [vmem:[%s191 + $0x258] sm:$0xff] %v342
                %v344 = vld [vmem:[%s190 + $0x720] sm:$0xff]
                %345 = vst [vmem:[%s191 + $0x260] sm:$0xff] %v344
                %v346 = vld [vmem:[%s190 + $0x728] sm:$0xff]
                %347 = vst [vmem:[%s191 + $0x268] sm:$0xff] %v346
                %v348 = vld [vmem:[%s190 + $0x750] sm:$0xff]
                %349 = vst [vmem:[%s191 + $0x270] sm:$0xff] %v348
                %v350 = vld [vmem:[%s190 + $0x758] sm:$0xff]
                %351 = vst [vmem:[%s191 + $0x278] sm:$0xff] %v350
                %v352 = vld [vmem:[%s190 + $0x780] sm:$0xff]
                %353 = vst [vmem:[%s191 + $0x280] sm:$0xff] %v352
                %v354 = vld [vmem:[%s190 + $0x788] sm:$0xff]
                %355 = vst [vmem:[%s191 + $0x288] sm:$0xff] %v354
                %v356 = vld [vmem:[%s190 + $0x7b0] sm:$0xff]
                %357 = vst [vmem:[%s191 + $0x290] sm:$0xff] %v356
                %v358 = vld [vmem:[%s190 + $0x7b8] sm:$0xff]
                %359 = vst [vmem:[%s191 + $0x298] sm:$0xff] %v358
                %v360 = vld [vmem:[%s190 + $0x7e0] sm:$0xff]
                %361 = vst [vmem:[%s191 + $0x2a0] sm:$0xff] %v360
                %v362 = vld [vmem:[%s190 + $0x7e8] sm:$0xff]
                %363 = vst [vmem:[%s191 + $0x2a8] sm:$0xff] %v362
                %v364 = vld [vmem:[%s190 + $0x810] sm:$0xff]
                %365 = vst [vmem:[%s191 + $0x2b0] sm:$0xff] %v364
                %v366 = vld [vmem:[%s190 + $0x818] sm:$0xff]
                %367 = vst [vmem:[%s191 + $0x2b8] sm:$0xff] %v366
                %v368 = vld [vmem:[%s190 + $0x840] sm:$0xff]
                %369 = vst [vmem:[%s191 + $0x2c0] sm:$0xff] %v368
                %v370 = vld [vmem:[%s190 + $0x848] sm:$0xff]
                %371 = vst [vmem:[%s191 + $0x2c8] sm:$0xff] %v370
                %v372 = vld [vmem:[%s190 + $0x870] sm:$0xff]
                %373 = vst [vmem:[%s191 + $0x2d0] sm:$0xff] %v372
                %v374 = vld [vmem:[%s190 + $0x878] sm:$0xff]
                %375 = vst [vmem:[%s191 + $0x2d8] sm:$0xff] %v374
                %v376 = vld [vmem:[%s190 + $0x8a0] sm:$0xff]
                %377 = vst [vmem:[%s191 + $0x2e0] sm:$0xff] %v376
                %v378 = vld [vmem:[%s190 + $0x8a8] sm:$0xff]
                %379 = vst [vmem:[%s191 + $0x2e8] sm:$0xff] %v378
                %v380 = vld [vmem:[%s190 + $0x8d0] sm:$0xff]
                %381 = vst [vmem:[%s191 + $0x2f0] sm:$0xff] %v380
                %v382 = vld [vmem:[%s190 + $0x8d8] sm:$0xff]
                %383 = vst [vmem:[%s191 + $0x2f8] sm:$0xff] %v382
                %v384 = vld [vmem:[%s190 + $0x900] sm:$0xff]
                %385 = vst [vmem:[%s191 + $0x300] sm:$0xff] %v384
                %v386 = vld [vmem:[%s190 + $0x908] sm:$0xff]
                %387 = vst [vmem:[%s191 + $0x308] sm:$0xff] %v386
                %v388 = vld [vmem:[%s190 + $0x930] sm:$0xff]
                %389 = vst [vmem:[%s191 + $0x310] sm:$0xff] %v388
                %v390 = vld [vmem:[%s190 + $0x938] sm:$0xff]
                %391 = vst [vmem:[%s191 + $0x318] sm:$0xff] %v390
                %v392 = vld [vmem:[%s190 + $0x960] sm:$0xff]
                %393 = vst [vmem:[%s191 + $0x320] sm:$0xff] %v392
                %v394 = vld [vmem:[%s190 + $0x968] sm:$0xff]
                %395 = vst [vmem:[%s191 + $0x328] sm:$0xff] %v394
                %v396 = vld [vmem:[%s190 + $0x990] sm:$0xff]
                %397 = vst [vmem:[%s191 + $0x330] sm:$0xff] %v396
                %v398 = vld [vmem:[%s190 + $0x998] sm:$0xff]
                %399 = vst [vmem:[%s191 + $0x338] sm:$0xff] %v398
                %v400 = vld [vmem:[%s190 + $0x9c0] sm:$0xff]
                %401 = vst [vmem:[%s191 + $0x340] sm:$0xff] %v400
                %v402 = vld [vmem:[%s190 + $0x9c8] sm:$0xff]
                %403 = vst [vmem:[%s191 + $0x348] sm:$0xff] %v402
                %v404 = vld [vmem:[%s190 + $0x9f0] sm:$0xff]
                %405 = vst [vmem:[%s191 + $0x350] sm:$0xff] %v404
                %v406 = vld [vmem:[%s190 + $0x9f8] sm:$0xff]
                %407 = vst [vmem:[%s191 + $0x358] sm:$0xff] %v406
                %v408 = vld [vmem:[%s190 + $0xa20] sm:$0xff]
                %409 = vst [vmem:[%s191 + $0x360] sm:$0xff] %v408
                %v410 = vld [vmem:[%s190 + $0xa28] sm:$0xff]
                %411 = vst [vmem:[%s191 + $0x368] sm:$0xff] %v410
                %v412 = vld [vmem:[%s190 + $0xa50] sm:$0xff]
                %413 = vst [vmem:[%s191 + $0x370] sm:$0xff] %v412
                %v414 = vld [vmem:[%s190 + $0xa58] sm:$0xff]
                %415 = vst [vmem:[%s191 + $0x378] sm:$0xff] %v414
                %v416 = vld [vmem:[%s190 + $0xa80] sm:$0xff]
                %417 = vst [vmem:[%s191 + $0x380] sm:$0xff] %v416
                %v418 = vld [vmem:[%s190 + $0xa88] sm:$0xff]
                %419 = vst [vmem:[%s191 + $0x388] sm:$0xff] %v418
                %v420 = vld [vmem:[%s190 + $0xab0] sm:$0xff]
                %421 = vst [vmem:[%s191 + $0x390] sm:$0xff] %v420
                %v422 = vld [vmem:[%s190 + $0xab8] sm:$0xff]
                %423 = vst [vmem:[%s191 + $0x398] sm:$0xff] %v422
                %v424 = vld [vmem:[%s190 + $0xae0] sm:$0xff]
                %425 = vst [vmem:[%s191 + $0x3a0] sm:$0xff] %v424
                %v426 = vld [vmem:[%s190 + $0xae8] sm:$0xff]
                %427 = vst [vmem:[%s191 + $0x3a8] sm:$0xff] %v426
                %v428 = vld [vmem:[%s190 + $0xb10] sm:$0xff]
                %429 = vst [vmem:[%s191 + $0x3b0] sm:$0xff] %v428
                %v430 = vld [vmem:[%s190 + $0xb18] sm:$0xff]
                %431 = vst [vmem:[%s191 + $0x3b8] sm:$0xff] %v430
                %v432 = vld [vmem:[%s190 + $0xb40] sm:$0xff]
                %433 = vst [vmem:[%s191 + $0x3c0] sm:$0xff] %v432
                %v434 = vld [vmem:[%s190 + $0xb48] sm:$0xff]
                %435 = vst [vmem:[%s191 + $0x3c8] sm:$0xff] %v434
                %v436 = vld [vmem:[%s190 + $0xb70] sm:$0xff]
                %437 = vst [vmem:[%s191 + $0x3d0] sm:$0xff] %v436
                %v438 = vld [vmem:[%s190 + $0xb78] sm:$0xff]
                %439 = vst [vmem:[%s191 + $0x3d8] sm:$0xff] %v438
                %v440 = vld [vmem:[%s190 + $0xba0] sm:$0xff]
                %441 = vst [vmem:[%s191 + $0x3e0] sm:$0xff] %v440
                %v442 = vld [vmem:[%s190 + $0xba8] sm:$0xff]
                %443 = vst [vmem:[%s191 + $0x3e8] sm:$0xff] %v442
                %v444 = vld [vmem:[%s190 + $0xbd0] sm:$0xff]
                %445 = vst [vmem:[%s191 + $0x3f0] sm:$0xff] %v444
                %v446 = vld [vmem:[%s190 + $0xbd8] sm:$0xff]
                %447 = vst [vmem:[%s191 + $0x3f8] sm:$0xff] %v446
              $region45: #{graphsage_pallas.3} parent=39 // loop_footer
                %s189 = sadd.s32 1, %s185
              $region46: #{graphsage_pallas.3} parent=39 // loop_footer_branch
                %184 = sbr.rel target = $region42
              $region47: #{graphsage_pallas.3} parent=39 // loop_exit
                _
            $region40: #{graphsage_pallas.3} parent=35 // pred_fallthru
              _
            // Predicated region
            $region48: #{graphsage_pallas.3} parent=35 // pred_check
              _
            $region49: #{graphsage_pallas.3} parent=35 // pred_check_branch
              %449 = sbr.rel target = $region51
            $region50: #{graphsage_pallas.3} parent=35 // pred_region
              _
            $region51: #{graphsage_pallas.3} parent=35 // pred_fallthru
              _
          $region36: #{graphsage_pallas.3} parent=31 // pred_fallthru
            _
          %450 = vnop
        $region32: #{graphsage_pallas.3} parent=27 // pred_fallthru
          _
      $region28: #{graphsage_pallas.3} parent=5 // pred_fallthru
        _
      %p451 = scmp.le.s32.totalorder 1, %s10
      %p452 = scmp.lt.s32.totalorder %s10, 10
      %p453 = pnand %p451, %p452
      %p454 = pneg %p453
      // Predicated region
      $region52: #{graphsage_pallas.3} parent=5 // pred_check
        _
      $region53: #{graphsage_pallas.3} parent=5 // pred_check_branch
        %456 = sbr.rel (%p453) target = $region55
      $region54: #{graphsage_pallas.3} parent=5 // pred_region
        %s457 = ssub.s32 %s10, 1
        %s458 = sand.u32 %s37, 1
        %s459 = sand.u32 %s37, 1
        %s460 = smul.addr %s459, 1024
        %s461 = scalar_lea.vmem [#allocation3], %s460
        // Predicated region
        $region56: #{graphsage_pallas.3} parent=54 // pred_check
          %p462 = pneg %p50
        $region57: #{graphsage_pallas.3} parent=54 // pred_check_branch
          %464 = sbr.rel (%p462) target = $region59
        $region58: #{graphsage_pallas.3} parent=54 // pred_region
          _
        $region59: #{graphsage_pallas.3} parent=54 // pred_fallthru
          _
        %s465 = sand.u32 %s37, 1
        %s466 = sand.u32 %s37, 1
        %s467 = smul.addr %s466, 1024
        %s468 = scalar_lea.vmem [#allocation3], %s467
        %p469 = pneg %p50
        %p470 = pneg %p47
        %p471 = pneg %p71
        %p472 = pneg %p68
        %p473 = pneg %p92
        %p474 = pneg %p89
        %p475 = pneg %p113
        %p476 = pneg %p110
        %p477 = pneg %p139
        %p478 = pneg %p136
        %s479 = smul.u32 64, %s19
        %p480 = scmp.lt.s32.totalorder %s479, 191
        %s481 = scalar_select %p480, %s479, 191
        %s482 = smul.addr %s481, 8
        %s483 = scalar_lea.vmem %s4, %s482
        %s484 = smul.u32 64, %s19
        %s485 = smul.u32 4, %s20
        %s486 = smul.u32 64, %s19
        %p487 = scmp.lt.s32.totalorder %s486, 191
        %s488 = scalar_select %p487, %s486, 191
        %s489 = smul.addr %s488, 8
        %s490 = scalar_lea.vmem %s4, %s489
        %s491 = smul.u32 64, %s19
        %p493 = scmp.eq.s32.totalorder %s20, 0
        // Predicated region
        $region60: #{graphsage_pallas.3} parent=54 // pred_check
          %p494 = pneg %p493
        $region61: #{graphsage_pallas.3} parent=54 // pred_check_branch
          %496 = sbr.rel (%p494) target = $region63
        $region62: #{graphsage_pallas.3} parent=54 // pred_region
          %497 = vst [vmem:[#allocation2] sm:$0xff] 0.0
          %498 = vst [vmem:[#allocation2 + $0x8] sm:$0xff] 0.0
          %499 = vst [vmem:[#allocation2 + $0x10] sm:$0xff] 0.0
          %500 = vst [vmem:[#allocation2 + $0x18] sm:$0xff] 0.0
          %501 = vst [vmem:[#allocation2 + $0x20] sm:$0xff] 0.0
          %502 = vst [vmem:[#allocation2 + $0x28] sm:$0xff] 0.0
          %503 = vst [vmem:[#allocation2 + $0x30] sm:$0xff] 0.0
          %504 = vst [vmem:[#allocation2 + $0x38] sm:$0xff] 0.0
          %505 = vst [vmem:[#allocation2 + $0x40] sm:$0xff] 0.0
          %506 = vst [vmem:[#allocation2 + $0x48] sm:$0xff] 0.0
          %507 = vst [vmem:[#allocation2 + $0x50] sm:$0xff] 0.0
          %508 = vst [vmem:[#allocation2 + $0x58] sm:$0xff] 0.0
          %509 = vst [vmem:[#allocation2 + $0x60] sm:$0xff] 0.0
          %510 = vst [vmem:[#allocation2 + $0x68] sm:$0xff] 0.0
          %511 = vst [vmem:[#allocation2 + $0x70] sm:$0xff] 0.0
          %512 = vst [vmem:[#allocation2 + $0x78] sm:$0xff] 0.0
          %513 = vst [vmem:[#allocation2 + $0x80] sm:$0xff] 0.0
          %514 = vst [vmem:[#allocation2 + $0x88] sm:$0xff] 0.0
          %515 = vst [vmem:[#allocation2 + $0x90] sm:$0xff] 0.0
          %516 = vst [vmem:[#allocation2 + $0x98] sm:$0xff] 0.0
          %517 = vst [vmem:[#allocation2 + $0xa0] sm:$0xff] 0.0
          %518 = vst [vmem:[#allocation2 + $0xa8] sm:$0xff] 0.0
          %519 = vst [vmem:[#allocation2 + $0xb0] sm:$0xff] 0.0
          %520 = vst [vmem:[#allocation2 + $0xb8] sm:$0xff] 0.0
          %521 = vst [vmem:[#allocation2 + $0xc0] sm:$0xff] 0.0
          %522 = vst [vmem:[#allocation2 + $0xc8] sm:$0xff] 0.0
          %523 = vst [vmem:[#allocation2 + $0xd0] sm:$0xff] 0.0
          %524 = vst [vmem:[#allocation2 + $0xd8] sm:$0xff] 0.0
          %525 = vst [vmem:[#allocation2 + $0xe0] sm:$0xff] 0.0
          %526 = vst [vmem:[#allocation2 + $0xe8] sm:$0xff] 0.0
          %527 = vst [vmem:[#allocation2 + $0xf0] sm:$0xff] 0.0
          %528 = vst [vmem:[#allocation2 + $0xf8] sm:$0xff] 0.0
          %529 = vst [vmem:[#allocation2 + $0x100] sm:$0xff] 0.0
          %530 = vst [vmem:[#allocation2 + $0x108] sm:$0xff] 0.0
          %531 = vst [vmem:[#allocation2 + $0x110] sm:$0xff] 0.0
          %532 = vst [vmem:[#allocation2 + $0x118] sm:$0xff] 0.0
          %533 = vst [vmem:[#allocation2 + $0x120] sm:$0xff] 0.0
          %534 = vst [vmem:[#allocation2 + $0x128] sm:$0xff] 0.0
          %535 = vst [vmem:[#allocation2 + $0x130] sm:$0xff] 0.0
          %536 = vst [vmem:[#allocation2 + $0x138] sm:$0xff] 0.0
          %537 = vst [vmem:[#allocation2 + $0x140] sm:$0xff] 0.0
          %538 = vst [vmem:[#allocation2 + $0x148] sm:$0xff] 0.0
          %539 = vst [vmem:[#allocation2 + $0x150] sm:$0xff] 0.0
          %540 = vst [vmem:[#allocation2 + $0x158] sm:$0xff] 0.0
          %541 = vst [vmem:[#allocation2 + $0x160] sm:$0xff] 0.0
          %542 = vst [vmem:[#allocation2 + $0x168] sm:$0xff] 0.0
          %543 = vst [vmem:[#allocation2 + $0x170] sm:$0xff] 0.0
          %544 = vst [vmem:[#allocation2 + $0x178] sm:$0xff] 0.0
          %545 = vst [vmem:[#allocation2 + $0x180] sm:$0xff] 0.0
          %546 = vst [vmem:[#allocation2 + $0x188] sm:$0xff] 0.0
          %547 = vst [vmem:[#allocation2 + $0x190] sm:$0xff] 0.0
          %548 = vst [vmem:[#allocation2 + $0x198] sm:$0xff] 0.0
          %549 = vst [vmem:[#allocation2 + $0x1a0] sm:$0xff] 0.0
          %550 = vst [vmem:[#allocation2 + $0x1a8] sm:$0xff] 0.0
          %551 = vst [vmem:[#allocation2 + $0x1b0] sm:$0xff] 0.0
          %552 = vst [vmem:[#allocation2 + $0x1b8] sm:$0xff] 0.0
          %553 = vst [vmem:[#allocation2 + $0x1c0] sm:$0xff] 0.0
          %554 = vst [vmem:[#allocation2 + $0x1c8] sm:$0xff] 0.0
          %555 = vst [vmem:[#allocation2 + $0x1d0] sm:$0xff] 0.0
          %556 = vst [vmem:[#allocation2 + $0x1d8] sm:$0xff] 0.0
          %557 = vst [vmem:[#allocation2 + $0x1e0] sm:$0xff] 0.0
          %558 = vst [vmem:[#allocation2 + $0x1e8] sm:$0xff] 0.0
          %559 = vst [vmem:[#allocation2 + $0x1f0] sm:$0xff] 0.0
          %560 = vst [vmem:[#allocation2 + $0x1f8] sm:$0xff] 0.0
        $region63: #{graphsage_pallas.3} parent=54 // pred_fallthru
          _
        %s561 = smul.u32 %s20, 512
        %s562 = sshra.s32 %s561, 3
        %s563 = sand.u32 %s561, 7
        %s564 = smul.addr %s562, 4
        %s565 = scalar_lea.vmem %s1, %s564
        %v566 = vld [vmem:[%s565] sm:$0xf]
        %v567 = vld [vmem:[%s565 + $0x4] sm:$0xf]
        %v568 = vld [vmem:[%s565 + $0x8] sm:$0xf]
        %v569 = vld [vmem:[%s565 + $0xc] sm:$0xf]
        %v570 = vld [vmem:[%s565 + $0x10] sm:$0xf]
        %v571 = vld [vmem:[%s565 + $0x14] sm:$0xf]
        %v572 = vld [vmem:[%s565 + $0x18] sm:$0xf]
        %v573 = vld [vmem:[%s565 + $0x1c] sm:$0xf]
        %v574 = vld [vmem:[%s565 + $0x20] sm:$0xf]
        %v575 = vld [vmem:[%s565 + $0x24] sm:$0xf]
        %v576 = vld [vmem:[%s565 + $0x28] sm:$0xf]
        %v577 = vld [vmem:[%s565 + $0x2c] sm:$0xf]
        %v578 = vld [vmem:[%s565 + $0x30] sm:$0xf]
        %v579 = vld [vmem:[%s565 + $0x34] sm:$0xf]
        %v580 = vld [vmem:[%s565 + $0x38] sm:$0xf]
        %v581 = vld [vmem:[%s565 + $0x3c] sm:$0xf]
        %v582 = vld [vmem:[%s565 + $0x40] sm:$0xf]
        %v583 = vld [vmem:[%s565 + $0x44] sm:$0xf]
        %v584 = vld [vmem:[%s565 + $0x48] sm:$0xf]
        %v585 = vld [vmem:[%s565 + $0x4c] sm:$0xf]
        %v586 = vld [vmem:[%s565 + $0x50] sm:$0xf]
        %v587 = vld [vmem:[%s565 + $0x54] sm:$0xf]
        %v588 = vld [vmem:[%s565 + $0x58] sm:$0xf]
        %v589 = vld [vmem:[%s565 + $0x5c] sm:$0xf]
        %v590 = vld [vmem:[%s565 + $0x60] sm:$0xf]
        %v591 = vld [vmem:[%s565 + $0x64] sm:$0xf]
        %v592 = vld [vmem:[%s565 + $0x68] sm:$0xf]
        %v593 = vld [vmem:[%s565 + $0x6c] sm:$0xf]
        %v594 = vld [vmem:[%s565 + $0x70] sm:$0xf]
        %v595 = vld [vmem:[%s565 + $0x74] sm:$0xf]
        %v596 = vld [vmem:[%s565 + $0x78] sm:$0xf]
        %v597 = vld [vmem:[%s565 + $0x7c] sm:$0xf]
        %v598 = vld [vmem:[%s565 + $0x80] sm:$0xf]
        %v599 = vld [vmem:[%s565 + $0x84] sm:$0xf]
        %v600 = vld [vmem:[%s565 + $0x88] sm:$0xf]
        %v601 = vld [vmem:[%s565 + $0x8c] sm:$0xf]
        %v602 = vld [vmem:[%s565 + $0x90] sm:$0xf]
        %v603 = vld [vmem:[%s565 + $0x94] sm:$0xf]
        %v604 = vld [vmem:[%s565 + $0x98] sm:$0xf]
        %v605 = vld [vmem:[%s565 + $0x9c] sm:$0xf]
        %v606 = vld [vmem:[%s565 + $0xa0] sm:$0xf]
        %v607 = vld [vmem:[%s565 + $0xa4] sm:$0xf]
        %v608 = vld [vmem:[%s565 + $0xa8] sm:$0xf]
        %v609 = vld [vmem:[%s565 + $0xac] sm:$0xf]
        %v610 = vld [vmem:[%s565 + $0xb0] sm:$0xf]
        %v611 = vld [vmem:[%s565 + $0xb4] sm:$0xf]
        %v612 = vld [vmem:[%s565 + $0xb8] sm:$0xf]
        %v613 = vld [vmem:[%s565 + $0xbc] sm:$0xf]
        %v614 = vld [vmem:[%s565 + $0xc0] sm:$0xf]
        %v615 = vld [vmem:[%s565 + $0xc4] sm:$0xf]
        %v616 = vld [vmem:[%s565 + $0xc8] sm:$0xf]
        %v617 = vld [vmem:[%s565 + $0xcc] sm:$0xf]
        %v618 = vld [vmem:[%s565 + $0xd0] sm:$0xf]
        %v619 = vld [vmem:[%s565 + $0xd4] sm:$0xf]
        %v620 = vld [vmem:[%s565 + $0xd8] sm:$0xf]
        %v621 = vld [vmem:[%s565 + $0xdc] sm:$0xf]
        %v622 = vld [vmem:[%s565 + $0xe0] sm:$0xf]
        %v623 = vld [vmem:[%s565 + $0xe4] sm:$0xf]
        %v624 = vld [vmem:[%s565 + $0xe8] sm:$0xf]
        %v625 = vld [vmem:[%s565 + $0xec] sm:$0xf]
        %v626 = vld [vmem:[%s565 + $0xf0] sm:$0xf]
        %v627 = vld [vmem:[%s565 + $0xf4] sm:$0xf]
        %v628 = vld [vmem:[%s565 + $0xf8] sm:$0xf]
        %v629 = vld [vmem:[%s565 + $0xfc] sm:$0xf]
        %v630 = vld [vmem:[#allocation2] sm:$0xff]
        %v631 = vld [vmem:[#allocation2 + $0x8] sm:$0xff]
        %v632 = vld [vmem:[#allocation2 + $0x10] sm:$0xff]
        %v633 = vld [vmem:[#allocation2 + $0x18] sm:$0xff]
        %v634 = vld [vmem:[#allocation2 + $0x20] sm:$0xff]
        %v635 = vld [vmem:[#allocation2 + $0x28] sm:$0xff]
        %v636 = vld [vmem:[#allocation2 + $0x30] sm:$0xff]
        %v637 = vld [vmem:[#allocation2 + $0x38] sm:$0xff]
        %v638 = vld [vmem:[#allocation2 + $0x40] sm:$0xff]
        %v639 = vld [vmem:[#allocation2 + $0x48] sm:$0xff]
        %v640 = vld [vmem:[#allocation2 + $0x50] sm:$0xff]
        %v641 = vld [vmem:[#allocation2 + $0x58] sm:$0xff]
        %v642 = vld [vmem:[#allocation2 + $0x60] sm:$0xff]
        %v643 = vld [vmem:[#allocation2 + $0x68] sm:$0xff]
        %v644 = vld [vmem:[#allocation2 + $0x70] sm:$0xff]
        %v645 = vld [vmem:[#allocation2 + $0x78] sm:$0xff]
        %v646 = vld [vmem:[#allocation2 + $0x80] sm:$0xff]
        %v647 = vld [vmem:[#allocation2 + $0x88] sm:$0xff]
        %v648 = vld [vmem:[#allocation2 + $0x90] sm:$0xff]
        %v649 = vld [vmem:[#allocation2 + $0x98] sm:$0xff]
        %v650 = vld [vmem:[#allocation2 + $0xa0] sm:$0xff]
        %v651 = vld [vmem:[#allocation2 + $0xa8] sm:$0xff]
        %v652 = vld [vmem:[#allocation2 + $0xb0] sm:$0xff]
        %v653 = vld [vmem:[#allocation2 + $0xb8] sm:$0xff]
        %v654 = vld [vmem:[#allocation2 + $0xc0] sm:$0xff]
        %v655 = vld [vmem:[#allocation2 + $0xc8] sm:$0xff]
        %v656 = vld [vmem:[#allocation2 + $0xd0] sm:$0xff]
        %v657 = vld [vmem:[#allocation2 + $0xd8] sm:$0xff]
        %v658 = vld [vmem:[#allocation2 + $0xe0] sm:$0xff]
        %v659 = vld [vmem:[#allocation2 + $0xe8] sm:$0xff]
        %v660 = vld [vmem:[#allocation2 + $0xf0] sm:$0xff]
        %v661 = vld [vmem:[#allocation2 + $0xf8] sm:$0xff]
        %v662 = vld [vmem:[#allocation2 + $0x100] sm:$0xff]
        %v663 = vld [vmem:[#allocation2 + $0x108] sm:$0xff]
        %v664 = vld [vmem:[#allocation2 + $0x110] sm:$0xff]
        %v665 = vld [vmem:[#allocation2 + $0x118] sm:$0xff]
        %v666 = vld [vmem:[#allocation2 + $0x120] sm:$0xff]
        %v667 = vld [vmem:[#allocation2 + $0x128] sm:$0xff]
        %v668 = vld [vmem:[#allocation2 + $0x130] sm:$0xff]
        %v669 = vld [vmem:[#allocation2 + $0x138] sm:$0xff]
        %v670 = vld [vmem:[#allocation2 + $0x140] sm:$0xff]
        %v671 = vld [vmem:[#allocation2 + $0x148] sm:$0xff]
        %v672 = vld [vmem:[#allocation2 + $0x150] sm:$0xff]
        %v673 = vld [vmem:[#allocation2 + $0x158] sm:$0xff]
        %v674 = vld [vmem:[#allocation2 + $0x160] sm:$0xff]
        %v675 = vld [vmem:[#allocation2 + $0x168] sm:$0xff]
        %v676 = vld [vmem:[#allocation2 + $0x170] sm:$0xff]
        %v677 = vld [vmem:[#allocation2 + $0x178] sm:$0xff]
        %v678 = vld [vmem:[#allocation2 + $0x180] sm:$0xff]
        %v679 = vld [vmem:[#allocation2 + $0x188] sm:$0xff]
        %v680 = vld [vmem:[#allocation2 + $0x190] sm:$0xff]
        %v681 = vld [vmem:[#allocation2 + $0x198] sm:$0xff]
        %v682 = vld [vmem:[#allocation2 + $0x1a0] sm:$0xff]
        %v683 = vld [vmem:[#allocation2 + $0x1a8] sm:$0xff]
        %v684 = vld [vmem:[#allocation2 + $0x1b0] sm:$0xff]
        %v685 = vld [vmem:[#allocation2 + $0x1b8] sm:$0xff]
        %v686 = vld [vmem:[#allocation2 + $0x1c0] sm:$0xff]
        %v687 = vld [vmem:[#allocation2 + $0x1c8] sm:$0xff]
        %v688 = vld [vmem:[#allocation2 + $0x1d0] sm:$0xff]
        %v689 = vld [vmem:[#allocation2 + $0x1d8] sm:$0xff]
        %v690 = vld [vmem:[#allocation2 + $0x1e0] sm:$0xff]
        %v691 = vld [vmem:[#allocation2 + $0x1e8] sm:$0xff]
        %v692 = vld [vmem:[#allocation2 + $0x1f0] sm:$0xff]
        %v693 = vld [vmem:[#allocation2 + $0x1f8] sm:$0xff]
        %v694 = vld [vmem:[%s461] sm:$0xff]
        %v695 = vld [vmem:[%s461 + $0x8] sm:$0xff]
        %v696 = vld [vmem:[%s461 + $0x10] sm:$0xff]
        %v697 = vld [vmem:[%s461 + $0x18] sm:$0xff]
        %v698 = vld [vmem:[%s461 + $0x20] sm:$0xff]
        %v699 = vld [vmem:[%s461 + $0x28] sm:$0xff]
        %v700 = vld [vmem:[%s461 + $0x30] sm:$0xff]
        %v701 = vld [vmem:[%s461 + $0x38] sm:$0xff]
        %v702 = vld [vmem:[%s461 + $0x40] sm:$0xff]
        %v703 = vld [vmem:[%s461 + $0x48] sm:$0xff]
        %v704 = vld [vmem:[%s461 + $0x50] sm:$0xff]
        %v705 = vld [vmem:[%s461 + $0x58] sm:$0xff]
        %v706 = vld [vmem:[%s461 + $0x60] sm:$0xff]
        %v707 = vld [vmem:[%s461 + $0x68] sm:$0xff]
        %v708 = vld [vmem:[%s461 + $0x70] sm:$0xff]
        %v709 = vld [vmem:[%s461 + $0x78] sm:$0xff]
        %v710 = vld [vmem:[%s461 + $0x80] sm:$0xff]
        %v711 = vld [vmem:[%s461 + $0x88] sm:$0xff]
        %v712 = vld [vmem:[%s461 + $0x90] sm:$0xff]
        %v713 = vld [vmem:[%s461 + $0x98] sm:$0xff]
        %v714 = vld [vmem:[%s461 + $0xa0] sm:$0xff]
        %v715 = vld [vmem:[%s461 + $0xa8] sm:$0xff]
        %v716 = vld [vmem:[%s461 + $0xb0] sm:$0xff]
        %v717 = vld [vmem:[%s461 + $0xb8] sm:$0xff]
        %v718 = vld [vmem:[%s461 + $0xc0] sm:$0xff]
        %v719 = vld [vmem:[%s461 + $0xc8] sm:$0xff]
        %v720 = vld [vmem:[%s461 + $0xd0] sm:$0xff]
        %v721 = vld [vmem:[%s461 + $0xd8] sm:$0xff]
        %v722 = vld [vmem:[%s461 + $0xe0] sm:$0xff]
        %v723 = vld [vmem:[%s461 + $0xe8] sm:$0xff]
        %v724 = vld [vmem:[%s461 + $0xf0] sm:$0xff]
        %v725 = vld [vmem:[%s461 + $0xf8] sm:$0xff]
        %v726 = vld [vmem:[%s461 + $0x100] sm:$0xff]
        %v727 = vld [vmem:[%s461 + $0x108] sm:$0xff]
        %v728 = vld [vmem:[%s461 + $0x110] sm:$0xff]
        %v729 = vld [vmem:[%s461 + $0x118] sm:$0xff]
        %v730 = vld [vmem:[%s461 + $0x120] sm:$0xff]
        %v731 = vld [vmem:[%s461 + $0x128] sm:$0xff]
        %v732 = vld [vmem:[%s461 + $0x130] sm:$0xff]
        %v733 = vld [vmem:[%s461 + $0x138] sm:$0xff]
        %v734 = vld [vmem:[%s461 + $0x140] sm:$0xff]
        %v735 = vld [vmem:[%s461 + $0x148] sm:$0xff]
        %v736 = vld [vmem:[%s461 + $0x150] sm:$0xff]
        %v737 = vld [vmem:[%s461 + $0x158] sm:$0xff]
        %v738 = vld [vmem:[%s461 + $0x160] sm:$0xff]
        %v739 = vld [vmem:[%s461 + $0x168] sm:$0xff]
        %v740 = vld [vmem:[%s461 + $0x170] sm:$0xff]
        %v741 = vld [vmem:[%s461 + $0x178] sm:$0xff]
        %v742 = vld [vmem:[%s461 + $0x180] sm:$0xff]
        %v743 = vld [vmem:[%s461 + $0x188] sm:$0xff]
        %v744 = vld [vmem:[%s461 + $0x190] sm:$0xff]
        %v745 = vld [vmem:[%s461 + $0x198] sm:$0xff]
        %v746 = vld [vmem:[%s461 + $0x1a0] sm:$0xff]
        %v747 = vld [vmem:[%s461 + $0x1a8] sm:$0xff]
        %v748 = vld [vmem:[%s461 + $0x1b0] sm:$0xff]
        %v749 = vld [vmem:[%s461 + $0x1b8] sm:$0xff]
        %v750 = vld [vmem:[%s461 + $0x1c0] sm:$0xff]
        %v751 = vld [vmem:[%s461 + $0x1c8] sm:$0xff]
        %v752 = vld [vmem:[%s461 + $0x1d0] sm:$0xff]
        %v753 = vld [vmem:[%s461 + $0x1d8] sm:$0xff]
        %v754 = vld [vmem:[%s461 + $0x1e0] sm:$0xff]
        %v755 = vld [vmem:[%s461 + $0x1e8] sm:$0xff]
        %v756 = vld [vmem:[%s461 + $0x1f0] sm:$0xff]
        %v757 = vld [vmem:[%s461 + $0x1f8] sm:$0xff]
        %v758 = vld [vmem:[%s461 + $0x200] sm:$0xff]
        %v759 = vld [vmem:[%s461 + $0x208] sm:$0xff]
        %v760 = vld [vmem:[%s461 + $0x210] sm:$0xff]
        %v761 = vld [vmem:[%s461 + $0x218] sm:$0xff]
        %v762 = vld [vmem:[%s461 + $0x220] sm:$0xff]
        %v763 = vld [vmem:[%s461 + $0x228] sm:$0xff]
        %v764 = vld [vmem:[%s461 + $0x230] sm:$0xff]
        %v765 = vld [vmem:[%s461 + $0x238] sm:$0xff]
        %v766 = vld [vmem:[%s461 + $0x240] sm:$0xff]
        %v767 = vld [vmem:[%s461 + $0x248] sm:$0xff]
        %v768 = vld [vmem:[%s461 + $0x250] sm:$0xff]
        %v769 = vld [vmem:[%s461 + $0x258] sm:$0xff]
        %v770 = vld [vmem:[%s461 + $0x260] sm:$0xff]
        %v771 = vld [vmem:[%s461 + $0x268] sm:$0xff]
        %v772 = vld [vmem:[%s461 + $0x270] sm:$0xff]
        %v773 = vld [vmem:[%s461 + $0x278] sm:$0xff]
        %v774 = vld [vmem:[%s461 + $0x280] sm:$0xff]
        %v775 = vld [vmem:[%s461 + $0x288] sm:$0xff]
        %v776 = vld [vmem:[%s461 + $0x290] sm:$0xff]
        %v777 = vld [vmem:[%s461 + $0x298] sm:$0xff]
        %v778 = vld [vmem:[%s461 + $0x2a0] sm:$0xff]
        %v779 = vld [vmem:[%s461 + $0x2a8] sm:$0xff]
        %v780 = vld [vmem:[%s461 + $0x2b0] sm:$0xff]
        %v781 = vld [vmem:[%s461 + $0x2b8] sm:$0xff]
        %v782 = vld [vmem:[%s461 + $0x2c0] sm:$0xff]
        %v783 = vld [vmem:[%s461 + $0x2c8] sm:$0xff]
        %v784 = vld [vmem:[%s461 + $0x2d0] sm:$0xff]
        %v785 = vld [vmem:[%s461 + $0x2d8] sm:$0xff]
        %v786 = vld [vmem:[%s461 + $0x2e0] sm:$0xff]
        %v787 = vld [vmem:[%s461 + $0x2e8] sm:$0xff]
        %v788 = vld [vmem:[%s461 + $0x2f0] sm:$0xff]
        %v789 = vld [vmem:[%s461 + $0x2f8] sm:$0xff]
        %v790 = vld [vmem:[%s461 + $0x300] sm:$0xff]
        %v791 = vld [vmem:[%s461 + $0x308] sm:$0xff]
        %v792 = vld [vmem:[%s461 + $0x310] sm:$0xff]
        %v793 = vld [vmem:[%s461 + $0x318] sm:$0xff]
        %v794 = vld [vmem:[%s461 + $0x320] sm:$0xff]
        %v795 = vld [vmem:[%s461 + $0x328] sm:$0xff]
        %v796 = vld [vmem:[%s461 + $0x330] sm:$0xff]
        %v797 = vld [vmem:[%s461 + $0x338] sm:$0xff]
        %v798 = vld [vmem:[%s461 + $0x340] sm:$0xff]
        %v799 = vld [vmem:[%s461 + $0x348] sm:$0xff]
        %v800 = vld [vmem:[%s461 + $0x350] sm:$0xff]
        %v801 = vld [vmem:[%s461 + $0x358] sm:$0xff]
        %v802 = vld [vmem:[%s461 + $0x360] sm:$0xff]
        %v803 = vld [vmem:[%s461 + $0x368] sm:$0xff]
        %v804 = vld [vmem:[%s461 + $0x370] sm:$0xff]
        %v805 = vld [vmem:[%s461 + $0x378] sm:$0xff]
        %v806 = vld [vmem:[%s461 + $0x380] sm:$0xff]
        %v807 = vld [vmem:[%s461 + $0x388] sm:$0xff]
        %v808 = vld [vmem:[%s461 + $0x390] sm:$0xff]
        %v809 = vld [vmem:[%s461 + $0x398] sm:$0xff]
        %v810 = vld [vmem:[%s461 + $0x3a0] sm:$0xff]
        %v811 = vld [vmem:[%s461 + $0x3a8] sm:$0xff]
        %v812 = vld [vmem:[%s461 + $0x3b0] sm:$0xff]
        %v813 = vld [vmem:[%s461 + $0x3b8] sm:$0xff]
        %v814 = vld [vmem:[%s461 + $0x3c0] sm:$0xff]
        %v815 = vld [vmem:[%s461 + $0x3c8] sm:$0xff]
        %v816 = vld [vmem:[%s461 + $0x3d0] sm:$0xff]
        %v817 = vld [vmem:[%s461 + $0x3d8] sm:$0xff]
        %v818 = vld [vmem:[%s461 + $0x3e0] sm:$0xff]
        %v819 = vld [vmem:[%s461 + $0x3e8] sm:$0xff]
        %v820 = vld [vmem:[%s461 + $0x3f0] sm:$0xff]
        %v821 = vld [vmem:[%s461 + $0x3f8] sm:$0xff]
        %v950 = vunpack.c.l.b16 %v694
        %v951 = vunpack.c.h.b16 %v694
        %v952 = vunpack.c.l.b16 %v695
        %v953 = vunpack.c.h.b16 %v695
        %v954 = vunpack.c.l.b16 %v696
        %v955 = vunpack.c.h.b16 %v696
        %v956 = vunpack.c.l.b16 %v697
        %v957 = vunpack.c.h.b16 %v697
        %v958 = vunpack.c.l.b16 %v698
        %v959 = vunpack.c.h.b16 %v698
        %v960 = vunpack.c.l.b16 %v699
        %v961 = vunpack.c.h.b16 %v699
        %v962 = vunpack.c.l.b16 %v700
        %v963 = vunpack.c.h.b16 %v700
        %v964 = vunpack.c.l.b16 %v701
        %v965 = vunpack.c.h.b16 %v701
        %v966 = vunpack.c.l.b16 %v702
        %v967 = vunpack.c.h.b16 %v702
        %v968 = vunpack.c.l.b16 %v703
        %v969 = vunpack.c.h.b16 %v703
        %v970 = vunpack.c.l.b16 %v704
        %v971 = vunpack.c.h.b16 %v704
        %v972 = vunpack.c.l.b16 %v705
        %v973 = vunpack.c.h.b16 %v705
        %v974 = vunpack.c.l.b16 %v706
        %v975 = vunpack.c.h.b16 %v706
        %v976 = vunpack.c.l.b16 %v707
        %v977 = vunpack.c.h.b16 %v707
        %v978 = vunpack.c.l.b16 %v708
        %v979 = vunpack.c.h.b16 %v708
        %v980 = vunpack.c.l.b16 %v709
        %v981 = vunpack.c.h.b16 %v709
        %v982 = vunpack.c.l.b16 %v710
        %v983 = vunpack.c.h.b16 %v710
        %v984 = vunpack.c.l.b16 %v711
        %v985 = vunpack.c.h.b16 %v711
        %v986 = vunpack.c.l.b16 %v712
        %v987 = vunpack.c.h.b16 %v712
        %v988 = vunpack.c.l.b16 %v713
        %v989 = vunpack.c.h.b16 %v713
        %v990 = vunpack.c.l.b16 %v714
        %v991 = vunpack.c.h.b16 %v714
        %v992 = vunpack.c.l.b16 %v715
        %v993 = vunpack.c.h.b16 %v715
        %v994 = vunpack.c.l.b16 %v716
        %v995 = vunpack.c.h.b16 %v716
        %v996 = vunpack.c.l.b16 %v717
        %v997 = vunpack.c.h.b16 %v717
        %v998 = vunpack.c.l.b16 %v718
        %v999 = vunpack.c.h.b16 %v718
        %v1000 = vunpack.c.l.b16 %v719
        %v1001 = vunpack.c.h.b16 %v719
        %v1002 = vunpack.c.l.b16 %v720
        %v1003 = vunpack.c.h.b16 %v720
        %v1004 = vunpack.c.l.b16 %v721
        %v1005 = vunpack.c.h.b16 %v721
        %v1006 = vunpack.c.l.b16 %v722
        %v1007 = vunpack.c.h.b16 %v722
        %v1008 = vunpack.c.l.b16 %v723
        %v1009 = vunpack.c.h.b16 %v723
        %v1010 = vunpack.c.l.b16 %v724
        %v1011 = vunpack.c.h.b16 %v724
        %v1012 = vunpack.c.l.b16 %v725
        %v1013 = vunpack.c.h.b16 %v725
        %v1014 = vunpack.c.l.b16 %v726
        %v1015 = vunpack.c.h.b16 %v726
        %v1016 = vunpack.c.l.b16 %v727
        %v1017 = vunpack.c.h.b16 %v727
        %v1018 = vunpack.c.l.b16 %v728
        %v1019 = vunpack.c.h.b16 %v728
        %v1020 = vunpack.c.l.b16 %v729
        %v1021 = vunpack.c.h.b16 %v729
        %v1022 = vunpack.c.l.b16 %v730
        %v1023 = vunpack.c.h.b16 %v730
        %v1024 = vunpack.c.l.b16 %v731
        %v1025 = vunpack.c.h.b16 %v731
        %v1026 = vunpack.c.l.b16 %v732
        %v1027 = vunpack.c.h.b16 %v732
        %v1028 = vunpack.c.l.b16 %v733
        %v1029 = vunpack.c.h.b16 %v733
        %v1030 = vunpack.c.l.b16 %v734
        %v1031 = vunpack.c.h.b16 %v734
        %v1032 = vunpack.c.l.b16 %v735
        %v1033 = vunpack.c.h.b16 %v735
        %v1034 = vunpack.c.l.b16 %v736
        %v1035 = vunpack.c.h.b16 %v736
        %v1036 = vunpack.c.l.b16 %v737
        %v1037 = vunpack.c.h.b16 %v737
        %v1038 = vunpack.c.l.b16 %v738
        %v1039 = vunpack.c.h.b16 %v738
        %v1040 = vunpack.c.l.b16 %v739
        %v1041 = vunpack.c.h.b16 %v739
        %v1042 = vunpack.c.l.b16 %v740
        %v1043 = vunpack.c.h.b16 %v740
        %v1044 = vunpack.c.l.b16 %v741
        %v1045 = vunpack.c.h.b16 %v741
        %v1046 = vunpack.c.l.b16 %v742
        %v1047 = vunpack.c.h.b16 %v742
        %v1048 = vunpack.c.l.b16 %v743
        %v1049 = vunpack.c.h.b16 %v743
        %v1050 = vunpack.c.l.b16 %v744
        %v1051 = vunpack.c.h.b16 %v744
        %v1052 = vunpack.c.l.b16 %v745
        %v1053 = vunpack.c.h.b16 %v745
        %v1054 = vunpack.c.l.b16 %v746
        %v1055 = vunpack.c.h.b16 %v746
        %v1056 = vunpack.c.l.b16 %v747
        %v1057 = vunpack.c.h.b16 %v747
        %v1058 = vunpack.c.l.b16 %v748
        %v1059 = vunpack.c.h.b16 %v748
        %v1060 = vunpack.c.l.b16 %v749
        %v1061 = vunpack.c.h.b16 %v749
        %v1062 = vunpack.c.l.b16 %v750
        %v1063 = vunpack.c.h.b16 %v750
        %v1064 = vunpack.c.l.b16 %v751
        %v1065 = vunpack.c.h.b16 %v751
        %v1066 = vunpack.c.l.b16 %v752
        %v1067 = vunpack.c.h.b16 %v752
        %v1068 = vunpack.c.l.b16 %v753
        %v1069 = vunpack.c.h.b16 %v753
        %v1070 = vunpack.c.l.b16 %v754
        %v1071 = vunpack.c.h.b16 %v754
        %v1072 = vunpack.c.l.b16 %v755
        %v1073 = vunpack.c.h.b16 %v755
        %v1074 = vunpack.c.l.b16 %v756
        %v1075 = vunpack.c.h.b16 %v756
        %v1076 = vunpack.c.l.b16 %v757
        %v1077 = vunpack.c.h.b16 %v757
        %v1078 = vunpack.c.l.b16 %v758
        %v1079 = vunpack.c.h.b16 %v758
        %v1080 = vunpack.c.l.b16 %v759
        %v1081 = vunpack.c.h.b16 %v759
        %v1082 = vunpack.c.l.b16 %v760
        %v1083 = vunpack.c.h.b16 %v760
        %v1084 = vunpack.c.l.b16 %v761
        %v1085 = vunpack.c.h.b16 %v761
        %v1086 = vunpack.c.l.b16 %v762
        %v1087 = vunpack.c.h.b16 %v762
        %v1088 = vunpack.c.l.b16 %v763
        %v1089 = vunpack.c.h.b16 %v763
        %v1090 = vunpack.c.l.b16 %v764
        %v1091 = vunpack.c.h.b16 %v764
        %v1092 = vunpack.c.l.b16 %v765
        %v1093 = vunpack.c.h.b16 %v765
        %v1094 = vunpack.c.l.b16 %v766
        %v1095 = vunpack.c.h.b16 %v766
        %v1096 = vunpack.c.l.b16 %v767
        %v1097 = vunpack.c.h.b16 %v767
        %v1098 = vunpack.c.l.b16 %v768
        %v1099 = vunpack.c.h.b16 %v768
        %v1100 = vunpack.c.l.b16 %v769
        %v1101 = vunpack.c.h.b16 %v769
        %v1102 = vunpack.c.l.b16 %v770
        %v1103 = vunpack.c.h.b16 %v770
        %v1104 = vunpack.c.l.b16 %v771
        %v1105 = vunpack.c.h.b16 %v771
        %v1106 = vunpack.c.l.b16 %v772
        %v1107 = vunpack.c.h.b16 %v772
        %v1108 = vunpack.c.l.b16 %v773
        %v1109 = vunpack.c.h.b16 %v773
        %v1110 = vunpack.c.l.b16 %v774
        %v1111 = vunpack.c.h.b16 %v774
        %v1112 = vunpack.c.l.b16 %v775
        %v1113 = vunpack.c.h.b16 %v775
        %v1114 = vunpack.c.l.b16 %v776
        %v1115 = vunpack.c.h.b16 %v776
        %v1116 = vunpack.c.l.b16 %v777
        %v1117 = vunpack.c.h.b16 %v777
        %v1118 = vunpack.c.l.b16 %v778
        %v1119 = vunpack.c.h.b16 %v778
        %v1120 = vunpack.c.l.b16 %v779
        %v1121 = vunpack.c.h.b16 %v779
        %v1122 = vunpack.c.l.b16 %v780
        %v1123 = vunpack.c.h.b16 %v780
        %v1124 = vunpack.c.l.b16 %v781
        %v1125 = vunpack.c.h.b16 %v781
        %v1126 = vunpack.c.l.b16 %v782
        %v1127 = vunpack.c.h.b16 %v782
        %v1128 = vunpack.c.l.b16 %v783
        %v1129 = vunpack.c.h.b16 %v783
        %v1130 = vunpack.c.l.b16 %v784
        %v1131 = vunpack.c.h.b16 %v784
        %v1132 = vunpack.c.l.b16 %v785
        %v1133 = vunpack.c.h.b16 %v785
        %v1134 = vunpack.c.l.b16 %v786
        %v1135 = vunpack.c.h.b16 %v786
        %v1136 = vunpack.c.l.b16 %v787
        %v1137 = vunpack.c.h.b16 %v787
        %v1138 = vunpack.c.l.b16 %v788
        %v1139 = vunpack.c.h.b16 %v788
        %v1140 = vunpack.c.l.b16 %v789
        %v1141 = vunpack.c.h.b16 %v789
        %v1142 = vunpack.c.l.b16 %v790
        %v1143 = vunpack.c.h.b16 %v790
        %v1144 = vunpack.c.l.b16 %v791
        %v1145 = vunpack.c.h.b16 %v791
        %v1146 = vunpack.c.l.b16 %v792
        %v1147 = vunpack.c.h.b16 %v792
        %v1148 = vunpack.c.l.b16 %v793
        %v1149 = vunpack.c.h.b16 %v793
        %v1150 = vunpack.c.l.b16 %v794
        %v1151 = vunpack.c.h.b16 %v794
        %v1152 = vunpack.c.l.b16 %v795
        %v1153 = vunpack.c.h.b16 %v795
        %v1154 = vunpack.c.l.b16 %v796
        %v1155 = vunpack.c.h.b16 %v796
        %v1156 = vunpack.c.l.b16 %v797
        %v1157 = vunpack.c.h.b16 %v797
        %v1158 = vunpack.c.l.b16 %v798
        %v1159 = vunpack.c.h.b16 %v798
        %v1160 = vunpack.c.l.b16 %v799
        %v1161 = vunpack.c.h.b16 %v799
        %v1162 = vunpack.c.l.b16 %v800
        %v1163 = vunpack.c.h.b16 %v800
        %v1164 = vunpack.c.l.b16 %v801
        %v1165 = vunpack.c.h.b16 %v801
        %v1166 = vunpack.c.l.b16 %v802
        %v1167 = vunpack.c.h.b16 %v802
        %v1168 = vunpack.c.l.b16 %v803
        %v1169 = vunpack.c.h.b16 %v803
        %v1170 = vunpack.c.l.b16 %v804
        %v1171 = vunpack.c.h.b16 %v804
        %v1172 = vunpack.c.l.b16 %v805
        %v1173 = vunpack.c.h.b16 %v805
        %v1174 = vunpack.c.l.b16 %v806
        %v1175 = vunpack.c.h.b16 %v806
        %v1176 = vunpack.c.l.b16 %v807
        %v1177 = vunpack.c.h.b16 %v807
        %v1178 = vunpack.c.l.b16 %v808
        %v1179 = vunpack.c.h.b16 %v808
        %v1180 = vunpack.c.l.b16 %v809
        %v1181 = vunpack.c.h.b16 %v809
        %v1182 = vunpack.c.l.b16 %v810
        %v1183 = vunpack.c.h.b16 %v810
        %v1184 = vunpack.c.l.b16 %v811
        %v1185 = vunpack.c.h.b16 %v811
        %v1186 = vunpack.c.l.b16 %v812
        %v1187 = vunpack.c.h.b16 %v812
        %v1188 = vunpack.c.l.b16 %v813
        %v1189 = vunpack.c.h.b16 %v813
        %v1190 = vunpack.c.l.b16 %v814
        %v1191 = vunpack.c.h.b16 %v814
        %v1192 = vunpack.c.l.b16 %v815
        %v1193 = vunpack.c.h.b16 %v815
        %v1194 = vunpack.c.l.b16 %v816
        %v1195 = vunpack.c.h.b16 %v816
        %v1196 = vunpack.c.l.b16 %v817
        %v1197 = vunpack.c.h.b16 %v817
        %v1198 = vunpack.c.l.b16 %v818
        %v1199 = vunpack.c.h.b16 %v818
        %v1200 = vunpack.c.l.b16 %v819
        %v1201 = vunpack.c.h.b16 %v819
        %v1202 = vunpack.c.l.b16 %v820
        %v1203 = vunpack.c.h.b16 %v820
        %v1204 = vunpack.c.l.b16 %v821
        %v1205 = vunpack.c.h.b16 %v821
        %v1206 = vpack.c.b16 %v954, %v950
        %v1207 = vpack.c.b16 %v955, %v951
        %v1208 = vpack.c.b16 %v956, %v952
        %v1209 = vpack.c.b16 %v957, %v953
        %v1210 = vpack.c.b16 %v962, %v958
        %v1211 = vpack.c.b16 %v963, %v959
        %v1212 = vpack.c.b16 %v964, %v960
        %v1213 = vpack.c.b16 %v965, %v961
        %v1214 = vpack.c.b16 %v970, %v966
        %v1215 = vpack.c.b16 %v971, %v967
        %v1216 = vpack.c.b16 %v972, %v968
        %v1217 = vpack.c.b16 %v973, %v969
        %v1218 = vpack.c.b16 %v978, %v974
        %v1219 = vpack.c.b16 %v979, %v975
        %v1220 = vpack.c.b16 %v980, %v976
        %v1221 = vpack.c.b16 %v981, %v977
        %v1222 = vpack.c.b16 %v986, %v982
        %v1223 = vpack.c.b16 %v987, %v983
        %v1224 = vpack.c.b16 %v988, %v984
        %v1225 = vpack.c.b16 %v989, %v985
        %v1226 = vpack.c.b16 %v994, %v990
        %v1227 = vpack.c.b16 %v995, %v991
        %v1228 = vpack.c.b16 %v996, %v992
        %v1229 = vpack.c.b16 %v997, %v993
        %v1230 = vpack.c.b16 %v1002, %v998
        %v1231 = vpack.c.b16 %v1003, %v999
        %v1232 = vpack.c.b16 %v1004, %v1000
        %v1233 = vpack.c.b16 %v1005, %v1001
        %v1234 = vpack.c.b16 %v1010, %v1006
        %v1235 = vpack.c.b16 %v1011, %v1007
        %v1236 = vpack.c.b16 %v1012, %v1008
        %v1237 = vpack.c.b16 %v1013, %v1009
        %v1238 = vpack.c.b16 %v1018, %v1014
        %v1239 = vpack.c.b16 %v1019, %v1015
        %v1240 = vpack.c.b16 %v1020, %v1016
        %v1241 = vpack.c.b16 %v1021, %v1017
        %v1242 = vpack.c.b16 %v1026, %v1022
        %v1243 = vpack.c.b16 %v1027, %v1023
        %v1244 = vpack.c.b16 %v1028, %v1024
        %v1245 = vpack.c.b16 %v1029, %v1025
        %v1246 = vpack.c.b16 %v1034, %v1030
        %v1247 = vpack.c.b16 %v1035, %v1031
        %v1248 = vpack.c.b16 %v1036, %v1032
        %v1249 = vpack.c.b16 %v1037, %v1033
        %v1250 = vpack.c.b16 %v1042, %v1038
        %v1251 = vpack.c.b16 %v1043, %v1039
        %v1252 = vpack.c.b16 %v1044, %v1040
        %v1253 = vpack.c.b16 %v1045, %v1041
        %v1254 = vpack.c.b16 %v1050, %v1046
        %v1255 = vpack.c.b16 %v1051, %v1047
        %v1256 = vpack.c.b16 %v1052, %v1048
        %v1257 = vpack.c.b16 %v1053, %v1049
        %v1258 = vpack.c.b16 %v1058, %v1054
        %v1259 = vpack.c.b16 %v1059, %v1055
        %v1260 = vpack.c.b16 %v1060, %v1056
        %v1261 = vpack.c.b16 %v1061, %v1057
        %v1262 = vpack.c.b16 %v1066, %v1062
        %v1263 = vpack.c.b16 %v1067, %v1063
        %v1264 = vpack.c.b16 %v1068, %v1064
        %v1265 = vpack.c.b16 %v1069, %v1065
        %v1266 = vpack.c.b16 %v1074, %v1070
        %v1267 = vpack.c.b16 %v1075, %v1071
        %v1268 = vpack.c.b16 %v1076, %v1072
        %v1269 = vpack.c.b16 %v1077, %v1073
        %v1270 = vpack.c.b16 %v1082, %v1078
        %v1271 = vpack.c.b16 %v1083, %v1079
        %v1272 = vpack.c.b16 %v1084, %v1080
        %v1273 = vpack.c.b16 %v1085, %v1081
        %v1274 = vpack.c.b16 %v1090, %v1086
        %v1275 = vpack.c.b16 %v1091, %v1087
        %v1276 = vpack.c.b16 %v1092, %v1088
        %v1277 = vpack.c.b16 %v1093, %v1089
        %v1278 = vpack.c.b16 %v1098, %v1094
        %v1279 = vpack.c.b16 %v1099, %v1095
        %v1280 = vpack.c.b16 %v1100, %v1096
        %v1281 = vpack.c.b16 %v1101, %v1097
        %v1282 = vpack.c.b16 %v1106, %v1102
        %v1283 = vpack.c.b16 %v1107, %v1103
        %v1284 = vpack.c.b16 %v1108, %v1104
        %v1285 = vpack.c.b16 %v1109, %v1105
        %v1286 = vpack.c.b16 %v1114, %v1110
        %v1287 = vpack.c.b16 %v1115, %v1111
        %v1288 = vpack.c.b16 %v1116, %v1112
        %v1289 = vpack.c.b16 %v1117, %v1113
        %v1290 = vpack.c.b16 %v1122, %v1118
        %v1291 = vpack.c.b16 %v1123, %v1119
        %v1292 = vpack.c.b16 %v1124, %v1120
        %v1293 = vpack.c.b16 %v1125, %v1121
        %v1294 = vpack.c.b16 %v1130, %v1126
        %v1295 = vpack.c.b16 %v1131, %v1127
        %v1296 = vpack.c.b16 %v1132, %v1128
        %v1297 = vpack.c.b16 %v1133, %v1129
        %v1298 = vpack.c.b16 %v1138, %v1134
        %v1299 = vpack.c.b16 %v1139, %v1135
        %v1300 = vpack.c.b16 %v1140, %v1136
        %v1301 = vpack.c.b16 %v1141, %v1137
        %v1302 = vpack.c.b16 %v1146, %v1142
        %v1303 = vpack.c.b16 %v1147, %v1143
        %v1304 = vpack.c.b16 %v1148, %v1144
        %v1305 = vpack.c.b16 %v1149, %v1145
        %v1306 = vpack.c.b16 %v1154, %v1150
        %v1307 = vpack.c.b16 %v1155, %v1151
        %v1308 = vpack.c.b16 %v1156, %v1152
        %v1309 = vpack.c.b16 %v1157, %v1153
        %v1310 = vpack.c.b16 %v1162, %v1158
        %v1311 = vpack.c.b16 %v1163, %v1159
        %v1312 = vpack.c.b16 %v1164, %v1160
        %v1313 = vpack.c.b16 %v1165, %v1161
        %v1314 = vpack.c.b16 %v1170, %v1166
        %v1315 = vpack.c.b16 %v1171, %v1167
        %v1316 = vpack.c.b16 %v1172, %v1168
        %v1317 = vpack.c.b16 %v1173, %v1169
        %v1318 = vpack.c.b16 %v1178, %v1174
        %v1319 = vpack.c.b16 %v1179, %v1175
        %v1320 = vpack.c.b16 %v1180, %v1176
        %v1321 = vpack.c.b16 %v1181, %v1177
        %v1322 = vpack.c.b16 %v1186, %v1182
        %v1323 = vpack.c.b16 %v1187, %v1183
        %v1324 = vpack.c.b16 %v1188, %v1184
        %v1325 = vpack.c.b16 %v1189, %v1185
        %v1326 = vpack.c.b16 %v1194, %v1190
        %v1327 = vpack.c.b16 %v1195, %v1191
        %v1328 = vpack.c.b16 %v1196, %v1192
        %v1329 = vpack.c.b16 %v1197, %v1193
        %v1330 = vpack.c.b16 %v1202, %v1198
        %v1331 = vpack.c.b16 %v1203, %v1199
        %v1332 = vpack.c.b16 %v1204, %v1200
        %v1333 = vpack.c.b16 %v1205, %v1201
        %v1526 = vunpack.c.l.b16 %v566
        %v1527 = vunpack.c.l.b16 %v567
        %v1528 = vunpack.c.l.b16 %v568
        %v1529 = vunpack.c.l.b16 %v569
        %v1530 = vunpack.c.l.b16 %v570
        %v1531 = vunpack.c.l.b16 %v571
        %v1532 = vunpack.c.l.b16 %v572
        %v1533 = vunpack.c.l.b16 %v573
        %v1534 = vunpack.c.l.b16 %v574
        %v1535 = vunpack.c.l.b16 %v575
        %v1536 = vunpack.c.l.b16 %v576
        %v1537 = vunpack.c.l.b16 %v577
        %v1538 = vunpack.c.l.b16 %v578
        %v1539 = vunpack.c.l.b16 %v579
        %v1540 = vunpack.c.l.b16 %v580
        %v1541 = vunpack.c.l.b16 %v581
        %v1542 = vunpack.c.l.b16 %v582
        %v1543 = vunpack.c.l.b16 %v583
        %v1544 = vunpack.c.l.b16 %v584
        %v1545 = vunpack.c.l.b16 %v585
        %v1546 = vunpack.c.l.b16 %v586
        %v1547 = vunpack.c.l.b16 %v587
        %v1548 = vunpack.c.l.b16 %v588
        %v1549 = vunpack.c.l.b16 %v589
        %v1550 = vunpack.c.l.b16 %v590
        %v1551 = vunpack.c.l.b16 %v591
        %v1552 = vunpack.c.l.b16 %v592
        %v1553 = vunpack.c.l.b16 %v593
        %v1554 = vunpack.c.l.b16 %v594
        %v1555 = vunpack.c.l.b16 %v595
        %v1556 = vunpack.c.l.b16 %v596
        %v1557 = vunpack.c.l.b16 %v597
        %v1558 = vunpack.c.l.b16 %v598
        %v1559 = vunpack.c.l.b16 %v599
        %v1560 = vunpack.c.l.b16 %v600
        %v1561 = vunpack.c.l.b16 %v601
        %v1562 = vunpack.c.l.b16 %v602
        %v1563 = vunpack.c.l.b16 %v603
        %v1564 = vunpack.c.l.b16 %v604
        %v1565 = vunpack.c.l.b16 %v605
        %v1566 = vunpack.c.l.b16 %v606
        %v1567 = vunpack.c.l.b16 %v607
        %v1568 = vunpack.c.l.b16 %v608
        %v1569 = vunpack.c.l.b16 %v609
        %v1570 = vunpack.c.l.b16 %v610
        %v1571 = vunpack.c.l.b16 %v611
        %v1572 = vunpack.c.l.b16 %v612
        %v1573 = vunpack.c.l.b16 %v613
        %v1574 = vunpack.c.l.b16 %v614
        %v1575 = vunpack.c.l.b16 %v615
        %v1576 = vunpack.c.l.b16 %v616
        %v1577 = vunpack.c.l.b16 %v617
        %v1578 = vunpack.c.l.b16 %v618
        %v1579 = vunpack.c.l.b16 %v619
        %v1580 = vunpack.c.l.b16 %v620
        %v1581 = vunpack.c.l.b16 %v621
        %v1582 = vunpack.c.l.b16 %v622
        %v1583 = vunpack.c.l.b16 %v623
        %v1584 = vunpack.c.l.b16 %v624
        %v1585 = vunpack.c.l.b16 %v625
        %v1586 = vunpack.c.l.b16 %v626
        %v1587 = vunpack.c.l.b16 %v627
        %v1588 = vunpack.c.l.b16 %v628
        %v1589 = vunpack.c.l.b16 %v629
        %v1590 = vpack.c.b16 %v1527, %v1526
        %v1591 = vpack.c.b16 %v1529, %v1528
        %v1592 = vpack.c.b16 %v1531, %v1530
        %v1593 = vpack.c.b16 %v1533, %v1532
        %v1594 = vpack.c.b16 %v1535, %v1534
        %v1595 = vpack.c.b16 %v1537, %v1536
        %v1596 = vpack.c.b16 %v1539, %v1538
        %v1597 = vpack.c.b16 %v1541, %v1540
        %v1598 = vpack.c.b16 %v1543, %v1542
        %v1599 = vpack.c.b16 %v1545, %v1544
        %v1600 = vpack.c.b16 %v1547, %v1546
        %v1601 = vpack.c.b16 %v1549, %v1548
        %v1602 = vpack.c.b16 %v1551, %v1550
        %v1603 = vpack.c.b16 %v1553, %v1552
        %v1604 = vpack.c.b16 %v1555, %v1554
        %v1605 = vpack.c.b16 %v1557, %v1556
        %v1606 = vpack.c.b16 %v1559, %v1558
        %v1607 = vpack.c.b16 %v1561, %v1560
        %v1608 = vpack.c.b16 %v1563, %v1562
        %v1609 = vpack.c.b16 %v1565, %v1564
        %v1610 = vpack.c.b16 %v1567, %v1566
        %v1611 = vpack.c.b16 %v1569, %v1568
        %v1612 = vpack.c.b16 %v1571, %v1570
        %v1613 = vpack.c.b16 %v1573, %v1572
        %v1614 = vpack.c.b16 %v1575, %v1574
        %v1615 = vpack.c.b16 %v1577, %v1576
        %v1616 = vpack.c.b16 %v1579, %v1578
        %v1617 = vpack.c.b16 %v1581, %v1580
        %v1618 = vpack.c.b16 %v1583, %v1582
        %v1619 = vpack.c.b16 %v1585, %v1584
        %v1620 = vpack.c.b16 %v1587, %v1586
        %v1621 = vpack.c.b16 %v1589, %v1588
        %1654 = vmatprep.subr.bf16.mxu0 0
        %1655 = vmatpush1.bf16.msra.mxu0 %v1590
        %1656 = vmatprep.subr.bf16.mxu0 0
        %1657 = vmatpush1.bf16.msra.mxu0 %v1591
        %1658 = vmatprep.subr.bf16.mxu0 0
        %1659 = vmatpush1.bf16.msra.mxu0 %v1592
        %1660 = vmatprep.subr.bf16.mxu0 0
        %1661 = vmatpush1.bf16.msra.mxu0 %v1593
        %1662 = vmatprep.subr.bf16.mxu0 0
        %1663 = vmatpush1.bf16.msra.mxu0 %v1594
        %1664 = vmatprep.subr.bf16.mxu0 0
        %1665 = vmatpush1.bf16.msra.mxu0 %v1595
        %1666 = vmatprep.subr.bf16.mxu0 0
        %1667 = vmatpush1.bf16.msra.mxu0 %v1596
        %1668 = vmatprep.subr.bf16.mxu0 0
        %1669 = vmatpush1.bf16.msra.mxu0 %v1597
        %1670 = vmatprep.subr.bf16.mxu0 0
        %1671 = vmatpush1.bf16.msra.mxu0 %v1598
        %1672 = vmatprep.subr.bf16.mxu0 0
        %1673 = vmatpush1.bf16.msra.mxu0 %v1599
        %1674 = vmatprep.subr.bf16.mxu0 0
        %1675 = vmatpush1.bf16.msra.mxu0 %v1600
        %1676 = vmatprep.subr.bf16.mxu0 0
        %1677 = vmatpush1.bf16.msra.mxu0 %v1601
        %1678 = vmatprep.subr.bf16.mxu0 0
        %1679 = vmatpush1.bf16.msra.mxu0 %v1602
        %1680 = vmatprep.subr.bf16.mxu0 0
        %1681 = vmatpush1.bf16.msra.mxu0 %v1603
        %1682 = vmatprep.subr.bf16.mxu0 0
        %1683 = vmatpush1.bf16.msra.mxu0 %v1604
        %1684 = vmatprep.subr.bf16.mxu0 0
        %1685 = vmatpush1.bf16.msra.mxu0 %v1605
        %1686 = vmatprep.mubr.bf16.mxu0 %v1207
        %1687 = vmatmul.mubr.bf16.gmra.mrb[0].mxu0 %v1206
        %v1688 = vpop.f32.mrb[0].mxu0
        %v1689 = vadd.f32 0.0, %v1688
        %v1690 = vpop.f32.mrb[0].mxu0
        %v1691 = vpop.f32.mrb[0].mxu0
        %v1692 = vadd.f32 0.0, %v1691
        %v1693 = vpop.f32.mrb[0].mxu0
        %1694 = vmatprep.mubr.bf16.mxu0 %v1211
        %1695 = vmatmul.mubr.bf16.gmra.mrb[0].mxu0 %v1210
        %v1696 = vpop.f32.mrb[0].mxu0
        %v1697 = vadd.f32 0.0, %v1696
        %v1698 = vpop.f32.mrb[0].mxu0
        %v1699 = vpop.f32.mrb[0].mxu0
        %v1700 = vadd.f32 0.0, %v1699
        %v1701 = vpop.f32.mrb[0].mxu0
        %1702 = vmatprep.mubr.bf16.mxu0 %v1215
        %1703 = vmatmul.mubr.bf16.gmra.mrb[0].mxu0 %v1214
        %v1704 = vpop.f32.mrb[0].mxu0
        %v1705 = vadd.f32 0.0, %v1704
        %v1706 = vpop.f32.mrb[0].mxu0
        %v1707 = vpop.f32.mrb[0].mxu0
        %v1708 = vadd.f32 0.0, %v1707
        %v1709 = vpop.f32.mrb[0].mxu0
        %1710 = vmatprep.mubr.bf16.mxu0 %v1219
        %1711 = vmatmul.mubr.bf16.gmra.mrb[0].mxu0 %v1218
        %v1712 = vpop.f32.mrb[0].mxu0
        %v1713 = vadd.f32 0.0, %v1712
        %v1714 = vpop.f32.mrb[0].mxu0
        %v1715 = vpop.f32.mrb[0].mxu0
        %v1716 = vadd.f32 0.0, %v1715
        %v1717 = vpop.f32.mrb[0].mxu0
        %1718 = vmatprep.mubr.bf16.mxu0 %v1223
        %1719 = vmatmul.mubr.bf16.gmra.mrb[0].mxu0 %v1222
        %v1720 = vpop.f32.mrb[0].mxu0
        %v1721 = vadd.f32 0.0, %v1720
        %v1722 = vpop.f32.mrb[0].mxu0
        %v1723 = vpop.f32.mrb[0].mxu0
        %v1724 = vadd.f32 0.0, %v1723
        %v1725 = vpop.f32.mrb[0].mxu0
        %1726 = vmatprep.mubr.bf16.mxu0 %v1227
        %1727 = vmatmul.mubr.bf16.gmra.mrb[0].mxu0 %v1226
        %v1728 = vpop.f32.mrb[0].mxu0
        %v1729 = vadd.f32 0.0, %v1728
        %v1730 = vpop.f32.mrb[0].mxu0
        %v1731 = vpop.f32.mrb[0].mxu0
        %v1732 = vadd.f32 0.0, %v1731
        %v1733 = vpop.f32.mrb[0].mxu0
        %1734 = vmatprep.mubr.bf16.mxu0 %v1231
        %1735 = vmatmul.mubr.bf16.gmra.mrb[0].mxu0 %v1230
        %v1736 = vpop.f32.mrb[0].mxu0
        %v1737 = vadd.f32 0.0, %v1736
        %v1738 = vpop.f32.mrb[0].mxu0
        %v1739 = vpop.f32.mrb[0].mxu0
        %v1740 = vadd.f32 0.0, %v1739
        %v1741 = vpop.f32.mrb[0].mxu0
        %1742 = vmatprep.mubr.bf16.mxu0 %v1235
        %1743 = vmatmul.mubr.bf16.gmra.mrb[0].mxu0 %v1234
        %v1744 = vpop.f32.mrb[0].mxu0
        %v1745 = vadd.f32 0.0, %v1744
        %v1746 = vpop.f32.mrb[0].mxu0
        %v1747 = vpop.f32.mrb[0].mxu0
        %v1748 = vadd.f32 0.0, %v1747
        %v1749 = vpop.f32.mrb[0].mxu0
        %1750 = vmatprep.mubr.bf16.mxu0 %v1239
        %1751 = vmatmul.mubr.bf16.gmra.mrb[0].mxu0 %v1238
        %v1752 = vpop.f32.mrb[0].mxu0
        %v1753 = vadd.f32 0.0, %v1752
        %v1754 = vpop.f32.mrb[0].mxu0
        %v1755 = vpop.f32.mrb[0].mxu0
        %v1756 = vadd.f32 0.0, %v1755
        %v1757 = vpop.f32.mrb[0].mxu0
        %1758 = vmatprep.mubr.bf16.mxu0 %v1243
        %1759 = vmatmul.mubr.bf16.gmra.mrb[0].mxu0 %v1242
        %v1760 = vpop.f32.mrb[0].mxu0
        %v1761 = vadd.f32 0.0, %v1760
        %v1762 = vpop.f32.mrb[0].mxu0
        %v1763 = vpop.f32.mrb[0].mxu0
        %v1764 = vadd.f32 0.0, %v1763
        %v1765 = vpop.f32.mrb[0].mxu0
        %1766 = vmatprep.mubr.bf16.mxu0 %v1247
        %1767 = vmatmul.mubr.bf16.gmra.mrb[0].mxu0 %v1246
        %v1768 = vpop.f32.mrb[0].mxu0
        %v1769 = vadd.f32 0.0, %v1768
        %v1770 = vpop.f32.mrb[0].mxu0
        %v1771 = vpop.f32.mrb[0].mxu0
        %v1772 = vadd.f32 0.0, %v1771
        %v1773 = vpop.f32.mrb[0].mxu0
        %1774 = vmatprep.mubr.bf16.mxu0 %v1251
        %1775 = vmatmul.mubr.bf16.gmra.mrb[0].mxu0 %v1250
        %v1776 = vpop.f32.mrb[0].mxu0
        %v1777 = vadd.f32 0.0, %v1776
        %v1778 = vpop.f32.mrb[0].mxu0
        %v1779 = vpop.f32.mrb[0].mxu0
        %v1780 = vadd.f32 0.0, %v1779
        %v1781 = vpop.f32.mrb[0].mxu0
        %1782 = vmatprep.mubr.bf16.mxu0 %v1255
        %1783 = vmatmul.mubr.bf16.gmra.mrb[0].mxu0 %v1254
        %v1784 = vpop.f32.mrb[0].mxu0
        %v1785 = vadd.f32 0.0, %v1784
        %v1786 = vpop.f32.mrb[0].mxu0
        %v1787 = vpop.f32.mrb[0].mxu0
        %v1788 = vadd.f32 0.0, %v1787
        %v1789 = vpop.f32.mrb[0].mxu0
        %1790 = vmatprep.mubr.bf16.mxu0 %v1259
        %1791 = vmatmul.mubr.bf16.gmra.mrb[0].mxu0 %v1258
        %v1792 = vpop.f32.mrb[0].mxu0
        %v1793 = vadd.f32 0.0, %v1792
        %v1794 = vpop.f32.mrb[0].mxu0
        %v1795 = vpop.f32.mrb[0].mxu0
        %v1796 = vadd.f32 0.0, %v1795
        %v1797 = vpop.f32.mrb[0].mxu0
        %1798 = vmatprep.mubr.bf16.mxu0 %v1263
        %1799 = vmatmul.mubr.bf16.gmra.mrb[0].mxu0 %v1262
        %v1800 = vpop.f32.mrb[0].mxu0
        %v1801 = vadd.f32 0.0, %v1800
        %v1802 = vpop.f32.mrb[0].mxu0
        %v1803 = vpop.f32.mrb[0].mxu0
        %v1804 = vadd.f32 0.0, %v1803
        %v1805 = vpop.f32.mrb[0].mxu0
        %1806 = vmatprep.mubr.bf16.mxu0 %v1267
        %1807 = vmatmul.mubr.bf16.gmra.mrb[0].mxu0 %v1266
        %v1808 = vpop.f32.mrb[0].mxu0
        %v1809 = vadd.f32 0.0, %v1808
        %v1810 = vpop.f32.mrb[0].mxu0
        %v1811 = vpop.f32.mrb[0].mxu0
        %v1812 = vadd.f32 0.0, %v1811
        %v1813 = vpop.f32.mrb[0].mxu0
        %1814 = vmatprep.mubr.bf16.mxu0 %v1271
        %1815 = vmatmul.mubr.bf16.gmra.mrb[0].mxu0 %v1270
        %v1816 = vpop.f32.mrb[0].mxu0
        %v1817 = vadd.f32 0.0, %v1816
        %v1818 = vpop.f32.mrb[0].mxu0
        %v1819 = vpop.f32.mrb[0].mxu0
        %v1820 = vadd.f32 0.0, %v1819
        %v1821 = vpop.f32.mrb[0].mxu0
        %1822 = vmatprep.mubr.bf16.mxu0 %v1275
        %1823 = vmatmul.mubr.bf16.gmra.mrb[0].mxu0 %v1274
        %v1824 = vpop.f32.mrb[0].mxu0
        %v1825 = vadd.f32 0.0, %v1824
        %v1826 = vpop.f32.mrb[0].mxu0
        %v1827 = vpop.f32.mrb[0].mxu0
        %v1828 = vadd.f32 0.0, %v1827
        %v1829 = vpop.f32.mrb[0].mxu0
        %1830 = vmatprep.mubr.bf16.mxu0 %v1279
        %1831 = vmatmul.mubr.bf16.gmra.mrb[0].mxu0 %v1278
        %v1832 = vpop.f32.mrb[0].mxu0
        %v1833 = vadd.f32 0.0, %v1832
        %v1834 = vpop.f32.mrb[0].mxu0
        %v1835 = vpop.f32.mrb[0].mxu0
        %v1836 = vadd.f32 0.0, %v1835
        %v1837 = vpop.f32.mrb[0].mxu0
        %1838 = vmatprep.mubr.bf16.mxu0 %v1283
        %1839 = vmatmul.mubr.bf16.gmra.mrb[0].mxu0 %v1282
        %v1840 = vpop.f32.mrb[0].mxu0
        %v1841 = vadd.f32 0.0, %v1840
        %v1842 = vpop.f32.mrb[0].mxu0
        %v1843 = vpop.f32.mrb[0].mxu0
        %v1844 = vadd.f32 0.0, %v1843
        %v1845 = vpop.f32.mrb[0].mxu0
        %1846 = vmatprep.mubr.bf16.mxu0 %v1287
        %1847 = vmatmul.mubr.bf16.gmra.mrb[0].mxu0 %v1286
        %v1848 = vpop.f32.mrb[0].mxu0
        %v1849 = vadd.f32 0.0, %v1848
        %v1850 = vpop.f32.mrb[0].mxu0
        %v1851 = vpop.f32.mrb[0].mxu0
        %v1852 = vadd.f32 0.0, %v1851
        %v1853 = vpop.f32.mrb[0].mxu0
        %1854 = vmatprep.mubr.bf16.mxu0 %v1291
        %1855 = vmatmul.mubr.bf16.gmra.mrb[0].mxu0 %v1290
        %v1856 = vpop.f32.mrb[0].mxu0
        %v1857 = vadd.f32 0.0, %v1856
        %v1858 = vpop.f32.mrb[0].mxu0
        %v1859 = vpop.f32.mrb[0].mxu0
        %v1860 = vadd.f32 0.0, %v1859
        %v1861 = vpop.f32.mrb[0].mxu0
        %1862 = vmatprep.mubr.bf16.mxu0 %v1295
        %1863 = vmatmul.mubr.bf16.gmra.mrb[0].mxu0 %v1294
        %v1864 = vpop.f32.mrb[0].mxu0
        %v1865 = vadd.f32 0.0, %v1864
        %v1866 = vpop.f32.mrb[0].mxu0
        %v1867 = vpop.f32.mrb[0].mxu0
        %v1868 = vadd.f32 0.0, %v1867
        %v1869 = vpop.f32.mrb[0].mxu0
        %1870 = vmatprep.mubr.bf16.mxu0 %v1299
        %1871 = vmatmul.mubr.bf16.gmra.mrb[0].mxu0 %v1298
        %v1872 = vpop.f32.mrb[0].mxu0
        %v1873 = vadd.f32 0.0, %v1872
        %v1874 = vpop.f32.mrb[0].mxu0
        %v1875 = vpop.f32.mrb[0].mxu0
        %v1876 = vadd.f32 0.0, %v1875
        %v1877 = vpop.f32.mrb[0].mxu0
        %1878 = vmatprep.mubr.bf16.mxu0 %v1303
        %1879 = vmatmul.mubr.bf16.gmra.mrb[0].mxu0 %v1302
        %v1880 = vpop.f32.mrb[0].mxu0
        %v1881 = vadd.f32 0.0, %v1880
        %v1882 = vpop.f32.mrb[0].mxu0
        %v1883 = vpop.f32.mrb[0].mxu0
        %v1884 = vadd.f32 0.0, %v1883
        %v1885 = vpop.f32.mrb[0].mxu0
        %1886 = vmatprep.mubr.bf16.mxu0 %v1307
        %1887 = vmatmul.mubr.bf16.gmra.mrb[0].mxu0 %v1306
        %v1888 = vpop.f32.mrb[0].mxu0
        %v1889 = vadd.f32 0.0, %v1888
        %v1890 = vpop.f32.mrb[0].mxu0
        %v1891 = vpop.f32.mrb[0].mxu0
        %v1892 = vadd.f32 0.0, %v1891
        %v1893 = vpop.f32.mrb[0].mxu0
        %1894 = vmatprep.mubr.bf16.mxu0 %v1311
        %1895 = vmatmul.mubr.bf16.gmra.mrb[0].mxu0 %v1310
        %v1896 = vpop.f32.mrb[0].mxu0
        %v1897 = vadd.f32 0.0, %v1896
        %v1898 = vpop.f32.mrb[0].mxu0
        %v1899 = vpop.f32.mrb[0].mxu0
        %v1900 = vadd.f32 0.0, %v1899
        %v1901 = vpop.f32.mrb[0].mxu0
        %1902 = vmatprep.mubr.bf16.mxu0 %v1315
        %1903 = vmatmul.mubr.bf16.gmra.mrb[0].mxu0 %v1314
        %v1904 = vpop.f32.mrb[0].mxu0
        %v1905 = vadd.f32 0.0, %v1904
        %v1906 = vpop.f32.mrb[0].mxu0
        %v1907 = vpop.f32.mrb[0].mxu0
        %v1908 = vadd.f32 0.0, %v1907
        %v1909 = vpop.f32.mrb[0].mxu0
        %1910 = vmatprep.mubr.bf16.mxu0 %v1319
        %1911 = vmatmul.mubr.bf16.gmra.mrb[0].mxu0 %v1318
        %v1912 = vpop.f32.mrb[0].mxu0
        %v1913 = vadd.f32 0.0, %v1912
        %v1914 = vpop.f32.mrb[0].mxu0
        %v1915 = vpop.f32.mrb[0].mxu0
        %v1916 = vadd.f32 0.0, %v1915
        %v1917 = vpop.f32.mrb[0].mxu0
        %1918 = vmatprep.mubr.bf16.mxu0 %v1323
        %1919 = vmatmul.mubr.bf16.gmra.mrb[0].mxu0 %v1322
        %v1920 = vpop.f32.mrb[0].mxu0
        %v1921 = vadd.f32 0.0, %v1920
        %v1922 = vpop.f32.mrb[0].mxu0
        %v1923 = vpop.f32.mrb[0].mxu0
        %v1924 = vadd.f32 0.0, %v1923
        %v1925 = vpop.f32.mrb[0].mxu0
        %1926 = vmatprep.mubr.bf16.mxu0 %v1327
        %1927 = vmatmul.mubr.bf16.gmra.mrb[0].mxu0 %v1326
        %v1928 = vpop.f32.mrb[0].mxu0
        %v1929 = vadd.f32 0.0, %v1928
        %v1930 = vpop.f32.mrb[0].mxu0
        %v1931 = vpop.f32.mrb[0].mxu0
        %v1932 = vadd.f32 0.0, %v1931
        %v1933 = vpop.f32.mrb[0].mxu0
        %1934 = vmatprep.mubr.bf16.mxu0 %v1331
        %1935 = vmatmul.mubr.bf16.gmra.mrb[0].mxu0 %v1330
        %v1936 = vpop.f32.mrb[0].mxu0
        %v1937 = vadd.f32 0.0, %v1936
        %v1938 = vpop.f32.mrb[0].mxu0
        %v1939 = vpop.f32.mrb[0].mxu0
        %v1940 = vadd.f32 0.0, %v1939
        %v1941 = vpop.f32.mrb[0].mxu0
        %1942 = vdwg.mxu0
        %1943 = vmatprep.subr.bf16.mxu0 0
        %1944 = vmatpush1.bf16.msra.mxu0 %v1606
        %1945 = vmatprep.subr.bf16.mxu0 0
        %1946 = vmatpush1.bf16.msra.mxu0 %v1607
        %1947 = vmatprep.subr.bf16.mxu0 0
        %1948 = vmatpush1.bf16.msra.mxu0 %v1608
        %1949 = vmatprep.subr.bf16.mxu0 0
        %1950 = vmatpush1.bf16.msra.mxu0 %v1609
        %1951 = vmatprep.subr.bf16.mxu0 0
        %1952 = vmatpush1.bf16.msra.mxu0 %v1610
        %1953 = vmatprep.subr.bf16.mxu0 0
        %1954 = vmatpush1.bf16.msra.mxu0 %v1611
        %1955 = vmatprep.subr.bf16.mxu0 0
        %1956 = vmatpush1.bf16.msra.mxu0 %v1612
        %1957 = vmatprep.subr.bf16.mxu0 0
        %1958 = vmatpush1.bf16.msra.mxu0 %v1613
        %1959 = vmatprep.subr.bf16.mxu0 0
        %1960 = vmatpush1.bf16.msra.mxu0 %v1614
        %1961 = vmatprep.subr.bf16.mxu0 0
        %1962 = vmatpush1.bf16.msra.mxu0 %v1615
        %1963 = vmatprep.subr.bf16.mxu0 0
        %1964 = vmatpush1.bf16.msra.mxu0 %v1616
        %1965 = vmatprep.subr.bf16.mxu0 0
        %1966 = vmatpush1.bf16.msra.mxu0 %v1617
        %1967 = vmatprep.subr.bf16.mxu0 0
        %1968 = vmatpush1.bf16.msra.mxu0 %v1618
        %1969 = vmatprep.subr.bf16.mxu0 0
        %1970 = vmatpush1.bf16.msra.mxu0 %v1619
        %1971 = vmatprep.subr.bf16.mxu0 0
        %1972 = vmatpush1.bf16.msra.mxu0 %v1620
        %1973 = vmatprep.subr.bf16.mxu0 0
        %1974 = vmatpush1.bf16.msra.mxu0 %v1621
        %1975 = vmatprep.mubr.bf16.mxu0 %v1209
        %1976 = vmatmul.mubr.bf16.gmra.mrb[0].mxu0 %v1208
        %v1977 = vpop.f32.mrb[0].mxu0
        %v1978 = vadd.f32 %v1689, %v1977
        %v1979 = vpop.f32.mrb[0].mxu0
        %v1980 = vpop.f32.mrb[0].mxu0
        %v1981 = vadd.f32 %v1692, %v1980
        %v1982 = vpop.f32.mrb[0].mxu0
        %1983 = vmatprep.mubr.bf16.mxu0 %v1213
        %1984 = vmatmul.mubr.bf16.gmra.mrb[0].mxu0 %v1212
        %v1985 = vpop.f32.mrb[0].mxu0
        %v1986 = vadd.f32 %v1697, %v1985
        %v1987 = vpop.f32.mrb[0].mxu0
        %v1988 = vpop.f32.mrb[0].mxu0
        %v1989 = vadd.f32 %v1700, %v1988
        %v1990 = vpop.f32.mrb[0].mxu0
        %1991 = vmatprep.mubr.bf16.mxu0 %v1217
        %1992 = vmatmul.mubr.bf16.gmra.mrb[0].mxu0 %v1216
        %v1993 = vpop.f32.mrb[0].mxu0
        %v1994 = vadd.f32 %v1705, %v1993
        %v1995 = vpop.f32.mrb[0].mxu0
        %v1996 = vpop.f32.mrb[0].mxu0
        %v1997 = vadd.f32 %v1708, %v1996
        %v1998 = vpop.f32.mrb[0].mxu0
        %1999 = vmatprep.mubr.bf16.mxu0 %v1221
        %2000 = vmatmul.mubr.bf16.gmra.mrb[0].mxu0 %v1220
        %v2001 = vpop.f32.mrb[0].mxu0
        %v2002 = vadd.f32 %v1713, %v2001
        %v2003 = vpop.f32.mrb[0].mxu0
        %v2004 = vpop.f32.mrb[0].mxu0
        %v2005 = vadd.f32 %v1716, %v2004
        %v2006 = vpop.f32.mrb[0].mxu0
        %2007 = vmatprep.mubr.bf16.mxu0 %v1225
        %2008 = vmatmul.mubr.bf16.gmra.mrb[0].mxu0 %v1224
        %v2009 = vpop.f32.mrb[0].mxu0
        %v2010 = vadd.f32 %v1721, %v2009
        %v2011 = vpop.f32.mrb[0].mxu0
        %v2012 = vpop.f32.mrb[0].mxu0
        %v2013 = vadd.f32 %v1724, %v2012
        %v2014 = vpop.f32.mrb[0].mxu0
        %2015 = vmatprep.mubr.bf16.mxu0 %v1229
        %2016 = vmatmul.mubr.bf16.gmra.mrb[0].mxu0 %v1228
        %v2017 = vpop.f32.mrb[0].mxu0
        %v2018 = vadd.f32 %v1729, %v2017
        %v2019 = vpop.f32.mrb[0].mxu0
        %v2020 = vpop.f32.mrb[0].mxu0
        %v2021 = vadd.f32 %v1732, %v2020
        %v2022 = vpop.f32.mrb[0].mxu0
        %2023 = vmatprep.mubr.bf16.mxu0 %v1233
        %2024 = vmatmul.mubr.bf16.gmra.mrb[0].mxu0 %v1232
        %v2025 = vpop.f32.mrb[0].mxu0
        %v2026 = vadd.f32 %v1737, %v2025
        %v2027 = vpop.f32.mrb[0].mxu0
        %v2028 = vpop.f32.mrb[0].mxu0
        %v2029 = vadd.f32 %v1740, %v2028
        %v2030 = vpop.f32.mrb[0].mxu0
        %2031 = vmatprep.mubr.bf16.mxu0 %v1237
        %2032 = vmatmul.mubr.bf16.gmra.mrb[0].mxu0 %v1236
        %v2033 = vpop.f32.mrb[0].mxu0
        %v2034 = vadd.f32 %v1745, %v2033
        %v2035 = vpop.f32.mrb[0].mxu0
        %v2036 = vpop.f32.mrb[0].mxu0
        %v2037 = vadd.f32 %v1748, %v2036
        %v2038 = vpop.f32.mrb[0].mxu0
        %2039 = vmatprep.mubr.bf16.mxu0 %v1241
        %2040 = vmatmul.mubr.bf16.gmra.mrb[0].mxu0 %v1240
        %v2041 = vpop.f32.mrb[0].mxu0
        %v2042 = vadd.f32 %v1753, %v2041
        %v2043 = vpop.f32.mrb[0].mxu0
        %v2044 = vpop.f32.mrb[0].mxu0
        %v2045 = vadd.f32 %v1756, %v2044
        %v2046 = vpop.f32.mrb[0].mxu0
        %2047 = vmatprep.mubr.bf16.mxu0 %v1245
        %2048 = vmatmul.mubr.bf16.gmra.mrb[0].mxu0 %v1244
        %v2049 = vpop.f32.mrb[0].mxu0
        %v2050 = vadd.f32 %v1761, %v2049
        %v2051 = vpop.f32.mrb[0].mxu0
        %v2052 = vpop.f32.mrb[0].mxu0
        %v2053 = vadd.f32 %v1764, %v2052
        %v2054 = vpop.f32.mrb[0].mxu0
        %2055 = vmatprep.mubr.bf16.mxu0 %v1249
        %2056 = vmatmul.mubr.bf16.gmra.mrb[0].mxu0 %v1248
        %v2057 = vpop.f32.mrb[0].mxu0
        %v2058 = vadd.f32 %v1769, %v2057
        %v2059 = vpop.f32.mrb[0].mxu0
        %v2060 = vpop.f32.mrb[0].mxu0
        %v2061 = vadd.f32 %v1772, %v2060
        %v2062 = vpop.f32.mrb[0].mxu0
        %2063 = vmatprep.mubr.bf16.mxu0 %v1253
        %2064 = vmatmul.mubr.bf16.gmra.mrb[0].mxu0 %v1252
        %v2065 = vpop.f32.mrb[0].mxu0
        %v2066 = vadd.f32 %v1777, %v2065
        %v2067 = vpop.f32.mrb[0].mxu0
        %v2068 = vpop.f32.mrb[0].mxu0
        %v2069 = vadd.f32 %v1780, %v2068
        %v2070 = vpop.f32.mrb[0].mxu0
        %2071 = vmatprep.mubr.bf16.mxu0 %v1257
        %2072 = vmatmul.mubr.bf16.gmra.mrb[0].mxu0 %v1256
        %v2073 = vpop.f32.mrb[0].mxu0
        %v2074 = vadd.f32 %v1785, %v2073
        %v2075 = vpop.f32.mrb[0].mxu0
        %v2076 = vpop.f32.mrb[0].mxu0
        %v2077 = vadd.f32 %v1788, %v2076
        %v2078 = vpop.f32.mrb[0].mxu0
        %2079 = vmatprep.mubr.bf16.mxu0 %v1261
        %2080 = vmatmul.mubr.bf16.gmra.mrb[0].mxu0 %v1260
        %v2081 = vpop.f32.mrb[0].mxu0
        %v2082 = vadd.f32 %v1793, %v2081
        %v2083 = vpop.f32.mrb[0].mxu0
        %v2084 = vpop.f32.mrb[0].mxu0
        %v2085 = vadd.f32 %v1796, %v2084
        %v2086 = vpop.f32.mrb[0].mxu0
        %2087 = vmatprep.mubr.bf16.mxu0 %v1265
        %2088 = vmatmul.mubr.bf16.gmra.mrb[0].mxu0 %v1264
        %v2089 = vpop.f32.mrb[0].mxu0
        %v2090 = vadd.f32 %v1801, %v2089
        %v2091 = vpop.f32.mrb[0].mxu0
        %v2092 = vpop.f32.mrb[0].mxu0
        %v2093 = vadd.f32 %v1804, %v2092
        %v2094 = vpop.f32.mrb[0].mxu0
        %2095 = vmatprep.mubr.bf16.mxu0 %v1269
        %2096 = vmatmul.mubr.bf16.gmra.mrb[0].mxu0 %v1268
        %v2097 = vpop.f32.mrb[0].mxu0
        %v2098 = vadd.f32 %v1809, %v2097
        %v2099 = vpop.f32.mrb[0].mxu0
        %v2100 = vpop.f32.mrb[0].mxu0
        %v2101 = vadd.f32 %v1812, %v2100
        %v2102 = vpop.f32.mrb[0].mxu0
        %2103 = vmatprep.mubr.bf16.mxu0 %v1273
        %2104 = vmatmul.mubr.bf16.gmra.mrb[0].mxu0 %v1272
        %v2105 = vpop.f32.mrb[0].mxu0
        %v2106 = vadd.f32 %v1817, %v2105
        %v2107 = vpop.f32.mrb[0].mxu0
        %v2108 = vpop.f32.mrb[0].mxu0
        %v2109 = vadd.f32 %v1820, %v2108
        %v2110 = vpop.f32.mrb[0].mxu0
        %2111 = vmatprep.mubr.bf16.mxu0 %v1277
        %2112 = vmatmul.mubr.bf16.gmra.mrb[0].mxu0 %v1276
        %v2113 = vpop.f32.mrb[0].mxu0
        %v2114 = vadd.f32 %v1825, %v2113
        %v2115 = vpop.f32.mrb[0].mxu0
        %v2116 = vpop.f32.mrb[0].mxu0
        %v2117 = vadd.f32 %v1828, %v2116
        %v2118 = vpop.f32.mrb[0].mxu0
        %2119 = vmatprep.mubr.bf16.mxu0 %v1281
        %2120 = vmatmul.mubr.bf16.gmra.mrb[0].mxu0 %v1280
        %v2121 = vpop.f32.mrb[0].mxu0
        %v2122 = vadd.f32 %v1833, %v2121
        %v2123 = vpop.f32.mrb[0].mxu0
        %v2124 = vpop.f32.mrb[0].mxu0
        %v2125 = vadd.f32 %v1836, %v2124
        %v2126 = vpop.f32.mrb[0].mxu0
        %2127 = vmatprep.mubr.bf16.mxu0 %v1285
        %2128 = vmatmul.mubr.bf16.gmra.mrb[0].mxu0 %v1284
        %v2129 = vpop.f32.mrb[0].mxu0
        %v2130 = vadd.f32 %v1841, %v2129
        %v2131 = vpop.f32.mrb[0].mxu0
        %v2132 = vpop.f32.mrb[0].mxu0
        %v2133 = vadd.f32 %v1844, %v2132
        %v2134 = vpop.f32.mrb[0].mxu0
        %2135 = vmatprep.mubr.bf16.mxu0 %v1289
        %2136 = vmatmul.mubr.bf16.gmra.mrb[0].mxu0 %v1288
        %v2137 = vpop.f32.mrb[0].mxu0
        %v2138 = vadd.f32 %v1849, %v2137
        %v2139 = vpop.f32.mrb[0].mxu0
        %v2140 = vpop.f32.mrb[0].mxu0
        %v2141 = vadd.f32 %v1852, %v2140
        %v2142 = vpop.f32.mrb[0].mxu0
        %2143 = vmatprep.mubr.bf16.mxu0 %v1293
        %2144 = vmatmul.mubr.bf16.gmra.mrb[0].mxu0 %v1292
        %v2145 = vpop.f32.mrb[0].mxu0
        %v2146 = vadd.f32 %v1857, %v2145
        %v2147 = vpop.f32.mrb[0].mxu0
        %v2148 = vpop.f32.mrb[0].mxu0
        %v2149 = vadd.f32 %v1860, %v2148
        %v2150 = vpop.f32.mrb[0].mxu0
        %2151 = vmatprep.mubr.bf16.mxu0 %v1297
        %2152 = vmatmul.mubr.bf16.gmra.mrb[0].mxu0 %v1296
        %v2153 = vpop.f32.mrb[0].mxu0
        %v2154 = vadd.f32 %v1865, %v2153
        %v2155 = vpop.f32.mrb[0].mxu0
        %v2156 = vpop.f32.mrb[0].mxu0
        %v2157 = vadd.f32 %v1868, %v2156
        %v2158 = vpop.f32.mrb[0].mxu0
        %2159 = vmatprep.mubr.bf16.mxu0 %v1301
        %2160 = vmatmul.mubr.bf16.gmra.mrb[0].mxu0 %v1300
        %v2161 = vpop.f32.mrb[0].mxu0
        %v2162 = vadd.f32 %v1873, %v2161
        %v2163 = vpop.f32.mrb[0].mxu0
        %v2164 = vpop.f32.mrb[0].mxu0
        %v2165 = vadd.f32 %v1876, %v2164
        %v2166 = vpop.f32.mrb[0].mxu0
        %2167 = vmatprep.mubr.bf16.mxu0 %v1305
        %2168 = vmatmul.mubr.bf16.gmra.mrb[0].mxu0 %v1304
        %v2169 = vpop.f32.mrb[0].mxu0
        %v2170 = vadd.f32 %v1881, %v2169
        %v2171 = vpop.f32.mrb[0].mxu0
        %v2172 = vpop.f32.mrb[0].mxu0
        %v2173 = vadd.f32 %v1884, %v2172
        %v2174 = vpop.f32.mrb[0].mxu0
        %2175 = vmatprep.mubr.bf16.mxu0 %v1309
        %2176 = vmatmul.mubr.bf16.gmra.mrb[0].mxu0 %v1308
        %v2177 = vpop.f32.mrb[0].mxu0
        %v2178 = vadd.f32 %v1889, %v2177
        %v2179 = vpop.f32.mrb[0].mxu0
        %v2180 = vpop.f32.mrb[0].mxu0
        %v2181 = vadd.f32 %v1892, %v2180
        %v2182 = vpop.f32.mrb[0].mxu0
        %2183 = vmatprep.mubr.bf16.mxu0 %v1313
        %2184 = vmatmul.mubr.bf16.gmra.mrb[0].mxu0 %v1312
        %v2185 = vpop.f32.mrb[0].mxu0
        %v2186 = vadd.f32 %v1897, %v2185
        %v2187 = vpop.f32.mrb[0].mxu0
        %v2188 = vpop.f32.mrb[0].mxu0
        %v2189 = vadd.f32 %v1900, %v2188
        %v2190 = vpop.f32.mrb[0].mxu0
        %2191 = vmatprep.mubr.bf16.mxu0 %v1317
        %2192 = vmatmul.mubr.bf16.gmra.mrb[0].mxu0 %v1316
        %v2193 = vpop.f32.mrb[0].mxu0
        %v2194 = vadd.f32 %v1905, %v2193
        %v2195 = vpop.f32.mrb[0].mxu0
        %v2196 = vpop.f32.mrb[0].mxu0
        %v2197 = vadd.f32 %v1908, %v2196
        %v2198 = vpop.f32.mrb[0].mxu0
        %2199 = vmatprep.mubr.bf16.mxu0 %v1321
        %2200 = vmatmul.mubr.bf16.gmra.mrb[0].mxu0 %v1320
        %v2201 = vpop.f32.mrb[0].mxu0
        %v2202 = vadd.f32 %v1913, %v2201
        %v2203 = vpop.f32.mrb[0].mxu0
        %v2204 = vpop.f32.mrb[0].mxu0
        %v2205 = vadd.f32 %v1916, %v2204
        %v2206 = vpop.f32.mrb[0].mxu0
        %2207 = vmatprep.mubr.bf16.mxu0 %v1325
        %2208 = vmatmul.mubr.bf16.gmra.mrb[0].mxu0 %v1324
        %v2209 = vpop.f32.mrb[0].mxu0
        %v2210 = vadd.f32 %v1921, %v2209
        %v2211 = vpop.f32.mrb[0].mxu0
        %v2212 = vpop.f32.mrb[0].mxu0
        %v2213 = vadd.f32 %v1924, %v2212
        %v2214 = vpop.f32.mrb[0].mxu0
        %2215 = vmatprep.mubr.bf16.mxu0 %v1329
        %2216 = vmatmul.mubr.bf16.gmra.mrb[0].mxu0 %v1328
        %v2217 = vpop.f32.mrb[0].mxu0
        %v2218 = vadd.f32 %v1929, %v2217
        %v2219 = vpop.f32.mrb[0].mxu0
        %v2220 = vpop.f32.mrb[0].mxu0
        %v2221 = vadd.f32 %v1932, %v2220
        %v2222 = vpop.f32.mrb[0].mxu0
        %2223 = vmatprep.mubr.bf16.mxu0 %v1333
        %2224 = vmatmul.mubr.bf16.gmra.mrb[0].mxu0 %v1332
        %v2225 = vpop.f32.mrb[0].mxu0
        %v2226 = vadd.f32 %v1937, %v2225
        %v2227 = vpop.f32.mrb[0].mxu0
        %v2228 = vpop.f32.mrb[0].mxu0
        %v2229 = vadd.f32 %v1940, %v2228
        %v2230 = vpop.f32.mrb[0].mxu0
        %2231 = vdwg.mxu0
        %v2232 = vadd.f32 %v630, %v1978
        %v2233 = vadd.f32 %v631, %v1981
        %v2234 = vadd.f32 %v632, %v1986
        %v2235 = vadd.f32 %v633, %v1989
        %v2236 = vadd.f32 %v634, %v1994
        %v2237 = vadd.f32 %v635, %v1997
        %v2238 = vadd.f32 %v636, %v2002
        %v2239 = vadd.f32 %v637, %v2005
        %v2240 = vadd.f32 %v638, %v2010
        %v2241 = vadd.f32 %v639, %v2013
        %v2242 = vadd.f32 %v640, %v2018
        %v2243 = vadd.f32 %v641, %v2021
        %v2244 = vadd.f32 %v642, %v2026
        %v2245 = vadd.f32 %v643, %v2029
        %v2246 = vadd.f32 %v644, %v2034
        %v2247 = vadd.f32 %v645, %v2037
        %v2248 = vadd.f32 %v646, %v2042
        %v2249 = vadd.f32 %v647, %v2045
        %v2250 = vadd.f32 %v648, %v2050
        %v2251 = vadd.f32 %v649, %v2053
        %v2252 = vadd.f32 %v650, %v2058
        %v2253 = vadd.f32 %v651, %v2061
        %v2254 = vadd.f32 %v652, %v2066
        %v2255 = vadd.f32 %v653, %v2069
        %v2256 = vadd.f32 %v654, %v2074
        %v2257 = vadd.f32 %v655, %v2077
        %v2258 = vadd.f32 %v656, %v2082
        %v2259 = vadd.f32 %v657, %v2085
        %v2260 = vadd.f32 %v658, %v2090
        %v2261 = vadd.f32 %v659, %v2093
        %v2262 = vadd.f32 %v660, %v2098
        %v2263 = vadd.f32 %v661, %v2101
        %v2264 = vadd.f32 %v662, %v2106
        %v2265 = vadd.f32 %v663, %v2109
        %v2266 = vadd.f32 %v664, %v2114
        %v2267 = vadd.f32 %v665, %v2117
        %v2268 = vadd.f32 %v666, %v2122
        %v2269 = vadd.f32 %v667, %v2125
        %v2270 = vadd.f32 %v668, %v2130
        %v2271 = vadd.f32 %v669, %v2133
        %v2272 = vadd.f32 %v670, %v2138
        %v2273 = vadd.f32 %v671, %v2141
        %v2274 = vadd.f32 %v672, %v2146
        %v2275 = vadd.f32 %v673, %v2149
        %v2276 = vadd.f32 %v674, %v2154
        %v2277 = vadd.f32 %v675, %v2157
        %v2278 = vadd.f32 %v676, %v2162
        %v2279 = vadd.f32 %v677, %v2165
        %v2280 = vadd.f32 %v678, %v2170
        %v2281 = vadd.f32 %v679, %v2173
        %v2282 = vadd.f32 %v680, %v2178
        %v2283 = vadd.f32 %v681, %v2181
        %v2284 = vadd.f32 %v682, %v2186
        %v2285 = vadd.f32 %v683, %v2189
        %v2286 = vadd.f32 %v684, %v2194
        %v2287 = vadd.f32 %v685, %v2197
        %v2288 = vadd.f32 %v686, %v2202
        %v2289 = vadd.f32 %v687, %v2205
        %v2290 = vadd.f32 %v688, %v2210
        %v2291 = vadd.f32 %v689, %v2213
        %v2292 = vadd.f32 %v690, %v2218
        %v2293 = vadd.f32 %v691, %v2221
        %v2294 = vadd.f32 %v692, %v2226
        %v2295 = vadd.f32 %v693, %v2229
        %2296 = vst [vmem:[#allocation2] sm:$0xff] %v2232
        %2297 = vst [vmem:[#allocation2 + $0x8] sm:$0xff] %v2233
        %2298 = vst [vmem:[#allocation2 + $0x10] sm:$0xff] %v2234
        %2299 = vst [vmem:[#allocation2 + $0x18] sm:$0xff] %v2235
        %2300 = vst [vmem:[#allocation2 + $0x20] sm:$0xff] %v2236
        %2301 = vst [vmem:[#allocation2 + $0x28] sm:$0xff] %v2237
        %2302 = vst [vmem:[#allocation2 + $0x30] sm:$0xff] %v2238
        %2303 = vst [vmem:[#allocation2 + $0x38] sm:$0xff] %v2239
        %2304 = vst [vmem:[#allocation2 + $0x40] sm:$0xff] %v2240
        %2305 = vst [vmem:[#allocation2 + $0x48] sm:$0xff] %v2241
        %2306 = vst [vmem:[#allocation2 + $0x50] sm:$0xff] %v2242
        %2307 = vst [vmem:[#allocation2 + $0x58] sm:$0xff] %v2243
        %2308 = vst [vmem:[#allocation2 + $0x60] sm:$0xff] %v2244
        %2309 = vst [vmem:[#allocation2 + $0x68] sm:$0xff] %v2245
        %2310 = vst [vmem:[#allocation2 + $0x70] sm:$0xff] %v2246
        %2311 = vst [vmem:[#allocation2 + $0x78] sm:$0xff] %v2247
        %2312 = vst [vmem:[#allocation2 + $0x80] sm:$0xff] %v2248
        %2313 = vst [vmem:[#allocation2 + $0x88] sm:$0xff] %v2249
        %2314 = vst [vmem:[#allocation2 + $0x90] sm:$0xff] %v2250
        %2315 = vst [vmem:[#allocation2 + $0x98] sm:$0xff] %v2251
        %2316 = vst [vmem:[#allocation2 + $0xa0] sm:$0xff] %v2252
        %2317 = vst [vmem:[#allocation2 + $0xa8] sm:$0xff] %v2253
        %2318 = vst [vmem:[#allocation2 + $0xb0] sm:$0xff] %v2254
        %2319 = vst [vmem:[#allocation2 + $0xb8] sm:$0xff] %v2255
        %2320 = vst [vmem:[#allocation2 + $0xc0] sm:$0xff] %v2256
        %2321 = vst [vmem:[#allocation2 + $0xc8] sm:$0xff] %v2257
        %2322 = vst [vmem:[#allocation2 + $0xd0] sm:$0xff] %v2258
        %2323 = vst [vmem:[#allocation2 + $0xd8] sm:$0xff] %v2259
        %2324 = vst [vmem:[#allocation2 + $0xe0] sm:$0xff] %v2260
        %2325 = vst [vmem:[#allocation2 + $0xe8] sm:$0xff] %v2261
        %2326 = vst [vmem:[#allocation2 + $0xf0] sm:$0xff] %v2262
        %2327 = vst [vmem:[#allocation2 + $0xf8] sm:$0xff] %v2263
        %2328 = vst [vmem:[#allocation2 + $0x100] sm:$0xff] %v2264
        %2329 = vst [vmem:[#allocation2 + $0x108] sm:$0xff] %v2265
        %2330 = vst [vmem:[#allocation2 + $0x110] sm:$0xff] %v2266
        %2331 = vst [vmem:[#allocation2 + $0x118] sm:$0xff] %v2267
        %2332 = vst [vmem:[#allocation2 + $0x120] sm:$0xff] %v2268
        %2333 = vst [vmem:[#allocation2 + $0x128] sm:$0xff] %v2269
        %2334 = vst [vmem:[#allocation2 + $0x130] sm:$0xff] %v2270
        %2335 = vst [vmem:[#allocation2 + $0x138] sm:$0xff] %v2271
        %2336 = vst [vmem:[#allocation2 + $0x140] sm:$0xff] %v2272
        %2337 = vst [vmem:[#allocation2 + $0x148] sm:$0xff] %v2273
        %2338 = vst [vmem:[#allocation2 + $0x150] sm:$0xff] %v2274
        %2339 = vst [vmem:[#allocation2 + $0x158] sm:$0xff] %v2275
        %2340 = vst [vmem:[#allocation2 + $0x160] sm:$0xff] %v2276
        %2341 = vst [vmem:[#allocation2 + $0x168] sm:$0xff] %v2277
        %2342 = vst [vmem:[#allocation2 + $0x170] sm:$0xff] %v2278
        %2343 = vst [vmem:[#allocation2 + $0x178] sm:$0xff] %v2279
        %2344 = vst [vmem:[#allocation2 + $0x180] sm:$0xff] %v2280
        %2345 = vst [vmem:[#allocation2 + $0x188] sm:$0xff] %v2281
        %2346 = vst [vmem:[#allocation2 + $0x190] sm:$0xff] %v2282
        %2347 = vst [vmem:[#allocation2 + $0x198] sm:$0xff] %v2283
        %2348 = vst [vmem:[#allocation2 + $0x1a0] sm:$0xff] %v2284
        %2349 = vst [vmem:[#allocation2 + $0x1a8] sm:$0xff] %v2285
        %2350 = vst [vmem:[#allocation2 + $0x1b0] sm:$0xff] %v2286
        %2351 = vst [vmem:[#allocation2 + $0x1b8] sm:$0xff] %v2287
        %2352 = vst [vmem:[#allocation2 + $0x1c0] sm:$0xff] %v2288
        %2353 = vst [vmem:[#allocation2 + $0x1c8] sm:$0xff] %v2289
        %2354 = vst [vmem:[#allocation2 + $0x1d0] sm:$0xff] %v2290
        %2355 = vst [vmem:[#allocation2 + $0x1d8] sm:$0xff] %v2291
        %2356 = vst [vmem:[#allocation2 + $0x1e0] sm:$0xff] %v2292
        %2357 = vst [vmem:[#allocation2 + $0x1e8] sm:$0xff] %v2293
        %2358 = vst [vmem:[#allocation2 + $0x1f0] sm:$0xff] %v2294
        %2359 = vst [vmem:[#allocation2 + $0x1f8] sm:$0xff] %v2295
        %p2360 = scmp.eq.s32.totalorder %s20, 2
        // Predicated region
        $region64: #{graphsage_pallas.3} parent=54 // pred_check
          %p2361 = pneg %p2360
        $region65: #{graphsage_pallas.3} parent=54 // pred_check_branch
          %2363 = sbr.rel (%p2361) target = $region67
        $region66: #{graphsage_pallas.3} parent=54 // pred_region
          %s2364 = smul.u32 %s19, 512
          %s2365 = sshra.s32 %s2364, 3
          %s2366 = sand.u32 %s2364, 7
          %s2367 = smul.addr %s2365, 4
          %s2368 = scalar_lea.vmem %s1, %s2367
          %v2369 = vld [vmem:[%s2368] sm:$0xf]
          %v2370 = vld [vmem:[%s2368 + $0x4] sm:$0xf]
          %v2371 = vld [vmem:[%s2368 + $0x8] sm:$0xf]
          %v2372 = vld [vmem:[%s2368 + $0xc] sm:$0xf]
          %v2373 = vld [vmem:[%s2368 + $0x10] sm:$0xf]
          %v2374 = vld [vmem:[%s2368 + $0x14] sm:$0xf]
          %v2375 = vld [vmem:[%s2368 + $0x18] sm:$0xf]
          %v2376 = vld [vmem:[%s2368 + $0x1c] sm:$0xf]
          %v2377 = vld [vmem:[%s2368 + $0x20] sm:$0xf]
          %v2378 = vld [vmem:[%s2368 + $0x24] sm:$0xf]
          %v2379 = vld [vmem:[%s2368 + $0x28] sm:$0xf]
          %v2380 = vld [vmem:[%s2368 + $0x2c] sm:$0xf]
          %v2381 = vld [vmem:[%s2368 + $0x30] sm:$0xf]
          %v2382 = vld [vmem:[%s2368 + $0x34] sm:$0xf]
          %v2383 = vld [vmem:[%s2368 + $0x38] sm:$0xf]
          %v2384 = vld [vmem:[%s2368 + $0x3c] sm:$0xf]
          %v2385 = vld [vmem:[%s2368 + $0x40] sm:$0xf]
          %v2386 = vld [vmem:[%s2368 + $0x44] sm:$0xf]
          %v2387 = vld [vmem:[%s2368 + $0x48] sm:$0xf]
          %v2388 = vld [vmem:[%s2368 + $0x4c] sm:$0xf]
          %v2389 = vld [vmem:[%s2368 + $0x50] sm:$0xf]
          %v2390 = vld [vmem:[%s2368 + $0x54] sm:$0xf]
          %v2391 = vld [vmem:[%s2368 + $0x58] sm:$0xf]
          %v2392 = vld [vmem:[%s2368 + $0x5c] sm:$0xf]
          %v2393 = vld [vmem:[%s2368 + $0x60] sm:$0xf]
          %v2394 = vld [vmem:[%s2368 + $0x64] sm:$0xf]
          %v2395 = vld [vmem:[%s2368 + $0x68] sm:$0xf]
          %v2396 = vld [vmem:[%s2368 + $0x6c] sm:$0xf]
          %v2397 = vld [vmem:[%s2368 + $0x70] sm:$0xf]
          %v2398 = vld [vmem:[%s2368 + $0x74] sm:$0xf]
          %v2399 = vld [vmem:[%s2368 + $0x78] sm:$0xf]
          %v2400 = vld [vmem:[%s2368 + $0x7c] sm:$0xf]
          %v2401 = vld [vmem:[%s2368 + $0x80] sm:$0xf]
          %v2402 = vld [vmem:[%s2368 + $0x84] sm:$0xf]
          %v2403 = vld [vmem:[%s2368 + $0x88] sm:$0xf]
          %v2404 = vld [vmem:[%s2368 + $0x8c] sm:$0xf]
          %v2405 = vld [vmem:[%s2368 + $0x90] sm:$0xf]
          %v2406 = vld [vmem:[%s2368 + $0x94] sm:$0xf]
          %v2407 = vld [vmem:[%s2368 + $0x98] sm:$0xf]
          %v2408 = vld [vmem:[%s2368 + $0x9c] sm:$0xf]
          %v2409 = vld [vmem:[%s2368 + $0xa0] sm:$0xf]
          %v2410 = vld [vmem:[%s2368 + $0xa4] sm:$0xf]
          %v2411 = vld [vmem:[%s2368 + $0xa8] sm:$0xf]
          %v2412 = vld [vmem:[%s2368 + $0xac] sm:$0xf]
          %v2413 = vld [vmem:[%s2368 + $0xb0] sm:$0xf]
          %v2414 = vld [vmem:[%s2368 + $0xb4] sm:$0xf]
          %v2415 = vld [vmem:[%s2368 + $0xb8] sm:$0xf]
          %v2416 = vld [vmem:[%s2368 + $0xbc] sm:$0xf]
          %v2417 = vld [vmem:[%s2368 + $0xc0] sm:$0xf]
          %v2418 = vld [vmem:[%s2368 + $0xc4] sm:$0xf]
          %v2419 = vld [vmem:[%s2368 + $0xc8] sm:$0xf]
          %v2420 = vld [vmem:[%s2368 + $0xcc] sm:$0xf]
          %v2421 = vld [vmem:[%s2368 + $0xd0] sm:$0xf]
          %v2422 = vld [vmem:[%s2368 + $0xd4] sm:$0xf]
          %v2423 = vld [vmem:[%s2368 + $0xd8] sm:$0xf]
          %v2424 = vld [vmem:[%s2368 + $0xdc] sm:$0xf]
          %v2425 = vld [vmem:[%s2368 + $0xe0] sm:$0xf]
          %v2426 = vld [vmem:[%s2368 + $0xe4] sm:$0xf]
          %v2427 = vld [vmem:[%s2368 + $0xe8] sm:$0xf]
          %v2428 = vld [vmem:[%s2368 + $0xec] sm:$0xf]
          %v2429 = vld [vmem:[%s2368 + $0xf0] sm:$0xf]
          %v2430 = vld [vmem:[%s2368 + $0xf4] sm:$0xf]
          %v2431 = vld [vmem:[%s2368 + $0xf8] sm:$0xf]
          %v2432 = vld [vmem:[%s2368 + $0xfc] sm:$0xf]
          %v2433 = vld [vmem:[#allocation2] sm:$0xff]
          %v2434 = vld [vmem:[#allocation2 + $0x8] sm:$0xff]
          %v2435 = vld [vmem:[#allocation2 + $0x10] sm:$0xff]
          %v2436 = vld [vmem:[#allocation2 + $0x18] sm:$0xff]
          %v2437 = vld [vmem:[#allocation2 + $0x20] sm:$0xff]
          %v2438 = vld [vmem:[#allocation2 + $0x28] sm:$0xff]
          %v2439 = vld [vmem:[#allocation2 + $0x30] sm:$0xff]
          %v2440 = vld [vmem:[#allocation2 + $0x38] sm:$0xff]
          %v2441 = vld [vmem:[#allocation2 + $0x40] sm:$0xff]
          %v2442 = vld [vmem:[#allocation2 + $0x48] sm:$0xff]
          %v2443 = vld [vmem:[#allocation2 + $0x50] sm:$0xff]
          %v2444 = vld [vmem:[#allocation2 + $0x58] sm:$0xff]
          %v2445 = vld [vmem:[#allocation2 + $0x60] sm:$0xff]
          %v2446 = vld [vmem:[#allocation2 + $0x68] sm:$0xff]
          %v2447 = vld [vmem:[#allocation2 + $0x70] sm:$0xff]
          %v2448 = vld [vmem:[#allocation2 + $0x78] sm:$0xff]
          %v2449 = vld [vmem:[#allocation2 + $0x80] sm:$0xff]
          %v2450 = vld [vmem:[#allocation2 + $0x88] sm:$0xff]
          %v2451 = vld [vmem:[#allocation2 + $0x90] sm:$0xff]
          %v2452 = vld [vmem:[#allocation2 + $0x98] sm:$0xff]
          %v2453 = vld [vmem:[#allocation2 + $0xa0] sm:$0xff]
          %v2454 = vld [vmem:[#allocation2 + $0xa8] sm:$0xff]
          %v2455 = vld [vmem:[#allocation2 + $0xb0] sm:$0xff]
          %v2456 = vld [vmem:[#allocation2 + $0xb8] sm:$0xff]
          %v2457 = vld [vmem:[#allocation2 + $0xc0] sm:$0xff]
          %v2458 = vld [vmem:[#allocation2 + $0xc8] sm:$0xff]
          %v2459 = vld [vmem:[#allocation2 + $0xd0] sm:$0xff]
          %v2460 = vld [vmem:[#allocation2 + $0xd8] sm:$0xff]
          %v2461 = vld [vmem:[#allocation2 + $0xe0] sm:$0xff]
          %v2462 = vld [vmem:[#allocation2 + $0xe8] sm:$0xff]
          %v2463 = vld [vmem:[#allocation2 + $0xf0] sm:$0xff]
          %v2464 = vld [vmem:[#allocation2 + $0xf8] sm:$0xff]
          %v2465 = vld [vmem:[#allocation2 + $0x100] sm:$0xff]
          %v2466 = vld [vmem:[#allocation2 + $0x108] sm:$0xff]
          %v2467 = vld [vmem:[#allocation2 + $0x110] sm:$0xff]
          %v2468 = vld [vmem:[#allocation2 + $0x118] sm:$0xff]
          %v2469 = vld [vmem:[#allocation2 + $0x120] sm:$0xff]
          %v2470 = vld [vmem:[#allocation2 + $0x128] sm:$0xff]
          %v2471 = vld [vmem:[#allocation2 + $0x130] sm:$0xff]
          %v2472 = vld [vmem:[#allocation2 + $0x138] sm:$0xff]
          %v2473 = vld [vmem:[#allocation2 + $0x140] sm:$0xff]
          %v2474 = vld [vmem:[#allocation2 + $0x148] sm:$0xff]
          %v2475 = vld [vmem:[#allocation2 + $0x150] sm:$0xff]
          %v2476 = vld [vmem:[#allocation2 + $0x158] sm:$0xff]
          %v2477 = vld [vmem:[#allocation2 + $0x160] sm:$0xff]
          %v2478 = vld [vmem:[#allocation2 + $0x168] sm:$0xff]
          %v2479 = vld [vmem:[#allocation2 + $0x170] sm:$0xff]
          %v2480 = vld [vmem:[#allocation2 + $0x178] sm:$0xff]
          %v2481 = vld [vmem:[#allocation2 + $0x180] sm:$0xff]
          %v2482 = vld [vmem:[#allocation2 + $0x188] sm:$0xff]
          %v2483 = vld [vmem:[#allocation2 + $0x190] sm:$0xff]
          %v2484 = vld [vmem:[#allocation2 + $0x198] sm:$0xff]
          %v2485 = vld [vmem:[#allocation2 + $0x1a0] sm:$0xff]
          %v2486 = vld [vmem:[#allocation2 + $0x1a8] sm:$0xff]
          %v2487 = vld [vmem:[#allocation2 + $0x1b0] sm:$0xff]
          %v2488 = vld [vmem:[#allocation2 + $0x1b8] sm:$0xff]
          %v2489 = vld [vmem:[#allocation2 + $0x1c0] sm:$0xff]
          %v2490 = vld [vmem:[#allocation2 + $0x1c8] sm:$0xff]
          %v2491 = vld [vmem:[#allocation2 + $0x1d0] sm:$0xff]
          %v2492 = vld [vmem:[#allocation2 + $0x1d8] sm:$0xff]
          %v2493 = vld [vmem:[#allocation2 + $0x1e0] sm:$0xff]
          %v2494 = vld [vmem:[#allocation2 + $0x1e8] sm:$0xff]
          %v2495 = vld [vmem:[#allocation2 + $0x1f0] sm:$0xff]
          %v2496 = vld [vmem:[#allocation2 + $0x1f8] sm:$0xff]
          %v2497 = vld [vmem:[%s2] sm:$0xff]
          %v2498 = vld [vmem:[%s2 + $0x8] sm:$0xff]
          %v2499 = vld [vmem:[%s2 + $0x10] sm:$0xff]
          %v2500 = vld [vmem:[%s2 + $0x18] sm:$0xff]
          %v2501 = vld [vmem:[%s2 + $0x20] sm:$0xff]
          %v2502 = vld [vmem:[%s2 + $0x28] sm:$0xff]
          %v2503 = vld [vmem:[%s2 + $0x30] sm:$0xff]
          %v2504 = vld [vmem:[%s2 + $0x38] sm:$0xff]
          %v2505 = vld [vmem:[%s2 + $0x40] sm:$0xff]
          %v2506 = vld [vmem:[%s2 + $0x48] sm:$0xff]
          %v2507 = vld [vmem:[%s2 + $0x50] sm:$0xff]
          %v2508 = vld [vmem:[%s2 + $0x58] sm:$0xff]
          %v2509 = vld [vmem:[%s2 + $0x60] sm:$0xff]
          %v2510 = vld [vmem:[%s2 + $0x68] sm:$0xff]
          %v2511 = vld [vmem:[%s2 + $0x70] sm:$0xff]
          %v2512 = vld [vmem:[%s2 + $0x78] sm:$0xff]
          %v2513 = vld [vmem:[%s3] sm:$0xff]
          %v2514 = vld [vmem:[%s3 + $0x8] sm:$0xff]
          %v2515 = vld [vmem:[%s3 + $0x10] sm:$0xff]
          %v2516 = vld [vmem:[%s3 + $0x18] sm:$0xff]
          %v2517 = vld [vmem:[%s3 + $0x20] sm:$0xff]
          %v2518 = vld [vmem:[%s3 + $0x28] sm:$0xff]
          %v2519 = vld [vmem:[%s3 + $0x30] sm:$0xff]
          %v2520 = vld [vmem:[%s3 + $0x38] sm:$0xff]
          %v2521 = vld [vmem:[%s3 + $0x40] sm:$0xff]
          %v2522 = vld [vmem:[%s3 + $0x48] sm:$0xff]
          %v2523 = vld [vmem:[%s3 + $0x50] sm:$0xff]
          %v2524 = vld [vmem:[%s3 + $0x58] sm:$0xff]
          %v2525 = vld [vmem:[%s3 + $0x60] sm:$0xff]
          %v2526 = vld [vmem:[%s3 + $0x68] sm:$0xff]
          %v2527 = vld [vmem:[%s3 + $0x70] sm:$0xff]
          %v2528 = vld [vmem:[%s3 + $0x78] sm:$0xff]
          %v2593 = vunpack.c.l.b16 %v2369
          %v2594 = vunpack.c.l.b16 %v2370
          %v2595 = vunpack.c.l.b16 %v2371
          %v2596 = vunpack.c.l.b16 %v2372
          %v2597 = vunpack.c.l.b16 %v2373
          %v2598 = vunpack.c.l.b16 %v2374
          %v2599 = vunpack.c.l.b16 %v2375
          %v2600 = vunpack.c.l.b16 %v2376
          %v2601 = vunpack.c.l.b16 %v2377
          %v2602 = vunpack.c.l.b16 %v2378
          %v2603 = vunpack.c.l.b16 %v2379
          %v2604 = vunpack.c.l.b16 %v2380
          %v2605 = vunpack.c.l.b16 %v2381
          %v2606 = vunpack.c.l.b16 %v2382
          %v2607 = vunpack.c.l.b16 %v2383
          %v2608 = vunpack.c.l.b16 %v2384
          %v2609 = vunpack.c.l.b16 %v2385
          %v2610 = vunpack.c.l.b16 %v2386
          %v2611 = vunpack.c.l.b16 %v2387
          %v2612 = vunpack.c.l.b16 %v2388
          %v2613 = vunpack.c.l.b16 %v2389
          %v2614 = vunpack.c.l.b16 %v2390
          %v2615 = vunpack.c.l.b16 %v2391
          %v2616 = vunpack.c.l.b16 %v2392
          %v2617 = vunpack.c.l.b16 %v2393
          %v2618 = vunpack.c.l.b16 %v2394
          %v2619 = vunpack.c.l.b16 %v2395
          %v2620 = vunpack.c.l.b16 %v2396
          %v2621 = vunpack.c.l.b16 %v2397
          %v2622 = vunpack.c.l.b16 %v2398
          %v2623 = vunpack.c.l.b16 %v2399
          %v2624 = vunpack.c.l.b16 %v2400
          %v2625 = vunpack.c.l.b16 %v2401
          %v2626 = vunpack.c.l.b16 %v2402
          %v2627 = vunpack.c.l.b16 %v2403
          %v2628 = vunpack.c.l.b16 %v2404
          %v2629 = vunpack.c.l.b16 %v2405
          %v2630 = vunpack.c.l.b16 %v2406
          %v2631 = vunpack.c.l.b16 %v2407
          %v2632 = vunpack.c.l.b16 %v2408
          %v2633 = vunpack.c.l.b16 %v2409
          %v2634 = vunpack.c.l.b16 %v2410
          %v2635 = vunpack.c.l.b16 %v2411
          %v2636 = vunpack.c.l.b16 %v2412
          %v2637 = vunpack.c.l.b16 %v2413
          %v2638 = vunpack.c.l.b16 %v2414
          %v2639 = vunpack.c.l.b16 %v2415
          %v2640 = vunpack.c.l.b16 %v2416
          %v2641 = vunpack.c.l.b16 %v2417
          %v2642 = vunpack.c.l.b16 %v2418
          %v2643 = vunpack.c.l.b16 %v2419
          %v2644 = vunpack.c.l.b16 %v2420
          %v2645 = vunpack.c.l.b16 %v2421
          %v2646 = vunpack.c.l.b16 %v2422
          %v2647 = vunpack.c.l.b16 %v2423
          %v2648 = vunpack.c.l.b16 %v2424
          %v2649 = vunpack.c.l.b16 %v2425
          %v2650 = vunpack.c.l.b16 %v2426
          %v2651 = vunpack.c.l.b16 %v2427
          %v2652 = vunpack.c.l.b16 %v2428
          %v2653 = vunpack.c.l.b16 %v2429
          %v2654 = vunpack.c.l.b16 %v2430
          %v2655 = vunpack.c.l.b16 %v2431
          %v2656 = vunpack.c.l.b16 %v2432
          %v2657 = vpack.c.b16 %v2594, %v2593
          %v2658 = vpack.c.b16 %v2596, %v2595
          %v2659 = vpack.c.b16 %v2598, %v2597
          %v2660 = vpack.c.b16 %v2600, %v2599
          %v2661 = vpack.c.b16 %v2602, %v2601
          %v2662 = vpack.c.b16 %v2604, %v2603
          %v2663 = vpack.c.b16 %v2606, %v2605
          %v2664 = vpack.c.b16 %v2608, %v2607
          %v2665 = vpack.c.b16 %v2610, %v2609
          %v2666 = vpack.c.b16 %v2612, %v2611
          %v2667 = vpack.c.b16 %v2614, %v2613
          %v2668 = vpack.c.b16 %v2616, %v2615
          %v2669 = vpack.c.b16 %v2618, %v2617
          %v2670 = vpack.c.b16 %v2620, %v2619
          %v2671 = vpack.c.b16 %v2622, %v2621
          %v2672 = vpack.c.b16 %v2624, %v2623
          %v2673 = vpack.c.b16 %v2626, %v2625
          %v2674 = vpack.c.b16 %v2628, %v2627
          %v2675 = vpack.c.b16 %v2630, %v2629
          %v2676 = vpack.c.b16 %v2632, %v2631
          %v2677 = vpack.c.b16 %v2634, %v2633
          %v2678 = vpack.c.b16 %v2636, %v2635
          %v2679 = vpack.c.b16 %v2638, %v2637
          %v2680 = vpack.c.b16 %v2640, %v2639
          %v2681 = vpack.c.b16 %v2642, %v2641
          %v2682 = vpack.c.b16 %v2644, %v2643
          %v2683 = vpack.c.b16 %v2646, %v2645
          %v2684 = vpack.c.b16 %v2648, %v2647
          %v2685 = vpack.c.b16 %v2650, %v2649
          %v2686 = vpack.c.b16 %v2652, %v2651
          %v2687 = vpack.c.b16 %v2654, %v2653
          %v2688 = vpack.c.b16 %v2656, %v2655
          %2721 = vmatprep.subr.mxu0 0.0
          %2722 = vmatpush1.msra.mxu0 %v2513
          %2723 = vmatprep.subr.mxu0 0.0
          %2724 = vmatpush1.msra.mxu0 %v2514
          %2725 = vmatprep.subr.mxu0 0.0
          %2726 = vmatpush1.msra.mxu0 %v2515
          %2727 = vmatprep.subr.mxu0 0.0
          %2728 = vmatpush1.msra.mxu0 %v2516
          %2729 = vmatprep.subr.mxu0 0.0
          %2730 = vmatpush1.msra.mxu0 %v2517
          %2731 = vmatprep.subr.mxu0 0.0
          %2732 = vmatpush1.msra.mxu0 %v2518
          %2733 = vmatprep.subr.mxu0 0.0
          %2734 = vmatpush1.msra.mxu0 %v2519
          %2735 = vmatprep.subr.mxu0 0.0
          %2736 = vmatpush1.msra.mxu0 %v2520
          %2737 = vmatprep.subr.mxu0 0.0
          %2738 = vmatpush1.msra.mxu0 %v2521
          %2739 = vmatprep.subr.mxu0 0.0
          %2740 = vmatpush1.msra.mxu0 %v2522
          %2741 = vmatprep.subr.mxu0 0.0
          %2742 = vmatpush1.msra.mxu0 %v2523
          %2743 = vmatprep.subr.mxu0 0.0
          %2744 = vmatpush1.msra.mxu0 %v2524
          %2745 = vmatprep.subr.mxu0 0.0
          %2746 = vmatpush1.msra.mxu0 %v2525
          %2747 = vmatprep.subr.mxu0 0.0
          %2748 = vmatpush1.msra.mxu0 %v2526
          %2749 = vmatprep.subr.mxu0 0.0
          %2750 = vmatpush1.msra.mxu0 %v2527
          %2751 = vmatprep.subr.mxu0 0.0
          %2752 = vmatpush1.msra.mxu0 %v2528
          %2753 = vmatprep.subr.mxu0 0.0
          %2754 = vmatpush1.msra.mxu0 0.0
          %2755 = vmatprep.subr.mxu0 0.0
          %2756 = vmatpush1.msra.mxu0 0.0
          %2757 = vmatprep.subr.mxu0 0.0
          %2758 = vmatpush1.msra.mxu0 0.0
          %2759 = vmatprep.subr.mxu0 0.0
          %2760 = vmatpush1.msra.mxu0 0.0
          %2761 = vmatprep.subr.mxu0 0.0
          %2762 = vmatpush1.msra.mxu0 0.0
          %2763 = vmatprep.subr.mxu0 0.0
          %2764 = vmatpush1.msra.mxu0 0.0
          %2765 = vmatprep.subr.mxu0 0.0
          %2766 = vmatpush1.msra.mxu0 0.0
          %2767 = vmatprep.subr.mxu0 0.0
          %2768 = vmatpush1.msra.mxu0 0.0
          %2769 = vmatprep.subr.mxu0 0.0
          %2770 = vmatpush1.msra.mxu0 0.0
          %2771 = vmatprep.subr.mxu0 0.0
          %2772 = vmatpush1.msra.mxu0 0.0
          %2773 = vmatprep.subr.mxu0 0.0
          %2774 = vmatpush1.msra.mxu0 0.0
          %2775 = vmatprep.subr.mxu0 0.0
          %2776 = vmatpush1.msra.mxu0 0.0
          %2777 = vmatprep.subr.mxu0 0.0
          %2778 = vmatpush1.msra.mxu0 0.0
          %2779 = vmatprep.subr.mxu0 0.0
          %2780 = vmatpush1.msra.mxu0 0.0
          %2781 = vmatprep.subr.mxu0 0.0
          %2782 = vmatpush1.msra.mxu0 0.0
          %2783 = vmatprep.subr.mxu0 0.0
          %2784 = vmatpush1.msra.mxu0 0.0
          %2785 = vmatprep.mubr.bf16.mxu0 0
          %2786 = vmatmul.mubr.bf16.gmra.mrb[0].mxu0 %v2657
          %v2787 = vpop.f32.mrb[0].mxu0
          %v2788 = vadd.f32 0.0, %v2787
          %v2789 = vpop.f32.mrb[0].mxu0
          %v2790 = vpop.f32.mrb[0].mxu0
          %v2791 = vadd.f32 0.0, %v2790
          %v2792 = vpop.f32.mrb[0].mxu0
          %2793 = vmatprep.mubr.bf16.mxu0 0
          %2794 = vmatmul.mubr.bf16.gmra.mrb[0].mxu0 %v2658
          %v2795 = vpop.f32.mrb[0].mxu0
          %v2796 = vadd.f32 0.0, %v2795
          %v2797 = vpop.f32.mrb[0].mxu0
          %v2798 = vpop.f32.mrb[0].mxu0
          %v2799 = vadd.f32 0.0, %v2798
          %v2800 = vpop.f32.mrb[0].mxu0
          %2801 = vmatprep.mubr.bf16.mxu0 0
          %2802 = vmatmul.mubr.bf16.gmra.mrb[0].mxu0 %v2659
          %v2803 = vpop.f32.mrb[0].mxu0
          %v2804 = vadd.f32 0.0, %v2803
          %v2805 = vpop.f32.mrb[0].mxu0
          %v2806 = vpop.f32.mrb[0].mxu0
          %v2807 = vadd.f32 0.0, %v2806
          %v2808 = vpop.f32.mrb[0].mxu0
          %2809 = vmatprep.mubr.bf16.mxu0 0
          %2810 = vmatmul.mubr.bf16.gmra.mrb[0].mxu0 %v2660
          %v2811 = vpop.f32.mrb[0].mxu0
          %v2812 = vadd.f32 0.0, %v2811
          %v2813 = vpop.f32.mrb[0].mxu0
          %v2814 = vpop.f32.mrb[0].mxu0
          %v2815 = vadd.f32 0.0, %v2814
          %v2816 = vpop.f32.mrb[0].mxu0
          %2817 = vmatprep.mubr.bf16.mxu0 0
          %2818 = vmatmul.mubr.bf16.gmra.mrb[0].mxu0 %v2661
          %v2819 = vpop.f32.mrb[0].mxu0
          %v2820 = vadd.f32 0.0, %v2819
          %v2821 = vpop.f32.mrb[0].mxu0
          %v2822 = vpop.f32.mrb[0].mxu0
          %v2823 = vadd.f32 0.0, %v2822
          %v2824 = vpop.f32.mrb[0].mxu0
          %2825 = vmatprep.mubr.bf16.mxu0 0
          %2826 = vmatmul.mubr.bf16.gmra.mrb[0].mxu0 %v2662
          %v2827 = vpop.f32.mrb[0].mxu0
          %v2828 = vadd.f32 0.0, %v2827
          %v2829 = vpop.f32.mrb[0].mxu0
          %v2830 = vpop.f32.mrb[0].mxu0
          %v2831 = vadd.f32 0.0, %v2830
          %v2832 = vpop.f32.mrb[0].mxu0
          %2833 = vmatprep.mubr.bf16.mxu0 0
          %2834 = vmatmul.mubr.bf16.gmra.mrb[0].mxu0 %v2663
          %v2835 = vpop.f32.mrb[0].mxu0
          %v2836 = vadd.f32 0.0, %v2835
          %v2837 = vpop.f32.mrb[0].mxu0
          %v2838 = vpop.f32.mrb[0].mxu0
          %v2839 = vadd.f32 0.0, %v2838
          %v2840 = vpop.f32.mrb[0].mxu0
          %2841 = vmatprep.mubr.bf16.mxu0 0
          %2842 = vmatmul.mubr.bf16.gmra.mrb[0].mxu0 %v2664
          %v2843 = vpop.f32.mrb[0].mxu0
          %v2844 = vadd.f32 0.0, %v2843
          %v2845 = vpop.f32.mrb[0].mxu0
          %v2846 = vpop.f32.mrb[0].mxu0
          %v2847 = vadd.f32 0.0, %v2846
          %v2848 = vpop.f32.mrb[0].mxu0
          %2849 = vmatprep.mubr.bf16.mxu0 0
          %2850 = vmatmul.mubr.bf16.gmra.mrb[0].mxu0 %v2665
          %v2851 = vpop.f32.mrb[0].mxu0
          %v2852 = vadd.f32 0.0, %v2851
          %v2853 = vpop.f32.mrb[0].mxu0
          %v2854 = vpop.f32.mrb[0].mxu0
          %v2855 = vadd.f32 0.0, %v2854
          %v2856 = vpop.f32.mrb[0].mxu0
          %2857 = vmatprep.mubr.bf16.mxu0 0
          %2858 = vmatmul.mubr.bf16.gmra.mrb[0].mxu0 %v2666
          %v2859 = vpop.f32.mrb[0].mxu0
          %v2860 = vadd.f32 0.0, %v2859
          %v2861 = vpop.f32.mrb[0].mxu0
          %v2862 = vpop.f32.mrb[0].mxu0
          %v2863 = vadd.f32 0.0, %v2862
          %v2864 = vpop.f32.mrb[0].mxu0
          %2865 = vmatprep.mubr.bf16.mxu0 0
          %2866 = vmatmul.mubr.bf16.gmra.mrb[0].mxu0 %v2667
          %v2867 = vpop.f32.mrb[0].mxu0
          %v2868 = vadd.f32 0.0, %v2867
          %v2869 = vpop.f32.mrb[0].mxu0
          %v2870 = vpop.f32.mrb[0].mxu0
          %v2871 = vadd.f32 0.0, %v2870
          %v2872 = vpop.f32.mrb[0].mxu0
          %2873 = vmatprep.mubr.bf16.mxu0 0
          %2874 = vmatmul.mubr.bf16.gmra.mrb[0].mxu0 %v2668
          %v2875 = vpop.f32.mrb[0].mxu0
          %v2876 = vadd.f32 0.0, %v2875
          %v2877 = vpop.f32.mrb[0].mxu0
          %v2878 = vpop.f32.mrb[0].mxu0
          %v2879 = vadd.f32 0.0, %v2878
          %v2880 = vpop.f32.mrb[0].mxu0
          %2881 = vmatprep.mubr.bf16.mxu0 0
          %2882 = vmatmul.mubr.bf16.gmra.mrb[0].mxu0 %v2669
          %v2883 = vpop.f32.mrb[0].mxu0
          %v2884 = vadd.f32 0.0, %v2883
          %v2885 = vpop.f32.mrb[0].mxu0
          %v2886 = vpop.f32.mrb[0].mxu0
          %v2887 = vadd.f32 0.0, %v2886
          %v2888 = vpop.f32.mrb[0].mxu0
          %2889 = vmatprep.mubr.bf16.mxu0 0
          %2890 = vmatmul.mubr.bf16.gmra.mrb[0].mxu0 %v2670
          %v2891 = vpop.f32.mrb[0].mxu0
          %v2892 = vadd.f32 0.0, %v2891
          %v2893 = vpop.f32.mrb[0].mxu0
          %v2894 = vpop.f32.mrb[0].mxu0
          %v2895 = vadd.f32 0.0, %v2894
          %v2896 = vpop.f32.mrb[0].mxu0
          %2897 = vmatprep.mubr.bf16.mxu0 0
          %2898 = vmatmul.mubr.bf16.gmra.mrb[0].mxu0 %v2671
          %v2899 = vpop.f32.mrb[0].mxu0
          %v2900 = vadd.f32 0.0, %v2899
          %v2901 = vpop.f32.mrb[0].mxu0
          %v2902 = vpop.f32.mrb[0].mxu0
          %v2903 = vadd.f32 0.0, %v2902
          %v2904 = vpop.f32.mrb[0].mxu0
          %2905 = vmatprep.mubr.bf16.mxu0 0
          %2906 = vmatmul.mubr.bf16.gmra.mrb[0].mxu0 %v2672
          %v2907 = vpop.f32.mrb[0].mxu0
          %v2908 = vadd.f32 0.0, %v2907
          %v2909 = vpop.f32.mrb[0].mxu0
          %v2910 = vpop.f32.mrb[0].mxu0
          %v2911 = vadd.f32 0.0, %v2910
          %v2912 = vpop.f32.mrb[0].mxu0
          %2913 = vmatprep.mubr.bf16.mxu0 0
          %2914 = vmatmul.mubr.bf16.gmra.mrb[0].mxu0 %v2673
          %v2915 = vpop.f32.mrb[0].mxu0
          %v2916 = vadd.f32 0.0, %v2915
          %v2917 = vpop.f32.mrb[0].mxu0
          %v2918 = vpop.f32.mrb[0].mxu0
          %v2919 = vadd.f32 0.0, %v2918
          %v2920 = vpop.f32.mrb[0].mxu0
          %2921 = vmatprep.mubr.bf16.mxu0 0
          %2922 = vmatmul.mubr.bf16.gmra.mrb[0].mxu0 %v2674
          %v2923 = vpop.f32.mrb[0].mxu0
          %v2924 = vadd.f32 0.0, %v2923
          %v2925 = vpop.f32.mrb[0].mxu0
          %v2926 = vpop.f32.mrb[0].mxu0
          %v2927 = vadd.f32 0.0, %v2926
          %v2928 = vpop.f32.mrb[0].mxu0
          %2929 = vmatprep.mubr.bf16.mxu0 0
          %2930 = vmatmul.mubr.bf16.gmra.mrb[0].mxu0 %v2675
          %v2931 = vpop.f32.mrb[0].mxu0
          %v2932 = vadd.f32 0.0, %v2931
          %v2933 = vpop.f32.mrb[0].mxu0
          %v2934 = vpop.f32.mrb[0].mxu0
          %v2935 = vadd.f32 0.0, %v2934
          %v2936 = vpop.f32.mrb[0].mxu0
          %2937 = vmatprep.mubr.bf16.mxu0 0
          %2938 = vmatmul.mubr.bf16.gmra.mrb[0].mxu0 %v2676
          %v2939 = vpop.f32.mrb[0].mxu0
          %v2940 = vadd.f32 0.0, %v2939
          %v2941 = vpop.f32.mrb[0].mxu0
          %v2942 = vpop.f32.mrb[0].mxu0
          %v2943 = vadd.f32 0.0, %v2942
          %v2944 = vpop.f32.mrb[0].mxu0
          %2945 = vmatprep.mubr.bf16.mxu0 0
          %2946 = vmatmul.mubr.bf16.gmra.mrb[0].mxu0 %v2677
          %v2947 = vpop.f32.mrb[0].mxu0
          %v2948 = vadd.f32 0.0, %v2947
          %v2949 = vpop.f32.mrb[0].mxu0
          %v2950 = vpop.f32.mrb[0].mxu0
          %v2951 = vadd.f32 0.0, %v2950
          %v2952 = vpop.f32.mrb[0].mxu0
          %2953 = vmatprep.mubr.bf16.mxu0 0
          %2954 = vmatmul.mubr.bf16.gmra.mrb[0].mxu0 %v2678
          %v2955 = vpop.f32.mrb[0].mxu0
          %v2956 = vadd.f32 0.0, %v2955
          %v2957 = vpop.f32.mrb[0].mxu0
          %v2958 = vpop.f32.mrb[0].mxu0
          %v2959 = vadd.f32 0.0, %v2958
          %v2960 = vpop.f32.mrb[0].mxu0
          %2961 = vmatprep.mubr.bf16.mxu0 0
          %2962 = vmatmul.mubr.bf16.gmra.mrb[0].mxu0 %v2679
          %v2963 = vpop.f32.mrb[0].mxu0
          %v2964 = vadd.f32 0.0, %v2963
          %v2965 = vpop.f32.mrb[0].mxu0
          %v2966 = vpop.f32.mrb[0].mxu0
          %v2967 = vadd.f32 0.0, %v2966
          %v2968 = vpop.f32.mrb[0].mxu0
          %2969 = vmatprep.mubr.bf16.mxu0 0
          %2970 = vmatmul.mubr.bf16.gmra.mrb[0].mxu0 %v2680
          %v2971 = vpop.f32.mrb[0].mxu0
          %v2972 = vadd.f32 0.0, %v2971
          %v2973 = vpop.f32.mrb[0].mxu0
          %v2974 = vpop.f32.mrb[0].mxu0
          %v2975 = vadd.f32 0.0, %v2974
          %v2976 = vpop.f32.mrb[0].mxu0
          %2977 = vmatprep.mubr.bf16.mxu0 0
          %2978 = vmatmul.mubr.bf16.gmra.mrb[0].mxu0 %v2681
          %v2979 = vpop.f32.mrb[0].mxu0
          %v2980 = vadd.f32 0.0, %v2979
          %v2981 = vpop.f32.mrb[0].mxu0
          %v2982 = vpop.f32.mrb[0].mxu0
          %v2983 = vadd.f32 0.0, %v2982
          %v2984 = vpop.f32.mrb[0].mxu0
          %2985 = vmatprep.mubr.bf16.mxu0 0
          %2986 = vmatmul.mubr.bf16.gmra.mrb[0].mxu0 %v2682
          %v2987 = vpop.f32.mrb[0].mxu0
          %v2988 = vadd.f32 0.0, %v2987
          %v2989 = vpop.f32.mrb[0].mxu0
          %v2990 = vpop.f32.mrb[0].mxu0
          %v2991 = vadd.f32 0.0, %v2990
          %v2992 = vpop.f32.mrb[0].mxu0
          %2993 = vmatprep.mubr.bf16.mxu0 0
          %2994 = vmatmul.mubr.bf16.gmra.mrb[0].mxu0 %v2683
          %v2995 = vpop.f32.mrb[0].mxu0
          %v2996 = vadd.f32 0.0, %v2995
          %v2997 = vpop.f32.mrb[0].mxu0
          %v2998 = vpop.f32.mrb[0].mxu0
          %v2999 = vadd.f32 0.0, %v2998
          %v3000 = vpop.f32.mrb[0].mxu0
          %3001 = vmatprep.mubr.bf16.mxu0 0
          %3002 = vmatmul.mubr.bf16.gmra.mrb[0].mxu0 %v2684
          %v3003 = vpop.f32.mrb[0].mxu0
          %v3004 = vadd.f32 0.0, %v3003
          %v3005 = vpop.f32.mrb[0].mxu0
          %v3006 = vpop.f32.mrb[0].mxu0
          %v3007 = vadd.f32 0.0, %v3006
          %v3008 = vpop.f32.mrb[0].mxu0
          %3009 = vmatprep.mubr.bf16.mxu0 0
          %3010 = vmatmul.mubr.bf16.gmra.mrb[0].mxu0 %v2685
          %v3011 = vpop.f32.mrb[0].mxu0
          %v3012 = vadd.f32 0.0, %v3011
          %v3013 = vpop.f32.mrb[0].mxu0
          %v3014 = vpop.f32.mrb[0].mxu0
          %v3015 = vadd.f32 0.0, %v3014
          %v3016 = vpop.f32.mrb[0].mxu0
          %3017 = vmatprep.mubr.bf16.mxu0 0
          %3018 = vmatmul.mubr.bf16.gmra.mrb[0].mxu0 %v2686
          %v3019 = vpop.f32.mrb[0].mxu0
          %v3020 = vadd.f32 0.0, %v3019
          %v3021 = vpop.f32.mrb[0].mxu0
          %v3022 = vpop.f32.mrb[0].mxu0
          %v3023 = vadd.f32 0.0, %v3022
          %v3024 = vpop.f32.mrb[0].mxu0
          %3025 = vmatprep.mubr.bf16.mxu0 0
          %3026 = vmatmul.mubr.bf16.gmra.mrb[0].mxu0 %v2687
          %v3027 = vpop.f32.mrb[0].mxu0
          %v3028 = vadd.f32 0.0, %v3027
          %v3029 = vpop.f32.mrb[0].mxu0
          %v3030 = vpop.f32.mrb[0].mxu0
          %v3031 = vadd.f32 0.0, %v3030
          %v3032 = vpop.f32.mrb[0].mxu0
          %3033 = vmatprep.mubr.bf16.mxu0 0
          %3034 = vmatmul.mubr.bf16.gmra.mrb[0].mxu0 %v2688
          %v3035 = vpop.f32.mrb[0].mxu0
          %v3036 = vadd.f32 0.0, %v3035
          %v3037 = vpop.f32.mrb[0].mxu0
          %v3038 = vpop.f32.mrb[0].mxu0
          %v3039 = vadd.f32 0.0, %v3038
          %v3040 = vpop.f32.mrb[0].mxu0
          %3041 = vdwg.mxu0
          %3042 = vmatprep.subr.mxu0 0.0
          %3043 = vmatpush1.msra.mxu0 %v2497
          %3044 = vmatprep.subr.mxu0 0.0
          %3045 = vmatpush1.msra.mxu0 %v2498
          %3046 = vmatprep.subr.mxu0 0.0
          %3047 = vmatpush1.msra.mxu0 %v2499
          %3048 = vmatprep.subr.mxu0 0.0
          %3049 = vmatpush1.msra.mxu0 %v2500
          %3050 = vmatprep.subr.mxu0 0.0
          %3051 = vmatpush1.msra.mxu0 %v2501
          %3052 = vmatprep.subr.mxu0 0.0
          %3053 = vmatpush1.msra.mxu0 %v2502
          %3054 = vmatprep.subr.mxu0 0.0
          %3055 = vmatpush1.msra.mxu0 %v2503
          %3056 = vmatprep.subr.mxu0 0.0
          %3057 = vmatpush1.msra.mxu0 %v2504
          %3058 = vmatprep.subr.mxu0 0.0
          %3059 = vmatpush1.msra.mxu0 %v2505
          %3060 = vmatprep.subr.mxu0 0.0
          %3061 = vmatpush1.msra.mxu0 %v2506
          %3062 = vmatprep.subr.mxu0 0.0
          %3063 = vmatpush1.msra.mxu0 %v2507
          %3064 = vmatprep.subr.mxu0 0.0
          %3065 = vmatpush1.msra.mxu0 %v2508
          %3066 = vmatprep.subr.mxu0 0.0
          %3067 = vmatpush1.msra.mxu0 %v2509
          %3068 = vmatprep.subr.mxu0 0.0
          %3069 = vmatpush1.msra.mxu0 %v2510
          %3070 = vmatprep.subr.mxu0 0.0
          %3071 = vmatpush1.msra.mxu0 %v2511
          %3072 = vmatprep.subr.mxu0 0.0
          %3073 = vmatpush1.msra.mxu0 %v2512
          %3074 = vmatprep.subr.mxu0 0.0
          %3075 = vmatpush1.msra.mxu0 0.0
          %3076 = vmatprep.subr.mxu0 0.0
          %3077 = vmatpush1.msra.mxu0 0.0
          %3078 = vmatprep.subr.mxu0 0.0
          %3079 = vmatpush1.msra.mxu0 0.0
          %3080 = vmatprep.subr.mxu0 0.0
          %3081 = vmatpush1.msra.mxu0 0.0
          %3082 = vmatprep.subr.mxu0 0.0
          %3083 = vmatpush1.msra.mxu0 0.0
          %3084 = vmatprep.subr.mxu0 0.0
          %3085 = vmatpush1.msra.mxu0 0.0
          %3086 = vmatprep.subr.mxu0 0.0
          %3087 = vmatpush1.msra.mxu0 0.0
          %3088 = vmatprep.subr.mxu0 0.0
          %3089 = vmatpush1.msra.mxu0 0.0
          %3090 = vmatprep.subr.mxu0 0.0
          %3091 = vmatpush1.msra.mxu0 0.0
          %3092 = vmatprep.subr.mxu0 0.0
          %3093 = vmatpush1.msra.mxu0 0.0
          %3094 = vmatprep.subr.mxu0 0.0
          %3095 = vmatpush1.msra.mxu0 0.0
          %3096 = vmatprep.subr.mxu0 0.0
          %3097 = vmatpush1.msra.mxu0 0.0
          %3098 = vmatprep.subr.mxu0 0.0
          %3099 = vmatpush1.msra.mxu0 0.0
          %3100 = vmatprep.subr.mxu0 0.0
          %3101 = vmatpush1.msra.mxu0 0.0
          %3102 = vmatprep.subr.mxu0 0.0
          %3103 = vmatpush1.msra.mxu0 0.0
          %3104 = vmatprep.subr.mxu0 0.0
          %3105 = vmatpush1.msra.mxu0 0.0
          %3106 = vmatprep.mubr.f32.mxu0 0.0
          %3107 = vmatmul.mubr.f32.gmra.mrb[0].mxu0 %v2433
          %v3108 = vpop.f32.mrb[0].mxu0
          %v3109 = vadd.f32 %v2788, %v3108
          %v3110 = vpop.f32.mrb[0].mxu0
          %3111 = vmatprep.mubr.f32.mxu0 0.0
          %3112 = vmatmul.mubr.f32.gmra.mrb[0].mxu0 %v2434
          %v3113 = vpop.f32.mrb[0].mxu0
          %v3114 = vadd.f32 %v2791, %v3113
          %v3115 = vpop.f32.mrb[0].mxu0
          %3116 = vmatprep.mubr.f32.mxu0 0.0
          %3117 = vmatmul.mubr.f32.gmra.mrb[0].mxu0 %v2435
          %v3118 = vpop.f32.mrb[0].mxu0
          %v3119 = vadd.f32 %v2796, %v3118
          %v3120 = vpop.f32.mrb[0].mxu0
          %3121 = vmatprep.mubr.f32.mxu0 0.0
          %3122 = vmatmul.mubr.f32.gmra.mrb[0].mxu0 %v2436
          %v3123 = vpop.f32.mrb[0].mxu0
          %v3124 = vadd.f32 %v2799, %v3123
          %v3125 = vpop.f32.mrb[0].mxu0
          %3126 = vmatprep.mubr.f32.mxu0 0.0
          %3127 = vmatmul.mubr.f32.gmra.mrb[0].mxu0 %v2437
          %v3128 = vpop.f32.mrb[0].mxu0
          %v3129 = vadd.f32 %v2804, %v3128
          %v3130 = vpop.f32.mrb[0].mxu0
          %3131 = vmatprep.mubr.f32.mxu0 0.0
          %3132 = vmatmul.mubr.f32.gmra.mrb[0].mxu0 %v2438
          %v3133 = vpop.f32.mrb[0].mxu0
          %v3134 = vadd.f32 %v2807, %v3133
          %v3135 = vpop.f32.mrb[0].mxu0
          %3136 = vmatprep.mubr.f32.mxu0 0.0
          %3137 = vmatmul.mubr.f32.gmra.mrb[0].mxu0 %v2439
          %v3138 = vpop.f32.mrb[0].mxu0
          %v3139 = vadd.f32 %v2812, %v3138
          %v3140 = vpop.f32.mrb[0].mxu0
          %3141 = vmatprep.mubr.f32.mxu0 0.0
          %3142 = vmatmul.mubr.f32.gmra.mrb[0].mxu0 %v2440
          %v3143 = vpop.f32.mrb[0].mxu0
          %v3144 = vadd.f32 %v2815, %v3143
          %v3145 = vpop.f32.mrb[0].mxu0
          %3146 = vmatprep.mubr.f32.mxu0 0.0
          %3147 = vmatmul.mubr.f32.gmra.mrb[0].mxu0 %v2441
          %v3148 = vpop.f32.mrb[0].mxu0
          %v3149 = vadd.f32 %v2820, %v3148
          %v3150 = vpop.f32.mrb[0].mxu0
          %3151 = vmatprep.mubr.f32.mxu0 0.0
          %3152 = vmatmul.mubr.f32.gmra.mrb[0].mxu0 %v2442
          %v3153 = vpop.f32.mrb[0].mxu0
          %v3154 = vadd.f32 %v2823, %v3153
          %v3155 = vpop.f32.mrb[0].mxu0
          %3156 = vmatprep.mubr.f32.mxu0 0.0
          %3157 = vmatmul.mubr.f32.gmra.mrb[0].mxu0 %v2443
          %v3158 = vpop.f32.mrb[0].mxu0
          %v3159 = vadd.f32 %v2828, %v3158
          %v3160 = vpop.f32.mrb[0].mxu0
          %3161 = vmatprep.mubr.f32.mxu0 0.0
          %3162 = vmatmul.mubr.f32.gmra.mrb[0].mxu0 %v2444
          %v3163 = vpop.f32.mrb[0].mxu0
          %v3164 = vadd.f32 %v2831, %v3163
          %v3165 = vpop.f32.mrb[0].mxu0
          %3166 = vmatprep.mubr.f32.mxu0 0.0
          %3167 = vmatmul.mubr.f32.gmra.mrb[0].mxu0 %v2445
          %v3168 = vpop.f32.mrb[0].mxu0
          %v3169 = vadd.f32 %v2836, %v3168
          %v3170 = vpop.f32.mrb[0].mxu0
          %3171 = vmatprep.mubr.f32.mxu0 0.0
          %3172 = vmatmul.mubr.f32.gmra.mrb[0].mxu0 %v2446
          %v3173 = vpop.f32.mrb[0].mxu0
          %v3174 = vadd.f32 %v2839, %v3173
          %v3175 = vpop.f32.mrb[0].mxu0
          %3176 = vmatprep.mubr.f32.mxu0 0.0
          %3177 = vmatmul.mubr.f32.gmra.mrb[0].mxu0 %v2447
          %v3178 = vpop.f32.mrb[0].mxu0
          %v3179 = vadd.f32 %v2844, %v3178
          %v3180 = vpop.f32.mrb[0].mxu0
          %3181 = vmatprep.mubr.f32.mxu0 0.0
          %3182 = vmatmul.mubr.f32.gmra.mrb[0].mxu0 %v2448
          %v3183 = vpop.f32.mrb[0].mxu0
          %v3184 = vadd.f32 %v2847, %v3183
          %v3185 = vpop.f32.mrb[0].mxu0
          %3186 = vmatprep.mubr.f32.mxu0 0.0
          %3187 = vmatmul.mubr.f32.gmra.mrb[0].mxu0 %v2449
          %v3188 = vpop.f32.mrb[0].mxu0
          %v3189 = vadd.f32 %v2852, %v3188
          %v3190 = vpop.f32.mrb[0].mxu0
          %3191 = vmatprep.mubr.f32.mxu0 0.0
          %3192 = vmatmul.mubr.f32.gmra.mrb[0].mxu0 %v2450
          %v3193 = vpop.f32.mrb[0].mxu0
          %v3194 = vadd.f32 %v2855, %v3193
          %v3195 = vpop.f32.mrb[0].mxu0
          %3196 = vmatprep.mubr.f32.mxu0 0.0
          %3197 = vmatmul.mubr.f32.gmra.mrb[0].mxu0 %v2451
          %v3198 = vpop.f32.mrb[0].mxu0
          %v3199 = vadd.f32 %v2860, %v3198
          %v3200 = vpop.f32.mrb[0].mxu0
          %3201 = vmatprep.mubr.f32.mxu0 0.0
          %3202 = vmatmul.mubr.f32.gmra.mrb[0].mxu0 %v2452
          %v3203 = vpop.f32.mrb[0].mxu0
          %v3204 = vadd.f32 %v2863, %v3203
          %v3205 = vpop.f32.mrb[0].mxu0
          %3206 = vmatprep.mubr.f32.mxu0 0.0
          %3207 = vmatmul.mubr.f32.gmra.mrb[0].mxu0 %v2453
          %v3208 = vpop.f32.mrb[0].mxu0
          %v3209 = vadd.f32 %v2868, %v3208
          %v3210 = vpop.f32.mrb[0].mxu0
          %3211 = vmatprep.mubr.f32.mxu0 0.0
          %3212 = vmatmul.mubr.f32.gmra.mrb[0].mxu0 %v2454
          %v3213 = vpop.f32.mrb[0].mxu0
          %v3214 = vadd.f32 %v2871, %v3213
          %v3215 = vpop.f32.mrb[0].mxu0
          %3216 = vmatprep.mubr.f32.mxu0 0.0
          %3217 = vmatmul.mubr.f32.gmra.mrb[0].mxu0 %v2455
          %v3218 = vpop.f32.mrb[0].mxu0
          %v3219 = vadd.f32 %v2876, %v3218
          %v3220 = vpop.f32.mrb[0].mxu0
          %3221 = vmatprep.mubr.f32.mxu0 0.0
          %3222 = vmatmul.mubr.f32.gmra.mrb[0].mxu0 %v2456
          %v3223 = vpop.f32.mrb[0].mxu0
          %v3224 = vadd.f32 %v2879, %v3223
          %v3225 = vpop.f32.mrb[0].mxu0
          %3226 = vmatprep.mubr.f32.mxu0 0.0
          %3227 = vmatmul.mubr.f32.gmra.mrb[0].mxu0 %v2457
          %v3228 = vpop.f32.mrb[0].mxu0
          %v3229 = vadd.f32 %v2884, %v3228
          %v3230 = vpop.f32.mrb[0].mxu0
          %3231 = vmatprep.mubr.f32.mxu0 0.0
          %3232 = vmatmul.mubr.f32.gmra.mrb[0].mxu0 %v2458
          %v3233 = vpop.f32.mrb[0].mxu0
          %v3234 = vadd.f32 %v2887, %v3233
          %v3235 = vpop.f32.mrb[0].mxu0
          %3236 = vmatprep.mubr.f32.mxu0 0.0
          %3237 = vmatmul.mubr.f32.gmra.mrb[0].mxu0 %v2459
          %v3238 = vpop.f32.mrb[0].mxu0
          %v3239 = vadd.f32 %v2892, %v3238
          %v3240 = vpop.f32.mrb[0].mxu0
          %3241 = vmatprep.mubr.f32.mxu0 0.0
          %3242 = vmatmul.mubr.f32.gmra.mrb[0].mxu0 %v2460
          %v3243 = vpop.f32.mrb[0].mxu0
          %v3244 = vadd.f32 %v2895, %v3243
          %v3245 = vpop.f32.mrb[0].mxu0
          %3246 = vmatprep.mubr.f32.mxu0 0.0
          %3247 = vmatmul.mubr.f32.gmra.mrb[0].mxu0 %v2461
          %v3248 = vpop.f32.mrb[0].mxu0
          %v3249 = vadd.f32 %v2900, %v3248
          %v3250 = vpop.f32.mrb[0].mxu0
          %3251 = vmatprep.mubr.f32.mxu0 0.0
          %3252 = vmatmul.mubr.f32.gmra.mrb[0].mxu0 %v2462
          %v3253 = vpop.f32.mrb[0].mxu0
          %v3254 = vadd.f32 %v2903, %v3253
          %v3255 = vpop.f32.mrb[0].mxu0
          %3256 = vmatprep.mubr.f32.mxu0 0.0
          %3257 = vmatmul.mubr.f32.gmra.mrb[0].mxu0 %v2463
          %v3258 = vpop.f32.mrb[0].mxu0
          %v3259 = vadd.f32 %v2908, %v3258
          %v3260 = vpop.f32.mrb[0].mxu0
          %3261 = vmatprep.mubr.f32.mxu0 0.0
          %3262 = vmatmul.mubr.f32.gmra.mrb[0].mxu0 %v2464
          %v3263 = vpop.f32.mrb[0].mxu0
          %v3264 = vadd.f32 %v2911, %v3263
          %v3265 = vpop.f32.mrb[0].mxu0
          %3266 = vmatprep.mubr.f32.mxu0 0.0
          %3267 = vmatmul.mubr.f32.gmra.mrb[0].mxu0 %v2465
          %v3268 = vpop.f32.mrb[0].mxu0
          %v3269 = vadd.f32 %v2916, %v3268
          %v3270 = vpop.f32.mrb[0].mxu0
          %3271 = vmatprep.mubr.f32.mxu0 0.0
          %3272 = vmatmul.mubr.f32.gmra.mrb[0].mxu0 %v2466
          %v3273 = vpop.f32.mrb[0].mxu0
          %v3274 = vadd.f32 %v2919, %v3273
          %v3275 = vpop.f32.mrb[0].mxu0
          %3276 = vmatprep.mubr.f32.mxu0 0.0
          %3277 = vmatmul.mubr.f32.gmra.mrb[0].mxu0 %v2467
          %v3278 = vpop.f32.mrb[0].mxu0
          %v3279 = vadd.f32 %v2924, %v3278
          %v3280 = vpop.f32.mrb[0].mxu0
          %3281 = vmatprep.mubr.f32.mxu0 0.0
          %3282 = vmatmul.mubr.f32.gmra.mrb[0].mxu0 %v2468
          %v3283 = vpop.f32.mrb[0].mxu0
          %v3284 = vadd.f32 %v2927, %v3283
          %v3285 = vpop.f32.mrb[0].mxu0
          %3286 = vmatprep.mubr.f32.mxu0 0.0
          %3287 = vmatmul.mubr.f32.gmra.mrb[0].mxu0 %v2469
          %v3288 = vpop.f32.mrb[0].mxu0
          %v3289 = vadd.f32 %v2932, %v3288
          %v3290 = vpop.f32.mrb[0].mxu0
          %3291 = vmatprep.mubr.f32.mxu0 0.0
          %3292 = vmatmul.mubr.f32.gmra.mrb[0].mxu0 %v2470
          %v3293 = vpop.f32.mrb[0].mxu0
          %v3294 = vadd.f32 %v2935, %v3293
          %v3295 = vpop.f32.mrb[0].mxu0
          %3296 = vmatprep.mubr.f32.mxu0 0.0
          %3297 = vmatmul.mubr.f32.gmra.mrb[0].mxu0 %v2471
          %v3298 = vpop.f32.mrb[0].mxu0
          %v3299 = vadd.f32 %v2940, %v3298
          %v3300 = vpop.f32.mrb[0].mxu0
          %3301 = vmatprep.mubr.f32.mxu0 0.0
          %3302 = vmatmul.mubr.f32.gmra.mrb[0].mxu0 %v2472
          %v3303 = vpop.f32.mrb[0].mxu0
          %v3304 = vadd.f32 %v2943, %v3303
          %v3305 = vpop.f32.mrb[0].mxu0
          %3306 = vmatprep.mubr.f32.mxu0 0.0
          %3307 = vmatmul.mubr.f32.gmra.mrb[0].mxu0 %v2473
          %v3308 = vpop.f32.mrb[0].mxu0
          %v3309 = vadd.f32 %v2948, %v3308
          %v3310 = vpop.f32.mrb[0].mxu0
          %3311 = vmatprep.mubr.f32.mxu0 0.0
          %3312 = vmatmul.mubr.f32.gmra.mrb[0].mxu0 %v2474
          %v3313 = vpop.f32.mrb[0].mxu0
          %v3314 = vadd.f32 %v2951, %v3313
          %v3315 = vpop.f32.mrb[0].mxu0
          %3316 = vmatprep.mubr.f32.mxu0 0.0
          %3317 = vmatmul.mubr.f32.gmra.mrb[0].mxu0 %v2475
          %v3318 = vpop.f32.mrb[0].mxu0
          %v3319 = vadd.f32 %v2956, %v3318
          %v3320 = vpop.f32.mrb[0].mxu0
          %3321 = vmatprep.mubr.f32.mxu0 0.0
          %3322 = vmatmul.mubr.f32.gmra.mrb[0].mxu0 %v2476
          %v3323 = vpop.f32.mrb[0].mxu0
          %v3324 = vadd.f32 %v2959, %v3323
          %v3325 = vpop.f32.mrb[0].mxu0
          %3326 = vmatprep.mubr.f32.mxu0 0.0
          %3327 = vmatmul.mubr.f32.gmra.mrb[0].mxu0 %v2477
          %v3328 = vpop.f32.mrb[0].mxu0
          %v3329 = vadd.f32 %v2964, %v3328
          %v3330 = vpop.f32.mrb[0].mxu0
          %3331 = vmatprep.mubr.f32.mxu0 0.0
          %3332 = vmatmul.mubr.f32.gmra.mrb[0].mxu0 %v2478
          %v3333 = vpop.f32.mrb[0].mxu0
          %v3334 = vadd.f32 %v2967, %v3333
          %v3335 = vpop.f32.mrb[0].mxu0
          %3336 = vmatprep.mubr.f32.mxu0 0.0
          %3337 = vmatmul.mubr.f32.gmra.mrb[0].mxu0 %v2479
          %v3338 = vpop.f32.mrb[0].mxu0
          %v3339 = vadd.f32 %v2972, %v3338
          %v3340 = vpop.f32.mrb[0].mxu0
          %3341 = vmatprep.mubr.f32.mxu0 0.0
          %3342 = vmatmul.mubr.f32.gmra.mrb[0].mxu0 %v2480
          %v3343 = vpop.f32.mrb[0].mxu0
          %v3344 = vadd.f32 %v2975, %v3343
          %v3345 = vpop.f32.mrb[0].mxu0
          %3346 = vmatprep.mubr.f32.mxu0 0.0
          %3347 = vmatmul.mubr.f32.gmra.mrb[0].mxu0 %v2481
          %v3348 = vpop.f32.mrb[0].mxu0
          %v3349 = vadd.f32 %v2980, %v3348
          %v3350 = vpop.f32.mrb[0].mxu0
          %3351 = vmatprep.mubr.f32.mxu0 0.0
          %3352 = vmatmul.mubr.f32.gmra.mrb[0].mxu0 %v2482
          %v3353 = vpop.f32.mrb[0].mxu0
          %v3354 = vadd.f32 %v2983, %v3353
          %v3355 = vpop.f32.mrb[0].mxu0
          %3356 = vmatprep.mubr.f32.mxu0 0.0
          %3357 = vmatmul.mubr.f32.gmra.mrb[0].mxu0 %v2483
          %v3358 = vpop.f32.mrb[0].mxu0
          %v3359 = vadd.f32 %v2988, %v3358
          %v3360 = vpop.f32.mrb[0].mxu0
          %3361 = vmatprep.mubr.f32.mxu0 0.0
          %3362 = vmatmul.mubr.f32.gmra.mrb[0].mxu0 %v2484
          %v3363 = vpop.f32.mrb[0].mxu0
          %v3364 = vadd.f32 %v2991, %v3363
          %v3365 = vpop.f32.mrb[0].mxu0
          %3366 = vmatprep.mubr.f32.mxu0 0.0
          %3367 = vmatmul.mubr.f32.gmra.mrb[0].mxu0 %v2485
          %v3368 = vpop.f32.mrb[0].mxu0
          %v3369 = vadd.f32 %v2996, %v3368
          %v3370 = vpop.f32.mrb[0].mxu0
          %3371 = vmatprep.mubr.f32.mxu0 0.0
          %3372 = vmatmul.mubr.f32.gmra.mrb[0].mxu0 %v2486
          %v3373 = vpop.f32.mrb[0].mxu0
          %v3374 = vadd.f32 %v2999, %v3373
          %v3375 = vpop.f32.mrb[0].mxu0
          %3376 = vmatprep.mubr.f32.mxu0 0.0
          %3377 = vmatmul.mubr.f32.gmra.mrb[0].mxu0 %v2487
          %v3378 = vpop.f32.mrb[0].mxu0
          %v3379 = vadd.f32 %v3004, %v3378
          %v3380 = vpop.f32.mrb[0].mxu0
          %3381 = vmatprep.mubr.f32.mxu0 0.0
          %3382 = vmatmul.mubr.f32.gmra.mrb[0].mxu0 %v2488
          %v3383 = vpop.f32.mrb[0].mxu0
          %v3384 = vadd.f32 %v3007, %v3383
          %v3385 = vpop.f32.mrb[0].mxu0
          %3386 = vmatprep.mubr.f32.mxu0 0.0
          %3387 = vmatmul.mubr.f32.gmra.mrb[0].mxu0 %v2489
          %v3388 = vpop.f32.mrb[0].mxu0
          %v3389 = vadd.f32 %v3012, %v3388
          %v3390 = vpop.f32.mrb[0].mxu0
          %3391 = vmatprep.mubr.f32.mxu0 0.0
          %3392 = vmatmul.mubr.f32.gmra.mrb[0].mxu0 %v2490
          %v3393 = vpop.f32.mrb[0].mxu0
          %v3394 = vadd.f32 %v3015, %v3393
          %v3395 = vpop.f32.mrb[0].mxu0
          %3396 = vmatprep.mubr.f32.mxu0 0.0
          %3397 = vmatmul.mubr.f32.gmra.mrb[0].mxu0 %v2491
          %v3398 = vpop.f32.mrb[0].mxu0
          %v3399 = vadd.f32 %v3020, %v3398
          %v3400 = vpop.f32.mrb[0].mxu0
          %3401 = vmatprep.mubr.f32.mxu0 0.0
          %3402 = vmatmul.mubr.f32.gmra.mrb[0].mxu0 %v2492
          %v3403 = vpop.f32.mrb[0].mxu0
          %v3404 = vadd.f32 %v3023, %v3403
          %v3405 = vpop.f32.mrb[0].mxu0
          %3406 = vmatprep.mubr.f32.mxu0 0.0
          %3407 = vmatmul.mubr.f32.gmra.mrb[0].mxu0 %v2493
          %v3408 = vpop.f32.mrb[0].mxu0
          %v3409 = vadd.f32 %v3028, %v3408
          %v3410 = vpop.f32.mrb[0].mxu0
          %3411 = vmatprep.mubr.f32.mxu0 0.0
          %3412 = vmatmul.mubr.f32.gmra.mrb[0].mxu0 %v2494
          %v3413 = vpop.f32.mrb[0].mxu0
          %v3414 = vadd.f32 %v3031, %v3413
          %v3415 = vpop.f32.mrb[0].mxu0
          %3416 = vmatprep.mubr.f32.mxu0 0.0
          %3417 = vmatmul.mubr.f32.gmra.mrb[0].mxu0 %v2495
          %v3418 = vpop.f32.mrb[0].mxu0
          %v3419 = vadd.f32 %v3036, %v3418
          %v3420 = vpop.f32.mrb[0].mxu0
          %3421 = vmatprep.mubr.f32.mxu0 0.0
          %3422 = vmatmul.mubr.f32.gmra.mrb[0].mxu0 %v2496
          %v3423 = vpop.f32.mrb[0].mxu0
          %v3424 = vadd.f32 %v3039, %v3423
          %v3425 = vpop.f32.mrb[0].mxu0
          %3426 = vdwg.mxu0
          %3427 = vst [vmem:[%s490] sm:$0xff] %v3109
          %3428 = vst [vmem:[%s490 + $0x8] sm:$0xff] %v3114
          %3429 = vst [vmem:[%s490 + $0x10] sm:$0xff] %v3119
          %3430 = vst [vmem:[%s490 + $0x18] sm:$0xff] %v3124
          %3431 = vst [vmem:[%s490 + $0x20] sm:$0xff] %v3129
          %3432 = vst [vmem:[%s490 + $0x28] sm:$0xff] %v3134
          %3433 = vst [vmem:[%s490 + $0x30] sm:$0xff] %v3139
          %3434 = vst [vmem:[%s490 + $0x38] sm:$0xff] %v3144
          %3435 = vst [vmem:[%s490 + $0x40] sm:$0xff] %v3149
          %3436 = vst [vmem:[%s490 + $0x48] sm:$0xff] %v3154
          %3437 = vst [vmem:[%s490 + $0x50] sm:$0xff] %v3159
          %3438 = vst [vmem:[%s490 + $0x58] sm:$0xff] %v3164
          %3439 = vst [vmem:[%s490 + $0x60] sm:$0xff] %v3169
          %3440 = vst [vmem:[%s490 + $0x68] sm:$0xff] %v3174
          %3441 = vst [vmem:[%s490 + $0x70] sm:$0xff] %v3179
          %3442 = vst [vmem:[%s490 + $0x78] sm:$0xff] %v3184
          %3443 = vst [vmem:[%s490 + $0x80] sm:$0xff] %v3189
          %3444 = vst [vmem:[%s490 + $0x88] sm:$0xff] %v3194
          %3445 = vst [vmem:[%s490 + $0x90] sm:$0xff] %v3199
          %3446 = vst [vmem:[%s490 + $0x98] sm:$0xff] %v3204
          %3447 = vst [vmem:[%s490 + $0xa0] sm:$0xff] %v3209
          %3448 = vst [vmem:[%s490 + $0xa8] sm:$0xff] %v3214
          %3449 = vst [vmem:[%s490 + $0xb0] sm:$0xff] %v3219
          %3450 = vst [vmem:[%s490 + $0xb8] sm:$0xff] %v3224
          %3451 = vst [vmem:[%s490 + $0xc0] sm:$0xff] %v3229
          %3452 = vst [vmem:[%s490 + $0xc8] sm:$0xff] %v3234
          %3453 = vst [vmem:[%s490 + $0xd0] sm:$0xff] %v3239
          %3454 = vst [vmem:[%s490 + $0xd8] sm:$0xff] %v3244
          %3455 = vst [vmem:[%s490 + $0xe0] sm:$0xff] %v3249
          %3456 = vst [vmem:[%s490 + $0xe8] sm:$0xff] %v3254
          %3457 = vst [vmem:[%s490 + $0xf0] sm:$0xff] %v3259
          %3458 = vst [vmem:[%s490 + $0xf8] sm:$0xff] %v3264
          %3459 = vst [vmem:[%s490 + $0x100] sm:$0xff] %v3269
          %3460 = vst [vmem:[%s490 + $0x108] sm:$0xff] %v3274
          %3461 = vst [vmem:[%s490 + $0x110] sm:$0xff] %v3279
          %3462 = vst [vmem:[%s490 + $0x118] sm:$0xff] %v3284
          %3463 = vst [vmem:[%s490 + $0x120] sm:$0xff] %v3289
          %3464 = vst [vmem:[%s490 + $0x128] sm:$0xff] %v3294
          %3465 = vst [vmem:[%s490 + $0x130] sm:$0xff] %v3299
          %3466 = vst [vmem:[%s490 + $0x138] sm:$0xff] %v3304
          %3467 = vst [vmem:[%s490 + $0x140] sm:$0xff] %v3309
          %3468 = vst [vmem:[%s490 + $0x148] sm:$0xff] %v3314
          %3469 = vst [vmem:[%s490 + $0x150] sm:$0xff] %v3319
          %3470 = vst [vmem:[%s490 + $0x158] sm:$0xff] %v3324
          %3471 = vst [vmem:[%s490 + $0x160] sm:$0xff] %v3329
          %3472 = vst [vmem:[%s490 + $0x168] sm:$0xff] %v3334
          %3473 = vst [vmem:[%s490 + $0x170] sm:$0xff] %v3339
          %3474 = vst [vmem:[%s490 + $0x178] sm:$0xff] %v3344
          %3475 = vst [vmem:[%s490 + $0x180] sm:$0xff] %v3349
          %3476 = vst [vmem:[%s490 + $0x188] sm:$0xff] %v3354
          %3477 = vst [vmem:[%s490 + $0x190] sm:$0xff] %v3359
          %3478 = vst [vmem:[%s490 + $0x198] sm:$0xff] %v3364
          %3479 = vst [vmem:[%s490 + $0x1a0] sm:$0xff] %v3369
          %3480 = vst [vmem:[%s490 + $0x1a8] sm:$0xff] %v3374
          %3481 = vst [vmem:[%s490 + $0x1b0] sm:$0xff] %v3379
          %3482 = vst [vmem:[%s490 + $0x1b8] sm:$0xff] %v3384
          %3483 = vst [vmem:[%s490 + $0x1c0] sm:$0xff] %v3389
          %3484 = vst [vmem:[%s490 + $0x1c8] sm:$0xff] %v3394
          %3485 = vst [vmem:[%s490 + $0x1d0] sm:$0xff] %v3399
          %3486 = vst [vmem:[%s490 + $0x1d8] sm:$0xff] %v3404
          %3487 = vst [vmem:[%s490 + $0x1e0] sm:$0xff] %v3409
          %3488 = vst [vmem:[%s490 + $0x1e8] sm:$0xff] %v3414
          %3489 = vst [vmem:[%s490 + $0x1f0] sm:$0xff] %v3419
          %3490 = vst [vmem:[%s490 + $0x1f8] sm:$0xff] %v3424
        $region67: #{graphsage_pallas.3} parent=54 // pred_fallthru
          _
        %s3491 = smul.u32 64, %s19
        %p3492 = scmp.lt.s32.totalorder %s3491, 191
        %s3493 = scalar_select %p3492, %s3491, 191
        %s3494 = smul.addr %s3493, 8
        %s3495 = scalar_lea.vmem %s4, %s3494
        // Predicated region
        $region68: #{graphsage_pallas.3} parent=54 // pred_check
          %p3496 = pneg %p136
        $region69: #{graphsage_pallas.3} parent=54 // pred_check_branch
          %3498 = sbr.rel (%p3496) target = $region71
        $region70: #{graphsage_pallas.3} parent=54 // pred_region
          %s3499 = smul.u32 64, %s19
        $region71: #{graphsage_pallas.3} parent=54 // pred_fallthru
          _
      $region55: #{graphsage_pallas.3} parent=5 // pred_fallthru
        _
      %p3500 = scmp.le.s32.totalorder 2, %s10
      // Predicated region
      $region72: #{graphsage_pallas.3} parent=5 // pred_check
        %p3501 = pneg %p3500
      $region73: #{graphsage_pallas.3} parent=5 // pred_check_branch
        %3503 = sbr.rel (%p3501) target = $region75
      $region74: #{graphsage_pallas.3} parent=5 // pred_region
        %s3504 = ssub.s32 %s10, 2
        // Predicated region
        $region76: #{graphsage_pallas.3} parent=74 // pred_check
          %p3505 = pneg %p142
        $region77: #{graphsage_pallas.3} parent=74 // pred_check_branch
          %3507 = sbr.rel (%p3505) target = $region79
        $region78: #{graphsage_pallas.3} parent=74 // pred_region
          %s3508 = smul.u32 64, %s21
          %p3509 = scmp.lt.s32.totalorder %s3508, 191
          %s3510 = scalar_select %p3509, %s3508, 191
          %s3511 = smul.addr %s3510, 8
          %s3512 = scalar_lea.vmem %s4, %s3511
        $region79: #{graphsage_pallas.3} parent=74 // pred_fallthru
          _
      $region75: #{graphsage_pallas.3} parent=5 // pred_fallthru
        _
    $region6: #{graphsage_pallas.3} parent=1 // loop_footer
      %s14 = sadd.s32 1, %s10
    $region7: #{graphsage_pallas.3} parent=1 // loop_footer_branch
      %9 = sbr.rel target = $region3
    $region8: #{graphsage_pallas.3} parent=1 // loop_exit
      _

// kernel: graphsage_pallas.2
$region0: #{graphsage_pallas.2}
  #allocation0 [shape = 'u32[]', space=smem, size = 0x4, offset = 0x4, fixed_abs, tag = 'smem constant byte address 0x4 - core index']
  #allocation1 [shape = 'u32[144,128]{1,0:T(1,128)}', space=vmem, size = 0x12000, scoped, tag = 'internal scratch']
  #allocation2 [shape = 'f32[512,128]{1,0:T(8,128)}', space=vmem, size = 0x40000, scoped, tag = 'scratch operand']
  %s0 = inlined_call_operand.vmem [shape: bf16[1536,1536], index: 0, kind: input, shape index: {}]
  %s1 = inlined_call_operand.vmem [shape: bf16[1536,128], index: 1, kind: input, shape index: {}]
  %s2 = inlined_call_operand.vmem [shape: f32[128,128], index: 2, kind: input, shape index: {}]
  %s3 = inlined_call_operand.vmem [shape: f32[128,128], index: 3, kind: input, shape index: {}]
  %s4 = inlined_call_operand.vmem [shape: bf16[1536,128], index: 4, kind: output, shape index: {}]
  %s5 = sld [smem:[#allocation0]]
  $region80: #{graphsage_pallas.2} parent=0
    _
  %s7 = ssub.s32 1, %s5
  %s8 = scalar_select 0, %s7, %s5
  $region1: #{graphsage_pallas.2} parent=0
    #allocation3 [shape = 'u8[1048576]{0}', space=vmem, size = 0x100000, scoped, tag = 'input window, operand 0']
    loop: start=0, step=1, limit=11
    $region2: #{graphsage_pallas.2} parent=1 // loop_pre_header
      _
    $region3: #{graphsage_pallas.2} parent=1 // loop_header
      %s10 = sphi 0, %s14
      %p11 = scmp.ge.s32.totalorder %s10, 11
      %s17 = sphi 0, %s29
      %s18 = sphi 0, %s25
      %s19 = sphi 0, %s17
      %s20 = sphi 0, %s18
      %s21 = sphi 0, %s19
      %s22 = sphi 0, %s20
      %s34 = sphi 0, %s36
      %s37 = sphi 0, %s34
      %s38 = sphi 0, %s37
      %s54 = sphi 0, %s38
      %s58 = sphi 0, %s58
      %s60 = sphi 0, %s58
      %s61 = sphi 0, %s60
      %s75 = sphi 0, %s61
      %s79 = sphi 0, %s79
      %s81 = sphi 0, %s79
      %s82 = sphi 0, %s81
      %s96 = sphi 0, %s82
      %s100 = sphi 0, %s100
      %s102 = sphi 0, %s100
      %s103 = sphi 0, %s102
      %s117 = sphi 0, %s103
      %s123 = sphi 0, %s125
      %s126 = sphi 0, %s123
      %s127 = sphi 0, %s126
      %s143 = sphi 0, %s127
    $region4: #{graphsage_pallas.2} parent=1 // loop_header_branch
      %13 = sbr.rel (%p11) target = $region8
    $region5: #{graphsage_pallas.2} parent=1 // loop_body
      %s15 = ssub.s32 %s10, 1
      %s16 = ssub.s32 %s10, 2
      %s23 = sadd.s32 1, %s18
      %p24 = scmp.ge.s32.totalorder %s23, 3
      %s25 = scalar_select %p24, 0, %s23
      %s26 = sadd.s32 1, %s17
      %s27 = scalar_select %p24, %s26, %s17
      %p28 = scmp.ge.s32.totalorder %s27, 3
      %s29 = scalar_select %p28, 0, %s27
      %s30 = ssub.s32 %s17, %s29
      %s31 = ssub.s32 %s18, %s25
      %s32 = sor.u32 %s30, %s31
      %p33 = scmp.eq.s32.totalorder %s32, 0
      %s35 = sadd.s32 %s34, 1
      %s36 = scalar_select %p33, %s34, %s35
      %p39 = pneg %p33
      %p40 = scmp.eq.s32.totalorder %s10, 8
      %p41 = por %p39, %p40
      %p42 = scmp.ne.s32.totalorder %s34, %s37
      %p43 = scmp.eq.s32.totalorder %s10, 0
      %p44 = por %p42, %p43
      %p45 = scmp.ne.s32.totalorder %s34, %s37
      %p46 = scmp.eq.s32.totalorder %s15, 8
      %p47 = por %p45, %p46
      %p48 = scmp.ne.s32.totalorder %s37, %s38
      %p49 = scmp.eq.s32.totalorder %s15, 0
      %p50 = por %p48, %p49
      %p51 = scmp.ne.s32.totalorder %s37, %s38
      %p52 = scmp.eq.s32.totalorder %s16, 8
      %p53 = por %p51, %p52
      %p55 = scmp.ne.s32.totalorder %s38, %s54
      %p56 = scmp.eq.s32.totalorder %s16, 0
      %p57 = por %p55, %p56
      %s59 = sadd.s32 %s58, 1
      %p62 = scmp.eq.s32.totalorder %s10, 8
      %p63 = scmp.ne.s32.totalorder %s58, %s60
      %p64 = scmp.eq.s32.totalorder %s10, 0
      %p65 = por %p63, %p64
      %p66 = scmp.ne.s32.totalorder %s58, %s60
      %p67 = scmp.eq.s32.totalorder %s15, 8
      %p68 = por %p66, %p67
      %p69 = scmp.ne.s32.totalorder %s60, %s61
      %p70 = scmp.eq.s32.totalorder %s15, 0
      %p71 = por %p69, %p70
      %p72 = scmp.ne.s32.totalorder %s60, %s61
      %p73 = scmp.eq.s32.totalorder %s16, 8
      %p74 = por %p72, %p73
      %p76 = scmp.ne.s32.totalorder %s61, %s75
      %p77 = scmp.eq.s32.totalorder %s16, 0
      %p78 = por %p76, %p77
      %s80 = sadd.s32 %s79, 1
      %p83 = scmp.eq.s32.totalorder %s10, 8
      %p84 = scmp.ne.s32.totalorder %s79, %s81
      %p85 = scmp.eq.s32.totalorder %s10, 0
      %p86 = por %p84, %p85
      %p87 = scmp.ne.s32.totalorder %s79, %s81
      %p88 = scmp.eq.s32.totalorder %s15, 8
      %p89 = por %p87, %p88
      %p90 = scmp.ne.s32.totalorder %s81, %s82
      %p91 = scmp.eq.s32.totalorder %s15, 0
      %p92 = por %p90, %p91
      %p93 = scmp.ne.s32.totalorder %s81, %s82
      %p94 = scmp.eq.s32.totalorder %s16, 8
      %p95 = por %p93, %p94
      %p97 = scmp.ne.s32.totalorder %s82, %s96
      %p98 = scmp.eq.s32.totalorder %s16, 0
      %p99 = por %p97, %p98
      %s101 = sadd.s32 %s100, 1
      %p104 = scmp.eq.s32.totalorder %s10, 8
      %p105 = scmp.ne.s32.totalorder %s100, %s102
      %p106 = scmp.eq.s32.totalorder %s10, 0
      %p107 = por %p105, %p106
      %p108 = scmp.ne.s32.totalorder %s100, %s102
      %p109 = scmp.eq.s32.totalorder %s15, 8
      %p110 = por %p108, %p109
      %p111 = scmp.ne.s32.totalorder %s102, %s103
      %p112 = scmp.eq.s32.totalorder %s15, 0
      %p113 = por %p111, %p112
      %p114 = scmp.ne.s32.totalorder %s102, %s103
      %p115 = scmp.eq.s32.totalorder %s16, 8
      %p116 = por %p114, %p115
      %p118 = scmp.ne.s32.totalorder %s103, %s117
      %p119 = scmp.eq.s32.totalorder %s16, 0
      %p120 = por %p118, %p119
      %s121 = ssub.s32 %s17, %s29
      %p122 = scmp.eq.s32.totalorder %s121, 0
      %s124 = sadd.s32 %s123, 1
      %s125 = scalar_select %p122, %s123, %s124
      %p128 = pneg %p122
      %p129 = scmp.eq.s32.totalorder %s10, 8
      %p130 = por %p128, %p129
      %p131 = scmp.ne.s32.totalorder %s123, %s126
      %p132 = scmp.eq.s32.totalorder %s10, 0
      %p133 = por %p131, %p132
      %p134 = scmp.ne.s32.totalorder %s123, %s126
      %p135 = scmp.eq.s32.totalorder %s15, 8
      %p136 = por %p134, %p135
      %p137 = scmp.ne.s32.totalorder %s126, %s127
      %p138 = scmp.eq.s32.totalorder %s15, 0
      %p139 = por %p137, %p138
      %p140 = scmp.ne.s32.totalorder %s126, %s127
      %p141 = scmp.eq.s32.totalorder %s16, 8
      %p142 = por %p140, %p141
      %p144 = scmp.ne.s32.totalorder %s127, %s143
      %p145 = scmp.eq.s32.totalorder %s16, 0
      %p146 = por %p144, %p145
      %p147 = scmp.le.s32.totalorder 1, %s10
      %p148 = scmp.lt.s32.totalorder %s10, 10
      %p149 = pnand %p147, %p148
      %p150 = pneg %p149
      // Predicated region
      $region9: #{graphsage_pallas.2} parent=5 // pred_check
        _
      $region10: #{graphsage_pallas.2} parent=5 // pred_check_branch
        %152 = sbr.rel (%p149) target = $region12
      $region11: #{graphsage_pallas.2} parent=5 // pred_region
        %s153 = ssub.s32 %s10, 1
        // Predicated region
        $region13: #{graphsage_pallas.2} parent=11 // pred_check
          %p154 = pneg %p71
        $region14: #{graphsage_pallas.2} parent=11 // pred_check_branch
          %156 = sbr.rel (%p154) target = $region16
        $region15: #{graphsage_pallas.2} parent=11 // pred_region
          _
        $region16: #{graphsage_pallas.2} parent=11 // pred_fallthru
          _
        // Predicated region
        $region17: #{graphsage_pallas.2} parent=11 // pred_check
          %p157 = pneg %p92
        $region18: #{graphsage_pallas.2} parent=11 // pred_check_branch
          %159 = sbr.rel (%p157) target = $region20
        $region19: #{graphsage_pallas.2} parent=11 // pred_region
          _
        $region20: #{graphsage_pallas.2} parent=11 // pred_fallthru
          _
        // Predicated region
        $region21: #{graphsage_pallas.2} parent=11 // pred_check
          %p160 = pneg %p113
        $region22: #{graphsage_pallas.2} parent=11 // pred_check_branch
          %162 = sbr.rel (%p160) target = $region24
        $region23: #{graphsage_pallas.2} parent=11 // pred_region
          _
        $region24: #{graphsage_pallas.2} parent=11 // pred_fallthru
          _
      $region12: #{graphsage_pallas.2} parent=5 // pred_fallthru
        _
      %p163 = scmp.lt.s32.totalorder %s10, 9
      // Predicated region
      $region25: #{graphsage_pallas.2} parent=5 // pred_check
        %p164 = pneg %p163
      $region26: #{graphsage_pallas.2} parent=5 // pred_check_branch
        %166 = sbr.rel (%p164) target = $region28
      $region27: #{graphsage_pallas.2} parent=5 // pred_region
        // Predicated region
        $region29: #{graphsage_pallas.2} parent=27 // pred_check
          %p167 = pneg %p44
        $region30: #{graphsage_pallas.2} parent=27 // pred_check_branch
          %169 = sbr.rel (%p167) target = $region32
        $region31: #{graphsage_pallas.2} parent=27 // pred_region
          %s170 = sand.u32 %s34, 1
          %s171 = sand.u32 %s34, 1
          %s172 = smul.addr %s171, 1024
          %s173 = scalar_lea.vmem [#allocation3], %s172
          %s174 = smul.u32 64, %s17
          %s175 = smul.u32 4, %s18
          %s176 = smul.addr %s174, 12
          %s177 = sadd.s32 %s175, %s176
          %s178 = smul.addr %s177, 4
          %s179 = scalar_lea.vmem %s0, %s178
          // Predicated region
          $region33: #{graphsage_pallas.2} parent=31 // pred_check
            _
          $region34: #{graphsage_pallas.2} parent=31 // pred_check_branch
            %181 = sbr.rel (0) target = $region36
          $region35: #{graphsage_pallas.2} parent=31 // pred_region
            // Predicated region
            $region37: #{graphsage_pallas.2} parent=35 // pred_check
              _
            $region38: #{graphsage_pallas.2} parent=35 // pred_check_branch
              %183 = sbr.rel (0) target = $region40
            $region39: #{graphsage_pallas.2} parent=35 // pred_region
              loop: start=0, step=1, limit=1
              $region41: #{graphsage_pallas.2} parent=39 // loop_pre_header
                _
              $region42: #{graphsage_pallas.2} parent=39 // loop_header
                %s185 = sphi 0, %s189
                %p186 = scmp.ge.s32.totalorder %s185, 1
                %s190 = sphi %s179, %s179
                %s191 = sphi %s173, %s173
              $region43: #{graphsage_pallas.2} parent=39 // loop_header_branch
                %188 = sbr.rel (%p186) target = $region47
              $region44: #{graphsage_pallas.2} parent=39 // loop_body
                %v192 = vld [vmem:[%s190] sm:$0xff]
                %193 = vst [vmem:[%s191] sm:$0xff] %v192
                %v194 = vld [vmem:[%s190 + $0x8] sm:$0xff]
                %195 = vst [vmem:[%s191 + $0x8] sm:$0xff] %v194
                %v196 = vld [vmem:[%s190 + $0x30] sm:$0xff]
                %197 = vst [vmem:[%s191 + $0x10] sm:$0xff] %v196
                %v198 = vld [vmem:[%s190 + $0x38] sm:$0xff]
                %199 = vst [vmem:[%s191 + $0x18] sm:$0xff] %v198
                %v200 = vld [vmem:[%s190 + $0x60] sm:$0xff]
                %201 = vst [vmem:[%s191 + $0x20] sm:$0xff] %v200
                %v202 = vld [vmem:[%s190 + $0x68] sm:$0xff]
                %203 = vst [vmem:[%s191 + $0x28] sm:$0xff] %v202
                %v204 = vld [vmem:[%s190 + $0x90] sm:$0xff]
                %205 = vst [vmem:[%s191 + $0x30] sm:$0xff] %v204
                %v206 = vld [vmem:[%s190 + $0x98] sm:$0xff]
                %207 = vst [vmem:[%s191 + $0x38] sm:$0xff] %v206
                %v208 = vld [vmem:[%s190 + $0xc0] sm:$0xff]
                %209 = vst [vmem:[%s191 + $0x40] sm:$0xff] %v208
                %v210 = vld [vmem:[%s190 + $0xc8] sm:$0xff]
                %211 = vst [vmem:[%s191 + $0x48] sm:$0xff] %v210
                %v212 = vld [vmem:[%s190 + $0xf0] sm:$0xff]
                %213 = vst [vmem:[%s191 + $0x50] sm:$0xff] %v212
                %v214 = vld [vmem:[%s190 + $0xf8] sm:$0xff]
                %215 = vst [vmem:[%s191 + $0x58] sm:$0xff] %v214
                %v216 = vld [vmem:[%s190 + $0x120] sm:$0xff]
                %217 = vst [vmem:[%s191 + $0x60] sm:$0xff] %v216
                %v218 = vld [vmem:[%s190 + $0x128] sm:$0xff]
                %219 = vst [vmem:[%s191 + $0x68] sm:$0xff] %v218
                %v220 = vld [vmem:[%s190 + $0x150] sm:$0xff]
                %221 = vst [vmem:[%s191 + $0x70] sm:$0xff] %v220
                %v222 = vld [vmem:[%s190 + $0x158] sm:$0xff]
                %223 = vst [vmem:[%s191 + $0x78] sm:$0xff] %v222
                %v224 = vld [vmem:[%s190 + $0x180] sm:$0xff]
                %225 = vst [vmem:[%s191 + $0x80] sm:$0xff] %v224
                %v226 = vld [vmem:[%s190 + $0x188] sm:$0xff]
                %227 = vst [vmem:[%s191 + $0x88] sm:$0xff] %v226
                %v228 = vld [vmem:[%s190 + $0x1b0] sm:$0xff]
                %229 = vst [vmem:[%s191 + $0x90] sm:$0xff] %v228
                %v230 = vld [vmem:[%s190 + $0x1b8] sm:$0xff]
                %231 = vst [vmem:[%s191 + $0x98] sm:$0xff] %v230
                %v232 = vld [vmem:[%s190 + $0x1e0] sm:$0xff]
                %233 = vst [vmem:[%s191 + $0xa0] sm:$0xff] %v232
                %v234 = vld [vmem:[%s190 + $0x1e8] sm:$0xff]
                %235 = vst [vmem:[%s191 + $0xa8] sm:$0xff] %v234
                %v236 = vld [vmem:[%s190 + $0x210] sm:$0xff]
                %237 = vst [vmem:[%s191 + $0xb0] sm:$0xff] %v236
                %v238 = vld [vmem:[%s190 + $0x218] sm:$0xff]
                %239 = vst [vmem:[%s191 + $0xb8] sm:$0xff] %v238
                %v240 = vld [vmem:[%s190 + $0x240] sm:$0xff]
                %241 = vst [vmem:[%s191 + $0xc0] sm:$0xff] %v240
                %v242 = vld [vmem:[%s190 + $0x248] sm:$0xff]
                %243 = vst [vmem:[%s191 + $0xc8] sm:$0xff] %v242
                %v244 = vld [vmem:[%s190 + $0x270] sm:$0xff]
                %245 = vst [vmem:[%s191 + $0xd0] sm:$0xff] %v244
                %v246 = vld [vmem:[%s190 + $0x278] sm:$0xff]
                %247 = vst [vmem:[%s191 + $0xd8] sm:$0xff] %v246
                %v248 = vld [vmem:[%s190 + $0x2a0] sm:$0xff]
                %249 = vst [vmem:[%s191 + $0xe0] sm:$0xff] %v248
                %v250 = vld [vmem:[%s190 + $0x2a8] sm:$0xff]
                %251 = vst [vmem:[%s191 + $0xe8] sm:$0xff] %v250
                %v252 = vld [vmem:[%s190 + $0x2d0] sm:$0xff]
                %253 = vst [vmem:[%s191 + $0xf0] sm:$0xff] %v252
                %v254 = vld [vmem:[%s190 + $0x2d8] sm:$0xff]
                %255 = vst [vmem:[%s191 + $0xf8] sm:$0xff] %v254
                %v256 = vld [vmem:[%s190 + $0x300] sm:$0xff]
                %257 = vst [vmem:[%s191 + $0x100] sm:$0xff] %v256
                %v258 = vld [vmem:[%s190 + $0x308] sm:$0xff]
                %259 = vst [vmem:[%s191 + $0x108] sm:$0xff] %v258
                %v260 = vld [vmem:[%s190 + $0x330] sm:$0xff]
                %261 = vst [vmem:[%s191 + $0x110] sm:$0xff] %v260
                %v262 = vld [vmem:[%s190 + $0x338] sm:$0xff]
                %263 = vst [vmem:[%s191 + $0x118] sm:$0xff] %v262
                %v264 = vld [vmem:[%s190 + $0x360] sm:$0xff]
                %265 = vst [vmem:[%s191 + $0x120] sm:$0xff] %v264
                %v266 = vld [vmem:[%s190 + $0x368] sm:$0xff]
                %267 = vst [vmem:[%s191 + $0x128] sm:$0xff] %v266
                %v268 = vld [vmem:[%s190 + $0x390] sm:$0xff]
                %269 = vst [vmem:[%s191 + $0x130] sm:$0xff] %v268
                %v270 = vld [vmem:[%s190 + $0x398] sm:$0xff]
                %271 = vst [vmem:[%s191 + $0x138] sm:$0xff] %v270
                %v272 = vld [vmem:[%s190 + $0x3c0] sm:$0xff]
                %273 = vst [vmem:[%s191 + $0x140] sm:$0xff] %v272
                %v274 = vld [vmem:[%s190 + $0x3c8] sm:$0xff]
                %275 = vst [vmem:[%s191 + $0x148] sm:$0xff] %v274
                %v276 = vld [vmem:[%s190 + $0x3f0] sm:$0xff]
                %277 = vst [vmem:[%s191 + $0x150] sm:$0xff] %v276
                %v278 = vld [vmem:[%s190 + $0x3f8] sm:$0xff]
                %279 = vst [vmem:[%s191 + $0x158] sm:$0xff] %v278
                %v280 = vld [vmem:[%s190 + $0x420] sm:$0xff]
                %281 = vst [vmem:[%s191 + $0x160] sm:$0xff] %v280
                %v282 = vld [vmem:[%s190 + $0x428] sm:$0xff]
                %283 = vst [vmem:[%s191 + $0x168] sm:$0xff] %v282
                %v284 = vld [vmem:[%s190 + $0x450] sm:$0xff]
                %285 = vst [vmem:[%s191 + $0x170] sm:$0xff] %v284
                %v286 = vld [vmem:[%s190 + $0x458] sm:$0xff]
                %287 = vst [vmem:[%s191 + $0x178] sm:$0xff] %v286
                %v288 = vld [vmem:[%s190 + $0x480] sm:$0xff]
                %289 = vst [vmem:[%s191 + $0x180] sm:$0xff] %v288
                %v290 = vld [vmem:[%s190 + $0x488] sm:$0xff]
                %291 = vst [vmem:[%s191 + $0x188] sm:$0xff] %v290
                %v292 = vld [vmem:[%s190 + $0x4b0] sm:$0xff]
                %293 = vst [vmem:[%s191 + $0x190] sm:$0xff] %v292
                %v294 = vld [vmem:[%s190 + $0x4b8] sm:$0xff]
                %295 = vst [vmem:[%s191 + $0x198] sm:$0xff] %v294
                %v296 = vld [vmem:[%s190 + $0x4e0] sm:$0xff]
                %297 = vst [vmem:[%s191 + $0x1a0] sm:$0xff] %v296
                %v298 = vld [vmem:[%s190 + $0x4e8] sm:$0xff]
                %299 = vst [vmem:[%s191 + $0x1a8] sm:$0xff] %v298
                %v300 = vld [vmem:[%s190 + $0x510] sm:$0xff]
                %301 = vst [vmem:[%s191 + $0x1b0] sm:$0xff] %v300
                %v302 = vld [vmem:[%s190 + $0x518] sm:$0xff]
                %303 = vst [vmem:[%s191 + $0x1b8] sm:$0xff] %v302
                %v304 = vld [vmem:[%s190 + $0x540] sm:$0xff]
                %305 = vst [vmem:[%s191 + $0x1c0] sm:$0xff] %v304
                %v306 = vld [vmem:[%s190 + $0x548] sm:$0xff]
                %307 = vst [vmem:[%s191 + $0x1c8] sm:$0xff] %v306
                %v308 = vld [vmem:[%s190 + $0x570] sm:$0xff]
                %309 = vst [vmem:[%s191 + $0x1d0] sm:$0xff] %v308
                %v310 = vld [vmem:[%s190 + $0x578] sm:$0xff]
                %311 = vst [vmem:[%s191 + $0x1d8] sm:$0xff] %v310
                %v312 = vld [vmem:[%s190 + $0x5a0] sm:$0xff]
                %313 = vst [vmem:[%s191 + $0x1e0] sm:$0xff] %v312
                %v314 = vld [vmem:[%s190 + $0x5a8] sm:$0xff]
                %315 = vst [vmem:[%s191 + $0x1e8] sm:$0xff] %v314
                %v316 = vld [vmem:[%s190 + $0x5d0] sm:$0xff]
                %317 = vst [vmem:[%s191 + $0x1f0] sm:$0xff] %v316
                %v318 = vld [vmem:[%s190 + $0x5d8] sm:$0xff]
                %319 = vst [vmem:[%s191 + $0x1f8] sm:$0xff] %v318
                %v320 = vld [vmem:[%s190 + $0x600] sm:$0xff]
                %321 = vst [vmem:[%s191 + $0x200] sm:$0xff] %v320
                %v322 = vld [vmem:[%s190 + $0x608] sm:$0xff]
                %323 = vst [vmem:[%s191 + $0x208] sm:$0xff] %v322
                %v324 = vld [vmem:[%s190 + $0x630] sm:$0xff]
                %325 = vst [vmem:[%s191 + $0x210] sm:$0xff] %v324
                %v326 = vld [vmem:[%s190 + $0x638] sm:$0xff]
                %327 = vst [vmem:[%s191 + $0x218] sm:$0xff] %v326
                %v328 = vld [vmem:[%s190 + $0x660] sm:$0xff]
                %329 = vst [vmem:[%s191 + $0x220] sm:$0xff] %v328
                %v330 = vld [vmem:[%s190 + $0x668] sm:$0xff]
                %331 = vst [vmem:[%s191 + $0x228] sm:$0xff] %v330
                %v332 = vld [vmem:[%s190 + $0x690] sm:$0xff]
                %333 = vst [vmem:[%s191 + $0x230] sm:$0xff] %v332
                %v334 = vld [vmem:[%s190 + $0x698] sm:$0xff]
                %335 = vst [vmem:[%s191 + $0x238] sm:$0xff] %v334
                %v336 = vld [vmem:[%s190 + $0x6c0] sm:$0xff]
                %337 = vst [vmem:[%s191 + $0x240] sm:$0xff] %v336
                %v338 = vld [vmem:[%s190 + $0x6c8] sm:$0xff]
                %339 = vst [vmem:[%s191 + $0x248] sm:$0xff] %v338
                %v340 = vld [vmem:[%s190 + $0x6f0] sm:$0xff]
                %341 = vst [vmem:[%s191 + $0x250] sm:$0xff] %v340
                %v342 = vld [vmem:[%s190 + $0x6f8] sm:$0xff]
                %343 = vst [vmem:[%s191 + $0x258] sm:$0xff] %v342
                %v344 = vld [vmem:[%s190 + $0x720] sm:$0xff]
                %345 = vst [vmem:[%s191 + $0x260] sm:$0xff] %v344
                %v346 = vld [vmem:[%s190 + $0x728] sm:$0xff]
                %347 = vst [vmem:[%s191 + $0x268] sm:$0xff] %v346
                %v348 = vld [vmem:[%s190 + $0x750] sm:$0xff]
                %349 = vst [vmem:[%s191 + $0x270] sm:$0xff] %v348
                %v350 = vld [vmem:[%s190 + $0x758] sm:$0xff]
                %351 = vst [vmem:[%s191 + $0x278] sm:$0xff] %v350
                %v352 = vld [vmem:[%s190 + $0x780] sm:$0xff]
                %353 = vst [vmem:[%s191 + $0x280] sm:$0xff] %v352
                %v354 = vld [vmem:[%s190 + $0x788] sm:$0xff]
                %355 = vst [vmem:[%s191 + $0x288] sm:$0xff] %v354
                %v356 = vld [vmem:[%s190 + $0x7b0] sm:$0xff]
                %357 = vst [vmem:[%s191 + $0x290] sm:$0xff] %v356
                %v358 = vld [vmem:[%s190 + $0x7b8] sm:$0xff]
                %359 = vst [vmem:[%s191 + $0x298] sm:$0xff] %v358
                %v360 = vld [vmem:[%s190 + $0x7e0] sm:$0xff]
                %361 = vst [vmem:[%s191 + $0x2a0] sm:$0xff] %v360
                %v362 = vld [vmem:[%s190 + $0x7e8] sm:$0xff]
                %363 = vst [vmem:[%s191 + $0x2a8] sm:$0xff] %v362
                %v364 = vld [vmem:[%s190 + $0x810] sm:$0xff]
                %365 = vst [vmem:[%s191 + $0x2b0] sm:$0xff] %v364
                %v366 = vld [vmem:[%s190 + $0x818] sm:$0xff]
                %367 = vst [vmem:[%s191 + $0x2b8] sm:$0xff] %v366
                %v368 = vld [vmem:[%s190 + $0x840] sm:$0xff]
                %369 = vst [vmem:[%s191 + $0x2c0] sm:$0xff] %v368
                %v370 = vld [vmem:[%s190 + $0x848] sm:$0xff]
                %371 = vst [vmem:[%s191 + $0x2c8] sm:$0xff] %v370
                %v372 = vld [vmem:[%s190 + $0x870] sm:$0xff]
                %373 = vst [vmem:[%s191 + $0x2d0] sm:$0xff] %v372
                %v374 = vld [vmem:[%s190 + $0x878] sm:$0xff]
                %375 = vst [vmem:[%s191 + $0x2d8] sm:$0xff] %v374
                %v376 = vld [vmem:[%s190 + $0x8a0] sm:$0xff]
                %377 = vst [vmem:[%s191 + $0x2e0] sm:$0xff] %v376
                %v378 = vld [vmem:[%s190 + $0x8a8] sm:$0xff]
                %379 = vst [vmem:[%s191 + $0x2e8] sm:$0xff] %v378
                %v380 = vld [vmem:[%s190 + $0x8d0] sm:$0xff]
                %381 = vst [vmem:[%s191 + $0x2f0] sm:$0xff] %v380
                %v382 = vld [vmem:[%s190 + $0x8d8] sm:$0xff]
                %383 = vst [vmem:[%s191 + $0x2f8] sm:$0xff] %v382
                %v384 = vld [vmem:[%s190 + $0x900] sm:$0xff]
                %385 = vst [vmem:[%s191 + $0x300] sm:$0xff] %v384
                %v386 = vld [vmem:[%s190 + $0x908] sm:$0xff]
                %387 = vst [vmem:[%s191 + $0x308] sm:$0xff] %v386
                %v388 = vld [vmem:[%s190 + $0x930] sm:$0xff]
                %389 = vst [vmem:[%s191 + $0x310] sm:$0xff] %v388
                %v390 = vld [vmem:[%s190 + $0x938] sm:$0xff]
                %391 = vst [vmem:[%s191 + $0x318] sm:$0xff] %v390
                %v392 = vld [vmem:[%s190 + $0x960] sm:$0xff]
                %393 = vst [vmem:[%s191 + $0x320] sm:$0xff] %v392
                %v394 = vld [vmem:[%s190 + $0x968] sm:$0xff]
                %395 = vst [vmem:[%s191 + $0x328] sm:$0xff] %v394
                %v396 = vld [vmem:[%s190 + $0x990] sm:$0xff]
                %397 = vst [vmem:[%s191 + $0x330] sm:$0xff] %v396
                %v398 = vld [vmem:[%s190 + $0x998] sm:$0xff]
                %399 = vst [vmem:[%s191 + $0x338] sm:$0xff] %v398
                %v400 = vld [vmem:[%s190 + $0x9c0] sm:$0xff]
                %401 = vst [vmem:[%s191 + $0x340] sm:$0xff] %v400
                %v402 = vld [vmem:[%s190 + $0x9c8] sm:$0xff]
                %403 = vst [vmem:[%s191 + $0x348] sm:$0xff] %v402
                %v404 = vld [vmem:[%s190 + $0x9f0] sm:$0xff]
                %405 = vst [vmem:[%s191 + $0x350] sm:$0xff] %v404
                %v406 = vld [vmem:[%s190 + $0x9f8] sm:$0xff]
                %407 = vst [vmem:[%s191 + $0x358] sm:$0xff] %v406
                %v408 = vld [vmem:[%s190 + $0xa20] sm:$0xff]
                %409 = vst [vmem:[%s191 + $0x360] sm:$0xff] %v408
                %v410 = vld [vmem:[%s190 + $0xa28] sm:$0xff]
                %411 = vst [vmem:[%s191 + $0x368] sm:$0xff] %v410
                %v412 = vld [vmem:[%s190 + $0xa50] sm:$0xff]
                %413 = vst [vmem:[%s191 + $0x370] sm:$0xff] %v412
                %v414 = vld [vmem:[%s190 + $0xa58] sm:$0xff]
                %415 = vst [vmem:[%s191 + $0x378] sm:$0xff] %v414
                %v416 = vld [vmem:[%s190 + $0xa80] sm:$0xff]
                %417 = vst [vmem:[%s191 + $0x380] sm:$0xff] %v416
                %v418 = vld [vmem:[%s190 + $0xa88] sm:$0xff]
                %419 = vst [vmem:[%s191 + $0x388] sm:$0xff] %v418
                %v420 = vld [vmem:[%s190 + $0xab0] sm:$0xff]
                %421 = vst [vmem:[%s191 + $0x390] sm:$0xff] %v420
                %v422 = vld [vmem:[%s190 + $0xab8] sm:$0xff]
                %423 = vst [vmem:[%s191 + $0x398] sm:$0xff] %v422
                %v424 = vld [vmem:[%s190 + $0xae0] sm:$0xff]
                %425 = vst [vmem:[%s191 + $0x3a0] sm:$0xff] %v424
                %v426 = vld [vmem:[%s190 + $0xae8] sm:$0xff]
                %427 = vst [vmem:[%s191 + $0x3a8] sm:$0xff] %v426
                %v428 = vld [vmem:[%s190 + $0xb10] sm:$0xff]
                %429 = vst [vmem:[%s191 + $0x3b0] sm:$0xff] %v428
                %v430 = vld [vmem:[%s190 + $0xb18] sm:$0xff]
                %431 = vst [vmem:[%s191 + $0x3b8] sm:$0xff] %v430
                %v432 = vld [vmem:[%s190 + $0xb40] sm:$0xff]
                %433 = vst [vmem:[%s191 + $0x3c0] sm:$0xff] %v432
                %v434 = vld [vmem:[%s190 + $0xb48] sm:$0xff]
                %435 = vst [vmem:[%s191 + $0x3c8] sm:$0xff] %v434
                %v436 = vld [vmem:[%s190 + $0xb70] sm:$0xff]
                %437 = vst [vmem:[%s191 + $0x3d0] sm:$0xff] %v436
                %v438 = vld [vmem:[%s190 + $0xb78] sm:$0xff]
                %439 = vst [vmem:[%s191 + $0x3d8] sm:$0xff] %v438
                %v440 = vld [vmem:[%s190 + $0xba0] sm:$0xff]
                %441 = vst [vmem:[%s191 + $0x3e0] sm:$0xff] %v440
                %v442 = vld [vmem:[%s190 + $0xba8] sm:$0xff]
                %443 = vst [vmem:[%s191 + $0x3e8] sm:$0xff] %v442
                %v444 = vld [vmem:[%s190 + $0xbd0] sm:$0xff]
                %445 = vst [vmem:[%s191 + $0x3f0] sm:$0xff] %v444
                %v446 = vld [vmem:[%s190 + $0xbd8] sm:$0xff]
                %447 = vst [vmem:[%s191 + $0x3f8] sm:$0xff] %v446
              $region45: #{graphsage_pallas.2} parent=39 // loop_footer
                %s189 = sadd.s32 1, %s185
              $region46: #{graphsage_pallas.2} parent=39 // loop_footer_branch
                %184 = sbr.rel target = $region42
              $region47: #{graphsage_pallas.2} parent=39 // loop_exit
                _
            $region40: #{graphsage_pallas.2} parent=35 // pred_fallthru
              _
            // Predicated region
            $region48: #{graphsage_pallas.2} parent=35 // pred_check
              _
            $region49: #{graphsage_pallas.2} parent=35 // pred_check_branch
              %449 = sbr.rel target = $region51
            $region50: #{graphsage_pallas.2} parent=35 // pred_region
              _
            $region51: #{graphsage_pallas.2} parent=35 // pred_fallthru
              _
          $region36: #{graphsage_pallas.2} parent=31 // pred_fallthru
            _
          %450 = vnop
        $region32: #{graphsage_pallas.2} parent=27 // pred_fallthru
          _
      $region28: #{graphsage_pallas.2} parent=5 // pred_fallthru
        _
      %p451 = scmp.le.s32.totalorder 1, %s10
      %p452 = scmp.lt.s32.totalorder %s10, 10
      %p453 = pnand %p451, %p452
      %p454 = pneg %p453
      // Predicated region
      $region52: #{graphsage_pallas.2} parent=5 // pred_check
        _
      $region53: #{graphsage_pallas.2} parent=5 // pred_check_branch
        %456 = sbr.rel (%p453) target = $region55
      $region54: #{graphsage_pallas.2} parent=5 // pred_region
        %s457 = ssub.s32 %s10, 1
        %s458 = sand.u32 %s37, 1
        %s459 = sand.u32 %s37, 1
        %s460 = smul.addr %s459, 1024
        %s461 = scalar_lea.vmem [#allocation3], %s460
        // Predicated region
        $region56: #{graphsage_pallas.2} parent=54 // pred_check
          %p462 = pneg %p50
        $region57: #{graphsage_pallas.2} parent=54 // pred_check_branch
          %464 = sbr.rel (%p462) target = $region59
        $region58: #{graphsage_pallas.2} parent=54 // pred_region
          _
        $region59: #{graphsage_pallas.2} parent=54 // pred_fallthru
          _
        %s465 = sand.u32 %s37, 1
        %s466 = sand.u32 %s37, 1
        %s467 = smul.addr %s466, 1024
        %s468 = scalar_lea.vmem [#allocation3], %s467
        %p469 = pneg %p50
        %p470 = pneg %p47
        %p471 = pneg %p71
        %p472 = pneg %p68
        %p473 = pneg %p92
        %p474 = pneg %p89
        %p475 = pneg %p113
        %p476 = pneg %p110
        %p477 = pneg %p139
        %p478 = pneg %p136
        %s479 = smul.u32 64, %s19
        %p480 = scmp.lt.s32.totalorder %s479, 191
        %s481 = scalar_select %p480, %s479, 191
        %s482 = smul.addr %s481, 4
        %s483 = scalar_lea.vmem %s4, %s482
        %s484 = smul.u32 64, %s19
        %s485 = smul.u32 4, %s20
        %s486 = smul.u32 64, %s19
        %p487 = scmp.lt.s32.totalorder %s486, 191
        %s488 = scalar_select %p487, %s486, 191
        %s489 = smul.addr %s488, 4
        %s490 = scalar_lea.vmem %s4, %s489
        %s491 = smul.u32 64, %s19
        %p493 = scmp.eq.s32.totalorder %s20, 0
        // Predicated region
        $region60: #{graphsage_pallas.2} parent=54 // pred_check
          %p494 = pneg %p493
        $region61: #{graphsage_pallas.2} parent=54 // pred_check_branch
          %496 = sbr.rel (%p494) target = $region63
        $region62: #{graphsage_pallas.2} parent=54 // pred_region
          %497 = vst [vmem:[#allocation2] sm:$0xff] 0.0
          %498 = vst [vmem:[#allocation2 + $0x8] sm:$0xff] 0.0
          %499 = vst [vmem:[#allocation2 + $0x10] sm:$0xff] 0.0
          %500 = vst [vmem:[#allocation2 + $0x18] sm:$0xff] 0.0
          %501 = vst [vmem:[#allocation2 + $0x20] sm:$0xff] 0.0
          %502 = vst [vmem:[#allocation2 + $0x28] sm:$0xff] 0.0
          %503 = vst [vmem:[#allocation2 + $0x30] sm:$0xff] 0.0
          %504 = vst [vmem:[#allocation2 + $0x38] sm:$0xff] 0.0
          %505 = vst [vmem:[#allocation2 + $0x40] sm:$0xff] 0.0
          %506 = vst [vmem:[#allocation2 + $0x48] sm:$0xff] 0.0
          %507 = vst [vmem:[#allocation2 + $0x50] sm:$0xff] 0.0
          %508 = vst [vmem:[#allocation2 + $0x58] sm:$0xff] 0.0
          %509 = vst [vmem:[#allocation2 + $0x60] sm:$0xff] 0.0
          %510 = vst [vmem:[#allocation2 + $0x68] sm:$0xff] 0.0
          %511 = vst [vmem:[#allocation2 + $0x70] sm:$0xff] 0.0
          %512 = vst [vmem:[#allocation2 + $0x78] sm:$0xff] 0.0
          %513 = vst [vmem:[#allocation2 + $0x80] sm:$0xff] 0.0
          %514 = vst [vmem:[#allocation2 + $0x88] sm:$0xff] 0.0
          %515 = vst [vmem:[#allocation2 + $0x90] sm:$0xff] 0.0
          %516 = vst [vmem:[#allocation2 + $0x98] sm:$0xff] 0.0
          %517 = vst [vmem:[#allocation2 + $0xa0] sm:$0xff] 0.0
          %518 = vst [vmem:[#allocation2 + $0xa8] sm:$0xff] 0.0
          %519 = vst [vmem:[#allocation2 + $0xb0] sm:$0xff] 0.0
          %520 = vst [vmem:[#allocation2 + $0xb8] sm:$0xff] 0.0
          %521 = vst [vmem:[#allocation2 + $0xc0] sm:$0xff] 0.0
          %522 = vst [vmem:[#allocation2 + $0xc8] sm:$0xff] 0.0
          %523 = vst [vmem:[#allocation2 + $0xd0] sm:$0xff] 0.0
          %524 = vst [vmem:[#allocation2 + $0xd8] sm:$0xff] 0.0
          %525 = vst [vmem:[#allocation2 + $0xe0] sm:$0xff] 0.0
          %526 = vst [vmem:[#allocation2 + $0xe8] sm:$0xff] 0.0
          %527 = vst [vmem:[#allocation2 + $0xf0] sm:$0xff] 0.0
          %528 = vst [vmem:[#allocation2 + $0xf8] sm:$0xff] 0.0
          %529 = vst [vmem:[#allocation2 + $0x100] sm:$0xff] 0.0
          %530 = vst [vmem:[#allocation2 + $0x108] sm:$0xff] 0.0
          %531 = vst [vmem:[#allocation2 + $0x110] sm:$0xff] 0.0
          %532 = vst [vmem:[#allocation2 + $0x118] sm:$0xff] 0.0
          %533 = vst [vmem:[#allocation2 + $0x120] sm:$0xff] 0.0
          %534 = vst [vmem:[#allocation2 + $0x128] sm:$0xff] 0.0
          %535 = vst [vmem:[#allocation2 + $0x130] sm:$0xff] 0.0
          %536 = vst [vmem:[#allocation2 + $0x138] sm:$0xff] 0.0
          %537 = vst [vmem:[#allocation2 + $0x140] sm:$0xff] 0.0
          %538 = vst [vmem:[#allocation2 + $0x148] sm:$0xff] 0.0
          %539 = vst [vmem:[#allocation2 + $0x150] sm:$0xff] 0.0
          %540 = vst [vmem:[#allocation2 + $0x158] sm:$0xff] 0.0
          %541 = vst [vmem:[#allocation2 + $0x160] sm:$0xff] 0.0
          %542 = vst [vmem:[#allocation2 + $0x168] sm:$0xff] 0.0
          %543 = vst [vmem:[#allocation2 + $0x170] sm:$0xff] 0.0
          %544 = vst [vmem:[#allocation2 + $0x178] sm:$0xff] 0.0
          %545 = vst [vmem:[#allocation2 + $0x180] sm:$0xff] 0.0
          %546 = vst [vmem:[#allocation2 + $0x188] sm:$0xff] 0.0
          %547 = vst [vmem:[#allocation2 + $0x190] sm:$0xff] 0.0
          %548 = vst [vmem:[#allocation2 + $0x198] sm:$0xff] 0.0
          %549 = vst [vmem:[#allocation2 + $0x1a0] sm:$0xff] 0.0
          %550 = vst [vmem:[#allocation2 + $0x1a8] sm:$0xff] 0.0
          %551 = vst [vmem:[#allocation2 + $0x1b0] sm:$0xff] 0.0
          %552 = vst [vmem:[#allocation2 + $0x1b8] sm:$0xff] 0.0
          %553 = vst [vmem:[#allocation2 + $0x1c0] sm:$0xff] 0.0
          %554 = vst [vmem:[#allocation2 + $0x1c8] sm:$0xff] 0.0
          %555 = vst [vmem:[#allocation2 + $0x1d0] sm:$0xff] 0.0
          %556 = vst [vmem:[#allocation2 + $0x1d8] sm:$0xff] 0.0
          %557 = vst [vmem:[#allocation2 + $0x1e0] sm:$0xff] 0.0
          %558 = vst [vmem:[#allocation2 + $0x1e8] sm:$0xff] 0.0
          %559 = vst [vmem:[#allocation2 + $0x1f0] sm:$0xff] 0.0
          %560 = vst [vmem:[#allocation2 + $0x1f8] sm:$0xff] 0.0
        $region63: #{graphsage_pallas.2} parent=54 // pred_fallthru
          _
        %s561 = smul.u32 %s20, 512
        %s562 = sshra.s32 %s561, 3
        %s563 = sand.u32 %s561, 7
        %s564 = smul.addr %s562, 4
        %s565 = scalar_lea.vmem %s1, %s564
        %v566 = vld [vmem:[%s565] sm:$0xf]
        %v567 = vld [vmem:[%s565 + $0x4] sm:$0xf]
        %v568 = vld [vmem:[%s565 + $0x8] sm:$0xf]
        %v569 = vld [vmem:[%s565 + $0xc] sm:$0xf]
        %v570 = vld [vmem:[%s565 + $0x10] sm:$0xf]
        %v571 = vld [vmem:[%s565 + $0x14] sm:$0xf]
        %v572 = vld [vmem:[%s565 + $0x18] sm:$0xf]
        %v573 = vld [vmem:[%s565 + $0x1c] sm:$0xf]
        %v574 = vld [vmem:[%s565 + $0x20] sm:$0xf]
        %v575 = vld [vmem:[%s565 + $0x24] sm:$0xf]
        %v576 = vld [vmem:[%s565 + $0x28] sm:$0xf]
        %v577 = vld [vmem:[%s565 + $0x2c] sm:$0xf]
        %v578 = vld [vmem:[%s565 + $0x30] sm:$0xf]
        %v579 = vld [vmem:[%s565 + $0x34] sm:$0xf]
        %v580 = vld [vmem:[%s565 + $0x38] sm:$0xf]
        %v581 = vld [vmem:[%s565 + $0x3c] sm:$0xf]
        %v582 = vld [vmem:[%s565 + $0x40] sm:$0xf]
        %v583 = vld [vmem:[%s565 + $0x44] sm:$0xf]
        %v584 = vld [vmem:[%s565 + $0x48] sm:$0xf]
        %v585 = vld [vmem:[%s565 + $0x4c] sm:$0xf]
        %v586 = vld [vmem:[%s565 + $0x50] sm:$0xf]
        %v587 = vld [vmem:[%s565 + $0x54] sm:$0xf]
        %v588 = vld [vmem:[%s565 + $0x58] sm:$0xf]
        %v589 = vld [vmem:[%s565 + $0x5c] sm:$0xf]
        %v590 = vld [vmem:[%s565 + $0x60] sm:$0xf]
        %v591 = vld [vmem:[%s565 + $0x64] sm:$0xf]
        %v592 = vld [vmem:[%s565 + $0x68] sm:$0xf]
        %v593 = vld [vmem:[%s565 + $0x6c] sm:$0xf]
        %v594 = vld [vmem:[%s565 + $0x70] sm:$0xf]
        %v595 = vld [vmem:[%s565 + $0x74] sm:$0xf]
        %v596 = vld [vmem:[%s565 + $0x78] sm:$0xf]
        %v597 = vld [vmem:[%s565 + $0x7c] sm:$0xf]
        %v598 = vld [vmem:[%s565 + $0x80] sm:$0xf]
        %v599 = vld [vmem:[%s565 + $0x84] sm:$0xf]
        %v600 = vld [vmem:[%s565 + $0x88] sm:$0xf]
        %v601 = vld [vmem:[%s565 + $0x8c] sm:$0xf]
        %v602 = vld [vmem:[%s565 + $0x90] sm:$0xf]
        %v603 = vld [vmem:[%s565 + $0x94] sm:$0xf]
        %v604 = vld [vmem:[%s565 + $0x98] sm:$0xf]
        %v605 = vld [vmem:[%s565 + $0x9c] sm:$0xf]
        %v606 = vld [vmem:[%s565 + $0xa0] sm:$0xf]
        %v607 = vld [vmem:[%s565 + $0xa4] sm:$0xf]
        %v608 = vld [vmem:[%s565 + $0xa8] sm:$0xf]
        %v609 = vld [vmem:[%s565 + $0xac] sm:$0xf]
        %v610 = vld [vmem:[%s565 + $0xb0] sm:$0xf]
        %v611 = vld [vmem:[%s565 + $0xb4] sm:$0xf]
        %v612 = vld [vmem:[%s565 + $0xb8] sm:$0xf]
        %v613 = vld [vmem:[%s565 + $0xbc] sm:$0xf]
        %v614 = vld [vmem:[%s565 + $0xc0] sm:$0xf]
        %v615 = vld [vmem:[%s565 + $0xc4] sm:$0xf]
        %v616 = vld [vmem:[%s565 + $0xc8] sm:$0xf]
        %v617 = vld [vmem:[%s565 + $0xcc] sm:$0xf]
        %v618 = vld [vmem:[%s565 + $0xd0] sm:$0xf]
        %v619 = vld [vmem:[%s565 + $0xd4] sm:$0xf]
        %v620 = vld [vmem:[%s565 + $0xd8] sm:$0xf]
        %v621 = vld [vmem:[%s565 + $0xdc] sm:$0xf]
        %v622 = vld [vmem:[%s565 + $0xe0] sm:$0xf]
        %v623 = vld [vmem:[%s565 + $0xe4] sm:$0xf]
        %v624 = vld [vmem:[%s565 + $0xe8] sm:$0xf]
        %v625 = vld [vmem:[%s565 + $0xec] sm:$0xf]
        %v626 = vld [vmem:[%s565 + $0xf0] sm:$0xf]
        %v627 = vld [vmem:[%s565 + $0xf4] sm:$0xf]
        %v628 = vld [vmem:[%s565 + $0xf8] sm:$0xf]
        %v629 = vld [vmem:[%s565 + $0xfc] sm:$0xf]
        %v630 = vld [vmem:[#allocation2] sm:$0xff]
        %v631 = vld [vmem:[#allocation2 + $0x8] sm:$0xff]
        %v632 = vld [vmem:[#allocation2 + $0x10] sm:$0xff]
        %v633 = vld [vmem:[#allocation2 + $0x18] sm:$0xff]
        %v634 = vld [vmem:[#allocation2 + $0x20] sm:$0xff]
        %v635 = vld [vmem:[#allocation2 + $0x28] sm:$0xff]
        %v636 = vld [vmem:[#allocation2 + $0x30] sm:$0xff]
        %v637 = vld [vmem:[#allocation2 + $0x38] sm:$0xff]
        %v638 = vld [vmem:[#allocation2 + $0x40] sm:$0xff]
        %v639 = vld [vmem:[#allocation2 + $0x48] sm:$0xff]
        %v640 = vld [vmem:[#allocation2 + $0x50] sm:$0xff]
        %v641 = vld [vmem:[#allocation2 + $0x58] sm:$0xff]
        %v642 = vld [vmem:[#allocation2 + $0x60] sm:$0xff]
        %v643 = vld [vmem:[#allocation2 + $0x68] sm:$0xff]
        %v644 = vld [vmem:[#allocation2 + $0x70] sm:$0xff]
        %v645 = vld [vmem:[#allocation2 + $0x78] sm:$0xff]
        %v646 = vld [vmem:[#allocation2 + $0x80] sm:$0xff]
        %v647 = vld [vmem:[#allocation2 + $0x88] sm:$0xff]
        %v648 = vld [vmem:[#allocation2 + $0x90] sm:$0xff]
        %v649 = vld [vmem:[#allocation2 + $0x98] sm:$0xff]
        %v650 = vld [vmem:[#allocation2 + $0xa0] sm:$0xff]
        %v651 = vld [vmem:[#allocation2 + $0xa8] sm:$0xff]
        %v652 = vld [vmem:[#allocation2 + $0xb0] sm:$0xff]
        %v653 = vld [vmem:[#allocation2 + $0xb8] sm:$0xff]
        %v654 = vld [vmem:[#allocation2 + $0xc0] sm:$0xff]
        %v655 = vld [vmem:[#allocation2 + $0xc8] sm:$0xff]
        %v656 = vld [vmem:[#allocation2 + $0xd0] sm:$0xff]
        %v657 = vld [vmem:[#allocation2 + $0xd8] sm:$0xff]
        %v658 = vld [vmem:[#allocation2 + $0xe0] sm:$0xff]
        %v659 = vld [vmem:[#allocation2 + $0xe8] sm:$0xff]
        %v660 = vld [vmem:[#allocation2 + $0xf0] sm:$0xff]
        %v661 = vld [vmem:[#allocation2 + $0xf8] sm:$0xff]
        %v662 = vld [vmem:[#allocation2 + $0x100] sm:$0xff]
        %v663 = vld [vmem:[#allocation2 + $0x108] sm:$0xff]
        %v664 = vld [vmem:[#allocation2 + $0x110] sm:$0xff]
        %v665 = vld [vmem:[#allocation2 + $0x118] sm:$0xff]
        %v666 = vld [vmem:[#allocation2 + $0x120] sm:$0xff]
        %v667 = vld [vmem:[#allocation2 + $0x128] sm:$0xff]
        %v668 = vld [vmem:[#allocation2 + $0x130] sm:$0xff]
        %v669 = vld [vmem:[#allocation2 + $0x138] sm:$0xff]
        %v670 = vld [vmem:[#allocation2 + $0x140] sm:$0xff]
        %v671 = vld [vmem:[#allocation2 + $0x148] sm:$0xff]
        %v672 = vld [vmem:[#allocation2 + $0x150] sm:$0xff]
        %v673 = vld [vmem:[#allocation2 + $0x158] sm:$0xff]
        %v674 = vld [vmem:[#allocation2 + $0x160] sm:$0xff]
        %v675 = vld [vmem:[#allocation2 + $0x168] sm:$0xff]
        %v676 = vld [vmem:[#allocation2 + $0x170] sm:$0xff]
        %v677 = vld [vmem:[#allocation2 + $0x178] sm:$0xff]
        %v678 = vld [vmem:[#allocation2 + $0x180] sm:$0xff]
        %v679 = vld [vmem:[#allocation2 + $0x188] sm:$0xff]
        %v680 = vld [vmem:[#allocation2 + $0x190] sm:$0xff]
        %v681 = vld [vmem:[#allocation2 + $0x198] sm:$0xff]
        %v682 = vld [vmem:[#allocation2 + $0x1a0] sm:$0xff]
        %v683 = vld [vmem:[#allocation2 + $0x1a8] sm:$0xff]
        %v684 = vld [vmem:[#allocation2 + $0x1b0] sm:$0xff]
        %v685 = vld [vmem:[#allocation2 + $0x1b8] sm:$0xff]
        %v686 = vld [vmem:[#allocation2 + $0x1c0] sm:$0xff]
        %v687 = vld [vmem:[#allocation2 + $0x1c8] sm:$0xff]
        %v688 = vld [vmem:[#allocation2 + $0x1d0] sm:$0xff]
        %v689 = vld [vmem:[#allocation2 + $0x1d8] sm:$0xff]
        %v690 = vld [vmem:[#allocation2 + $0x1e0] sm:$0xff]
        %v691 = vld [vmem:[#allocation2 + $0x1e8] sm:$0xff]
        %v692 = vld [vmem:[#allocation2 + $0x1f0] sm:$0xff]
        %v693 = vld [vmem:[#allocation2 + $0x1f8] sm:$0xff]
        %v694 = vld [vmem:[%s461] sm:$0xff]
        %v695 = vld [vmem:[%s461 + $0x8] sm:$0xff]
        %v696 = vld [vmem:[%s461 + $0x10] sm:$0xff]
        %v697 = vld [vmem:[%s461 + $0x18] sm:$0xff]
        %v698 = vld [vmem:[%s461 + $0x20] sm:$0xff]
        %v699 = vld [vmem:[%s461 + $0x28] sm:$0xff]
        %v700 = vld [vmem:[%s461 + $0x30] sm:$0xff]
        %v701 = vld [vmem:[%s461 + $0x38] sm:$0xff]
        %v702 = vld [vmem:[%s461 + $0x40] sm:$0xff]
        %v703 = vld [vmem:[%s461 + $0x48] sm:$0xff]
        %v704 = vld [vmem:[%s461 + $0x50] sm:$0xff]
        %v705 = vld [vmem:[%s461 + $0x58] sm:$0xff]
        %v706 = vld [vmem:[%s461 + $0x60] sm:$0xff]
        %v707 = vld [vmem:[%s461 + $0x68] sm:$0xff]
        %v708 = vld [vmem:[%s461 + $0x70] sm:$0xff]
        %v709 = vld [vmem:[%s461 + $0x78] sm:$0xff]
        %v710 = vld [vmem:[%s461 + $0x80] sm:$0xff]
        %v711 = vld [vmem:[%s461 + $0x88] sm:$0xff]
        %v712 = vld [vmem:[%s461 + $0x90] sm:$0xff]
        %v713 = vld [vmem:[%s461 + $0x98] sm:$0xff]
        %v714 = vld [vmem:[%s461 + $0xa0] sm:$0xff]
        %v715 = vld [vmem:[%s461 + $0xa8] sm:$0xff]
        %v716 = vld [vmem:[%s461 + $0xb0] sm:$0xff]
        %v717 = vld [vmem:[%s461 + $0xb8] sm:$0xff]
        %v718 = vld [vmem:[%s461 + $0xc0] sm:$0xff]
        %v719 = vld [vmem:[%s461 + $0xc8] sm:$0xff]
        %v720 = vld [vmem:[%s461 + $0xd0] sm:$0xff]
        %v721 = vld [vmem:[%s461 + $0xd8] sm:$0xff]
        %v722 = vld [vmem:[%s461 + $0xe0] sm:$0xff]
        %v723 = vld [vmem:[%s461 + $0xe8] sm:$0xff]
        %v724 = vld [vmem:[%s461 + $0xf0] sm:$0xff]
        %v725 = vld [vmem:[%s461 + $0xf8] sm:$0xff]
        %v726 = vld [vmem:[%s461 + $0x100] sm:$0xff]
        %v727 = vld [vmem:[%s461 + $0x108] sm:$0xff]
        %v728 = vld [vmem:[%s461 + $0x110] sm:$0xff]
        %v729 = vld [vmem:[%s461 + $0x118] sm:$0xff]
        %v730 = vld [vmem:[%s461 + $0x120] sm:$0xff]
        %v731 = vld [vmem:[%s461 + $0x128] sm:$0xff]
        %v732 = vld [vmem:[%s461 + $0x130] sm:$0xff]
        %v733 = vld [vmem:[%s461 + $0x138] sm:$0xff]
        %v734 = vld [vmem:[%s461 + $0x140] sm:$0xff]
        %v735 = vld [vmem:[%s461 + $0x148] sm:$0xff]
        %v736 = vld [vmem:[%s461 + $0x150] sm:$0xff]
        %v737 = vld [vmem:[%s461 + $0x158] sm:$0xff]
        %v738 = vld [vmem:[%s461 + $0x160] sm:$0xff]
        %v739 = vld [vmem:[%s461 + $0x168] sm:$0xff]
        %v740 = vld [vmem:[%s461 + $0x170] sm:$0xff]
        %v741 = vld [vmem:[%s461 + $0x178] sm:$0xff]
        %v742 = vld [vmem:[%s461 + $0x180] sm:$0xff]
        %v743 = vld [vmem:[%s461 + $0x188] sm:$0xff]
        %v744 = vld [vmem:[%s461 + $0x190] sm:$0xff]
        %v745 = vld [vmem:[%s461 + $0x198] sm:$0xff]
        %v746 = vld [vmem:[%s461 + $0x1a0] sm:$0xff]
        %v747 = vld [vmem:[%s461 + $0x1a8] sm:$0xff]
        %v748 = vld [vmem:[%s461 + $0x1b0] sm:$0xff]
        %v749 = vld [vmem:[%s461 + $0x1b8] sm:$0xff]
        %v750 = vld [vmem:[%s461 + $0x1c0] sm:$0xff]
        %v751 = vld [vmem:[%s461 + $0x1c8] sm:$0xff]
        %v752 = vld [vmem:[%s461 + $0x1d0] sm:$0xff]
        %v753 = vld [vmem:[%s461 + $0x1d8] sm:$0xff]
        %v754 = vld [vmem:[%s461 + $0x1e0] sm:$0xff]
        %v755 = vld [vmem:[%s461 + $0x1e8] sm:$0xff]
        %v756 = vld [vmem:[%s461 + $0x1f0] sm:$0xff]
        %v757 = vld [vmem:[%s461 + $0x1f8] sm:$0xff]
        %v758 = vld [vmem:[%s461 + $0x200] sm:$0xff]
        %v759 = vld [vmem:[%s461 + $0x208] sm:$0xff]
        %v760 = vld [vmem:[%s461 + $0x210] sm:$0xff]
        %v761 = vld [vmem:[%s461 + $0x218] sm:$0xff]
        %v762 = vld [vmem:[%s461 + $0x220] sm:$0xff]
        %v763 = vld [vmem:[%s461 + $0x228] sm:$0xff]
        %v764 = vld [vmem:[%s461 + $0x230] sm:$0xff]
        %v765 = vld [vmem:[%s461 + $0x238] sm:$0xff]
        %v766 = vld [vmem:[%s461 + $0x240] sm:$0xff]
        %v767 = vld [vmem:[%s461 + $0x248] sm:$0xff]
        %v768 = vld [vmem:[%s461 + $0x250] sm:$0xff]
        %v769 = vld [vmem:[%s461 + $0x258] sm:$0xff]
        %v770 = vld [vmem:[%s461 + $0x260] sm:$0xff]
        %v771 = vld [vmem:[%s461 + $0x268] sm:$0xff]
        %v772 = vld [vmem:[%s461 + $0x270] sm:$0xff]
        %v773 = vld [vmem:[%s461 + $0x278] sm:$0xff]
        %v774 = vld [vmem:[%s461 + $0x280] sm:$0xff]
        %v775 = vld [vmem:[%s461 + $0x288] sm:$0xff]
        %v776 = vld [vmem:[%s461 + $0x290] sm:$0xff]
        %v777 = vld [vmem:[%s461 + $0x298] sm:$0xff]
        %v778 = vld [vmem:[%s461 + $0x2a0] sm:$0xff]
        %v779 = vld [vmem:[%s461 + $0x2a8] sm:$0xff]
        %v780 = vld [vmem:[%s461 + $0x2b0] sm:$0xff]
        %v781 = vld [vmem:[%s461 + $0x2b8] sm:$0xff]
        %v782 = vld [vmem:[%s461 + $0x2c0] sm:$0xff]
        %v783 = vld [vmem:[%s461 + $0x2c8] sm:$0xff]
        %v784 = vld [vmem:[%s461 + $0x2d0] sm:$0xff]
        %v785 = vld [vmem:[%s461 + $0x2d8] sm:$0xff]
        %v786 = vld [vmem:[%s461 + $0x2e0] sm:$0xff]
        %v787 = vld [vmem:[%s461 + $0x2e8] sm:$0xff]
        %v788 = vld [vmem:[%s461 + $0x2f0] sm:$0xff]
        %v789 = vld [vmem:[%s461 + $0x2f8] sm:$0xff]
        %v790 = vld [vmem:[%s461 + $0x300] sm:$0xff]
        %v791 = vld [vmem:[%s461 + $0x308] sm:$0xff]
        %v792 = vld [vmem:[%s461 + $0x310] sm:$0xff]
        %v793 = vld [vmem:[%s461 + $0x318] sm:$0xff]
        %v794 = vld [vmem:[%s461 + $0x320] sm:$0xff]
        %v795 = vld [vmem:[%s461 + $0x328] sm:$0xff]
        %v796 = vld [vmem:[%s461 + $0x330] sm:$0xff]
        %v797 = vld [vmem:[%s461 + $0x338] sm:$0xff]
        %v798 = vld [vmem:[%s461 + $0x340] sm:$0xff]
        %v799 = vld [vmem:[%s461 + $0x348] sm:$0xff]
        %v800 = vld [vmem:[%s461 + $0x350] sm:$0xff]
        %v801 = vld [vmem:[%s461 + $0x358] sm:$0xff]
        %v802 = vld [vmem:[%s461 + $0x360] sm:$0xff]
        %v803 = vld [vmem:[%s461 + $0x368] sm:$0xff]
        %v804 = vld [vmem:[%s461 + $0x370] sm:$0xff]
        %v805 = vld [vmem:[%s461 + $0x378] sm:$0xff]
        %v806 = vld [vmem:[%s461 + $0x380] sm:$0xff]
        %v807 = vld [vmem:[%s461 + $0x388] sm:$0xff]
        %v808 = vld [vmem:[%s461 + $0x390] sm:$0xff]
        %v809 = vld [vmem:[%s461 + $0x398] sm:$0xff]
        %v810 = vld [vmem:[%s461 + $0x3a0] sm:$0xff]
        %v811 = vld [vmem:[%s461 + $0x3a8] sm:$0xff]
        %v812 = vld [vmem:[%s461 + $0x3b0] sm:$0xff]
        %v813 = vld [vmem:[%s461 + $0x3b8] sm:$0xff]
        %v814 = vld [vmem:[%s461 + $0x3c0] sm:$0xff]
        %v815 = vld [vmem:[%s461 + $0x3c8] sm:$0xff]
        %v816 = vld [vmem:[%s461 + $0x3d0] sm:$0xff]
        %v817 = vld [vmem:[%s461 + $0x3d8] sm:$0xff]
        %v818 = vld [vmem:[%s461 + $0x3e0] sm:$0xff]
        %v819 = vld [vmem:[%s461 + $0x3e8] sm:$0xff]
        %v820 = vld [vmem:[%s461 + $0x3f0] sm:$0xff]
        %v821 = vld [vmem:[%s461 + $0x3f8] sm:$0xff]
        %v950 = vunpack.c.l.b16 %v694
        %v951 = vunpack.c.h.b16 %v694
        %v952 = vunpack.c.l.b16 %v695
        %v953 = vunpack.c.h.b16 %v695
        %v954 = vunpack.c.l.b16 %v696
        %v955 = vunpack.c.h.b16 %v696
        %v956 = vunpack.c.l.b16 %v697
        %v957 = vunpack.c.h.b16 %v697
        %v958 = vunpack.c.l.b16 %v698
        %v959 = vunpack.c.h.b16 %v698
        %v960 = vunpack.c.l.b16 %v699
        %v961 = vunpack.c.h.b16 %v699
        %v962 = vunpack.c.l.b16 %v700
        %v963 = vunpack.c.h.b16 %v700
        %v964 = vunpack.c.l.b16 %v701
        %v965 = vunpack.c.h.b16 %v701
        %v966 = vunpack.c.l.b16 %v702
        %v967 = vunpack.c.h.b16 %v702
        %v968 = vunpack.c.l.b16 %v703
        %v969 = vunpack.c.h.b16 %v703
        %v970 = vunpack.c.l.b16 %v704
        %v971 = vunpack.c.h.b16 %v704
        %v972 = vunpack.c.l.b16 %v705
        %v973 = vunpack.c.h.b16 %v705
        %v974 = vunpack.c.l.b16 %v706
        %v975 = vunpack.c.h.b16 %v706
        %v976 = vunpack.c.l.b16 %v707
        %v977 = vunpack.c.h.b16 %v707
        %v978 = vunpack.c.l.b16 %v708
        %v979 = vunpack.c.h.b16 %v708
        %v980 = vunpack.c.l.b16 %v709
        %v981 = vunpack.c.h.b16 %v709
        %v982 = vunpack.c.l.b16 %v710
        %v983 = vunpack.c.h.b16 %v710
        %v984 = vunpack.c.l.b16 %v711
        %v985 = vunpack.c.h.b16 %v711
        %v986 = vunpack.c.l.b16 %v712
        %v987 = vunpack.c.h.b16 %v712
        %v988 = vunpack.c.l.b16 %v713
        %v989 = vunpack.c.h.b16 %v713
        %v990 = vunpack.c.l.b16 %v714
        %v991 = vunpack.c.h.b16 %v714
        %v992 = vunpack.c.l.b16 %v715
        %v993 = vunpack.c.h.b16 %v715
        %v994 = vunpack.c.l.b16 %v716
        %v995 = vunpack.c.h.b16 %v716
        %v996 = vunpack.c.l.b16 %v717
        %v997 = vunpack.c.h.b16 %v717
        %v998 = vunpack.c.l.b16 %v718
        %v999 = vunpack.c.h.b16 %v718
        %v1000 = vunpack.c.l.b16 %v719
        %v1001 = vunpack.c.h.b16 %v719
        %v1002 = vunpack.c.l.b16 %v720
        %v1003 = vunpack.c.h.b16 %v720
        %v1004 = vunpack.c.l.b16 %v721
        %v1005 = vunpack.c.h.b16 %v721
        %v1006 = vunpack.c.l.b16 %v722
        %v1007 = vunpack.c.h.b16 %v722
        %v1008 = vunpack.c.l.b16 %v723
        %v1009 = vunpack.c.h.b16 %v723
        %v1010 = vunpack.c.l.b16 %v724
        %v1011 = vunpack.c.h.b16 %v724
        %v1012 = vunpack.c.l.b16 %v725
        %v1013 = vunpack.c.h.b16 %v725
        %v1014 = vunpack.c.l.b16 %v726
        %v1015 = vunpack.c.h.b16 %v726
        %v1016 = vunpack.c.l.b16 %v727
        %v1017 = vunpack.c.h.b16 %v727
        %v1018 = vunpack.c.l.b16 %v728
        %v1019 = vunpack.c.h.b16 %v728
        %v1020 = vunpack.c.l.b16 %v729
        %v1021 = vunpack.c.h.b16 %v729
        %v1022 = vunpack.c.l.b16 %v730
        %v1023 = vunpack.c.h.b16 %v730
        %v1024 = vunpack.c.l.b16 %v731
        %v1025 = vunpack.c.h.b16 %v731
        %v1026 = vunpack.c.l.b16 %v732
        %v1027 = vunpack.c.h.b16 %v732
        %v1028 = vunpack.c.l.b16 %v733
        %v1029 = vunpack.c.h.b16 %v733
        %v1030 = vunpack.c.l.b16 %v734
        %v1031 = vunpack.c.h.b16 %v734
        %v1032 = vunpack.c.l.b16 %v735
        %v1033 = vunpack.c.h.b16 %v735
        %v1034 = vunpack.c.l.b16 %v736
        %v1035 = vunpack.c.h.b16 %v736
        %v1036 = vunpack.c.l.b16 %v737
        %v1037 = vunpack.c.h.b16 %v737
        %v1038 = vunpack.c.l.b16 %v738
        %v1039 = vunpack.c.h.b16 %v738
        %v1040 = vunpack.c.l.b16 %v739
        %v1041 = vunpack.c.h.b16 %v739
        %v1042 = vunpack.c.l.b16 %v740
        %v1043 = vunpack.c.h.b16 %v740
        %v1044 = vunpack.c.l.b16 %v741
        %v1045 = vunpack.c.h.b16 %v741
        %v1046 = vunpack.c.l.b16 %v742
        %v1047 = vunpack.c.h.b16 %v742
        %v1048 = vunpack.c.l.b16 %v743
        %v1049 = vunpack.c.h.b16 %v743
        %v1050 = vunpack.c.l.b16 %v744
        %v1051 = vunpack.c.h.b16 %v744
        %v1052 = vunpack.c.l.b16 %v745
        %v1053 = vunpack.c.h.b16 %v745
        %v1054 = vunpack.c.l.b16 %v746
        %v1055 = vunpack.c.h.b16 %v746
        %v1056 = vunpack.c.l.b16 %v747
        %v1057 = vunpack.c.h.b16 %v747
        %v1058 = vunpack.c.l.b16 %v748
        %v1059 = vunpack.c.h.b16 %v748
        %v1060 = vunpack.c.l.b16 %v749
        %v1061 = vunpack.c.h.b16 %v749
        %v1062 = vunpack.c.l.b16 %v750
        %v1063 = vunpack.c.h.b16 %v750
        %v1064 = vunpack.c.l.b16 %v751
        %v1065 = vunpack.c.h.b16 %v751
        %v1066 = vunpack.c.l.b16 %v752
        %v1067 = vunpack.c.h.b16 %v752
        %v1068 = vunpack.c.l.b16 %v753
        %v1069 = vunpack.c.h.b16 %v753
        %v1070 = vunpack.c.l.b16 %v754
        %v1071 = vunpack.c.h.b16 %v754
        %v1072 = vunpack.c.l.b16 %v755
        %v1073 = vunpack.c.h.b16 %v755
        %v1074 = vunpack.c.l.b16 %v756
        %v1075 = vunpack.c.h.b16 %v756
        %v1076 = vunpack.c.l.b16 %v757
        %v1077 = vunpack.c.h.b16 %v757
        %v1078 = vunpack.c.l.b16 %v758
        %v1079 = vunpack.c.h.b16 %v758
        %v1080 = vunpack.c.l.b16 %v759
        %v1081 = vunpack.c.h.b16 %v759
        %v1082 = vunpack.c.l.b16 %v760
        %v1083 = vunpack.c.h.b16 %v760
        %v1084 = vunpack.c.l.b16 %v761
        %v1085 = vunpack.c.h.b16 %v761
        %v1086 = vunpack.c.l.b16 %v762
        %v1087 = vunpack.c.h.b16 %v762
        %v1088 = vunpack.c.l.b16 %v763
        %v1089 = vunpack.c.h.b16 %v763
        %v1090 = vunpack.c.l.b16 %v764
        %v1091 = vunpack.c.h.b16 %v764
        %v1092 = vunpack.c.l.b16 %v765
        %v1093 = vunpack.c.h.b16 %v765
        %v1094 = vunpack.c.l.b16 %v766
        %v1095 = vunpack.c.h.b16 %v766
        %v1096 = vunpack.c.l.b16 %v767
        %v1097 = vunpack.c.h.b16 %v767
        %v1098 = vunpack.c.l.b16 %v768
        %v1099 = vunpack.c.h.b16 %v768
        %v1100 = vunpack.c.l.b16 %v769
        %v1101 = vunpack.c.h.b16 %v769
        %v1102 = vunpack.c.l.b16 %v770
        %v1103 = vunpack.c.h.b16 %v770
        %v1104 = vunpack.c.l.b16 %v771
        %v1105 = vunpack.c.h.b16 %v771
        %v1106 = vunpack.c.l.b16 %v772
        %v1107 = vunpack.c.h.b16 %v772
        %v1108 = vunpack.c.l.b16 %v773
        %v1109 = vunpack.c.h.b16 %v773
        %v1110 = vunpack.c.l.b16 %v774
        %v1111 = vunpack.c.h.b16 %v774
        %v1112 = vunpack.c.l.b16 %v775
        %v1113 = vunpack.c.h.b16 %v775
        %v1114 = vunpack.c.l.b16 %v776
        %v1115 = vunpack.c.h.b16 %v776
        %v1116 = vunpack.c.l.b16 %v777
        %v1117 = vunpack.c.h.b16 %v777
        %v1118 = vunpack.c.l.b16 %v778
        %v1119 = vunpack.c.h.b16 %v778
        %v1120 = vunpack.c.l.b16 %v779
        %v1121 = vunpack.c.h.b16 %v779
        %v1122 = vunpack.c.l.b16 %v780
        %v1123 = vunpack.c.h.b16 %v780
        %v1124 = vunpack.c.l.b16 %v781
        %v1125 = vunpack.c.h.b16 %v781
        %v1126 = vunpack.c.l.b16 %v782
        %v1127 = vunpack.c.h.b16 %v782
        %v1128 = vunpack.c.l.b16 %v783
        %v1129 = vunpack.c.h.b16 %v783
        %v1130 = vunpack.c.l.b16 %v784
        %v1131 = vunpack.c.h.b16 %v784
        %v1132 = vunpack.c.l.b16 %v785
        %v1133 = vunpack.c.h.b16 %v785
        %v1134 = vunpack.c.l.b16 %v786
        %v1135 = vunpack.c.h.b16 %v786
        %v1136 = vunpack.c.l.b16 %v787
        %v1137 = vunpack.c.h.b16 %v787
        %v1138 = vunpack.c.l.b16 %v788
        %v1139 = vunpack.c.h.b16 %v788
        %v1140 = vunpack.c.l.b16 %v789
        %v1141 = vunpack.c.h.b16 %v789
        %v1142 = vunpack.c.l.b16 %v790
        %v1143 = vunpack.c.h.b16 %v790
        %v1144 = vunpack.c.l.b16 %v791
        %v1145 = vunpack.c.h.b16 %v791
        %v1146 = vunpack.c.l.b16 %v792
        %v1147 = vunpack.c.h.b16 %v792
        %v1148 = vunpack.c.l.b16 %v793
        %v1149 = vunpack.c.h.b16 %v793
        %v1150 = vunpack.c.l.b16 %v794
        %v1151 = vunpack.c.h.b16 %v794
        %v1152 = vunpack.c.l.b16 %v795
        %v1153 = vunpack.c.h.b16 %v795
        %v1154 = vunpack.c.l.b16 %v796
        %v1155 = vunpack.c.h.b16 %v796
        %v1156 = vunpack.c.l.b16 %v797
        %v1157 = vunpack.c.h.b16 %v797
        %v1158 = vunpack.c.l.b16 %v798
        %v1159 = vunpack.c.h.b16 %v798
        %v1160 = vunpack.c.l.b16 %v799
        %v1161 = vunpack.c.h.b16 %v799
        %v1162 = vunpack.c.l.b16 %v800
        %v1163 = vunpack.c.h.b16 %v800
        %v1164 = vunpack.c.l.b16 %v801
        %v1165 = vunpack.c.h.b16 %v801
        %v1166 = vunpack.c.l.b16 %v802
        %v1167 = vunpack.c.h.b16 %v802
        %v1168 = vunpack.c.l.b16 %v803
        %v1169 = vunpack.c.h.b16 %v803
        %v1170 = vunpack.c.l.b16 %v804
        %v1171 = vunpack.c.h.b16 %v804
        %v1172 = vunpack.c.l.b16 %v805
        %v1173 = vunpack.c.h.b16 %v805
        %v1174 = vunpack.c.l.b16 %v806
        %v1175 = vunpack.c.h.b16 %v806
        %v1176 = vunpack.c.l.b16 %v807
        %v1177 = vunpack.c.h.b16 %v807
        %v1178 = vunpack.c.l.b16 %v808
        %v1179 = vunpack.c.h.b16 %v808
        %v1180 = vunpack.c.l.b16 %v809
        %v1181 = vunpack.c.h.b16 %v809
        %v1182 = vunpack.c.l.b16 %v810
        %v1183 = vunpack.c.h.b16 %v810
        %v1184 = vunpack.c.l.b16 %v811
        %v1185 = vunpack.c.h.b16 %v811
        %v1186 = vunpack.c.l.b16 %v812
        %v1187 = vunpack.c.h.b16 %v812
        %v1188 = vunpack.c.l.b16 %v813
        %v1189 = vunpack.c.h.b16 %v813
        %v1190 = vunpack.c.l.b16 %v814
        %v1191 = vunpack.c.h.b16 %v814
        %v1192 = vunpack.c.l.b16 %v815
        %v1193 = vunpack.c.h.b16 %v815
        %v1194 = vunpack.c.l.b16 %v816
        %v1195 = vunpack.c.h.b16 %v816
        %v1196 = vunpack.c.l.b16 %v817
        %v1197 = vunpack.c.h.b16 %v817
        %v1198 = vunpack.c.l.b16 %v818
        %v1199 = vunpack.c.h.b16 %v818
        %v1200 = vunpack.c.l.b16 %v819
        %v1201 = vunpack.c.h.b16 %v819
        %v1202 = vunpack.c.l.b16 %v820
        %v1203 = vunpack.c.h.b16 %v820
        %v1204 = vunpack.c.l.b16 %v821
        %v1205 = vunpack.c.h.b16 %v821
        %v1206 = vpack.c.b16 %v954, %v950
        %v1207 = vpack.c.b16 %v955, %v951
        %v1208 = vpack.c.b16 %v956, %v952
        %v1209 = vpack.c.b16 %v957, %v953
        %v1210 = vpack.c.b16 %v962, %v958
        %v1211 = vpack.c.b16 %v963, %v959
        %v1212 = vpack.c.b16 %v964, %v960
        %v1213 = vpack.c.b16 %v965, %v961
        %v1214 = vpack.c.b16 %v970, %v966
        %v1215 = vpack.c.b16 %v971, %v967
        %v1216 = vpack.c.b16 %v972, %v968
        %v1217 = vpack.c.b16 %v973, %v969
        %v1218 = vpack.c.b16 %v978, %v974
        %v1219 = vpack.c.b16 %v979, %v975
        %v1220 = vpack.c.b16 %v980, %v976
        %v1221 = vpack.c.b16 %v981, %v977
        %v1222 = vpack.c.b16 %v986, %v982
        %v1223 = vpack.c.b16 %v987, %v983
        %v1224 = vpack.c.b16 %v988, %v984
        %v1225 = vpack.c.b16 %v989, %v985
        %v1226 = vpack.c.b16 %v994, %v990
        %v1227 = vpack.c.b16 %v995, %v991
        %v1228 = vpack.c.b16 %v996, %v992
        %v1229 = vpack.c.b16 %v997, %v993
        %v1230 = vpack.c.b16 %v1002, %v998
        %v1231 = vpack.c.b16 %v1003, %v999
        %v1232 = vpack.c.b16 %v1004, %v1000
        %v1233 = vpack.c.b16 %v1005, %v1001
        %v1234 = vpack.c.b16 %v1010, %v1006
        %v1235 = vpack.c.b16 %v1011, %v1007
        %v1236 = vpack.c.b16 %v1012, %v1008
        %v1237 = vpack.c.b16 %v1013, %v1009
        %v1238 = vpack.c.b16 %v1018, %v1014
        %v1239 = vpack.c.b16 %v1019, %v1015
        %v1240 = vpack.c.b16 %v1020, %v1016
        %v1241 = vpack.c.b16 %v1021, %v1017
        %v1242 = vpack.c.b16 %v1026, %v1022
        %v1243 = vpack.c.b16 %v1027, %v1023
        %v1244 = vpack.c.b16 %v1028, %v1024
        %v1245 = vpack.c.b16 %v1029, %v1025
        %v1246 = vpack.c.b16 %v1034, %v1030
        %v1247 = vpack.c.b16 %v1035, %v1031
        %v1248 = vpack.c.b16 %v1036, %v1032
        %v1249 = vpack.c.b16 %v1037, %v1033
        %v1250 = vpack.c.b16 %v1042, %v1038
        %v1251 = vpack.c.b16 %v1043, %v1039
        %v1252 = vpack.c.b16 %v1044, %v1040
        %v1253 = vpack.c.b16 %v1045, %v1041
        %v1254 = vpack.c.b16 %v1050, %v1046
        %v1255 = vpack.c.b16 %v1051, %v1047
        %v1256 = vpack.c.b16 %v1052, %v1048
        %v1257 = vpack.c.b16 %v1053, %v1049
        %v1258 = vpack.c.b16 %v1058, %v1054
        %v1259 = vpack.c.b16 %v1059, %v1055
        %v1260 = vpack.c.b16 %v1060, %v1056
        %v1261 = vpack.c.b16 %v1061, %v1057
        %v1262 = vpack.c.b16 %v1066, %v1062
        %v1263 = vpack.c.b16 %v1067, %v1063
        %v1264 = vpack.c.b16 %v1068, %v1064
        %v1265 = vpack.c.b16 %v1069, %v1065
        %v1266 = vpack.c.b16 %v1074, %v1070
        %v1267 = vpack.c.b16 %v1075, %v1071
        %v1268 = vpack.c.b16 %v1076, %v1072
        %v1269 = vpack.c.b16 %v1077, %v1073
        %v1270 = vpack.c.b16 %v1082, %v1078
        %v1271 = vpack.c.b16 %v1083, %v1079
        %v1272 = vpack.c.b16 %v1084, %v1080
        %v1273 = vpack.c.b16 %v1085, %v1081
        %v1274 = vpack.c.b16 %v1090, %v1086
        %v1275 = vpack.c.b16 %v1091, %v1087
        %v1276 = vpack.c.b16 %v1092, %v1088
        %v1277 = vpack.c.b16 %v1093, %v1089
        %v1278 = vpack.c.b16 %v1098, %v1094
        %v1279 = vpack.c.b16 %v1099, %v1095
        %v1280 = vpack.c.b16 %v1100, %v1096
        %v1281 = vpack.c.b16 %v1101, %v1097
        %v1282 = vpack.c.b16 %v1106, %v1102
        %v1283 = vpack.c.b16 %v1107, %v1103
        %v1284 = vpack.c.b16 %v1108, %v1104
        %v1285 = vpack.c.b16 %v1109, %v1105
        %v1286 = vpack.c.b16 %v1114, %v1110
        %v1287 = vpack.c.b16 %v1115, %v1111
        %v1288 = vpack.c.b16 %v1116, %v1112
        %v1289 = vpack.c.b16 %v1117, %v1113
        %v1290 = vpack.c.b16 %v1122, %v1118
        %v1291 = vpack.c.b16 %v1123, %v1119
        %v1292 = vpack.c.b16 %v1124, %v1120
        %v1293 = vpack.c.b16 %v1125, %v1121
        %v1294 = vpack.c.b16 %v1130, %v1126
        %v1295 = vpack.c.b16 %v1131, %v1127
        %v1296 = vpack.c.b16 %v1132, %v1128
        %v1297 = vpack.c.b16 %v1133, %v1129
        %v1298 = vpack.c.b16 %v1138, %v1134
        %v1299 = vpack.c.b16 %v1139, %v1135
        %v1300 = vpack.c.b16 %v1140, %v1136
        %v1301 = vpack.c.b16 %v1141, %v1137
        %v1302 = vpack.c.b16 %v1146, %v1142
        %v1303 = vpack.c.b16 %v1147, %v1143
        %v1304 = vpack.c.b16 %v1148, %v1144
        %v1305 = vpack.c.b16 %v1149, %v1145
        %v1306 = vpack.c.b16 %v1154, %v1150
        %v1307 = vpack.c.b16 %v1155, %v1151
        %v1308 = vpack.c.b16 %v1156, %v1152
        %v1309 = vpack.c.b16 %v1157, %v1153
        %v1310 = vpack.c.b16 %v1162, %v1158
        %v1311 = vpack.c.b16 %v1163, %v1159
        %v1312 = vpack.c.b16 %v1164, %v1160
        %v1313 = vpack.c.b16 %v1165, %v1161
        %v1314 = vpack.c.b16 %v1170, %v1166
        %v1315 = vpack.c.b16 %v1171, %v1167
        %v1316 = vpack.c.b16 %v1172, %v1168
        %v1317 = vpack.c.b16 %v1173, %v1169
        %v1318 = vpack.c.b16 %v1178, %v1174
        %v1319 = vpack.c.b16 %v1179, %v1175
        %v1320 = vpack.c.b16 %v1180, %v1176
        %v1321 = vpack.c.b16 %v1181, %v1177
        %v1322 = vpack.c.b16 %v1186, %v1182
        %v1323 = vpack.c.b16 %v1187, %v1183
        %v1324 = vpack.c.b16 %v1188, %v1184
        %v1325 = vpack.c.b16 %v1189, %v1185
        %v1326 = vpack.c.b16 %v1194, %v1190
        %v1327 = vpack.c.b16 %v1195, %v1191
        %v1328 = vpack.c.b16 %v1196, %v1192
        %v1329 = vpack.c.b16 %v1197, %v1193
        %v1330 = vpack.c.b16 %v1202, %v1198
        %v1331 = vpack.c.b16 %v1203, %v1199
        %v1332 = vpack.c.b16 %v1204, %v1200
        %v1333 = vpack.c.b16 %v1205, %v1201
        %v1526 = vunpack.c.l.b16 %v566
        %v1527 = vunpack.c.l.b16 %v567
        %v1528 = vunpack.c.l.b16 %v568
        %v1529 = vunpack.c.l.b16 %v569
        %v1530 = vunpack.c.l.b16 %v570
        %v1531 = vunpack.c.l.b16 %v571
        %v1532 = vunpack.c.l.b16 %v572
        %v1533 = vunpack.c.l.b16 %v573
        %v1534 = vunpack.c.l.b16 %v574
        %v1535 = vunpack.c.l.b16 %v575
        %v1536 = vunpack.c.l.b16 %v576
        %v1537 = vunpack.c.l.b16 %v577
        %v1538 = vunpack.c.l.b16 %v578
        %v1539 = vunpack.c.l.b16 %v579
        %v1540 = vunpack.c.l.b16 %v580
        %v1541 = vunpack.c.l.b16 %v581
        %v1542 = vunpack.c.l.b16 %v582
        %v1543 = vunpack.c.l.b16 %v583
        %v1544 = vunpack.c.l.b16 %v584
        %v1545 = vunpack.c.l.b16 %v585
        %v1546 = vunpack.c.l.b16 %v586
        %v1547 = vunpack.c.l.b16 %v587
        %v1548 = vunpack.c.l.b16 %v588
        %v1549 = vunpack.c.l.b16 %v589
        %v1550 = vunpack.c.l.b16 %v590
        %v1551 = vunpack.c.l.b16 %v591
        %v1552 = vunpack.c.l.b16 %v592
        %v1553 = vunpack.c.l.b16 %v593
        %v1554 = vunpack.c.l.b16 %v594
        %v1555 = vunpack.c.l.b16 %v595
        %v1556 = vunpack.c.l.b16 %v596
        %v1557 = vunpack.c.l.b16 %v597
        %v1558 = vunpack.c.l.b16 %v598
        %v1559 = vunpack.c.l.b16 %v599
        %v1560 = vunpack.c.l.b16 %v600
        %v1561 = vunpack.c.l.b16 %v601
        %v1562 = vunpack.c.l.b16 %v602
        %v1563 = vunpack.c.l.b16 %v603
        %v1564 = vunpack.c.l.b16 %v604
        %v1565 = vunpack.c.l.b16 %v605
        %v1566 = vunpack.c.l.b16 %v606
        %v1567 = vunpack.c.l.b16 %v607
        %v1568 = vunpack.c.l.b16 %v608
        %v1569 = vunpack.c.l.b16 %v609
        %v1570 = vunpack.c.l.b16 %v610
        %v1571 = vunpack.c.l.b16 %v611
        %v1572 = vunpack.c.l.b16 %v612
        %v1573 = vunpack.c.l.b16 %v613
        %v1574 = vunpack.c.l.b16 %v614
        %v1575 = vunpack.c.l.b16 %v615
        %v1576 = vunpack.c.l.b16 %v616
        %v1577 = vunpack.c.l.b16 %v617
        %v1578 = vunpack.c.l.b16 %v618
        %v1579 = vunpack.c.l.b16 %v619
        %v1580 = vunpack.c.l.b16 %v620
        %v1581 = vunpack.c.l.b16 %v621
        %v1582 = vunpack.c.l.b16 %v622
        %v1583 = vunpack.c.l.b16 %v623
        %v1584 = vunpack.c.l.b16 %v624
        %v1585 = vunpack.c.l.b16 %v625
        %v1586 = vunpack.c.l.b16 %v626
        %v1587 = vunpack.c.l.b16 %v627
        %v1588 = vunpack.c.l.b16 %v628
        %v1589 = vunpack.c.l.b16 %v629
        %v1590 = vpack.c.b16 %v1527, %v1526
        %v1591 = vpack.c.b16 %v1529, %v1528
        %v1592 = vpack.c.b16 %v1531, %v1530
        %v1593 = vpack.c.b16 %v1533, %v1532
        %v1594 = vpack.c.b16 %v1535, %v1534
        %v1595 = vpack.c.b16 %v1537, %v1536
        %v1596 = vpack.c.b16 %v1539, %v1538
        %v1597 = vpack.c.b16 %v1541, %v1540
        %v1598 = vpack.c.b16 %v1543, %v1542
        %v1599 = vpack.c.b16 %v1545, %v1544
        %v1600 = vpack.c.b16 %v1547, %v1546
        %v1601 = vpack.c.b16 %v1549, %v1548
        %v1602 = vpack.c.b16 %v1551, %v1550
        %v1603 = vpack.c.b16 %v1553, %v1552
        %v1604 = vpack.c.b16 %v1555, %v1554
        %v1605 = vpack.c.b16 %v1557, %v1556
        %v1606 = vpack.c.b16 %v1559, %v1558
        %v1607 = vpack.c.b16 %v1561, %v1560
        %v1608 = vpack.c.b16 %v1563, %v1562
        %v1609 = vpack.c.b16 %v1565, %v1564
        %v1610 = vpack.c.b16 %v1567, %v1566
        %v1611 = vpack.c.b16 %v1569, %v1568
        %v1612 = vpack.c.b16 %v1571, %v1570
        %v1613 = vpack.c.b16 %v1573, %v1572
        %v1614 = vpack.c.b16 %v1575, %v1574
        %v1615 = vpack.c.b16 %v1577, %v1576
        %v1616 = vpack.c.b16 %v1579, %v1578
        %v1617 = vpack.c.b16 %v1581, %v1580
        %v1618 = vpack.c.b16 %v1583, %v1582
        %v1619 = vpack.c.b16 %v1585, %v1584
        %v1620 = vpack.c.b16 %v1587, %v1586
        %v1621 = vpack.c.b16 %v1589, %v1588
        %1654 = vmatprep.subr.bf16.mxu0 0
        %1655 = vmatpush1.bf16.msra.mxu0 %v1590
        %1656 = vmatprep.subr.bf16.mxu0 0
        %1657 = vmatpush1.bf16.msra.mxu0 %v1591
        %1658 = vmatprep.subr.bf16.mxu0 0
        %1659 = vmatpush1.bf16.msra.mxu0 %v1592
        %1660 = vmatprep.subr.bf16.mxu0 0
        %1661 = vmatpush1.bf16.msra.mxu0 %v1593
        %1662 = vmatprep.subr.bf16.mxu0 0
        %1663 = vmatpush1.bf16.msra.mxu0 %v1594
        %1664 = vmatprep.subr.bf16.mxu0 0
        %1665 = vmatpush1.bf16.msra.mxu0 %v1595
        %1666 = vmatprep.subr.bf16.mxu0 0
        %1667 = vmatpush1.bf16.msra.mxu0 %v1596
        %1668 = vmatprep.subr.bf16.mxu0 0
        %1669 = vmatpush1.bf16.msra.mxu0 %v1597
        %1670 = vmatprep.subr.bf16.mxu0 0
        %1671 = vmatpush1.bf16.msra.mxu0 %v1598
        %1672 = vmatprep.subr.bf16.mxu0 0
        %1673 = vmatpush1.bf16.msra.mxu0 %v1599
        %1674 = vmatprep.subr.bf16.mxu0 0
        %1675 = vmatpush1.bf16.msra.mxu0 %v1600
        %1676 = vmatprep.subr.bf16.mxu0 0
        %1677 = vmatpush1.bf16.msra.mxu0 %v1601
        %1678 = vmatprep.subr.bf16.mxu0 0
        %1679 = vmatpush1.bf16.msra.mxu0 %v1602
        %1680 = vmatprep.subr.bf16.mxu0 0
        %1681 = vmatpush1.bf16.msra.mxu0 %v1603
        %1682 = vmatprep.subr.bf16.mxu0 0
        %1683 = vmatpush1.bf16.msra.mxu0 %v1604
        %1684 = vmatprep.subr.bf16.mxu0 0
        %1685 = vmatpush1.bf16.msra.mxu0 %v1605
        %1686 = vmatprep.mubr.bf16.mxu0 %v1207
        %1687 = vmatmul.mubr.bf16.gmra.mrb[0].mxu0 %v1206
        %v1688 = vpop.f32.mrb[0].mxu0
        %v1689 = vadd.f32 0.0, %v1688
        %v1690 = vpop.f32.mrb[0].mxu0
        %v1691 = vpop.f32.mrb[0].mxu0
        %v1692 = vadd.f32 0.0, %v1691
        %v1693 = vpop.f32.mrb[0].mxu0
        %1694 = vmatprep.mubr.bf16.mxu0 %v1211
        %1695 = vmatmul.mubr.bf16.gmra.mrb[0].mxu0 %v1210
        %v1696 = vpop.f32.mrb[0].mxu0
        %v1697 = vadd.f32 0.0, %v1696
        %v1698 = vpop.f32.mrb[0].mxu0
        %v1699 = vpop.f32.mrb[0].mxu0
        %v1700 = vadd.f32 0.0, %v1699
        %v1701 = vpop.f32.mrb[0].mxu0
        %1702 = vmatprep.mubr.bf16.mxu0 %v1215
        %1703 = vmatmul.mubr.bf16.gmra.mrb[0].mxu0 %v1214
        %v1704 = vpop.f32.mrb[0].mxu0
        %v1705 = vadd.f32 0.0, %v1704
        %v1706 = vpop.f32.mrb[0].mxu0
        %v1707 = vpop.f32.mrb[0].mxu0
        %v1708 = vadd.f32 0.0, %v1707
        %v1709 = vpop.f32.mrb[0].mxu0
        %1710 = vmatprep.mubr.bf16.mxu0 %v1219
        %1711 = vmatmul.mubr.bf16.gmra.mrb[0].mxu0 %v1218
        %v1712 = vpop.f32.mrb[0].mxu0
        %v1713 = vadd.f32 0.0, %v1712
        %v1714 = vpop.f32.mrb[0].mxu0
        %v1715 = vpop.f32.mrb[0].mxu0
        %v1716 = vadd.f32 0.0, %v1715
        %v1717 = vpop.f32.mrb[0].mxu0
        %1718 = vmatprep.mubr.bf16.mxu0 %v1223
        %1719 = vmatmul.mubr.bf16.gmra.mrb[0].mxu0 %v1222
        %v1720 = vpop.f32.mrb[0].mxu0
        %v1721 = vadd.f32 0.0, %v1720
        %v1722 = vpop.f32.mrb[0].mxu0
        %v1723 = vpop.f32.mrb[0].mxu0
        %v1724 = vadd.f32 0.0, %v1723
        %v1725 = vpop.f32.mrb[0].mxu0
        %1726 = vmatprep.mubr.bf16.mxu0 %v1227
        %1727 = vmatmul.mubr.bf16.gmra.mrb[0].mxu0 %v1226
        %v1728 = vpop.f32.mrb[0].mxu0
        %v1729 = vadd.f32 0.0, %v1728
        %v1730 = vpop.f32.mrb[0].mxu0
        %v1731 = vpop.f32.mrb[0].mxu0
        %v1732 = vadd.f32 0.0, %v1731
        %v1733 = vpop.f32.mrb[0].mxu0
        %1734 = vmatprep.mubr.bf16.mxu0 %v1231
        %1735 = vmatmul.mubr.bf16.gmra.mrb[0].mxu0 %v1230
        %v1736 = vpop.f32.mrb[0].mxu0
        %v1737 = vadd.f32 0.0, %v1736
        %v1738 = vpop.f32.mrb[0].mxu0
        %v1739 = vpop.f32.mrb[0].mxu0
        %v1740 = vadd.f32 0.0, %v1739
        %v1741 = vpop.f32.mrb[0].mxu0
        %1742 = vmatprep.mubr.bf16.mxu0 %v1235
        %1743 = vmatmul.mubr.bf16.gmra.mrb[0].mxu0 %v1234
        %v1744 = vpop.f32.mrb[0].mxu0
        %v1745 = vadd.f32 0.0, %v1744
        %v1746 = vpop.f32.mrb[0].mxu0
        %v1747 = vpop.f32.mrb[0].mxu0
        %v1748 = vadd.f32 0.0, %v1747
        %v1749 = vpop.f32.mrb[0].mxu0
        %1750 = vmatprep.mubr.bf16.mxu0 %v1239
        %1751 = vmatmul.mubr.bf16.gmra.mrb[0].mxu0 %v1238
        %v1752 = vpop.f32.mrb[0].mxu0
        %v1753 = vadd.f32 0.0, %v1752
        %v1754 = vpop.f32.mrb[0].mxu0
        %v1755 = vpop.f32.mrb[0].mxu0
        %v1756 = vadd.f32 0.0, %v1755
        %v1757 = vpop.f32.mrb[0].mxu0
        %1758 = vmatprep.mubr.bf16.mxu0 %v1243
        %1759 = vmatmul.mubr.bf16.gmra.mrb[0].mxu0 %v1242
        %v1760 = vpop.f32.mrb[0].mxu0
        %v1761 = vadd.f32 0.0, %v1760
        %v1762 = vpop.f32.mrb[0].mxu0
        %v1763 = vpop.f32.mrb[0].mxu0
        %v1764 = vadd.f32 0.0, %v1763
        %v1765 = vpop.f32.mrb[0].mxu0
        %1766 = vmatprep.mubr.bf16.mxu0 %v1247
        %1767 = vmatmul.mubr.bf16.gmra.mrb[0].mxu0 %v1246
        %v1768 = vpop.f32.mrb[0].mxu0
        %v1769 = vadd.f32 0.0, %v1768
        %v1770 = vpop.f32.mrb[0].mxu0
        %v1771 = vpop.f32.mrb[0].mxu0
        %v1772 = vadd.f32 0.0, %v1771
        %v1773 = vpop.f32.mrb[0].mxu0
        %1774 = vmatprep.mubr.bf16.mxu0 %v1251
        %1775 = vmatmul.mubr.bf16.gmra.mrb[0].mxu0 %v1250
        %v1776 = vpop.f32.mrb[0].mxu0
        %v1777 = vadd.f32 0.0, %v1776
        %v1778 = vpop.f32.mrb[0].mxu0
        %v1779 = vpop.f32.mrb[0].mxu0
        %v1780 = vadd.f32 0.0, %v1779
        %v1781 = vpop.f32.mrb[0].mxu0
        %1782 = vmatprep.mubr.bf16.mxu0 %v1255
        %1783 = vmatmul.mubr.bf16.gmra.mrb[0].mxu0 %v1254
        %v1784 = vpop.f32.mrb[0].mxu0
        %v1785 = vadd.f32 0.0, %v1784
        %v1786 = vpop.f32.mrb[0].mxu0
        %v1787 = vpop.f32.mrb[0].mxu0
        %v1788 = vadd.f32 0.0, %v1787
        %v1789 = vpop.f32.mrb[0].mxu0
        %1790 = vmatprep.mubr.bf16.mxu0 %v1259
        %1791 = vmatmul.mubr.bf16.gmra.mrb[0].mxu0 %v1258
        %v1792 = vpop.f32.mrb[0].mxu0
        %v1793 = vadd.f32 0.0, %v1792
        %v1794 = vpop.f32.mrb[0].mxu0
        %v1795 = vpop.f32.mrb[0].mxu0
        %v1796 = vadd.f32 0.0, %v1795
        %v1797 = vpop.f32.mrb[0].mxu0
        %1798 = vmatprep.mubr.bf16.mxu0 %v1263
        %1799 = vmatmul.mubr.bf16.gmra.mrb[0].mxu0 %v1262
        %v1800 = vpop.f32.mrb[0].mxu0
        %v1801 = vadd.f32 0.0, %v1800
        %v1802 = vpop.f32.mrb[0].mxu0
        %v1803 = vpop.f32.mrb[0].mxu0
        %v1804 = vadd.f32 0.0, %v1803
        %v1805 = vpop.f32.mrb[0].mxu0
        %1806 = vmatprep.mubr.bf16.mxu0 %v1267
        %1807 = vmatmul.mubr.bf16.gmra.mrb[0].mxu0 %v1266
        %v1808 = vpop.f32.mrb[0].mxu0
        %v1809 = vadd.f32 0.0, %v1808
        %v1810 = vpop.f32.mrb[0].mxu0
        %v1811 = vpop.f32.mrb[0].mxu0
        %v1812 = vadd.f32 0.0, %v1811
        %v1813 = vpop.f32.mrb[0].mxu0
        %1814 = vmatprep.mubr.bf16.mxu0 %v1271
        %1815 = vmatmul.mubr.bf16.gmra.mrb[0].mxu0 %v1270
        %v1816 = vpop.f32.mrb[0].mxu0
        %v1817 = vadd.f32 0.0, %v1816
        %v1818 = vpop.f32.mrb[0].mxu0
        %v1819 = vpop.f32.mrb[0].mxu0
        %v1820 = vadd.f32 0.0, %v1819
        %v1821 = vpop.f32.mrb[0].mxu0
        %1822 = vmatprep.mubr.bf16.mxu0 %v1275
        %1823 = vmatmul.mubr.bf16.gmra.mrb[0].mxu0 %v1274
        %v1824 = vpop.f32.mrb[0].mxu0
        %v1825 = vadd.f32 0.0, %v1824
        %v1826 = vpop.f32.mrb[0].mxu0
        %v1827 = vpop.f32.mrb[0].mxu0
        %v1828 = vadd.f32 0.0, %v1827
        %v1829 = vpop.f32.mrb[0].mxu0
        %1830 = vmatprep.mubr.bf16.mxu0 %v1279
        %1831 = vmatmul.mubr.bf16.gmra.mrb[0].mxu0 %v1278
        %v1832 = vpop.f32.mrb[0].mxu0
        %v1833 = vadd.f32 0.0, %v1832
        %v1834 = vpop.f32.mrb[0].mxu0
        %v1835 = vpop.f32.mrb[0].mxu0
        %v1836 = vadd.f32 0.0, %v1835
        %v1837 = vpop.f32.mrb[0].mxu0
        %1838 = vmatprep.mubr.bf16.mxu0 %v1283
        %1839 = vmatmul.mubr.bf16.gmra.mrb[0].mxu0 %v1282
        %v1840 = vpop.f32.mrb[0].mxu0
        %v1841 = vadd.f32 0.0, %v1840
        %v1842 = vpop.f32.mrb[0].mxu0
        %v1843 = vpop.f32.mrb[0].mxu0
        %v1844 = vadd.f32 0.0, %v1843
        %v1845 = vpop.f32.mrb[0].mxu0
        %1846 = vmatprep.mubr.bf16.mxu0 %v1287
        %1847 = vmatmul.mubr.bf16.gmra.mrb[0].mxu0 %v1286
        %v1848 = vpop.f32.mrb[0].mxu0
        %v1849 = vadd.f32 0.0, %v1848
        %v1850 = vpop.f32.mrb[0].mxu0
        %v1851 = vpop.f32.mrb[0].mxu0
        %v1852 = vadd.f32 0.0, %v1851
        %v1853 = vpop.f32.mrb[0].mxu0
        %1854 = vmatprep.mubr.bf16.mxu0 %v1291
        %1855 = vmatmul.mubr.bf16.gmra.mrb[0].mxu0 %v1290
        %v1856 = vpop.f32.mrb[0].mxu0
        %v1857 = vadd.f32 0.0, %v1856
        %v1858 = vpop.f32.mrb[0].mxu0
        %v1859 = vpop.f32.mrb[0].mxu0
        %v1860 = vadd.f32 0.0, %v1859
        %v1861 = vpop.f32.mrb[0].mxu0
        %1862 = vmatprep.mubr.bf16.mxu0 %v1295
        %1863 = vmatmul.mubr.bf16.gmra.mrb[0].mxu0 %v1294
        %v1864 = vpop.f32.mrb[0].mxu0
        %v1865 = vadd.f32 0.0, %v1864
        %v1866 = vpop.f32.mrb[0].mxu0
        %v1867 = vpop.f32.mrb[0].mxu0
        %v1868 = vadd.f32 0.0, %v1867
        %v1869 = vpop.f32.mrb[0].mxu0
        %1870 = vmatprep.mubr.bf16.mxu0 %v1299
        %1871 = vmatmul.mubr.bf16.gmra.mrb[0].mxu0 %v1298
        %v1872 = vpop.f32.mrb[0].mxu0
        %v1873 = vadd.f32 0.0, %v1872
        %v1874 = vpop.f32.mrb[0].mxu0
        %v1875 = vpop.f32.mrb[0].mxu0
        %v1876 = vadd.f32 0.0, %v1875
        %v1877 = vpop.f32.mrb[0].mxu0
        %1878 = vmatprep.mubr.bf16.mxu0 %v1303
        %1879 = vmatmul.mubr.bf16.gmra.mrb[0].mxu0 %v1302
        %v1880 = vpop.f32.mrb[0].mxu0
        %v1881 = vadd.f32 0.0, %v1880
        %v1882 = vpop.f32.mrb[0].mxu0
        %v1883 = vpop.f32.mrb[0].mxu0
        %v1884 = vadd.f32 0.0, %v1883
        %v1885 = vpop.f32.mrb[0].mxu0
        %1886 = vmatprep.mubr.bf16.mxu0 %v1307
        %1887 = vmatmul.mubr.bf16.gmra.mrb[0].mxu0 %v1306
        %v1888 = vpop.f32.mrb[0].mxu0
        %v1889 = vadd.f32 0.0, %v1888
        %v1890 = vpop.f32.mrb[0].mxu0
        %v1891 = vpop.f32.mrb[0].mxu0
        %v1892 = vadd.f32 0.0, %v1891
        %v1893 = vpop.f32.mrb[0].mxu0
        %1894 = vmatprep.mubr.bf16.mxu0 %v1311
        %1895 = vmatmul.mubr.bf16.gmra.mrb[0].mxu0 %v1310
        %v1896 = vpop.f32.mrb[0].mxu0
        %v1897 = vadd.f32 0.0, %v1896
        %v1898 = vpop.f32.mrb[0].mxu0
        %v1899 = vpop.f32.mrb[0].mxu0
        %v1900 = vadd.f32 0.0, %v1899
        %v1901 = vpop.f32.mrb[0].mxu0
        %1902 = vmatprep.mubr.bf16.mxu0 %v1315
        %1903 = vmatmul.mubr.bf16.gmra.mrb[0].mxu0 %v1314
        %v1904 = vpop.f32.mrb[0].mxu0
        %v1905 = vadd.f32 0.0, %v1904
        %v1906 = vpop.f32.mrb[0].mxu0
        %v1907 = vpop.f32.mrb[0].mxu0
        %v1908 = vadd.f32 0.0, %v1907
        %v1909 = vpop.f32.mrb[0].mxu0
        %1910 = vmatprep.mubr.bf16.mxu0 %v1319
        %1911 = vmatmul.mubr.bf16.gmra.mrb[0].mxu0 %v1318
        %v1912 = vpop.f32.mrb[0].mxu0
        %v1913 = vadd.f32 0.0, %v1912
        %v1914 = vpop.f32.mrb[0].mxu0
        %v1915 = vpop.f32.mrb[0].mxu0
        %v1916 = vadd.f32 0.0, %v1915
        %v1917 = vpop.f32.mrb[0].mxu0
        %1918 = vmatprep.mubr.bf16.mxu0 %v1323
        %1919 = vmatmul.mubr.bf16.gmra.mrb[0].mxu0 %v1322
        %v1920 = vpop.f32.mrb[0].mxu0
        %v1921 = vadd.f32 0.0, %v1920
        %v1922 = vpop.f32.mrb[0].mxu0
        %v1923 = vpop.f32.mrb[0].mxu0
        %v1924 = vadd.f32 0.0, %v1923
        %v1925 = vpop.f32.mrb[0].mxu0
        %1926 = vmatprep.mubr.bf16.mxu0 %v1327
        %1927 = vmatmul.mubr.bf16.gmra.mrb[0].mxu0 %v1326
        %v1928 = vpop.f32.mrb[0].mxu0
        %v1929 = vadd.f32 0.0, %v1928
        %v1930 = vpop.f32.mrb[0].mxu0
        %v1931 = vpop.f32.mrb[0].mxu0
        %v1932 = vadd.f32 0.0, %v1931
        %v1933 = vpop.f32.mrb[0].mxu0
        %1934 = vmatprep.mubr.bf16.mxu0 %v1331
        %1935 = vmatmul.mubr.bf16.gmra.mrb[0].mxu0 %v1330
        %v1936 = vpop.f32.mrb[0].mxu0
        %v1937 = vadd.f32 0.0, %v1936
        %v1938 = vpop.f32.mrb[0].mxu0
        %v1939 = vpop.f32.mrb[0].mxu0
        %v1940 = vadd.f32 0.0, %v1939
        %v1941 = vpop.f32.mrb[0].mxu0
        %1942 = vdwg.mxu0
        %1943 = vmatprep.subr.bf16.mxu0 0
        %1944 = vmatpush1.bf16.msra.mxu0 %v1606
        %1945 = vmatprep.subr.bf16.mxu0 0
        %1946 = vmatpush1.bf16.msra.mxu0 %v1607
        %1947 = vmatprep.subr.bf16.mxu0 0
        %1948 = vmatpush1.bf16.msra.mxu0 %v1608
        %1949 = vmatprep.subr.bf16.mxu0 0
        %1950 = vmatpush1.bf16.msra.mxu0 %v1609
        %1951 = vmatprep.subr.bf16.mxu0 0
        %1952 = vmatpush1.bf16.msra.mxu0 %v1610
        %1953 = vmatprep.subr.bf16.mxu0 0
        %1954 = vmatpush1.bf16.msra.mxu0 %v1611
        %1955 = vmatprep.subr.bf16.mxu0 0
        %1956 = vmatpush1.bf16.msra.mxu0 %v1612
        %1957 = vmatprep.subr.bf16.mxu0 0
        %1958 = vmatpush1.bf16.msra.mxu0 %v1613
        %1959 = vmatprep.subr.bf16.mxu0 0
        %1960 = vmatpush1.bf16.msra.mxu0 %v1614
        %1961 = vmatprep.subr.bf16.mxu0 0
        %1962 = vmatpush1.bf16.msra.mxu0 %v1615
        %1963 = vmatprep.subr.bf16.mxu0 0
        %1964 = vmatpush1.bf16.msra.mxu0 %v1616
        %1965 = vmatprep.subr.bf16.mxu0 0
        %1966 = vmatpush1.bf16.msra.mxu0 %v1617
        %1967 = vmatprep.subr.bf16.mxu0 0
        %1968 = vmatpush1.bf16.msra.mxu0 %v1618
        %1969 = vmatprep.subr.bf16.mxu0 0
        %1970 = vmatpush1.bf16.msra.mxu0 %v1619
        %1971 = vmatprep.subr.bf16.mxu0 0
        %1972 = vmatpush1.bf16.msra.mxu0 %v1620
        %1973 = vmatprep.subr.bf16.mxu0 0
        %1974 = vmatpush1.bf16.msra.mxu0 %v1621
        %1975 = vmatprep.mubr.bf16.mxu0 %v1209
        %1976 = vmatmul.mubr.bf16.gmra.mrb[0].mxu0 %v1208
        %v1977 = vpop.f32.mrb[0].mxu0
        %v1978 = vadd.f32 %v1689, %v1977
        %v1979 = vpop.f32.mrb[0].mxu0
        %v1980 = vpop.f32.mrb[0].mxu0
        %v1981 = vadd.f32 %v1692, %v1980
        %v1982 = vpop.f32.mrb[0].mxu0
        %1983 = vmatprep.mubr.bf16.mxu0 %v1213
        %1984 = vmatmul.mubr.bf16.gmra.mrb[0].mxu0 %v1212
        %v1985 = vpop.f32.mrb[0].mxu0
        %v1986 = vadd.f32 %v1697, %v1985
        %v1987 = vpop.f32.mrb[0].mxu0
        %v1988 = vpop.f32.mrb[0].mxu0
        %v1989 = vadd.f32 %v1700, %v1988
        %v1990 = vpop.f32.mrb[0].mxu0
        %1991 = vmatprep.mubr.bf16.mxu0 %v1217
        %1992 = vmatmul.mubr.bf16.gmra.mrb[0].mxu0 %v1216
        %v1993 = vpop.f32.mrb[0].mxu0
        %v1994 = vadd.f32 %v1705, %v1993
        %v1995 = vpop.f32.mrb[0].mxu0
        %v1996 = vpop.f32.mrb[0].mxu0
        %v1997 = vadd.f32 %v1708, %v1996
        %v1998 = vpop.f32.mrb[0].mxu0
        %1999 = vmatprep.mubr.bf16.mxu0 %v1221
        %2000 = vmatmul.mubr.bf16.gmra.mrb[0].mxu0 %v1220
        %v2001 = vpop.f32.mrb[0].mxu0
        %v2002 = vadd.f32 %v1713, %v2001
        %v2003 = vpop.f32.mrb[0].mxu0
        %v2004 = vpop.f32.mrb[0].mxu0
        %v2005 = vadd.f32 %v1716, %v2004
        %v2006 = vpop.f32.mrb[0].mxu0
        %2007 = vmatprep.mubr.bf16.mxu0 %v1225
        %2008 = vmatmul.mubr.bf16.gmra.mrb[0].mxu0 %v1224
        %v2009 = vpop.f32.mrb[0].mxu0
        %v2010 = vadd.f32 %v1721, %v2009
        %v2011 = vpop.f32.mrb[0].mxu0
        %v2012 = vpop.f32.mrb[0].mxu0
        %v2013 = vadd.f32 %v1724, %v2012
        %v2014 = vpop.f32.mrb[0].mxu0
        %2015 = vmatprep.mubr.bf16.mxu0 %v1229
        %2016 = vmatmul.mubr.bf16.gmra.mrb[0].mxu0 %v1228
        %v2017 = vpop.f32.mrb[0].mxu0
        %v2018 = vadd.f32 %v1729, %v2017
        %v2019 = vpop.f32.mrb[0].mxu0
        %v2020 = vpop.f32.mrb[0].mxu0
        %v2021 = vadd.f32 %v1732, %v2020
        %v2022 = vpop.f32.mrb[0].mxu0
        %2023 = vmatprep.mubr.bf16.mxu0 %v1233
        %2024 = vmatmul.mubr.bf16.gmra.mrb[0].mxu0 %v1232
        %v2025 = vpop.f32.mrb[0].mxu0
        %v2026 = vadd.f32 %v1737, %v2025
        %v2027 = vpop.f32.mrb[0].mxu0
        %v2028 = vpop.f32.mrb[0].mxu0
        %v2029 = vadd.f32 %v1740, %v2028
        %v2030 = vpop.f32.mrb[0].mxu0
        %2031 = vmatprep.mubr.bf16.mxu0 %v1237
        %2032 = vmatmul.mubr.bf16.gmra.mrb[0].mxu0 %v1236
        %v2033 = vpop.f32.mrb[0].mxu0
        %v2034 = vadd.f32 %v1745, %v2033
        %v2035 = vpop.f32.mrb[0].mxu0
        %v2036 = vpop.f32.mrb[0].mxu0
        %v2037 = vadd.f32 %v1748, %v2036
        %v2038 = vpop.f32.mrb[0].mxu0
        %2039 = vmatprep.mubr.bf16.mxu0 %v1241
        %2040 = vmatmul.mubr.bf16.gmra.mrb[0].mxu0 %v1240
        %v2041 = vpop.f32.mrb[0].mxu0
        %v2042 = vadd.f32 %v1753, %v2041
        %v2043 = vpop.f32.mrb[0].mxu0
        %v2044 = vpop.f32.mrb[0].mxu0
        %v2045 = vadd.f32 %v1756, %v2044
        %v2046 = vpop.f32.mrb[0].mxu0
        %2047 = vmatprep.mubr.bf16.mxu0 %v1245
        %2048 = vmatmul.mubr.bf16.gmra.mrb[0].mxu0 %v1244
        %v2049 = vpop.f32.mrb[0].mxu0
        %v2050 = vadd.f32 %v1761, %v2049
        %v2051 = vpop.f32.mrb[0].mxu0
        %v2052 = vpop.f32.mrb[0].mxu0
        %v2053 = vadd.f32 %v1764, %v2052
        %v2054 = vpop.f32.mrb[0].mxu0
        %2055 = vmatprep.mubr.bf16.mxu0 %v1249
        %2056 = vmatmul.mubr.bf16.gmra.mrb[0].mxu0 %v1248
        %v2057 = vpop.f32.mrb[0].mxu0
        %v2058 = vadd.f32 %v1769, %v2057
        %v2059 = vpop.f32.mrb[0].mxu0
        %v2060 = vpop.f32.mrb[0].mxu0
        %v2061 = vadd.f32 %v1772, %v2060
        %v2062 = vpop.f32.mrb[0].mxu0
        %2063 = vmatprep.mubr.bf16.mxu0 %v1253
        %2064 = vmatmul.mubr.bf16.gmra.mrb[0].mxu0 %v1252
        %v2065 = vpop.f32.mrb[0].mxu0
        %v2066 = vadd.f32 %v1777, %v2065
        %v2067 = vpop.f32.mrb[0].mxu0
        %v2068 = vpop.f32.mrb[0].mxu0
        %v2069 = vadd.f32 %v1780, %v2068
        %v2070 = vpop.f32.mrb[0].mxu0
        %2071 = vmatprep.mubr.bf16.mxu0 %v1257
        %2072 = vmatmul.mubr.bf16.gmra.mrb[0].mxu0 %v1256
        %v2073 = vpop.f32.mrb[0].mxu0
        %v2074 = vadd.f32 %v1785, %v2073
        %v2075 = vpop.f32.mrb[0].mxu0
        %v2076 = vpop.f32.mrb[0].mxu0
        %v2077 = vadd.f32 %v1788, %v2076
        %v2078 = vpop.f32.mrb[0].mxu0
        %2079 = vmatprep.mubr.bf16.mxu0 %v1261
        %2080 = vmatmul.mubr.bf16.gmra.mrb[0].mxu0 %v1260
        %v2081 = vpop.f32.mrb[0].mxu0
        %v2082 = vadd.f32 %v1793, %v2081
        %v2083 = vpop.f32.mrb[0].mxu0
        %v2084 = vpop.f32.mrb[0].mxu0
        %v2085 = vadd.f32 %v1796, %v2084
        %v2086 = vpop.f32.mrb[0].mxu0
        %2087 = vmatprep.mubr.bf16.mxu0 %v1265
        %2088 = vmatmul.mubr.bf16.gmra.mrb[0].mxu0 %v1264
        %v2089 = vpop.f32.mrb[0].mxu0
        %v2090 = vadd.f32 %v1801, %v2089
        %v2091 = vpop.f32.mrb[0].mxu0
        %v2092 = vpop.f32.mrb[0].mxu0
        %v2093 = vadd.f32 %v1804, %v2092
        %v2094 = vpop.f32.mrb[0].mxu0
        %2095 = vmatprep.mubr.bf16.mxu0 %v1269
        %2096 = vmatmul.mubr.bf16.gmra.mrb[0].mxu0 %v1268
        %v2097 = vpop.f32.mrb[0].mxu0
        %v2098 = vadd.f32 %v1809, %v2097
        %v2099 = vpop.f32.mrb[0].mxu0
        %v2100 = vpop.f32.mrb[0].mxu0
        %v2101 = vadd.f32 %v1812, %v2100
        %v2102 = vpop.f32.mrb[0].mxu0
        %2103 = vmatprep.mubr.bf16.mxu0 %v1273
        %2104 = vmatmul.mubr.bf16.gmra.mrb[0].mxu0 %v1272
        %v2105 = vpop.f32.mrb[0].mxu0
        %v2106 = vadd.f32 %v1817, %v2105
        %v2107 = vpop.f32.mrb[0].mxu0
        %v2108 = vpop.f32.mrb[0].mxu0
        %v2109 = vadd.f32 %v1820, %v2108
        %v2110 = vpop.f32.mrb[0].mxu0
        %2111 = vmatprep.mubr.bf16.mxu0 %v1277
        %2112 = vmatmul.mubr.bf16.gmra.mrb[0].mxu0 %v1276
        %v2113 = vpop.f32.mrb[0].mxu0
        %v2114 = vadd.f32 %v1825, %v2113
        %v2115 = vpop.f32.mrb[0].mxu0
        %v2116 = vpop.f32.mrb[0].mxu0
        %v2117 = vadd.f32 %v1828, %v2116
        %v2118 = vpop.f32.mrb[0].mxu0
        %2119 = vmatprep.mubr.bf16.mxu0 %v1281
        %2120 = vmatmul.mubr.bf16.gmra.mrb[0].mxu0 %v1280
        %v2121 = vpop.f32.mrb[0].mxu0
        %v2122 = vadd.f32 %v1833, %v2121
        %v2123 = vpop.f32.mrb[0].mxu0
        %v2124 = vpop.f32.mrb[0].mxu0
        %v2125 = vadd.f32 %v1836, %v2124
        %v2126 = vpop.f32.mrb[0].mxu0
        %2127 = vmatprep.mubr.bf16.mxu0 %v1285
        %2128 = vmatmul.mubr.bf16.gmra.mrb[0].mxu0 %v1284
        %v2129 = vpop.f32.mrb[0].mxu0
        %v2130 = vadd.f32 %v1841, %v2129
        %v2131 = vpop.f32.mrb[0].mxu0
        %v2132 = vpop.f32.mrb[0].mxu0
        %v2133 = vadd.f32 %v1844, %v2132
        %v2134 = vpop.f32.mrb[0].mxu0
        %2135 = vmatprep.mubr.bf16.mxu0 %v1289
        %2136 = vmatmul.mubr.bf16.gmra.mrb[0].mxu0 %v1288
        %v2137 = vpop.f32.mrb[0].mxu0
        %v2138 = vadd.f32 %v1849, %v2137
        %v2139 = vpop.f32.mrb[0].mxu0
        %v2140 = vpop.f32.mrb[0].mxu0
        %v2141 = vadd.f32 %v1852, %v2140
        %v2142 = vpop.f32.mrb[0].mxu0
        %2143 = vmatprep.mubr.bf16.mxu0 %v1293
        %2144 = vmatmul.mubr.bf16.gmra.mrb[0].mxu0 %v1292
        %v2145 = vpop.f32.mrb[0].mxu0
        %v2146 = vadd.f32 %v1857, %v2145
        %v2147 = vpop.f32.mrb[0].mxu0
        %v2148 = vpop.f32.mrb[0].mxu0
        %v2149 = vadd.f32 %v1860, %v2148
        %v2150 = vpop.f32.mrb[0].mxu0
        %2151 = vmatprep.mubr.bf16.mxu0 %v1297
        %2152 = vmatmul.mubr.bf16.gmra.mrb[0].mxu0 %v1296
        %v2153 = vpop.f32.mrb[0].mxu0
        %v2154 = vadd.f32 %v1865, %v2153
        %v2155 = vpop.f32.mrb[0].mxu0
        %v2156 = vpop.f32.mrb[0].mxu0
        %v2157 = vadd.f32 %v1868, %v2156
        %v2158 = vpop.f32.mrb[0].mxu0
        %2159 = vmatprep.mubr.bf16.mxu0 %v1301
        %2160 = vmatmul.mubr.bf16.gmra.mrb[0].mxu0 %v1300
        %v2161 = vpop.f32.mrb[0].mxu0
        %v2162 = vadd.f32 %v1873, %v2161
        %v2163 = vpop.f32.mrb[0].mxu0
        %v2164 = vpop.f32.mrb[0].mxu0
        %v2165 = vadd.f32 %v1876, %v2164
        %v2166 = vpop.f32.mrb[0].mxu0
        %2167 = vmatprep.mubr.bf16.mxu0 %v1305
        %2168 = vmatmul.mubr.bf16.gmra.mrb[0].mxu0 %v1304
        %v2169 = vpop.f32.mrb[0].mxu0
        %v2170 = vadd.f32 %v1881, %v2169
        %v2171 = vpop.f32.mrb[0].mxu0
        %v2172 = vpop.f32.mrb[0].mxu0
        %v2173 = vadd.f32 %v1884, %v2172
        %v2174 = vpop.f32.mrb[0].mxu0
        %2175 = vmatprep.mubr.bf16.mxu0 %v1309
        %2176 = vmatmul.mubr.bf16.gmra.mrb[0].mxu0 %v1308
        %v2177 = vpop.f32.mrb[0].mxu0
        %v2178 = vadd.f32 %v1889, %v2177
        %v2179 = vpop.f32.mrb[0].mxu0
        %v2180 = vpop.f32.mrb[0].mxu0
        %v2181 = vadd.f32 %v1892, %v2180
        %v2182 = vpop.f32.mrb[0].mxu0
        %2183 = vmatprep.mubr.bf16.mxu0 %v1313
        %2184 = vmatmul.mubr.bf16.gmra.mrb[0].mxu0 %v1312
        %v2185 = vpop.f32.mrb[0].mxu0
        %v2186 = vadd.f32 %v1897, %v2185
        %v2187 = vpop.f32.mrb[0].mxu0
        %v2188 = vpop.f32.mrb[0].mxu0
        %v2189 = vadd.f32 %v1900, %v2188
        %v2190 = vpop.f32.mrb[0].mxu0
        %2191 = vmatprep.mubr.bf16.mxu0 %v1317
        %2192 = vmatmul.mubr.bf16.gmra.mrb[0].mxu0 %v1316
        %v2193 = vpop.f32.mrb[0].mxu0
        %v2194 = vadd.f32 %v1905, %v2193
        %v2195 = vpop.f32.mrb[0].mxu0
        %v2196 = vpop.f32.mrb[0].mxu0
        %v2197 = vadd.f32 %v1908, %v2196
        %v2198 = vpop.f32.mrb[0].mxu0
        %2199 = vmatprep.mubr.bf16.mxu0 %v1321
        %2200 = vmatmul.mubr.bf16.gmra.mrb[0].mxu0 %v1320
        %v2201 = vpop.f32.mrb[0].mxu0
        %v2202 = vadd.f32 %v1913, %v2201
        %v2203 = vpop.f32.mrb[0].mxu0
        %v2204 = vpop.f32.mrb[0].mxu0
        %v2205 = vadd.f32 %v1916, %v2204
        %v2206 = vpop.f32.mrb[0].mxu0
        %2207 = vmatprep.mubr.bf16.mxu0 %v1325
        %2208 = vmatmul.mubr.bf16.gmra.mrb[0].mxu0 %v1324
        %v2209 = vpop.f32.mrb[0].mxu0
        %v2210 = vadd.f32 %v1921, %v2209
        %v2211 = vpop.f32.mrb[0].mxu0
        %v2212 = vpop.f32.mrb[0].mxu0
        %v2213 = vadd.f32 %v1924, %v2212
        %v2214 = vpop.f32.mrb[0].mxu0
        %2215 = vmatprep.mubr.bf16.mxu0 %v1329
        %2216 = vmatmul.mubr.bf16.gmra.mrb[0].mxu0 %v1328
        %v2217 = vpop.f32.mrb[0].mxu0
        %v2218 = vadd.f32 %v1929, %v2217
        %v2219 = vpop.f32.mrb[0].mxu0
        %v2220 = vpop.f32.mrb[0].mxu0
        %v2221 = vadd.f32 %v1932, %v2220
        %v2222 = vpop.f32.mrb[0].mxu0
        %2223 = vmatprep.mubr.bf16.mxu0 %v1333
        %2224 = vmatmul.mubr.bf16.gmra.mrb[0].mxu0 %v1332
        %v2225 = vpop.f32.mrb[0].mxu0
        %v2226 = vadd.f32 %v1937, %v2225
        %v2227 = vpop.f32.mrb[0].mxu0
        %v2228 = vpop.f32.mrb[0].mxu0
        %v2229 = vadd.f32 %v1940, %v2228
        %v2230 = vpop.f32.mrb[0].mxu0
        %2231 = vdwg.mxu0
        %v2232 = vadd.f32 %v630, %v1978
        %v2233 = vadd.f32 %v631, %v1981
        %v2234 = vadd.f32 %v632, %v1986
        %v2235 = vadd.f32 %v633, %v1989
        %v2236 = vadd.f32 %v634, %v1994
        %v2237 = vadd.f32 %v635, %v1997
        %v2238 = vadd.f32 %v636, %v2002
        %v2239 = vadd.f32 %v637, %v2005
        %v2240 = vadd.f32 %v638, %v2010
        %v2241 = vadd.f32 %v639, %v2013
        %v2242 = vadd.f32 %v640, %v2018
        %v2243 = vadd.f32 %v641, %v2021
        %v2244 = vadd.f32 %v642, %v2026
        %v2245 = vadd.f32 %v643, %v2029
        %v2246 = vadd.f32 %v644, %v2034
        %v2247 = vadd.f32 %v645, %v2037
        %v2248 = vadd.f32 %v646, %v2042
        %v2249 = vadd.f32 %v647, %v2045
        %v2250 = vadd.f32 %v648, %v2050
        %v2251 = vadd.f32 %v649, %v2053
        %v2252 = vadd.f32 %v650, %v2058
        %v2253 = vadd.f32 %v651, %v2061
        %v2254 = vadd.f32 %v652, %v2066
        %v2255 = vadd.f32 %v653, %v2069
        %v2256 = vadd.f32 %v654, %v2074
        %v2257 = vadd.f32 %v655, %v2077
        %v2258 = vadd.f32 %v656, %v2082
        %v2259 = vadd.f32 %v657, %v2085
        %v2260 = vadd.f32 %v658, %v2090
        %v2261 = vadd.f32 %v659, %v2093
        %v2262 = vadd.f32 %v660, %v2098
        %v2263 = vadd.f32 %v661, %v2101
        %v2264 = vadd.f32 %v662, %v2106
        %v2265 = vadd.f32 %v663, %v2109
        %v2266 = vadd.f32 %v664, %v2114
        %v2267 = vadd.f32 %v665, %v2117
        %v2268 = vadd.f32 %v666, %v2122
        %v2269 = vadd.f32 %v667, %v2125
        %v2270 = vadd.f32 %v668, %v2130
        %v2271 = vadd.f32 %v669, %v2133
        %v2272 = vadd.f32 %v670, %v2138
        %v2273 = vadd.f32 %v671, %v2141
        %v2274 = vadd.f32 %v672, %v2146
        %v2275 = vadd.f32 %v673, %v2149
        %v2276 = vadd.f32 %v674, %v2154
        %v2277 = vadd.f32 %v675, %v2157
        %v2278 = vadd.f32 %v676, %v2162
        %v2279 = vadd.f32 %v677, %v2165
        %v2280 = vadd.f32 %v678, %v2170
        %v2281 = vadd.f32 %v679, %v2173
        %v2282 = vadd.f32 %v680, %v2178
        %v2283 = vadd.f32 %v681, %v2181
        %v2284 = vadd.f32 %v682, %v2186
        %v2285 = vadd.f32 %v683, %v2189
        %v2286 = vadd.f32 %v684, %v2194
        %v2287 = vadd.f32 %v685, %v2197
        %v2288 = vadd.f32 %v686, %v2202
        %v2289 = vadd.f32 %v687, %v2205
        %v2290 = vadd.f32 %v688, %v2210
        %v2291 = vadd.f32 %v689, %v2213
        %v2292 = vadd.f32 %v690, %v2218
        %v2293 = vadd.f32 %v691, %v2221
        %v2294 = vadd.f32 %v692, %v2226
        %v2295 = vadd.f32 %v693, %v2229
        %2296 = vst [vmem:[#allocation2] sm:$0xff] %v2232
        %2297 = vst [vmem:[#allocation2 + $0x8] sm:$0xff] %v2233
        %2298 = vst [vmem:[#allocation2 + $0x10] sm:$0xff] %v2234
        %2299 = vst [vmem:[#allocation2 + $0x18] sm:$0xff] %v2235
        %2300 = vst [vmem:[#allocation2 + $0x20] sm:$0xff] %v2236
        %2301 = vst [vmem:[#allocation2 + $0x28] sm:$0xff] %v2237
        %2302 = vst [vmem:[#allocation2 + $0x30] sm:$0xff] %v2238
        %2303 = vst [vmem:[#allocation2 + $0x38] sm:$0xff] %v2239
        %2304 = vst [vmem:[#allocation2 + $0x40] sm:$0xff] %v2240
        %2305 = vst [vmem:[#allocation2 + $0x48] sm:$0xff] %v2241
        %2306 = vst [vmem:[#allocation2 + $0x50] sm:$0xff] %v2242
        %2307 = vst [vmem:[#allocation2 + $0x58] sm:$0xff] %v2243
        %2308 = vst [vmem:[#allocation2 + $0x60] sm:$0xff] %v2244
        %2309 = vst [vmem:[#allocation2 + $0x68] sm:$0xff] %v2245
        %2310 = vst [vmem:[#allocation2 + $0x70] sm:$0xff] %v2246
        %2311 = vst [vmem:[#allocation2 + $0x78] sm:$0xff] %v2247
        %2312 = vst [vmem:[#allocation2 + $0x80] sm:$0xff] %v2248
        %2313 = vst [vmem:[#allocation2 + $0x88] sm:$0xff] %v2249
        %2314 = vst [vmem:[#allocation2 + $0x90] sm:$0xff] %v2250
        %2315 = vst [vmem:[#allocation2 + $0x98] sm:$0xff] %v2251
        %2316 = vst [vmem:[#allocation2 + $0xa0] sm:$0xff] %v2252
        %2317 = vst [vmem:[#allocation2 + $0xa8] sm:$0xff] %v2253
        %2318 = vst [vmem:[#allocation2 + $0xb0] sm:$0xff] %v2254
        %2319 = vst [vmem:[#allocation2 + $0xb8] sm:$0xff] %v2255
        %2320 = vst [vmem:[#allocation2 + $0xc0] sm:$0xff] %v2256
        %2321 = vst [vmem:[#allocation2 + $0xc8] sm:$0xff] %v2257
        %2322 = vst [vmem:[#allocation2 + $0xd0] sm:$0xff] %v2258
        %2323 = vst [vmem:[#allocation2 + $0xd8] sm:$0xff] %v2259
        %2324 = vst [vmem:[#allocation2 + $0xe0] sm:$0xff] %v2260
        %2325 = vst [vmem:[#allocation2 + $0xe8] sm:$0xff] %v2261
        %2326 = vst [vmem:[#allocation2 + $0xf0] sm:$0xff] %v2262
        %2327 = vst [vmem:[#allocation2 + $0xf8] sm:$0xff] %v2263
        %2328 = vst [vmem:[#allocation2 + $0x100] sm:$0xff] %v2264
        %2329 = vst [vmem:[#allocation2 + $0x108] sm:$0xff] %v2265
        %2330 = vst [vmem:[#allocation2 + $0x110] sm:$0xff] %v2266
        %2331 = vst [vmem:[#allocation2 + $0x118] sm:$0xff] %v2267
        %2332 = vst [vmem:[#allocation2 + $0x120] sm:$0xff] %v2268
        %2333 = vst [vmem:[#allocation2 + $0x128] sm:$0xff] %v2269
        %2334 = vst [vmem:[#allocation2 + $0x130] sm:$0xff] %v2270
        %2335 = vst [vmem:[#allocation2 + $0x138] sm:$0xff] %v2271
        %2336 = vst [vmem:[#allocation2 + $0x140] sm:$0xff] %v2272
        %2337 = vst [vmem:[#allocation2 + $0x148] sm:$0xff] %v2273
        %2338 = vst [vmem:[#allocation2 + $0x150] sm:$0xff] %v2274
        %2339 = vst [vmem:[#allocation2 + $0x158] sm:$0xff] %v2275
        %2340 = vst [vmem:[#allocation2 + $0x160] sm:$0xff] %v2276
        %2341 = vst [vmem:[#allocation2 + $0x168] sm:$0xff] %v2277
        %2342 = vst [vmem:[#allocation2 + $0x170] sm:$0xff] %v2278
        %2343 = vst [vmem:[#allocation2 + $0x178] sm:$0xff] %v2279
        %2344 = vst [vmem:[#allocation2 + $0x180] sm:$0xff] %v2280
        %2345 = vst [vmem:[#allocation2 + $0x188] sm:$0xff] %v2281
        %2346 = vst [vmem:[#allocation2 + $0x190] sm:$0xff] %v2282
        %2347 = vst [vmem:[#allocation2 + $0x198] sm:$0xff] %v2283
        %2348 = vst [vmem:[#allocation2 + $0x1a0] sm:$0xff] %v2284
        %2349 = vst [vmem:[#allocation2 + $0x1a8] sm:$0xff] %v2285
        %2350 = vst [vmem:[#allocation2 + $0x1b0] sm:$0xff] %v2286
        %2351 = vst [vmem:[#allocation2 + $0x1b8] sm:$0xff] %v2287
        %2352 = vst [vmem:[#allocation2 + $0x1c0] sm:$0xff] %v2288
        %2353 = vst [vmem:[#allocation2 + $0x1c8] sm:$0xff] %v2289
        %2354 = vst [vmem:[#allocation2 + $0x1d0] sm:$0xff] %v2290
        %2355 = vst [vmem:[#allocation2 + $0x1d8] sm:$0xff] %v2291
        %2356 = vst [vmem:[#allocation2 + $0x1e0] sm:$0xff] %v2292
        %2357 = vst [vmem:[#allocation2 + $0x1e8] sm:$0xff] %v2293
        %2358 = vst [vmem:[#allocation2 + $0x1f0] sm:$0xff] %v2294
        %2359 = vst [vmem:[#allocation2 + $0x1f8] sm:$0xff] %v2295
        %p2360 = scmp.eq.s32.totalorder %s20, 2
        // Predicated region
        $region64: #{graphsage_pallas.2} parent=54 // pred_check
          %p2361 = pneg %p2360
        $region65: #{graphsage_pallas.2} parent=54 // pred_check_branch
          %2363 = sbr.rel (%p2361) target = $region67
        $region66: #{graphsage_pallas.2} parent=54 // pred_region
          %s2364 = smul.u32 %s19, 512
          %s2365 = sshra.s32 %s2364, 3
          %s2366 = sand.u32 %s2364, 7
          %s2367 = smul.addr %s2365, 4
          %s2368 = scalar_lea.vmem %s1, %s2367
          %v2369 = vld [vmem:[%s2368] sm:$0xf]
          %v2370 = vld [vmem:[%s2368 + $0x4] sm:$0xf]
          %v2371 = vld [vmem:[%s2368 + $0x8] sm:$0xf]
          %v2372 = vld [vmem:[%s2368 + $0xc] sm:$0xf]
          %v2373 = vld [vmem:[%s2368 + $0x10] sm:$0xf]
          %v2374 = vld [vmem:[%s2368 + $0x14] sm:$0xf]
          %v2375 = vld [vmem:[%s2368 + $0x18] sm:$0xf]
          %v2376 = vld [vmem:[%s2368 + $0x1c] sm:$0xf]
          %v2377 = vld [vmem:[%s2368 + $0x20] sm:$0xf]
          %v2378 = vld [vmem:[%s2368 + $0x24] sm:$0xf]
          %v2379 = vld [vmem:[%s2368 + $0x28] sm:$0xf]
          %v2380 = vld [vmem:[%s2368 + $0x2c] sm:$0xf]
          %v2381 = vld [vmem:[%s2368 + $0x30] sm:$0xf]
          %v2382 = vld [vmem:[%s2368 + $0x34] sm:$0xf]
          %v2383 = vld [vmem:[%s2368 + $0x38] sm:$0xf]
          %v2384 = vld [vmem:[%s2368 + $0x3c] sm:$0xf]
          %v2385 = vld [vmem:[%s2368 + $0x40] sm:$0xf]
          %v2386 = vld [vmem:[%s2368 + $0x44] sm:$0xf]
          %v2387 = vld [vmem:[%s2368 + $0x48] sm:$0xf]
          %v2388 = vld [vmem:[%s2368 + $0x4c] sm:$0xf]
          %v2389 = vld [vmem:[%s2368 + $0x50] sm:$0xf]
          %v2390 = vld [vmem:[%s2368 + $0x54] sm:$0xf]
          %v2391 = vld [vmem:[%s2368 + $0x58] sm:$0xf]
          %v2392 = vld [vmem:[%s2368 + $0x5c] sm:$0xf]
          %v2393 = vld [vmem:[%s2368 + $0x60] sm:$0xf]
          %v2394 = vld [vmem:[%s2368 + $0x64] sm:$0xf]
          %v2395 = vld [vmem:[%s2368 + $0x68] sm:$0xf]
          %v2396 = vld [vmem:[%s2368 + $0x6c] sm:$0xf]
          %v2397 = vld [vmem:[%s2368 + $0x70] sm:$0xf]
          %v2398 = vld [vmem:[%s2368 + $0x74] sm:$0xf]
          %v2399 = vld [vmem:[%s2368 + $0x78] sm:$0xf]
          %v2400 = vld [vmem:[%s2368 + $0x7c] sm:$0xf]
          %v2401 = vld [vmem:[%s2368 + $0x80] sm:$0xf]
          %v2402 = vld [vmem:[%s2368 + $0x84] sm:$0xf]
          %v2403 = vld [vmem:[%s2368 + $0x88] sm:$0xf]
          %v2404 = vld [vmem:[%s2368 + $0x8c] sm:$0xf]
          %v2405 = vld [vmem:[%s2368 + $0x90] sm:$0xf]
          %v2406 = vld [vmem:[%s2368 + $0x94] sm:$0xf]
          %v2407 = vld [vmem:[%s2368 + $0x98] sm:$0xf]
          %v2408 = vld [vmem:[%s2368 + $0x9c] sm:$0xf]
          %v2409 = vld [vmem:[%s2368 + $0xa0] sm:$0xf]
          %v2410 = vld [vmem:[%s2368 + $0xa4] sm:$0xf]
          %v2411 = vld [vmem:[%s2368 + $0xa8] sm:$0xf]
          %v2412 = vld [vmem:[%s2368 + $0xac] sm:$0xf]
          %v2413 = vld [vmem:[%s2368 + $0xb0] sm:$0xf]
          %v2414 = vld [vmem:[%s2368 + $0xb4] sm:$0xf]
          %v2415 = vld [vmem:[%s2368 + $0xb8] sm:$0xf]
          %v2416 = vld [vmem:[%s2368 + $0xbc] sm:$0xf]
          %v2417 = vld [vmem:[%s2368 + $0xc0] sm:$0xf]
          %v2418 = vld [vmem:[%s2368 + $0xc4] sm:$0xf]
          %v2419 = vld [vmem:[%s2368 + $0xc8] sm:$0xf]
          %v2420 = vld [vmem:[%s2368 + $0xcc] sm:$0xf]
          %v2421 = vld [vmem:[%s2368 + $0xd0] sm:$0xf]
          %v2422 = vld [vmem:[%s2368 + $0xd4] sm:$0xf]
          %v2423 = vld [vmem:[%s2368 + $0xd8] sm:$0xf]
          %v2424 = vld [vmem:[%s2368 + $0xdc] sm:$0xf]
          %v2425 = vld [vmem:[%s2368 + $0xe0] sm:$0xf]
          %v2426 = vld [vmem:[%s2368 + $0xe4] sm:$0xf]
          %v2427 = vld [vmem:[%s2368 + $0xe8] sm:$0xf]
          %v2428 = vld [vmem:[%s2368 + $0xec] sm:$0xf]
          %v2429 = vld [vmem:[%s2368 + $0xf0] sm:$0xf]
          %v2430 = vld [vmem:[%s2368 + $0xf4] sm:$0xf]
          %v2431 = vld [vmem:[%s2368 + $0xf8] sm:$0xf]
          %v2432 = vld [vmem:[%s2368 + $0xfc] sm:$0xf]
          %v2433 = vld [vmem:[#allocation2] sm:$0xff]
          %v2434 = vld [vmem:[#allocation2 + $0x8] sm:$0xff]
          %v2435 = vld [vmem:[#allocation2 + $0x10] sm:$0xff]
          %v2436 = vld [vmem:[#allocation2 + $0x18] sm:$0xff]
          %v2437 = vld [vmem:[#allocation2 + $0x20] sm:$0xff]
          %v2438 = vld [vmem:[#allocation2 + $0x28] sm:$0xff]
          %v2439 = vld [vmem:[#allocation2 + $0x30] sm:$0xff]
          %v2440 = vld [vmem:[#allocation2 + $0x38] sm:$0xff]
          %v2441 = vld [vmem:[#allocation2 + $0x40] sm:$0xff]
          %v2442 = vld [vmem:[#allocation2 + $0x48] sm:$0xff]
          %v2443 = vld [vmem:[#allocation2 + $0x50] sm:$0xff]
          %v2444 = vld [vmem:[#allocation2 + $0x58] sm:$0xff]
          %v2445 = vld [vmem:[#allocation2 + $0x60] sm:$0xff]
          %v2446 = vld [vmem:[#allocation2 + $0x68] sm:$0xff]
          %v2447 = vld [vmem:[#allocation2 + $0x70] sm:$0xff]
          %v2448 = vld [vmem:[#allocation2 + $0x78] sm:$0xff]
          %v2449 = vld [vmem:[#allocation2 + $0x80] sm:$0xff]
          %v2450 = vld [vmem:[#allocation2 + $0x88] sm:$0xff]
          %v2451 = vld [vmem:[#allocation2 + $0x90] sm:$0xff]
          %v2452 = vld [vmem:[#allocation2 + $0x98] sm:$0xff]
          %v2453 = vld [vmem:[#allocation2 + $0xa0] sm:$0xff]
          %v2454 = vld [vmem:[#allocation2 + $0xa8] sm:$0xff]
          %v2455 = vld [vmem:[#allocation2 + $0xb0] sm:$0xff]
          %v2456 = vld [vmem:[#allocation2 + $0xb8] sm:$0xff]
          %v2457 = vld [vmem:[#allocation2 + $0xc0] sm:$0xff]
          %v2458 = vld [vmem:[#allocation2 + $0xc8] sm:$0xff]
          %v2459 = vld [vmem:[#allocation2 + $0xd0] sm:$0xff]
          %v2460 = vld [vmem:[#allocation2 + $0xd8] sm:$0xff]
          %v2461 = vld [vmem:[#allocation2 + $0xe0] sm:$0xff]
          %v2462 = vld [vmem:[#allocation2 + $0xe8] sm:$0xff]
          %v2463 = vld [vmem:[#allocation2 + $0xf0] sm:$0xff]
          %v2464 = vld [vmem:[#allocation2 + $0xf8] sm:$0xff]
          %v2465 = vld [vmem:[#allocation2 + $0x100] sm:$0xff]
          %v2466 = vld [vmem:[#allocation2 + $0x108] sm:$0xff]
          %v2467 = vld [vmem:[#allocation2 + $0x110] sm:$0xff]
          %v2468 = vld [vmem:[#allocation2 + $0x118] sm:$0xff]
          %v2469 = vld [vmem:[#allocation2 + $0x120] sm:$0xff]
          %v2470 = vld [vmem:[#allocation2 + $0x128] sm:$0xff]
          %v2471 = vld [vmem:[#allocation2 + $0x130] sm:$0xff]
          %v2472 = vld [vmem:[#allocation2 + $0x138] sm:$0xff]
          %v2473 = vld [vmem:[#allocation2 + $0x140] sm:$0xff]
          %v2474 = vld [vmem:[#allocation2 + $0x148] sm:$0xff]
          %v2475 = vld [vmem:[#allocation2 + $0x150] sm:$0xff]
          %v2476 = vld [vmem:[#allocation2 + $0x158] sm:$0xff]
          %v2477 = vld [vmem:[#allocation2 + $0x160] sm:$0xff]
          %v2478 = vld [vmem:[#allocation2 + $0x168] sm:$0xff]
          %v2479 = vld [vmem:[#allocation2 + $0x170] sm:$0xff]
          %v2480 = vld [vmem:[#allocation2 + $0x178] sm:$0xff]
          %v2481 = vld [vmem:[#allocation2 + $0x180] sm:$0xff]
          %v2482 = vld [vmem:[#allocation2 + $0x188] sm:$0xff]
          %v2483 = vld [vmem:[#allocation2 + $0x190] sm:$0xff]
          %v2484 = vld [vmem:[#allocation2 + $0x198] sm:$0xff]
          %v2485 = vld [vmem:[#allocation2 + $0x1a0] sm:$0xff]
          %v2486 = vld [vmem:[#allocation2 + $0x1a8] sm:$0xff]
          %v2487 = vld [vmem:[#allocation2 + $0x1b0] sm:$0xff]
          %v2488 = vld [vmem:[#allocation2 + $0x1b8] sm:$0xff]
          %v2489 = vld [vmem:[#allocation2 + $0x1c0] sm:$0xff]
          %v2490 = vld [vmem:[#allocation2 + $0x1c8] sm:$0xff]
          %v2491 = vld [vmem:[#allocation2 + $0x1d0] sm:$0xff]
          %v2492 = vld [vmem:[#allocation2 + $0x1d8] sm:$0xff]
          %v2493 = vld [vmem:[#allocation2 + $0x1e0] sm:$0xff]
          %v2494 = vld [vmem:[#allocation2 + $0x1e8] sm:$0xff]
          %v2495 = vld [vmem:[#allocation2 + $0x1f0] sm:$0xff]
          %v2496 = vld [vmem:[#allocation2 + $0x1f8] sm:$0xff]
          %v2497 = vld [vmem:[%s2] sm:$0xff]
          %v2498 = vld [vmem:[%s2 + $0x8] sm:$0xff]
          %v2499 = vld [vmem:[%s2 + $0x10] sm:$0xff]
          %v2500 = vld [vmem:[%s2 + $0x18] sm:$0xff]
          %v2501 = vld [vmem:[%s2 + $0x20] sm:$0xff]
          %v2502 = vld [vmem:[%s2 + $0x28] sm:$0xff]
          %v2503 = vld [vmem:[%s2 + $0x30] sm:$0xff]
          %v2504 = vld [vmem:[%s2 + $0x38] sm:$0xff]
          %v2505 = vld [vmem:[%s2 + $0x40] sm:$0xff]
          %v2506 = vld [vmem:[%s2 + $0x48] sm:$0xff]
          %v2507 = vld [vmem:[%s2 + $0x50] sm:$0xff]
          %v2508 = vld [vmem:[%s2 + $0x58] sm:$0xff]
          %v2509 = vld [vmem:[%s2 + $0x60] sm:$0xff]
          %v2510 = vld [vmem:[%s2 + $0x68] sm:$0xff]
          %v2511 = vld [vmem:[%s2 + $0x70] sm:$0xff]
          %v2512 = vld [vmem:[%s2 + $0x78] sm:$0xff]
          %v2513 = vld [vmem:[%s3] sm:$0xff]
          %v2514 = vld [vmem:[%s3 + $0x8] sm:$0xff]
          %v2515 = vld [vmem:[%s3 + $0x10] sm:$0xff]
          %v2516 = vld [vmem:[%s3 + $0x18] sm:$0xff]
          %v2517 = vld [vmem:[%s3 + $0x20] sm:$0xff]
          %v2518 = vld [vmem:[%s3 + $0x28] sm:$0xff]
          %v2519 = vld [vmem:[%s3 + $0x30] sm:$0xff]
          %v2520 = vld [vmem:[%s3 + $0x38] sm:$0xff]
          %v2521 = vld [vmem:[%s3 + $0x40] sm:$0xff]
          %v2522 = vld [vmem:[%s3 + $0x48] sm:$0xff]
          %v2523 = vld [vmem:[%s3 + $0x50] sm:$0xff]
          %v2524 = vld [vmem:[%s3 + $0x58] sm:$0xff]
          %v2525 = vld [vmem:[%s3 + $0x60] sm:$0xff]
          %v2526 = vld [vmem:[%s3 + $0x68] sm:$0xff]
          %v2527 = vld [vmem:[%s3 + $0x70] sm:$0xff]
          %v2528 = vld [vmem:[%s3 + $0x78] sm:$0xff]
          %v2593 = vunpack.c.l.b16 %v2369
          %v2594 = vunpack.c.l.b16 %v2370
          %v2595 = vunpack.c.l.b16 %v2371
          %v2596 = vunpack.c.l.b16 %v2372
          %v2597 = vunpack.c.l.b16 %v2373
          %v2598 = vunpack.c.l.b16 %v2374
          %v2599 = vunpack.c.l.b16 %v2375
          %v2600 = vunpack.c.l.b16 %v2376
          %v2601 = vunpack.c.l.b16 %v2377
          %v2602 = vunpack.c.l.b16 %v2378
          %v2603 = vunpack.c.l.b16 %v2379
          %v2604 = vunpack.c.l.b16 %v2380
          %v2605 = vunpack.c.l.b16 %v2381
          %v2606 = vunpack.c.l.b16 %v2382
          %v2607 = vunpack.c.l.b16 %v2383
          %v2608 = vunpack.c.l.b16 %v2384
          %v2609 = vunpack.c.l.b16 %v2385
          %v2610 = vunpack.c.l.b16 %v2386
          %v2611 = vunpack.c.l.b16 %v2387
          %v2612 = vunpack.c.l.b16 %v2388
          %v2613 = vunpack.c.l.b16 %v2389
          %v2614 = vunpack.c.l.b16 %v2390
          %v2615 = vunpack.c.l.b16 %v2391
          %v2616 = vunpack.c.l.b16 %v2392
          %v2617 = vunpack.c.l.b16 %v2393
          %v2618 = vunpack.c.l.b16 %v2394
          %v2619 = vunpack.c.l.b16 %v2395
          %v2620 = vunpack.c.l.b16 %v2396
          %v2621 = vunpack.c.l.b16 %v2397
          %v2622 = vunpack.c.l.b16 %v2398
          %v2623 = vunpack.c.l.b16 %v2399
          %v2624 = vunpack.c.l.b16 %v2400
          %v2625 = vunpack.c.l.b16 %v2401
          %v2626 = vunpack.c.l.b16 %v2402
          %v2627 = vunpack.c.l.b16 %v2403
          %v2628 = vunpack.c.l.b16 %v2404
          %v2629 = vunpack.c.l.b16 %v2405
          %v2630 = vunpack.c.l.b16 %v2406
          %v2631 = vunpack.c.l.b16 %v2407
          %v2632 = vunpack.c.l.b16 %v2408
          %v2633 = vunpack.c.l.b16 %v2409
          %v2634 = vunpack.c.l.b16 %v2410
          %v2635 = vunpack.c.l.b16 %v2411
          %v2636 = vunpack.c.l.b16 %v2412
          %v2637 = vunpack.c.l.b16 %v2413
          %v2638 = vunpack.c.l.b16 %v2414
          %v2639 = vunpack.c.l.b16 %v2415
          %v2640 = vunpack.c.l.b16 %v2416
          %v2641 = vunpack.c.l.b16 %v2417
          %v2642 = vunpack.c.l.b16 %v2418
          %v2643 = vunpack.c.l.b16 %v2419
          %v2644 = vunpack.c.l.b16 %v2420
          %v2645 = vunpack.c.l.b16 %v2421
          %v2646 = vunpack.c.l.b16 %v2422
          %v2647 = vunpack.c.l.b16 %v2423
          %v2648 = vunpack.c.l.b16 %v2424
          %v2649 = vunpack.c.l.b16 %v2425
          %v2650 = vunpack.c.l.b16 %v2426
          %v2651 = vunpack.c.l.b16 %v2427
          %v2652 = vunpack.c.l.b16 %v2428
          %v2653 = vunpack.c.l.b16 %v2429
          %v2654 = vunpack.c.l.b16 %v2430
          %v2655 = vunpack.c.l.b16 %v2431
          %v2656 = vunpack.c.l.b16 %v2432
          %v2657 = vpack.c.b16 %v2594, %v2593
          %v2658 = vpack.c.b16 %v2596, %v2595
          %v2659 = vpack.c.b16 %v2598, %v2597
          %v2660 = vpack.c.b16 %v2600, %v2599
          %v2661 = vpack.c.b16 %v2602, %v2601
          %v2662 = vpack.c.b16 %v2604, %v2603
          %v2663 = vpack.c.b16 %v2606, %v2605
          %v2664 = vpack.c.b16 %v2608, %v2607
          %v2665 = vpack.c.b16 %v2610, %v2609
          %v2666 = vpack.c.b16 %v2612, %v2611
          %v2667 = vpack.c.b16 %v2614, %v2613
          %v2668 = vpack.c.b16 %v2616, %v2615
          %v2669 = vpack.c.b16 %v2618, %v2617
          %v2670 = vpack.c.b16 %v2620, %v2619
          %v2671 = vpack.c.b16 %v2622, %v2621
          %v2672 = vpack.c.b16 %v2624, %v2623
          %v2673 = vpack.c.b16 %v2626, %v2625
          %v2674 = vpack.c.b16 %v2628, %v2627
          %v2675 = vpack.c.b16 %v2630, %v2629
          %v2676 = vpack.c.b16 %v2632, %v2631
          %v2677 = vpack.c.b16 %v2634, %v2633
          %v2678 = vpack.c.b16 %v2636, %v2635
          %v2679 = vpack.c.b16 %v2638, %v2637
          %v2680 = vpack.c.b16 %v2640, %v2639
          %v2681 = vpack.c.b16 %v2642, %v2641
          %v2682 = vpack.c.b16 %v2644, %v2643
          %v2683 = vpack.c.b16 %v2646, %v2645
          %v2684 = vpack.c.b16 %v2648, %v2647
          %v2685 = vpack.c.b16 %v2650, %v2649
          %v2686 = vpack.c.b16 %v2652, %v2651
          %v2687 = vpack.c.b16 %v2654, %v2653
          %v2688 = vpack.c.b16 %v2656, %v2655
          %2721 = vmatprep.subr.mxu0 0.0
          %2722 = vmatpush1.msra.mxu0 %v2513
          %2723 = vmatprep.subr.mxu0 0.0
          %2724 = vmatpush1.msra.mxu0 %v2514
          %2725 = vmatprep.subr.mxu0 0.0
          %2726 = vmatpush1.msra.mxu0 %v2515
          %2727 = vmatprep.subr.mxu0 0.0
          %2728 = vmatpush1.msra.mxu0 %v2516
          %2729 = vmatprep.subr.mxu0 0.0
          %2730 = vmatpush1.msra.mxu0 %v2517
          %2731 = vmatprep.subr.mxu0 0.0
          %2732 = vmatpush1.msra.mxu0 %v2518
          %2733 = vmatprep.subr.mxu0 0.0
          %2734 = vmatpush1.msra.mxu0 %v2519
          %2735 = vmatprep.subr.mxu0 0.0
          %2736 = vmatpush1.msra.mxu0 %v2520
          %2737 = vmatprep.subr.mxu0 0.0
          %2738 = vmatpush1.msra.mxu0 %v2521
          %2739 = vmatprep.subr.mxu0 0.0
          %2740 = vmatpush1.msra.mxu0 %v2522
          %2741 = vmatprep.subr.mxu0 0.0
          %2742 = vmatpush1.msra.mxu0 %v2523
          %2743 = vmatprep.subr.mxu0 0.0
          %2744 = vmatpush1.msra.mxu0 %v2524
          %2745 = vmatprep.subr.mxu0 0.0
          %2746 = vmatpush1.msra.mxu0 %v2525
          %2747 = vmatprep.subr.mxu0 0.0
          %2748 = vmatpush1.msra.mxu0 %v2526
          %2749 = vmatprep.subr.mxu0 0.0
          %2750 = vmatpush1.msra.mxu0 %v2527
          %2751 = vmatprep.subr.mxu0 0.0
          %2752 = vmatpush1.msra.mxu0 %v2528
          %2753 = vmatprep.subr.mxu0 0.0
          %2754 = vmatpush1.msra.mxu0 0.0
          %2755 = vmatprep.subr.mxu0 0.0
          %2756 = vmatpush1.msra.mxu0 0.0
          %2757 = vmatprep.subr.mxu0 0.0
          %2758 = vmatpush1.msra.mxu0 0.0
          %2759 = vmatprep.subr.mxu0 0.0
          %2760 = vmatpush1.msra.mxu0 0.0
          %2761 = vmatprep.subr.mxu0 0.0
          %2762 = vmatpush1.msra.mxu0 0.0
          %2763 = vmatprep.subr.mxu0 0.0
          %2764 = vmatpush1.msra.mxu0 0.0
          %2765 = vmatprep.subr.mxu0 0.0
          %2766 = vmatpush1.msra.mxu0 0.0
          %2767 = vmatprep.subr.mxu0 0.0
          %2768 = vmatpush1.msra.mxu0 0.0
          %2769 = vmatprep.subr.mxu0 0.0
          %2770 = vmatpush1.msra.mxu0 0.0
          %2771 = vmatprep.subr.mxu0 0.0
          %2772 = vmatpush1.msra.mxu0 0.0
          %2773 = vmatprep.subr.mxu0 0.0
          %2774 = vmatpush1.msra.mxu0 0.0
          %2775 = vmatprep.subr.mxu0 0.0
          %2776 = vmatpush1.msra.mxu0 0.0
          %2777 = vmatprep.subr.mxu0 0.0
          %2778 = vmatpush1.msra.mxu0 0.0
          %2779 = vmatprep.subr.mxu0 0.0
          %2780 = vmatpush1.msra.mxu0 0.0
          %2781 = vmatprep.subr.mxu0 0.0
          %2782 = vmatpush1.msra.mxu0 0.0
          %2783 = vmatprep.subr.mxu0 0.0
          %2784 = vmatpush1.msra.mxu0 0.0
          %2785 = vmatprep.mubr.bf16.mxu0 0
          %2786 = vmatmul.mubr.bf16.gmra.mrb[0].mxu0 %v2657
          %v2787 = vpop.f32.mrb[0].mxu0
          %v2788 = vadd.f32 0.0, %v2787
          %v2789 = vpop.f32.mrb[0].mxu0
          %v2790 = vpop.f32.mrb[0].mxu0
          %v2791 = vadd.f32 0.0, %v2790
          %v2792 = vpop.f32.mrb[0].mxu0
          %2793 = vmatprep.mubr.bf16.mxu0 0
          %2794 = vmatmul.mubr.bf16.gmra.mrb[0].mxu0 %v2658
          %v2795 = vpop.f32.mrb[0].mxu0
          %v2796 = vadd.f32 0.0, %v2795
          %v2797 = vpop.f32.mrb[0].mxu0
          %v2798 = vpop.f32.mrb[0].mxu0
          %v2799 = vadd.f32 0.0, %v2798
          %v2800 = vpop.f32.mrb[0].mxu0
          %2801 = vmatprep.mubr.bf16.mxu0 0
          %2802 = vmatmul.mubr.bf16.gmra.mrb[0].mxu0 %v2659
          %v2803 = vpop.f32.mrb[0].mxu0
          %v2804 = vadd.f32 0.0, %v2803
          %v2805 = vpop.f32.mrb[0].mxu0
          %v2806 = vpop.f32.mrb[0].mxu0
          %v2807 = vadd.f32 0.0, %v2806
          %v2808 = vpop.f32.mrb[0].mxu0
          %2809 = vmatprep.mubr.bf16.mxu0 0
          %2810 = vmatmul.mubr.bf16.gmra.mrb[0].mxu0 %v2660
          %v2811 = vpop.f32.mrb[0].mxu0
          %v2812 = vadd.f32 0.0, %v2811
          %v2813 = vpop.f32.mrb[0].mxu0
          %v2814 = vpop.f32.mrb[0].mxu0
          %v2815 = vadd.f32 0.0, %v2814
          %v2816 = vpop.f32.mrb[0].mxu0
          %2817 = vmatprep.mubr.bf16.mxu0 0
          %2818 = vmatmul.mubr.bf16.gmra.mrb[0].mxu0 %v2661
          %v2819 = vpop.f32.mrb[0].mxu0
          %v2820 = vadd.f32 0.0, %v2819
          %v2821 = vpop.f32.mrb[0].mxu0
          %v2822 = vpop.f32.mrb[0].mxu0
          %v2823 = vadd.f32 0.0, %v2822
          %v2824 = vpop.f32.mrb[0].mxu0
          %2825 = vmatprep.mubr.bf16.mxu0 0
          %2826 = vmatmul.mubr.bf16.gmra.mrb[0].mxu0 %v2662
          %v2827 = vpop.f32.mrb[0].mxu0
          %v2828 = vadd.f32 0.0, %v2827
          %v2829 = vpop.f32.mrb[0].mxu0
          %v2830 = vpop.f32.mrb[0].mxu0
          %v2831 = vadd.f32 0.0, %v2830
          %v2832 = vpop.f32.mrb[0].mxu0
          %2833 = vmatprep.mubr.bf16.mxu0 0
          %2834 = vmatmul.mubr.bf16.gmra.mrb[0].mxu0 %v2663
          %v2835 = vpop.f32.mrb[0].mxu0
          %v2836 = vadd.f32 0.0, %v2835
          %v2837 = vpop.f32.mrb[0].mxu0
          %v2838 = vpop.f32.mrb[0].mxu0
          %v2839 = vadd.f32 0.0, %v2838
          %v2840 = vpop.f32.mrb[0].mxu0
          %2841 = vmatprep.mubr.bf16.mxu0 0
          %2842 = vmatmul.mubr.bf16.gmra.mrb[0].mxu0 %v2664
          %v2843 = vpop.f32.mrb[0].mxu0
          %v2844 = vadd.f32 0.0, %v2843
          %v2845 = vpop.f32.mrb[0].mxu0
          %v2846 = vpop.f32.mrb[0].mxu0
          %v2847 = vadd.f32 0.0, %v2846
          %v2848 = vpop.f32.mrb[0].mxu0
          %2849 = vmatprep.mubr.bf16.mxu0 0
          %2850 = vmatmul.mubr.bf16.gmra.mrb[0].mxu0 %v2665
          %v2851 = vpop.f32.mrb[0].mxu0
          %v2852 = vadd.f32 0.0, %v2851
          %v2853 = vpop.f32.mrb[0].mxu0
          %v2854 = vpop.f32.mrb[0].mxu0
          %v2855 = vadd.f32 0.0, %v2854
          %v2856 = vpop.f32.mrb[0].mxu0
          %2857 = vmatprep.mubr.bf16.mxu0 0
          %2858 = vmatmul.mubr.bf16.gmra.mrb[0].mxu0 %v2666
          %v2859 = vpop.f32.mrb[0].mxu0
          %v2860 = vadd.f32 0.0, %v2859
          %v2861 = vpop.f32.mrb[0].mxu0
          %v2862 = vpop.f32.mrb[0].mxu0
          %v2863 = vadd.f32 0.0, %v2862
          %v2864 = vpop.f32.mrb[0].mxu0
          %2865 = vmatprep.mubr.bf16.mxu0 0
          %2866 = vmatmul.mubr.bf16.gmra.mrb[0].mxu0 %v2667
          %v2867 = vpop.f32.mrb[0].mxu0
          %v2868 = vadd.f32 0.0, %v2867
          %v2869 = vpop.f32.mrb[0].mxu0
          %v2870 = vpop.f32.mrb[0].mxu0
          %v2871 = vadd.f32 0.0, %v2870
          %v2872 = vpop.f32.mrb[0].mxu0
          %2873 = vmatprep.mubr.bf16.mxu0 0
          %2874 = vmatmul.mubr.bf16.gmra.mrb[0].mxu0 %v2668
          %v2875 = vpop.f32.mrb[0].mxu0
          %v2876 = vadd.f32 0.0, %v2875
          %v2877 = vpop.f32.mrb[0].mxu0
          %v2878 = vpop.f32.mrb[0].mxu0
          %v2879 = vadd.f32 0.0, %v2878
          %v2880 = vpop.f32.mrb[0].mxu0
          %2881 = vmatprep.mubr.bf16.mxu0 0
          %2882 = vmatmul.mubr.bf16.gmra.mrb[0].mxu0 %v2669
          %v2883 = vpop.f32.mrb[0].mxu0
          %v2884 = vadd.f32 0.0, %v2883
          %v2885 = vpop.f32.mrb[0].mxu0
          %v2886 = vpop.f32.mrb[0].mxu0
          %v2887 = vadd.f32 0.0, %v2886
          %v2888 = vpop.f32.mrb[0].mxu0
          %2889 = vmatprep.mubr.bf16.mxu0 0
          %2890 = vmatmul.mubr.bf16.gmra.mrb[0].mxu0 %v2670
          %v2891 = vpop.f32.mrb[0].mxu0
          %v2892 = vadd.f32 0.0, %v2891
          %v2893 = vpop.f32.mrb[0].mxu0
          %v2894 = vpop.f32.mrb[0].mxu0
          %v2895 = vadd.f32 0.0, %v2894
          %v2896 = vpop.f32.mrb[0].mxu0
          %2897 = vmatprep.mubr.bf16.mxu0 0
          %2898 = vmatmul.mubr.bf16.gmra.mrb[0].mxu0 %v2671
          %v2899 = vpop.f32.mrb[0].mxu0
          %v2900 = vadd.f32 0.0, %v2899
          %v2901 = vpop.f32.mrb[0].mxu0
          %v2902 = vpop.f32.mrb[0].mxu0
          %v2903 = vadd.f32 0.0, %v2902
          %v2904 = vpop.f32.mrb[0].mxu0
          %2905 = vmatprep.mubr.bf16.mxu0 0
          %2906 = vmatmul.mubr.bf16.gmra.mrb[0].mxu0 %v2672
          %v2907 = vpop.f32.mrb[0].mxu0
          %v2908 = vadd.f32 0.0, %v2907
          %v2909 = vpop.f32.mrb[0].mxu0
          %v2910 = vpop.f32.mrb[0].mxu0
          %v2911 = vadd.f32 0.0, %v2910
          %v2912 = vpop.f32.mrb[0].mxu0
          %2913 = vmatprep.mubr.bf16.mxu0 0
          %2914 = vmatmul.mubr.bf16.gmra.mrb[0].mxu0 %v2673
          %v2915 = vpop.f32.mrb[0].mxu0
          %v2916 = vadd.f32 0.0, %v2915
          %v2917 = vpop.f32.mrb[0].mxu0
          %v2918 = vpop.f32.mrb[0].mxu0
          %v2919 = vadd.f32 0.0, %v2918
          %v2920 = vpop.f32.mrb[0].mxu0
          %2921 = vmatprep.mubr.bf16.mxu0 0
          %2922 = vmatmul.mubr.bf16.gmra.mrb[0].mxu0 %v2674
          %v2923 = vpop.f32.mrb[0].mxu0
          %v2924 = vadd.f32 0.0, %v2923
          %v2925 = vpop.f32.mrb[0].mxu0
          %v2926 = vpop.f32.mrb[0].mxu0
          %v2927 = vadd.f32 0.0, %v2926
          %v2928 = vpop.f32.mrb[0].mxu0
          %2929 = vmatprep.mubr.bf16.mxu0 0
          %2930 = vmatmul.mubr.bf16.gmra.mrb[0].mxu0 %v2675
          %v2931 = vpop.f32.mrb[0].mxu0
          %v2932 = vadd.f32 0.0, %v2931
          %v2933 = vpop.f32.mrb[0].mxu0
          %v2934 = vpop.f32.mrb[0].mxu0
          %v2935 = vadd.f32 0.0, %v2934
          %v2936 = vpop.f32.mrb[0].mxu0
          %2937 = vmatprep.mubr.bf16.mxu0 0
          %2938 = vmatmul.mubr.bf16.gmra.mrb[0].mxu0 %v2676
          %v2939 = vpop.f32.mrb[0].mxu0
          %v2940 = vadd.f32 0.0, %v2939
          %v2941 = vpop.f32.mrb[0].mxu0
          %v2942 = vpop.f32.mrb[0].mxu0
          %v2943 = vadd.f32 0.0, %v2942
          %v2944 = vpop.f32.mrb[0].mxu0
          %2945 = vmatprep.mubr.bf16.mxu0 0
          %2946 = vmatmul.mubr.bf16.gmra.mrb[0].mxu0 %v2677
          %v2947 = vpop.f32.mrb[0].mxu0
          %v2948 = vadd.f32 0.0, %v2947
          %v2949 = vpop.f32.mrb[0].mxu0
          %v2950 = vpop.f32.mrb[0].mxu0
          %v2951 = vadd.f32 0.0, %v2950
          %v2952 = vpop.f32.mrb[0].mxu0
          %2953 = vmatprep.mubr.bf16.mxu0 0
          %2954 = vmatmul.mubr.bf16.gmra.mrb[0].mxu0 %v2678
          %v2955 = vpop.f32.mrb[0].mxu0
          %v2956 = vadd.f32 0.0, %v2955
          %v2957 = vpop.f32.mrb[0].mxu0
          %v2958 = vpop.f32.mrb[0].mxu0
          %v2959 = vadd.f32 0.0, %v2958
          %v2960 = vpop.f32.mrb[0].mxu0
          %2961 = vmatprep.mubr.bf16.mxu0 0
          %2962 = vmatmul.mubr.bf16.gmra.mrb[0].mxu0 %v2679
          %v2963 = vpop.f32.mrb[0].mxu0
          %v2964 = vadd.f32 0.0, %v2963
          %v2965 = vpop.f32.mrb[0].mxu0
          %v2966 = vpop.f32.mrb[0].mxu0
          %v2967 = vadd.f32 0.0, %v2966
          %v2968 = vpop.f32.mrb[0].mxu0
          %2969 = vmatprep.mubr.bf16.mxu0 0
          %2970 = vmatmul.mubr.bf16.gmra.mrb[0].mxu0 %v2680
          %v2971 = vpop.f32.mrb[0].mxu0
          %v2972 = vadd.f32 0.0, %v2971
          %v2973 = vpop.f32.mrb[0].mxu0
          %v2974 = vpop.f32.mrb[0].mxu0
          %v2975 = vadd.f32 0.0, %v2974
          %v2976 = vpop.f32.mrb[0].mxu0
          %2977 = vmatprep.mubr.bf16.mxu0 0
          %2978 = vmatmul.mubr.bf16.gmra.mrb[0].mxu0 %v2681
          %v2979 = vpop.f32.mrb[0].mxu0
          %v2980 = vadd.f32 0.0, %v2979
          %v2981 = vpop.f32.mrb[0].mxu0
          %v2982 = vpop.f32.mrb[0].mxu0
          %v2983 = vadd.f32 0.0, %v2982
          %v2984 = vpop.f32.mrb[0].mxu0
          %2985 = vmatprep.mubr.bf16.mxu0 0
          %2986 = vmatmul.mubr.bf16.gmra.mrb[0].mxu0 %v2682
          %v2987 = vpop.f32.mrb[0].mxu0
          %v2988 = vadd.f32 0.0, %v2987
          %v2989 = vpop.f32.mrb[0].mxu0
          %v2990 = vpop.f32.mrb[0].mxu0
          %v2991 = vadd.f32 0.0, %v2990
          %v2992 = vpop.f32.mrb[0].mxu0
          %2993 = vmatprep.mubr.bf16.mxu0 0
          %2994 = vmatmul.mubr.bf16.gmra.mrb[0].mxu0 %v2683
          %v2995 = vpop.f32.mrb[0].mxu0
          %v2996 = vadd.f32 0.0, %v2995
          %v2997 = vpop.f32.mrb[0].mxu0
          %v2998 = vpop.f32.mrb[0].mxu0
          %v2999 = vadd.f32 0.0, %v2998
          %v3000 = vpop.f32.mrb[0].mxu0
          %3001 = vmatprep.mubr.bf16.mxu0 0
          %3002 = vmatmul.mubr.bf16.gmra.mrb[0].mxu0 %v2684
          %v3003 = vpop.f32.mrb[0].mxu0
          %v3004 = vadd.f32 0.0, %v3003
          %v3005 = vpop.f32.mrb[0].mxu0
          %v3006 = vpop.f32.mrb[0].mxu0
          %v3007 = vadd.f32 0.0, %v3006
          %v3008 = vpop.f32.mrb[0].mxu0
          %3009 = vmatprep.mubr.bf16.mxu0 0
          %3010 = vmatmul.mubr.bf16.gmra.mrb[0].mxu0 %v2685
          %v3011 = vpop.f32.mrb[0].mxu0
          %v3012 = vadd.f32 0.0, %v3011
          %v3013 = vpop.f32.mrb[0].mxu0
          %v3014 = vpop.f32.mrb[0].mxu0
          %v3015 = vadd.f32 0.0, %v3014
          %v3016 = vpop.f32.mrb[0].mxu0
          %3017 = vmatprep.mubr.bf16.mxu0 0
          %3018 = vmatmul.mubr.bf16.gmra.mrb[0].mxu0 %v2686
          %v3019 = vpop.f32.mrb[0].mxu0
          %v3020 = vadd.f32 0.0, %v3019
          %v3021 = vpop.f32.mrb[0].mxu0
          %v3022 = vpop.f32.mrb[0].mxu0
          %v3023 = vadd.f32 0.0, %v3022
          %v3024 = vpop.f32.mrb[0].mxu0
          %3025 = vmatprep.mubr.bf16.mxu0 0
          %3026 = vmatmul.mubr.bf16.gmra.mrb[0].mxu0 %v2687
          %v3027 = vpop.f32.mrb[0].mxu0
          %v3028 = vadd.f32 0.0, %v3027
          %v3029 = vpop.f32.mrb[0].mxu0
          %v3030 = vpop.f32.mrb[0].mxu0
          %v3031 = vadd.f32 0.0, %v3030
          %v3032 = vpop.f32.mrb[0].mxu0
          %3033 = vmatprep.mubr.bf16.mxu0 0
          %3034 = vmatmul.mubr.bf16.gmra.mrb[0].mxu0 %v2688
          %v3035 = vpop.f32.mrb[0].mxu0
          %v3036 = vadd.f32 0.0, %v3035
          %v3037 = vpop.f32.mrb[0].mxu0
          %v3038 = vpop.f32.mrb[0].mxu0
          %v3039 = vadd.f32 0.0, %v3038
          %v3040 = vpop.f32.mrb[0].mxu0
          %3041 = vdwg.mxu0
          %3042 = vmatprep.subr.mxu0 0.0
          %3043 = vmatpush1.msra.mxu0 %v2497
          %3044 = vmatprep.subr.mxu0 0.0
          %3045 = vmatpush1.msra.mxu0 %v2498
          %3046 = vmatprep.subr.mxu0 0.0
          %3047 = vmatpush1.msra.mxu0 %v2499
          %3048 = vmatprep.subr.mxu0 0.0
          %3049 = vmatpush1.msra.mxu0 %v2500
          %3050 = vmatprep.subr.mxu0 0.0
          %3051 = vmatpush1.msra.mxu0 %v2501
          %3052 = vmatprep.subr.mxu0 0.0
          %3053 = vmatpush1.msra.mxu0 %v2502
          %3054 = vmatprep.subr.mxu0 0.0
          %3055 = vmatpush1.msra.mxu0 %v2503
          %3056 = vmatprep.subr.mxu0 0.0
          %3057 = vmatpush1.msra.mxu0 %v2504
          %3058 = vmatprep.subr.mxu0 0.0
          %3059 = vmatpush1.msra.mxu0 %v2505
          %3060 = vmatprep.subr.mxu0 0.0
          %3061 = vmatpush1.msra.mxu0 %v2506
          %3062 = vmatprep.subr.mxu0 0.0
          %3063 = vmatpush1.msra.mxu0 %v2507
          %3064 = vmatprep.subr.mxu0 0.0
          %3065 = vmatpush1.msra.mxu0 %v2508
          %3066 = vmatprep.subr.mxu0 0.0
          %3067 = vmatpush1.msra.mxu0 %v2509
          %3068 = vmatprep.subr.mxu0 0.0
          %3069 = vmatpush1.msra.mxu0 %v2510
          %3070 = vmatprep.subr.mxu0 0.0
          %3071 = vmatpush1.msra.mxu0 %v2511
          %3072 = vmatprep.subr.mxu0 0.0
          %3073 = vmatpush1.msra.mxu0 %v2512
          %3074 = vmatprep.subr.mxu0 0.0
          %3075 = vmatpush1.msra.mxu0 0.0
          %3076 = vmatprep.subr.mxu0 0.0
          %3077 = vmatpush1.msra.mxu0 0.0
          %3078 = vmatprep.subr.mxu0 0.0
          %3079 = vmatpush1.msra.mxu0 0.0
          %3080 = vmatprep.subr.mxu0 0.0
          %3081 = vmatpush1.msra.mxu0 0.0
          %3082 = vmatprep.subr.mxu0 0.0
          %3083 = vmatpush1.msra.mxu0 0.0
          %3084 = vmatprep.subr.mxu0 0.0
          %3085 = vmatpush1.msra.mxu0 0.0
          %3086 = vmatprep.subr.mxu0 0.0
          %3087 = vmatpush1.msra.mxu0 0.0
          %3088 = vmatprep.subr.mxu0 0.0
          %3089 = vmatpush1.msra.mxu0 0.0
          %3090 = vmatprep.subr.mxu0 0.0
          %3091 = vmatpush1.msra.mxu0 0.0
          %3092 = vmatprep.subr.mxu0 0.0
          %3093 = vmatpush1.msra.mxu0 0.0
          %3094 = vmatprep.subr.mxu0 0.0
          %3095 = vmatpush1.msra.mxu0 0.0
          %3096 = vmatprep.subr.mxu0 0.0
          %3097 = vmatpush1.msra.mxu0 0.0
          %3098 = vmatprep.subr.mxu0 0.0
          %3099 = vmatpush1.msra.mxu0 0.0
          %3100 = vmatprep.subr.mxu0 0.0
          %3101 = vmatpush1.msra.mxu0 0.0
          %3102 = vmatprep.subr.mxu0 0.0
          %3103 = vmatpush1.msra.mxu0 0.0
          %3104 = vmatprep.subr.mxu0 0.0
          %3105 = vmatpush1.msra.mxu0 0.0
          %3106 = vmatprep.mubr.f32.mxu0 0.0
          %3107 = vmatmul.mubr.f32.gmra.mrb[0].mxu0 %v2433
          %v3108 = vpop.f32.mrb[0].mxu0
          %v3109 = vadd.f32 %v2788, %v3108
          %v3110 = vpop.f32.mrb[0].mxu0
          %3111 = vmatprep.mubr.f32.mxu0 0.0
          %3112 = vmatmul.mubr.f32.gmra.mrb[0].mxu0 %v2434
          %v3113 = vpop.f32.mrb[0].mxu0
          %v3114 = vadd.f32 %v2791, %v3113
          %v3115 = vpop.f32.mrb[0].mxu0
          %3116 = vmatprep.mubr.f32.mxu0 0.0
          %3117 = vmatmul.mubr.f32.gmra.mrb[0].mxu0 %v2435
          %v3118 = vpop.f32.mrb[0].mxu0
          %v3119 = vadd.f32 %v2796, %v3118
          %v3120 = vpop.f32.mrb[0].mxu0
          %3121 = vmatprep.mubr.f32.mxu0 0.0
          %3122 = vmatmul.mubr.f32.gmra.mrb[0].mxu0 %v2436
          %v3123 = vpop.f32.mrb[0].mxu0
          %v3124 = vadd.f32 %v2799, %v3123
          %v3125 = vpop.f32.mrb[0].mxu0
          %3126 = vmatprep.mubr.f32.mxu0 0.0
          %3127 = vmatmul.mubr.f32.gmra.mrb[0].mxu0 %v2437
          %v3128 = vpop.f32.mrb[0].mxu0
          %v3129 = vadd.f32 %v2804, %v3128
          %v3130 = vpop.f32.mrb[0].mxu0
          %3131 = vmatprep.mubr.f32.mxu0 0.0
          %3132 = vmatmul.mubr.f32.gmra.mrb[0].mxu0 %v2438
          %v3133 = vpop.f32.mrb[0].mxu0
          %v3134 = vadd.f32 %v2807, %v3133
          %v3135 = vpop.f32.mrb[0].mxu0
          %3136 = vmatprep.mubr.f32.mxu0 0.0
          %3137 = vmatmul.mubr.f32.gmra.mrb[0].mxu0 %v2439
          %v3138 = vpop.f32.mrb[0].mxu0
          %v3139 = vadd.f32 %v2812, %v3138
          %v3140 = vpop.f32.mrb[0].mxu0
          %3141 = vmatprep.mubr.f32.mxu0 0.0
          %3142 = vmatmul.mubr.f32.gmra.mrb[0].mxu0 %v2440
          %v3143 = vpop.f32.mrb[0].mxu0
          %v3144 = vadd.f32 %v2815, %v3143
          %v3145 = vpop.f32.mrb[0].mxu0
          %3146 = vmatprep.mubr.f32.mxu0 0.0
          %3147 = vmatmul.mubr.f32.gmra.mrb[0].mxu0 %v2441
          %v3148 = vpop.f32.mrb[0].mxu0
          %v3149 = vadd.f32 %v2820, %v3148
          %v3150 = vpop.f32.mrb[0].mxu0
          %3151 = vmatprep.mubr.f32.mxu0 0.0
          %3152 = vmatmul.mubr.f32.gmra.mrb[0].mxu0 %v2442
          %v3153 = vpop.f32.mrb[0].mxu0
          %v3154 = vadd.f32 %v2823, %v3153
          %v3155 = vpop.f32.mrb[0].mxu0
          %3156 = vmatprep.mubr.f32.mxu0 0.0
          %3157 = vmatmul.mubr.f32.gmra.mrb[0].mxu0 %v2443
          %v3158 = vpop.f32.mrb[0].mxu0
          %v3159 = vadd.f32 %v2828, %v3158
          %v3160 = vpop.f32.mrb[0].mxu0
          %3161 = vmatprep.mubr.f32.mxu0 0.0
          %3162 = vmatmul.mubr.f32.gmra.mrb[0].mxu0 %v2444
          %v3163 = vpop.f32.mrb[0].mxu0
          %v3164 = vadd.f32 %v2831, %v3163
          %v3165 = vpop.f32.mrb[0].mxu0
          %3166 = vmatprep.mubr.f32.mxu0 0.0
          %3167 = vmatmul.mubr.f32.gmra.mrb[0].mxu0 %v2445
          %v3168 = vpop.f32.mrb[0].mxu0
          %v3169 = vadd.f32 %v2836, %v3168
          %v3170 = vpop.f32.mrb[0].mxu0
          %3171 = vmatprep.mubr.f32.mxu0 0.0
          %3172 = vmatmul.mubr.f32.gmra.mrb[0].mxu0 %v2446
          %v3173 = vpop.f32.mrb[0].mxu0
          %v3174 = vadd.f32 %v2839, %v3173
          %v3175 = vpop.f32.mrb[0].mxu0
          %3176 = vmatprep.mubr.f32.mxu0 0.0
          %3177 = vmatmul.mubr.f32.gmra.mrb[0].mxu0 %v2447
          %v3178 = vpop.f32.mrb[0].mxu0
          %v3179 = vadd.f32 %v2844, %v3178
          %v3180 = vpop.f32.mrb[0].mxu0
          %3181 = vmatprep.mubr.f32.mxu0 0.0
          %3182 = vmatmul.mubr.f32.gmra.mrb[0].mxu0 %v2448
          %v3183 = vpop.f32.mrb[0].mxu0
          %v3184 = vadd.f32 %v2847, %v3183
          %v3185 = vpop.f32.mrb[0].mxu0
          %3186 = vmatprep.mubr.f32.mxu0 0.0
          %3187 = vmatmul.mubr.f32.gmra.mrb[0].mxu0 %v2449
          %v3188 = vpop.f32.mrb[0].mxu0
          %v3189 = vadd.f32 %v2852, %v3188
          %v3190 = vpop.f32.mrb[0].mxu0
          %3191 = vmatprep.mubr.f32.mxu0 0.0
          %3192 = vmatmul.mubr.f32.gmra.mrb[0].mxu0 %v2450
          %v3193 = vpop.f32.mrb[0].mxu0
          %v3194 = vadd.f32 %v2855, %v3193
          %v3195 = vpop.f32.mrb[0].mxu0
          %3196 = vmatprep.mubr.f32.mxu0 0.0
          %3197 = vmatmul.mubr.f32.gmra.mrb[0].mxu0 %v2451
          %v3198 = vpop.f32.mrb[0].mxu0
          %v3199 = vadd.f32 %v2860, %v3198
          %v3200 = vpop.f32.mrb[0].mxu0
          %3201 = vmatprep.mubr.f32.mxu0 0.0
          %3202 = vmatmul.mubr.f32.gmra.mrb[0].mxu0 %v2452
          %v3203 = vpop.f32.mrb[0].mxu0
          %v3204 = vadd.f32 %v2863, %v3203
          %v3205 = vpop.f32.mrb[0].mxu0
          %3206 = vmatprep.mubr.f32.mxu0 0.0
          %3207 = vmatmul.mubr.f32.gmra.mrb[0].mxu0 %v2453
          %v3208 = vpop.f32.mrb[0].mxu0
          %v3209 = vadd.f32 %v2868, %v3208
          %v3210 = vpop.f32.mrb[0].mxu0
          %3211 = vmatprep.mubr.f32.mxu0 0.0
          %3212 = vmatmul.mubr.f32.gmra.mrb[0].mxu0 %v2454
          %v3213 = vpop.f32.mrb[0].mxu0
          %v3214 = vadd.f32 %v2871, %v3213
          %v3215 = vpop.f32.mrb[0].mxu0
          %3216 = vmatprep.mubr.f32.mxu0 0.0
          %3217 = vmatmul.mubr.f32.gmra.mrb[0].mxu0 %v2455
          %v3218 = vpop.f32.mrb[0].mxu0
          %v3219 = vadd.f32 %v2876, %v3218
          %v3220 = vpop.f32.mrb[0].mxu0
          %3221 = vmatprep.mubr.f32.mxu0 0.0
          %3222 = vmatmul.mubr.f32.gmra.mrb[0].mxu0 %v2456
          %v3223 = vpop.f32.mrb[0].mxu0
          %v3224 = vadd.f32 %v2879, %v3223
          %v3225 = vpop.f32.mrb[0].mxu0
          %3226 = vmatprep.mubr.f32.mxu0 0.0
          %3227 = vmatmul.mubr.f32.gmra.mrb[0].mxu0 %v2457
          %v3228 = vpop.f32.mrb[0].mxu0
          %v3229 = vadd.f32 %v2884, %v3228
          %v3230 = vpop.f32.mrb[0].mxu0
          %3231 = vmatprep.mubr.f32.mxu0 0.0
          %3232 = vmatmul.mubr.f32.gmra.mrb[0].mxu0 %v2458
          %v3233 = vpop.f32.mrb[0].mxu0
          %v3234 = vadd.f32 %v2887, %v3233
          %v3235 = vpop.f32.mrb[0].mxu0
          %3236 = vmatprep.mubr.f32.mxu0 0.0
          %3237 = vmatmul.mubr.f32.gmra.mrb[0].mxu0 %v2459
          %v3238 = vpop.f32.mrb[0].mxu0
          %v3239 = vadd.f32 %v2892, %v3238
          %v3240 = vpop.f32.mrb[0].mxu0
          %3241 = vmatprep.mubr.f32.mxu0 0.0
          %3242 = vmatmul.mubr.f32.gmra.mrb[0].mxu0 %v2460
          %v3243 = vpop.f32.mrb[0].mxu0
          %v3244 = vadd.f32 %v2895, %v3243
          %v3245 = vpop.f32.mrb[0].mxu0
          %3246 = vmatprep.mubr.f32.mxu0 0.0
          %3247 = vmatmul.mubr.f32.gmra.mrb[0].mxu0 %v2461
          %v3248 = vpop.f32.mrb[0].mxu0
          %v3249 = vadd.f32 %v2900, %v3248
          %v3250 = vpop.f32.mrb[0].mxu0
          %3251 = vmatprep.mubr.f32.mxu0 0.0
          %3252 = vmatmul.mubr.f32.gmra.mrb[0].mxu0 %v2462
          %v3253 = vpop.f32.mrb[0].mxu0
          %v3254 = vadd.f32 %v2903, %v3253
          %v3255 = vpop.f32.mrb[0].mxu0
          %3256 = vmatprep.mubr.f32.mxu0 0.0
          %3257 = vmatmul.mubr.f32.gmra.mrb[0].mxu0 %v2463
          %v3258 = vpop.f32.mrb[0].mxu0
          %v3259 = vadd.f32 %v2908, %v3258
          %v3260 = vpop.f32.mrb[0].mxu0
          %3261 = vmatprep.mubr.f32.mxu0 0.0
          %3262 = vmatmul.mubr.f32.gmra.mrb[0].mxu0 %v2464
          %v3263 = vpop.f32.mrb[0].mxu0
          %v3264 = vadd.f32 %v2911, %v3263
          %v3265 = vpop.f32.mrb[0].mxu0
          %3266 = vmatprep.mubr.f32.mxu0 0.0
          %3267 = vmatmul.mubr.f32.gmra.mrb[0].mxu0 %v2465
          %v3268 = vpop.f32.mrb[0].mxu0
          %v3269 = vadd.f32 %v2916, %v3268
          %v3270 = vpop.f32.mrb[0].mxu0
          %3271 = vmatprep.mubr.f32.mxu0 0.0
          %3272 = vmatmul.mubr.f32.gmra.mrb[0].mxu0 %v2466
          %v3273 = vpop.f32.mrb[0].mxu0
          %v3274 = vadd.f32 %v2919, %v3273
          %v3275 = vpop.f32.mrb[0].mxu0
          %3276 = vmatprep.mubr.f32.mxu0 0.0
          %3277 = vmatmul.mubr.f32.gmra.mrb[0].mxu0 %v2467
          %v3278 = vpop.f32.mrb[0].mxu0
          %v3279 = vadd.f32 %v2924, %v3278
          %v3280 = vpop.f32.mrb[0].mxu0
          %3281 = vmatprep.mubr.f32.mxu0 0.0
          %3282 = vmatmul.mubr.f32.gmra.mrb[0].mxu0 %v2468
          %v3283 = vpop.f32.mrb[0].mxu0
          %v3284 = vadd.f32 %v2927, %v3283
          %v3285 = vpop.f32.mrb[0].mxu0
          %3286 = vmatprep.mubr.f32.mxu0 0.0
          %3287 = vmatmul.mubr.f32.gmra.mrb[0].mxu0 %v2469
          %v3288 = vpop.f32.mrb[0].mxu0
          %v3289 = vadd.f32 %v2932, %v3288
          %v3290 = vpop.f32.mrb[0].mxu0
          %3291 = vmatprep.mubr.f32.mxu0 0.0
          %3292 = vmatmul.mubr.f32.gmra.mrb[0].mxu0 %v2470
          %v3293 = vpop.f32.mrb[0].mxu0
          %v3294 = vadd.f32 %v2935, %v3293
          %v3295 = vpop.f32.mrb[0].mxu0
          %3296 = vmatprep.mubr.f32.mxu0 0.0
          %3297 = vmatmul.mubr.f32.gmra.mrb[0].mxu0 %v2471
          %v3298 = vpop.f32.mrb[0].mxu0
          %v3299 = vadd.f32 %v2940, %v3298
          %v3300 = vpop.f32.mrb[0].mxu0
          %3301 = vmatprep.mubr.f32.mxu0 0.0
          %3302 = vmatmul.mubr.f32.gmra.mrb[0].mxu0 %v2472
          %v3303 = vpop.f32.mrb[0].mxu0
          %v3304 = vadd.f32 %v2943, %v3303
          %v3305 = vpop.f32.mrb[0].mxu0
          %3306 = vmatprep.mubr.f32.mxu0 0.0
          %3307 = vmatmul.mubr.f32.gmra.mrb[0].mxu0 %v2473
          %v3308 = vpop.f32.mrb[0].mxu0
          %v3309 = vadd.f32 %v2948, %v3308
          %v3310 = vpop.f32.mrb[0].mxu0
          %3311 = vmatprep.mubr.f32.mxu0 0.0
          %3312 = vmatmul.mubr.f32.gmra.mrb[0].mxu0 %v2474
          %v3313 = vpop.f32.mrb[0].mxu0
          %v3314 = vadd.f32 %v2951, %v3313
          %v3315 = vpop.f32.mrb[0].mxu0
          %3316 = vmatprep.mubr.f32.mxu0 0.0
          %3317 = vmatmul.mubr.f32.gmra.mrb[0].mxu0 %v2475
          %v3318 = vpop.f32.mrb[0].mxu0
          %v3319 = vadd.f32 %v2956, %v3318
          %v3320 = vpop.f32.mrb[0].mxu0
          %3321 = vmatprep.mubr.f32.mxu0 0.0
          %3322 = vmatmul.mubr.f32.gmra.mrb[0].mxu0 %v2476
          %v3323 = vpop.f32.mrb[0].mxu0
          %v3324 = vadd.f32 %v2959, %v3323
          %v3325 = vpop.f32.mrb[0].mxu0
          %3326 = vmatprep.mubr.f32.mxu0 0.0
          %3327 = vmatmul.mubr.f32.gmra.mrb[0].mxu0 %v2477
          %v3328 = vpop.f32.mrb[0].mxu0
          %v3329 = vadd.f32 %v2964, %v3328
          %v3330 = vpop.f32.mrb[0].mxu0
          %3331 = vmatprep.mubr.f32.mxu0 0.0
          %3332 = vmatmul.mubr.f32.gmra.mrb[0].mxu0 %v2478
          %v3333 = vpop.f32.mrb[0].mxu0
          %v3334 = vadd.f32 %v2967, %v3333
          %v3335 = vpop.f32.mrb[0].mxu0
          %3336 = vmatprep.mubr.f32.mxu0 0.0
          %3337 = vmatmul.mubr.f32.gmra.mrb[0].mxu0 %v2479
          %v3338 = vpop.f32.mrb[0].mxu0
          %v3339 = vadd.f32 %v2972, %v3338
          %v3340 = vpop.f32.mrb[0].mxu0
          %3341 = vmatprep.mubr.f32.mxu0 0.0
          %3342 = vmatmul.mubr.f32.gmra.mrb[0].mxu0 %v2480
          %v3343 = vpop.f32.mrb[0].mxu0
          %v3344 = vadd.f32 %v2975, %v3343
          %v3345 = vpop.f32.mrb[0].mxu0
          %3346 = vmatprep.mubr.f32.mxu0 0.0
          %3347 = vmatmul.mubr.f32.gmra.mrb[0].mxu0 %v2481
          %v3348 = vpop.f32.mrb[0].mxu0
          %v3349 = vadd.f32 %v2980, %v3348
          %v3350 = vpop.f32.mrb[0].mxu0
          %3351 = vmatprep.mubr.f32.mxu0 0.0
          %3352 = vmatmul.mubr.f32.gmra.mrb[0].mxu0 %v2482
          %v3353 = vpop.f32.mrb[0].mxu0
          %v3354 = vadd.f32 %v2983, %v3353
          %v3355 = vpop.f32.mrb[0].mxu0
          %3356 = vmatprep.mubr.f32.mxu0 0.0
          %3357 = vmatmul.mubr.f32.gmra.mrb[0].mxu0 %v2483
          %v3358 = vpop.f32.mrb[0].mxu0
          %v3359 = vadd.f32 %v2988, %v3358
          %v3360 = vpop.f32.mrb[0].mxu0
          %3361 = vmatprep.mubr.f32.mxu0 0.0
          %3362 = vmatmul.mubr.f32.gmra.mrb[0].mxu0 %v2484
          %v3363 = vpop.f32.mrb[0].mxu0
          %v3364 = vadd.f32 %v2991, %v3363
          %v3365 = vpop.f32.mrb[0].mxu0
          %3366 = vmatprep.mubr.f32.mxu0 0.0
          %3367 = vmatmul.mubr.f32.gmra.mrb[0].mxu0 %v2485
          %v3368 = vpop.f32.mrb[0].mxu0
          %v3369 = vadd.f32 %v2996, %v3368
          %v3370 = vpop.f32.mrb[0].mxu0
          %3371 = vmatprep.mubr.f32.mxu0 0.0
          %3372 = vmatmul.mubr.f32.gmra.mrb[0].mxu0 %v2486
          %v3373 = vpop.f32.mrb[0].mxu0
          %v3374 = vadd.f32 %v2999, %v3373
          %v3375 = vpop.f32.mrb[0].mxu0
          %3376 = vmatprep.mubr.f32.mxu0 0.0
          %3377 = vmatmul.mubr.f32.gmra.mrb[0].mxu0 %v2487
          %v3378 = vpop.f32.mrb[0].mxu0
          %v3379 = vadd.f32 %v3004, %v3378
          %v3380 = vpop.f32.mrb[0].mxu0
          %3381 = vmatprep.mubr.f32.mxu0 0.0
          %3382 = vmatmul.mubr.f32.gmra.mrb[0].mxu0 %v2488
          %v3383 = vpop.f32.mrb[0].mxu0
          %v3384 = vadd.f32 %v3007, %v3383
          %v3385 = vpop.f32.mrb[0].mxu0
          %3386 = vmatprep.mubr.f32.mxu0 0.0
          %3387 = vmatmul.mubr.f32.gmra.mrb[0].mxu0 %v2489
          %v3388 = vpop.f32.mrb[0].mxu0
          %v3389 = vadd.f32 %v3012, %v3388
          %v3390 = vpop.f32.mrb[0].mxu0
          %3391 = vmatprep.mubr.f32.mxu0 0.0
          %3392 = vmatmul.mubr.f32.gmra.mrb[0].mxu0 %v2490
          %v3393 = vpop.f32.mrb[0].mxu0
          %v3394 = vadd.f32 %v3015, %v3393
          %v3395 = vpop.f32.mrb[0].mxu0
          %3396 = vmatprep.mubr.f32.mxu0 0.0
          %3397 = vmatmul.mubr.f32.gmra.mrb[0].mxu0 %v2491
          %v3398 = vpop.f32.mrb[0].mxu0
          %v3399 = vadd.f32 %v3020, %v3398
          %v3400 = vpop.f32.mrb[0].mxu0
          %3401 = vmatprep.mubr.f32.mxu0 0.0
          %3402 = vmatmul.mubr.f32.gmra.mrb[0].mxu0 %v2492
          %v3403 = vpop.f32.mrb[0].mxu0
          %v3404 = vadd.f32 %v3023, %v3403
          %v3405 = vpop.f32.mrb[0].mxu0
          %3406 = vmatprep.mubr.f32.mxu0 0.0
          %3407 = vmatmul.mubr.f32.gmra.mrb[0].mxu0 %v2493
          %v3408 = vpop.f32.mrb[0].mxu0
          %v3409 = vadd.f32 %v3028, %v3408
          %v3410 = vpop.f32.mrb[0].mxu0
          %3411 = vmatprep.mubr.f32.mxu0 0.0
          %3412 = vmatmul.mubr.f32.gmra.mrb[0].mxu0 %v2494
          %v3413 = vpop.f32.mrb[0].mxu0
          %v3414 = vadd.f32 %v3031, %v3413
          %v3415 = vpop.f32.mrb[0].mxu0
          %3416 = vmatprep.mubr.f32.mxu0 0.0
          %3417 = vmatmul.mubr.f32.gmra.mrb[0].mxu0 %v2495
          %v3418 = vpop.f32.mrb[0].mxu0
          %v3419 = vadd.f32 %v3036, %v3418
          %v3420 = vpop.f32.mrb[0].mxu0
          %3421 = vmatprep.mubr.f32.mxu0 0.0
          %3422 = vmatmul.mubr.f32.gmra.mrb[0].mxu0 %v2496
          %v3423 = vpop.f32.mrb[0].mxu0
          %v3424 = vadd.f32 %v3039, %v3423
          %v3425 = vpop.f32.mrb[0].mxu0
          %3426 = vdwg.mxu0
          %v3427 = vmax.f32 %v3109, 0.0
          %v3428 = vmax.f32 %v3114, 0.0
          %v3429 = vmax.f32 %v3119, 0.0
          %v3430 = vmax.f32 %v3124, 0.0
          %v3431 = vmax.f32 %v3129, 0.0
          %v3432 = vmax.f32 %v3134, 0.0
          %v3433 = vmax.f32 %v3139, 0.0
          %v3434 = vmax.f32 %v3144, 0.0
          %v3435 = vmax.f32 %v3149, 0.0
          %v3436 = vmax.f32 %v3154, 0.0
          %v3437 = vmax.f32 %v3159, 0.0
          %v3438 = vmax.f32 %v3164, 0.0
          %v3439 = vmax.f32 %v3169, 0.0
          %v3440 = vmax.f32 %v3174, 0.0
          %v3441 = vmax.f32 %v3179, 0.0
          %v3442 = vmax.f32 %v3184, 0.0
          %v3443 = vmax.f32 %v3189, 0.0
          %v3444 = vmax.f32 %v3194, 0.0
          %v3445 = vmax.f32 %v3199, 0.0
          %v3446 = vmax.f32 %v3204, 0.0
          %v3447 = vmax.f32 %v3209, 0.0
          %v3448 = vmax.f32 %v3214, 0.0
          %v3449 = vmax.f32 %v3219, 0.0
          %v3450 = vmax.f32 %v3224, 0.0
          %v3451 = vmax.f32 %v3229, 0.0
          %v3452 = vmax.f32 %v3234, 0.0
          %v3453 = vmax.f32 %v3239, 0.0
          %v3454 = vmax.f32 %v3244, 0.0
          %v3455 = vmax.f32 %v3249, 0.0
          %v3456 = vmax.f32 %v3254, 0.0
          %v3457 = vmax.f32 %v3259, 0.0
          %v3458 = vmax.f32 %v3264, 0.0
          %v3459 = vmax.f32 %v3269, 0.0
          %v3460 = vmax.f32 %v3274, 0.0
          %v3461 = vmax.f32 %v3279, 0.0
          %v3462 = vmax.f32 %v3284, 0.0
          %v3463 = vmax.f32 %v3289, 0.0
          %v3464 = vmax.f32 %v3294, 0.0
          %v3465 = vmax.f32 %v3299, 0.0
          %v3466 = vmax.f32 %v3304, 0.0
          %v3467 = vmax.f32 %v3309, 0.0
          %v3468 = vmax.f32 %v3314, 0.0
          %v3469 = vmax.f32 %v3319, 0.0
          %v3470 = vmax.f32 %v3324, 0.0
          %v3471 = vmax.f32 %v3329, 0.0
          %v3472 = vmax.f32 %v3334, 0.0
          %v3473 = vmax.f32 %v3339, 0.0
          %v3474 = vmax.f32 %v3344, 0.0
          %v3475 = vmax.f32 %v3349, 0.0
          %v3476 = vmax.f32 %v3354, 0.0
          %v3477 = vmax.f32 %v3359, 0.0
          %v3478 = vmax.f32 %v3364, 0.0
          %v3479 = vmax.f32 %v3369, 0.0
          %v3480 = vmax.f32 %v3374, 0.0
          %v3481 = vmax.f32 %v3379, 0.0
          %v3482 = vmax.f32 %v3384, 0.0
          %v3483 = vmax.f32 %v3389, 0.0
          %v3484 = vmax.f32 %v3394, 0.0
          %v3485 = vmax.f32 %v3399, 0.0
          %v3486 = vmax.f32 %v3404, 0.0
          %v3487 = vmax.f32 %v3409, 0.0
          %v3488 = vmax.f32 %v3414, 0.0
          %v3489 = vmax.f32 %v3419, 0.0
          %v3490 = vmax.f32 %v3424, 0.0
          %v3491 = vpack.c.bf16 %v3428, %v3427
          %v3492 = vpack.c.bf16 %v3430, %v3429
          %v3493 = vpack.c.bf16 %v3432, %v3431
          %v3494 = vpack.c.bf16 %v3434, %v3433
          %v3495 = vpack.c.bf16 %v3436, %v3435
          %v3496 = vpack.c.bf16 %v3438, %v3437
          %v3497 = vpack.c.bf16 %v3440, %v3439
          %v3498 = vpack.c.bf16 %v3442, %v3441
          %v3499 = vpack.c.bf16 %v3444, %v3443
          %v3500 = vpack.c.bf16 %v3446, %v3445
          %v3501 = vpack.c.bf16 %v3448, %v3447
          %v3502 = vpack.c.bf16 %v3450, %v3449
          %v3503 = vpack.c.bf16 %v3452, %v3451
          %v3504 = vpack.c.bf16 %v3454, %v3453
          %v3505 = vpack.c.bf16 %v3456, %v3455
          %v3506 = vpack.c.bf16 %v3458, %v3457
          %v3507 = vpack.c.bf16 %v3460, %v3459
          %v3508 = vpack.c.bf16 %v3462, %v3461
          %v3509 = vpack.c.bf16 %v3464, %v3463
          %v3510 = vpack.c.bf16 %v3466, %v3465
          %v3511 = vpack.c.bf16 %v3468, %v3467
          %v3512 = vpack.c.bf16 %v3470, %v3469
          %v3513 = vpack.c.bf16 %v3472, %v3471
          %v3514 = vpack.c.bf16 %v3474, %v3473
          %v3515 = vpack.c.bf16 %v3476, %v3475
          %v3516 = vpack.c.bf16 %v3478, %v3477
          %v3517 = vpack.c.bf16 %v3480, %v3479
          %v3518 = vpack.c.bf16 %v3482, %v3481
          %v3519 = vpack.c.bf16 %v3484, %v3483
          %v3520 = vpack.c.bf16 %v3486, %v3485
          %v3521 = vpack.c.bf16 %v3488, %v3487
          %v3522 = vpack.c.bf16 %v3490, %v3489
          %v3555 = vunpack.c.l.b16 %v3491
          %v3556 = vunpack.c.h.b16 %v3491
          %v3557 = vunpack.c.l.b16 %v3492
          %v3558 = vunpack.c.h.b16 %v3492
          %v3559 = vunpack.c.l.b16 %v3493
          %v3560 = vunpack.c.h.b16 %v3493
          %v3561 = vunpack.c.l.b16 %v3494
          %v3562 = vunpack.c.h.b16 %v3494
          %v3563 = vunpack.c.l.b16 %v3495
          %v3564 = vunpack.c.h.b16 %v3495
          %v3565 = vunpack.c.l.b16 %v3496
          %v3566 = vunpack.c.h.b16 %v3496
          %v3567 = vunpack.c.l.b16 %v3497
          %v3568 = vunpack.c.h.b16 %v3497
          %v3569 = vunpack.c.l.b16 %v3498
          %v3570 = vunpack.c.h.b16 %v3498
          %v3571 = vunpack.c.l.b16 %v3499
          %v3572 = vunpack.c.h.b16 %v3499
          %v3573 = vunpack.c.l.b16 %v3500
          %v3574 = vunpack.c.h.b16 %v3500
          %v3575 = vunpack.c.l.b16 %v3501
          %v3576 = vunpack.c.h.b16 %v3501
          %v3577 = vunpack.c.l.b16 %v3502
          %v3578 = vunpack.c.h.b16 %v3502
          %v3579 = vunpack.c.l.b16 %v3503
          %v3580 = vunpack.c.h.b16 %v3503
          %v3581 = vunpack.c.l.b16 %v3504
          %v3582 = vunpack.c.h.b16 %v3504
          %v3583 = vunpack.c.l.b16 %v3505
          %v3584 = vunpack.c.h.b16 %v3505
          %v3585 = vunpack.c.l.b16 %v3506
          %v3586 = vunpack.c.h.b16 %v3506
          %v3587 = vunpack.c.l.b16 %v3507
          %v3588 = vunpack.c.h.b16 %v3507
          %v3589 = vunpack.c.l.b16 %v3508
          %v3590 = vunpack.c.h.b16 %v3508
          %v3591 = vunpack.c.l.b16 %v3509
          %v3592 = vunpack.c.h.b16 %v3509
          %v3593 = vunpack.c.l.b16 %v3510
          %v3594 = vunpack.c.h.b16 %v3510
          %v3595 = vunpack.c.l.b16 %v3511
          %v3596 = vunpack.c.h.b16 %v3511
          %v3597 = vunpack.c.l.b16 %v3512
          %v3598 = vunpack.c.h.b16 %v3512
          %v3599 = vunpack.c.l.b16 %v3513
          %v3600 = vunpack.c.h.b16 %v3513
          %v3601 = vunpack.c.l.b16 %v3514
          %v3602 = vunpack.c.h.b16 %v3514
          %v3603 = vunpack.c.l.b16 %v3515
          %v3604 = vunpack.c.h.b16 %v3515
          %v3605 = vunpack.c.l.b16 %v3516
          %v3606 = vunpack.c.h.b16 %v3516
          %v3607 = vunpack.c.l.b16 %v3517
          %v3608 = vunpack.c.h.b16 %v3517
          %v3609 = vunpack.c.l.b16 %v3518
          %v3610 = vunpack.c.h.b16 %v3518
          %v3611 = vunpack.c.l.b16 %v3519
          %v3612 = vunpack.c.h.b16 %v3519
          %v3613 = vunpack.c.l.b16 %v3520
          %v3614 = vunpack.c.h.b16 %v3520
          %v3615 = vunpack.c.l.b16 %v3521
          %v3616 = vunpack.c.h.b16 %v3521
          %v3617 = vunpack.c.l.b16 %v3522
          %v3618 = vunpack.c.h.b16 %v3522
          %v3619 = vpack.c.b16 %v3555, %v3555
          %v3620 = vpack.c.b16 %v3556, %v3556
          %v3621 = vpack.c.b16 %v3557, %v3557
          %v3622 = vpack.c.b16 %v3558, %v3558
          %v3623 = vpack.c.b16 %v3559, %v3559
          %v3624 = vpack.c.b16 %v3560, %v3560
          %v3625 = vpack.c.b16 %v3561, %v3561
          %v3626 = vpack.c.b16 %v3562, %v3562
          %v3627 = vpack.c.b16 %v3563, %v3563
          %v3628 = vpack.c.b16 %v3564, %v3564
          %v3629 = vpack.c.b16 %v3565, %v3565
          %v3630 = vpack.c.b16 %v3566, %v3566
          %v3631 = vpack.c.b16 %v3567, %v3567
          %v3632 = vpack.c.b16 %v3568, %v3568
          %v3633 = vpack.c.b16 %v3569, %v3569
          %v3634 = vpack.c.b16 %v3570, %v3570
          %v3635 = vpack.c.b16 %v3571, %v3571
          %v3636 = vpack.c.b16 %v3572, %v3572
          %v3637 = vpack.c.b16 %v3573, %v3573
          %v3638 = vpack.c.b16 %v3574, %v3574
          %v3639 = vpack.c.b16 %v3575, %v3575
          %v3640 = vpack.c.b16 %v3576, %v3576
          %v3641 = vpack.c.b16 %v3577, %v3577
          %v3642 = vpack.c.b16 %v3578, %v3578
          %v3643 = vpack.c.b16 %v3579, %v3579
          %v3644 = vpack.c.b16 %v3580, %v3580
          %v3645 = vpack.c.b16 %v3581, %v3581
          %v3646 = vpack.c.b16 %v3582, %v3582
          %v3647 = vpack.c.b16 %v3583, %v3583
          %v3648 = vpack.c.b16 %v3584, %v3584
          %v3649 = vpack.c.b16 %v3585, %v3585
          %v3650 = vpack.c.b16 %v3586, %v3586
          %v3651 = vpack.c.b16 %v3587, %v3587
          %v3652 = vpack.c.b16 %v3588, %v3588
          %v3653 = vpack.c.b16 %v3589, %v3589
          %v3654 = vpack.c.b16 %v3590, %v3590
          %v3655 = vpack.c.b16 %v3591, %v3591
          %v3656 = vpack.c.b16 %v3592, %v3592
          %v3657 = vpack.c.b16 %v3593, %v3593
          %v3658 = vpack.c.b16 %v3594, %v3594
          %v3659 = vpack.c.b16 %v3595, %v3595
          %v3660 = vpack.c.b16 %v3596, %v3596
          %v3661 = vpack.c.b16 %v3597, %v3597
          %v3662 = vpack.c.b16 %v3598, %v3598
          %v3663 = vpack.c.b16 %v3599, %v3599
          %v3664 = vpack.c.b16 %v3600, %v3600
          %v3665 = vpack.c.b16 %v3601, %v3601
          %v3666 = vpack.c.b16 %v3602, %v3602
          %v3667 = vpack.c.b16 %v3603, %v3603
          %v3668 = vpack.c.b16 %v3604, %v3604
          %v3669 = vpack.c.b16 %v3605, %v3605
          %v3670 = vpack.c.b16 %v3606, %v3606
          %v3671 = vpack.c.b16 %v3607, %v3607
          %v3672 = vpack.c.b16 %v3608, %v3608
          %v3673 = vpack.c.b16 %v3609, %v3609
          %v3674 = vpack.c.b16 %v3610, %v3610
          %v3675 = vpack.c.b16 %v3611, %v3611
          %v3676 = vpack.c.b16 %v3612, %v3612
          %v3677 = vpack.c.b16 %v3613, %v3613
          %v3678 = vpack.c.b16 %v3614, %v3614
          %v3679 = vpack.c.b16 %v3615, %v3615
          %v3680 = vpack.c.b16 %v3616, %v3616
          %v3681 = vpack.c.b16 %v3617, %v3617
          %v3682 = vpack.c.b16 %v3618, %v3618
          %3747 = vst [vmem:[%s490] sm:$0xf] %v3619
          %3748 = vst [vmem:[%s490 + $0x4] sm:$0xf] %v3620
          %3749 = vst [vmem:[%s490 + $0x8] sm:$0xf] %v3621
          %3750 = vst [vmem:[%s490 + $0xc] sm:$0xf] %v3622
          %3751 = vst [vmem:[%s490 + $0x10] sm:$0xf] %v3623
          %3752 = vst [vmem:[%s490 + $0x14] sm:$0xf] %v3624
          %3753 = vst [vmem:[%s490 + $0x18] sm:$0xf] %v3625
          %3754 = vst [vmem:[%s490 + $0x1c] sm:$0xf] %v3626
          %3755 = vst [vmem:[%s490 + $0x20] sm:$0xf] %v3627
          %3756 = vst [vmem:[%s490 + $0x24] sm:$0xf] %v3628
          %3757 = vst [vmem:[%s490 + $0x28] sm:$0xf] %v3629
          %3758 = vst [vmem:[%s490 + $0x2c] sm:$0xf] %v3630
          %3759 = vst [vmem:[%s490 + $0x30] sm:$0xf] %v3631
          %3760 = vst [vmem:[%s490 + $0x34] sm:$0xf] %v3632
          %3761 = vst [vmem:[%s490 + $0x38] sm:$0xf] %v3633
          %3762 = vst [vmem:[%s490 + $0x3c] sm:$0xf] %v3634
          %3763 = vst [vmem:[%s490 + $0x40] sm:$0xf] %v3635
          %3764 = vst [vmem:[%s490 + $0x44] sm:$0xf] %v3636
          %3765 = vst [vmem:[%s490 + $0x48] sm:$0xf] %v3637
          %3766 = vst [vmem:[%s490 + $0x4c] sm:$0xf] %v3638
          %3767 = vst [vmem:[%s490 + $0x50] sm:$0xf] %v3639
          %3768 = vst [vmem:[%s490 + $0x54] sm:$0xf] %v3640
          %3769 = vst [vmem:[%s490 + $0x58] sm:$0xf] %v3641
          %3770 = vst [vmem:[%s490 + $0x5c] sm:$0xf] %v3642
          %3771 = vst [vmem:[%s490 + $0x60] sm:$0xf] %v3643
          %3772 = vst [vmem:[%s490 + $0x64] sm:$0xf] %v3644
          %3773 = vst [vmem:[%s490 + $0x68] sm:$0xf] %v3645
          %3774 = vst [vmem:[%s490 + $0x6c] sm:$0xf] %v3646
          %3775 = vst [vmem:[%s490 + $0x70] sm:$0xf] %v3647
          %3776 = vst [vmem:[%s490 + $0x74] sm:$0xf] %v3648
          %3777 = vst [vmem:[%s490 + $0x78] sm:$0xf] %v3649
          %3778 = vst [vmem:[%s490 + $0x7c] sm:$0xf] %v3650
          %3779 = vst [vmem:[%s490 + $0x80] sm:$0xf] %v3651
          %3780 = vst [vmem:[%s490 + $0x84] sm:$0xf] %v3652
          %3781 = vst [vmem:[%s490 + $0x88] sm:$0xf] %v3653
          %3782 = vst [vmem:[%s490 + $0x8c] sm:$0xf] %v3654
          %3783 = vst [vmem:[%s490 + $0x90] sm:$0xf] %v3655
          %3784 = vst [vmem:[%s490 + $0x94] sm:$0xf] %v3656
          %3785 = vst [vmem:[%s490 + $0x98] sm:$0xf] %v3657
          %3786 = vst [vmem:[%s490 + $0x9c] sm:$0xf] %v3658
          %3787 = vst [vmem:[%s490 + $0xa0] sm:$0xf] %v3659
          %3788 = vst [vmem:[%s490 + $0xa4] sm:$0xf] %v3660
          %3789 = vst [vmem:[%s490 + $0xa8] sm:$0xf] %v3661
          %3790 = vst [vmem:[%s490 + $0xac] sm:$0xf] %v3662
          %3791 = vst [vmem:[%s490 + $0xb0] sm:$0xf] %v3663
          %3792 = vst [vmem:[%s490 + $0xb4] sm:$0xf] %v3664
          %3793 = vst [vmem:[%s490 + $0xb8] sm:$0xf] %v3665
          %3794 = vst [vmem:[%s490 + $0xbc] sm:$0xf] %v3666
          %3795 = vst [vmem:[%s490 + $0xc0] sm:$0xf] %v3667
          %3796 = vst [vmem:[%s490 + $0xc4] sm:$0xf] %v3668
          %3797 = vst [vmem:[%s490 + $0xc8] sm:$0xf] %v3669
          %3798 = vst [vmem:[%s490 + $0xcc] sm:$0xf] %v3670
          %3799 = vst [vmem:[%s490 + $0xd0] sm:$0xf] %v3671
          %3800 = vst [vmem:[%s490 + $0xd4] sm:$0xf] %v3672
          %3801 = vst [vmem:[%s490 + $0xd8] sm:$0xf] %v3673
          %3802 = vst [vmem:[%s490 + $0xdc] sm:$0xf] %v3674
          %3803 = vst [vmem:[%s490 + $0xe0] sm:$0xf] %v3675
          %3804 = vst [vmem:[%s490 + $0xe4] sm:$0xf] %v3676
          %3805 = vst [vmem:[%s490 + $0xe8] sm:$0xf] %v3677
          %3806 = vst [vmem:[%s490 + $0xec] sm:$0xf] %v3678
          %3807 = vst [vmem:[%s490 + $0xf0] sm:$0xf] %v3679
          %3808 = vst [vmem:[%s490 + $0xf4] sm:$0xf] %v3680
          %3809 = vst [vmem:[%s490 + $0xf8] sm:$0xf] %v3681
          %3810 = vst [vmem:[%s490 + $0xfc] sm:$0xf] %v3682
        $region67: #{graphsage_pallas.2} parent=54 // pred_fallthru
          _
        %s3811 = smul.u32 64, %s19
        %p3812 = scmp.lt.s32.totalorder %s3811, 191
        %s3813 = scalar_select %p3812, %s3811, 191
        %s3814 = smul.addr %s3813, 4
        %s3815 = scalar_lea.vmem %s4, %s3814
        // Predicated region
        $region68: #{graphsage_pallas.2} parent=54 // pred_check
          %p3816 = pneg %p136
        $region69: #{graphsage_pallas.2} parent=54 // pred_check_branch
          %3818 = sbr.rel (%p3816) target = $region71
        $region70: #{graphsage_pallas.2} parent=54 // pred_region
          %s3819 = smul.u32 64, %s19
        $region71: #{graphsage_pallas.2} parent=54 // pred_fallthru
          _
      $region55: #{graphsage_pallas.2} parent=5 // pred_fallthru
        _
      %p3820 = scmp.le.s32.totalorder 2, %s10
      // Predicated region
      $region72: #{graphsage_pallas.2} parent=5 // pred_check
        %p3821 = pneg %p3820
      $region73: #{graphsage_pallas.2} parent=5 // pred_check_branch
        %3823 = sbr.rel (%p3821) target = $region75
      $region74: #{graphsage_pallas.2} parent=5 // pred_region
        %s3824 = ssub.s32 %s10, 2
        // Predicated region
        $region76: #{graphsage_pallas.2} parent=74 // pred_check
          %p3825 = pneg %p142
        $region77: #{graphsage_pallas.2} parent=74 // pred_check_branch
          %3827 = sbr.rel (%p3825) target = $region79
        $region78: #{graphsage_pallas.2} parent=74 // pred_region
          %s3828 = smul.u32 64, %s21
          %p3829 = scmp.lt.s32.totalorder %s3828, 191
          %s3830 = scalar_select %p3829, %s3828, 191
          %s3831 = smul.addr %s3830, 4
          %s3832 = scalar_lea.vmem %s4, %s3831
        $region79: #{graphsage_pallas.2} parent=74 // pred_fallthru
          _
      $region75: #{graphsage_pallas.2} parent=5 // pred_fallthru
        _
    $region6: #{graphsage_pallas.2} parent=1 // loop_footer
      %s14 = sadd.s32 1, %s10
    $region7: #{graphsage_pallas.2} parent=1 // loop_footer_branch
      %9 = sbr.rel target = $region3
    $region8: #{graphsage_pallas.2} parent=1 // loop_exit
      _

</llo_original>
